<compile_context>
chip_gen: v5e
topology: v5e:2x2
jax: 0.10.0
libtpu: 0.0.40
codegen_flags: <defaults>
</compile_context>

<pallas_src>
import functools

import jax
import jax.numpy as jnp
from jax import lax
from jax.experimental import pallas as pl
from jax.experimental.pallas import tpu as pltpu


def _sigmoid_tanh(x):
    # sigmoid(x) == 0.5 * (tanh(x/2) + 1); single EUP tanh instead of exp+recip.
    return 0.5 * jnp.tanh(0.5 * x) + 0.5


def _stacked_lstm_kernel(x_ref, wx0_ref, whh_ref, *rest,
                         num_layers, t_block, hidden_pad, seq_len, guard_tail):
    """One grid step = t_block time steps through all layers.

    x_ref  : (t_block, Bp, Dp)   bf16 input slab for this time block
    wx0_ref: (Dp, 4Hp)           bf16 layer-0 input weight (transposed, padded)
    whh_ref: (L, Hp, 4Hp)        bf16 recurrent weights, all layers
    wih_ref: (L-1, Hp, 4Hp)      bf16 input weights, layers 1..L-1 (if L > 1)
    out_ref: (t_block, Bp, Hp)   f32 last-layer h per step
    h_ref, c_ref: (L, Bp, Hp)    f32 resident recurrent state (== final states)
    xg_ref : (t_block, Bp, 4Hp)  f32 scratch: hoisted layer-0 x-projection
    """
    if num_layers > 1:
        wih_ref, out_ref, h_ref, c_ref, xg_ref = rest
    else:
        out_ref, h_ref, c_ref, xg_ref = rest
        wih_ref = None

    blk = pl.program_id(0)
    Hp = hidden_pad
    bp = x_ref.shape[1]

    @pl.when(blk == 0)
    def _():
        h_ref[...] = jnp.zeros_like(h_ref)
        c_ref[...] = jnp.zeros_like(c_ref)

    # Hoisted layer-0 input projection: one wide matmul (M = t_block*Bp rows)
    # per grid step, off the serial recurrence. Padded rows/lanes are zero so
    # the padded part of xg is provably zero.
    x_blk = x_ref[...].reshape(t_block * bp, x_ref.shape[2])
    xg_ref[...] = jnp.dot(
        x_blk, wx0_ref[...], preferred_element_type=jnp.float32
    ).reshape(t_block, bp, 4 * Hp)

    w_dtype = whh_ref.dtype

    def step(t_local, carry):
        def body():
            layer_in = None
            h_new = None
            for layer in range(num_layers):
                h_prev = h_ref[layer]                               # (Bp, Hp) f32
                c_prev = c_ref[layer]
                gates = jnp.dot(h_prev.astype(w_dtype), whh_ref[layer],
                                preferred_element_type=jnp.float32)  # (Bp, 4Hp)
                if layer == 0:
                    gates = gates + xg_ref[t_local]
                else:
                    gates = gates + jnp.dot(layer_in, wih_ref[layer - 1],
                                            preferred_element_type=jnp.float32)
                ingate     = _sigmoid_tanh(gates[:, 0 * Hp:1 * Hp])
                forgetgate = _sigmoid_tanh(gates[:, 1 * Hp:2 * Hp])
                cellgate   = jnp.tanh(gates[:, 2 * Hp:3 * Hp])
                outgate    = _sigmoid_tanh(gates[:, 3 * Hp:4 * Hp])
                c_new = forgetgate * c_prev + ingate * cellgate
                h_new = outgate * jnp.tanh(c_new)
                c_ref[layer] = c_new
                h_ref[layer] = h_new
                layer_in = h_new.astype(w_dtype)
            out_ref[t_local] = h_new.astype(out_ref.dtype)

        if guard_tail:
            # Only the last grid block can contain padded time steps.
            pl.when(blk * t_block + t_local < seq_len)(body)
        else:
            body()
        return carry

    # Full unroll for small blocks (exposes the (layer l, t)/(layer l+1, t-1)
    # ILP the recurrence has); partial unroll for large t_block to bound vreg
    # pressure / code size.
    lax.fori_loop(0, t_block, step, 0, unroll=True if t_block <= 8 else 4)


def _round_up(v, m):
    return (v + m - 1) // m * m


def _pad_gate_weight_T(w, k_in, k_pad, H, Hp, dtype):
    """w: (4H, k_in) PyTorch-layout gate weight.

    Returns (k_pad, 4*Hp) transposed weight where gate g occupies columns
    [g*Hp, g*Hp+H) (lane-aligned) and all padded rows/columns are zero.
    """
    wT = jnp.asarray(w, jnp.float32).T                 # (k_in, 4H)
    out = jnp.zeros((k_pad, 4 * Hp), jnp.float32)
    for g in range(4):
        out = out.at[:k_in, g * Hp:g * Hp + H].set(wT[:, g * H:(g + 1) * H])
    return out.astype(dtype)


def stacked_rnn_forward(x, w_ih_list, w_hh_list, *, t_block=8,
                        compute_dtype=jnp.bfloat16):
    """Pallas implementation of stackedRNN.forward (LSTM cells, bias=False).

    x: (seq_len, batch, input_size) float32, time-major.
    w_ih_list[l]: (4H, input_size) for l==0 else (4H, H)   (PyTorch layout)
    w_hh_list[l]: (4H, H)
    Returns (output, (h_final, c_final)).
    """
    x = jnp.asarray(x)
    S, B, D = x.shape
    L = len(w_ih_list)
    H = w_hh_list[0].shape[1]

    # MXU / lane-friendly padded sizes.
    Bp = _round_up(B, 8)
    Hp = _round_up(H, 128)
    Dp = _round_up(D, 128)

    # Time block: pad S up to a multiple (tail steps skipped in-kernel).
    t_block = max(1, min(t_block, S))
    S_pad = _round_up(S, t_block)
    guard_tail = S_pad != S

    # Transposed, gate-padded bf16 weights.
    wx0 = _pad_gate_weight_T(w_ih_list[0], D, Dp, H, Hp, compute_dtype)
    whh = jnp.stack([
        _pad_gate_weight_T(w_hh_list[l], H, Hp, H, Hp, compute_dtype)
        for l in range(L)])                                           # (L, Hp, 4Hp)
    weight_args = [wx0, whh]
    in_specs = [
        pl.BlockSpec((t_block, Bp, Dp), lambda b: (b, 0, 0)),         # x block
        pl.BlockSpec((Dp, 4 * Hp), lambda b: (0, 0)),                 # layer-0 x weight
        pl.BlockSpec((L, Hp, 4 * Hp), lambda b: (0, 0, 0)),           # recurrent weights
    ]
    if L > 1:
        wih = jnp.stack([
            _pad_gate_weight_T(w_ih_list[l], H, Hp, H, Hp, compute_dtype)
            for l in range(1, L)])                                    # (L-1, Hp, 4Hp)
        weight_args.append(wih)
        in_specs.append(pl.BlockSpec((L - 1, Hp, 4 * Hp), lambda b: (0, 0, 0)))

    # Zero-pad the input only when needed; padded rows/lanes stay inert.
    if (S, B, D) == (S_pad, Bp, Dp):
        x_p = x.astype(compute_dtype)
    else:
        x_p = jnp.zeros((S_pad, Bp, Dp), compute_dtype).at[:S, :B, :D].set(
            x.astype(compute_dtype))

    # Explicit VMEM budget: weights + double-buffered x/out blocks + resident
    # state + x-projection scratch, with 2x headroom, clamped to [16, 64] MiB
    # (64 MiB is safe on every chip incl. v7x).
    itemsize = jnp.dtype(compute_dtype).itemsize
    w_bytes = sum(int(a.size) for a in weight_args) * itemsize
    est = (2 * w_bytes
           + 2 * t_block * Bp * Dp * itemsize
           + 2 * t_block * Bp * Hp * 4
           + 2 * 2 * L * Bp * Hp * 4
           + t_block * Bp * 4 * Hp * 4)
    vmem_limit = int(min(64 * 1024 * 1024, max(16 * 1024 * 1024, 2 * est)))

    kernel = functools.partial(
        _stacked_lstm_kernel, num_layers=L, t_block=t_block,
        hidden_pad=Hp, seq_len=S, guard_tail=guard_tail)

    out_p, h_fin_p, c_fin_p = pl.pallas_call(
        kernel,
        grid=(S_pad // t_block,),
        in_specs=in_specs,
        out_specs=[
            pl.BlockSpec((t_block, Bp, Hp), lambda b: (b, 0, 0)),     # per-step output
            pl.BlockSpec((L, Bp, Hp), lambda b: (0, 0, 0)),           # resident h state
            pl.BlockSpec((L, Bp, Hp), lambda b: (0, 0, 0)),           # resident c state
        ],
        out_shape=(
            jax.ShapeDtypeStruct((S_pad, Bp, Hp), jnp.float32),
            jax.ShapeDtypeStruct((L, Bp, Hp), jnp.float32),
            jax.ShapeDtypeStruct((L, Bp, Hp), jnp.float32),
        ),
        scratch_shapes=[pltpu.VMEM((t_block, Bp, 4 * Hp), jnp.float32)],
        compiler_params=pltpu.CompilerParams(
            dimension_semantics=("arbitrary",),       # time is sequential
            vmem_limit_bytes=vmem_limit,
        ),
    )(x_p, *weight_args)

    out = out_p[:S, :B, :H]
    h_fin = h_fin_p[:, :B, :H]
    c_fin = c_fin_p[:, :B, :H]
    return out, (h_fin, c_fin)


def stacked_rnn_reference(x, w_ih_list, w_hh_list):
    """Pure-JAX reference reproducing stackedRNN.forward semantics (f32)."""
    S, B, _ = x.shape
    L = len(w_ih_list)
    H = w_hh_list[0].shape[1]
    h = [jnp.zeros((B, H), jnp.float32) for _ in range(L)]
    c = [jnp.zeros((B, H), jnp.float32) for _ in range(L)]
    outs = []
    for t in range(S):
        xin = x[t]
        for l in range(L):
            gates = xin @ w_ih_list[l].T + h[l] @ w_hh_list[l].T
            i, f, g, o = jnp.split(gates, 4, axis=1)
            c[l] = jax.nn.sigmoid(f) * c[l] + jax.nn.sigmoid(i) * jnp.tanh(g)
            h[l] = jax.nn.sigmoid(o) * jnp.tanh(c[l])
            xin = h[l]
        outs.append(xin)
    return jnp.stack(outs), (jnp.stack(h), jnp.stack(c))


if __name__ == "__main__":
    seq_len, batch, input_size, hidden, num_layers = 8, 2, 32, 32, 2
    gate_size = 4 * hidden
    stdev = 1.0 / (hidden ** 0.5)

    key = jax.random.PRNGKey(0)
    keys = jax.random.split(key, 1 + 2 * num_layers)
    x = jax.random.normal(keys[0], (seq_len, batch, input_size), jnp.float32)

    # Deterministic parameter init mirroring RNNCell.reset_parameters:
    # uniform(-1/sqrt(H), 1/sqrt(H)); layer 0 w_ih uses input_size, later
    # layers use output_size (=hidden) as input dim (RNNCell.new_like).
    w_ih_list, w_hh_list = [], []
    for l in range(num_layers):
        din = input_size if l == 0 else hidden
        w_ih_list.append(jax.random.uniform(
            keys[1 + 2 * l], (gate_size, din), jnp.float32, -stdev, stdev))
        w_hh_list.append(jax.random.uniform(
            keys[2 + 2 * l], (gate_size, hidden), jnp.float32, -stdev, stdev))

    out, (h_fin, c_fin) = stacked_rnn_forward(x, w_ih_list, w_hh_list)
    jax.block_until_ready((out, h_fin, c_fin))

    ref_out, (ref_h, ref_c) = stacked_rnn_reference(x, w_ih_list, w_hh_list)
    assert out.shape == (seq_len, batch, hidden)
    assert h_fin.shape == (num_layers, batch, hidden)
    assert c_fin.shape == (num_layers, batch, hidden)
    # bf16 weights / matmul inputs inside the kernel -> relaxed tolerances.
    assert jnp.allclose(out, ref_out, atol=2e-2, rtol=2e-2), \
        float(jnp.max(jnp.abs(out - ref_out)))
    assert jnp.allclose(h_fin, ref_h, atol=2e-2, rtol=2e-2)
    assert jnp.allclose(c_fin, ref_c, atol=2e-2, rtol=2e-2)

    print("KERNEL_OK")
</pallas_src>

<mosaic_0001>
module attributes {stable_mosaic.version = 11 : i64} {
  func.func @_stacked_lstm_kernel(%arg0: i32, %arg1: memref<8x8x128xbf16, #tpu.memory_space<vmem>>, %arg2: memref<128x512xbf16, #tpu.memory_space<vmem>>, %arg3: memref<2x128x512xbf16, #tpu.memory_space<vmem>>, %arg4: memref<1x128x512xbf16, #tpu.memory_space<vmem>>, %arg5: memref<8x8x128xf32, #tpu.memory_space<vmem>>, %arg6: memref<2x8x128xf32, #tpu.memory_space<vmem>>, %arg7: memref<2x8x128xf32, #tpu.memory_space<vmem>>, %arg8: memref<8x8x512xf32, #tpu.memory_space<vmem>>) attributes {dimension_semantics = [#tpu.dimension_semantics<arbitrary>], iteration_bounds = array<i64: 1>, scalar_prefetch = 0 : i64, scratch_operands = 1 : i64, tpu.core_type = #tpu.core_type<tc>, window_params = [{transform_indices = @transform_0, window_bounds = array<i64: 8, 8, 128>}, {pipeline_mode = #tpu.pipeline_mode<synchronous>, transform_indices = @transform_1, window_bounds = array<i64: 128, 512>}, {pipeline_mode = #tpu.pipeline_mode<synchronous>, transform_indices = @transform_2, window_bounds = array<i64: 2, 128, 512>}, {pipeline_mode = #tpu.pipeline_mode<synchronous>, transform_indices = @transform_3, window_bounds = array<i64: 1, 128, 512>}, {transform_indices = @transform_4, window_bounds = array<i64: 8, 8, 128>}, {pipeline_mode = #tpu.pipeline_mode<synchronous>, transform_indices = @transform_5, window_bounds = array<i64: 2, 8, 128>}, {pipeline_mode = #tpu.pipeline_mode<synchronous>, transform_indices = @transform_6, window_bounds = array<i64: 2, 8, 128>}]} {
    %c0_i32 = arith.constant 0 : i32
    %0 = arith.cmpi eq, %arg0, %c0_i32 : i32
    %1 = arith.extui %0 : i1 to i32
    %c0_i32_0 = arith.constant 0 : i32
    %2 = arith.cmpi ne, %1, %c0_i32_0 : i32
    scf.if %2 {
      %cst_472 = arith.constant 0.000000e+00 : f32
      %833 = vector.broadcast %cst_472 : f32 to vector<2x8x128xf32>
      %c0_473 = arith.constant 0 : index
      %c0_474 = arith.constant 0 : index
      %c0_475 = arith.constant 0 : index
      %834 = vector.load %arg6[%c0_473, %c0_474, %c0_475] : memref<2x8x128xf32, #tpu.memory_space<vmem>>, vector<2x8x128xf32>
      tpu.vector_store %arg6[%c0_473, %c0_474, %c0_475], %833 {strides = array<i32>} : memref<2x8x128xf32, #tpu.memory_space<vmem>>, vector<2x8x128xf32>,
      %cst_476 = arith.constant 0.000000e+00 : f32
      %835 = vector.broadcast %cst_476 : f32 to vector<2x8x128xf32>
      %c0_477 = arith.constant 0 : index
      %c0_478 = arith.constant 0 : index
      %c0_479 = arith.constant 0 : index
      %836 = vector.load %arg7[%c0_477, %c0_478, %c0_479] : memref<2x8x128xf32, #tpu.memory_space<vmem>>, vector<2x8x128xf32>
      tpu.vector_store %arg7[%c0_477, %c0_478, %c0_479], %835 {strides = array<i32>} : memref<2x8x128xf32, #tpu.memory_space<vmem>>, vector<2x8x128xf32>,
    } else {
    }
    %c0 = arith.constant 0 : index
    %c0_1 = arith.constant 0 : index
    %c0_2 = arith.constant 0 : index
    %3 = vector.load %arg1[%c0, %c0_1, %c0_2] : memref<8x8x128xbf16, #tpu.memory_space<vmem>>, vector<8x8x128xbf16>
    %4 = vector.shape_cast %3 : vector<8x8x128xbf16> to vector<64x128xbf16>
    %c0_3 = arith.constant 0 : index
    %c0_4 = arith.constant 0 : index
    %5 = vector.load %arg2[%c0_3, %c0_4] : memref<128x512xbf16, #tpu.memory_space<vmem>>, vector<128x512xbf16>
    %cst = arith.constant dense<0.000000e+00> : vector<64x512xf32>
    %6 = tpu.matmul %4, %5, %cst {dimension_numbers = #tpu.dot_dimension_numbers<[1], [0], [0], [1], [0, 0, 1, 1], [], []>} : vector<64x128xbf16>, vector<128x512xbf16>, vector<64x512xf32> -> vector<64x512xf32>
    %7 = vector.shape_cast %6 : vector<64x512xf32> to vector<8x8x512xf32>
    %c0_5 = arith.constant 0 : index
    %c0_6 = arith.constant 0 : index
    %c0_7 = arith.constant 0 : index
    %8 = vector.load %arg8[%c0_5, %c0_6, %c0_7] : memref<8x8x512xf32, #tpu.memory_space<vmem>>, vector<8x8x512xf32>
    tpu.vector_store %arg8[%c0_5, %c0_6, %c0_7], %7 {strides = array<i32>} : memref<8x8x512xf32, #tpu.memory_space<vmem>>, vector<8x8x512xf32>,
    %c0_i32_8 = arith.constant 0 : i32
    %c0_9 = arith.constant 0 : index
    %c0_10 = arith.constant 0 : index
    %c0_11 = arith.constant 0 : index
    %9 = vector.load %arg6[%c0_9, %c0_10, %c0_11] : memref<2x8x128xf32, #tpu.memory_space<vmem>>, vector<1x8x128xf32>
    %10 = vector.shape_cast %9 : vector<1x8x128xf32> to vector<8x128xf32>
    %c0_12 = arith.constant 0 : index
    %c0_13 = arith.constant 0 : index
    %c0_14 = arith.constant 0 : index
    %11 = vector.load %arg7[%c0_12, %c0_13, %c0_14] : memref<2x8x128xf32, #tpu.memory_space<vmem>>, vector<1x8x128xf32>
    %12 = vector.shape_cast %11 : vector<1x8x128xf32> to vector<8x128xf32>
    %13 = arith.truncf %10 : vector<8x128xf32> to vector<8x128xbf16>
    %c0_15 = arith.constant 0 : index
    %c0_16 = arith.constant 0 : index
    %c0_17 = arith.constant 0 : index
    %14 = vector.load %arg3[%c0_15, %c0_16, %c0_17] : memref<2x128x512xbf16, #tpu.memory_space<vmem>>, vector<1x128x512xbf16>
    %15 = vector.shape_cast %14 : vector<1x128x512xbf16> to vector<128x512xbf16>
    %cst_18 = arith.constant dense<0.000000e+00> : vector<8x512xf32>
    %16 = tpu.matmul %13, %15, %cst_18 {dimension_numbers = #tpu.dot_dimension_numbers<[1], [0], [0], [1], [0, 0, 1, 1], [], []>} : vector<8x128xbf16>, vector<128x512xbf16>, vector<8x512xf32> -> vector<8x512xf32>
    %17 = arith.index_cast %c0_i32_8 : i32 to index
    %c0_19 = arith.constant 0 : index
    %c0_20 = arith.constant 0 : index
    %18 = vector.load %arg8[%17, %c0_19, %c0_20] : memref<8x8x512xf32, #tpu.memory_space<vmem>>, vector<1x8x512xf32>
    %19 = vector.shape_cast %18 : vector<1x8x512xf32> to vector<8x512xf32>
    %20 = arith.addf %16, %19 : vector<8x512xf32>
    %21 = vector.extract_strided_slice %20 {offsets = [0, 0], sizes = [8, 128], strides = [1, 1]} : vector<8x512xf32> to vector<8x128xf32>
    %cst_21 = arith.constant 5.000000e-01 : f32
    %22 = vector.broadcast %cst_21 : f32 to vector<8x128xf32>
    %23 = arith.mulf %22, %21 : vector<8x128xf32>
    %24 = math.tanh %23 : vector<8x128xf32>
    %cst_22 = arith.constant 5.000000e-01 : f32
    %25 = vector.broadcast %cst_22 : f32 to vector<8x128xf32>
    %26 = arith.mulf %25, %24 : vector<8x128xf32>
    %cst_23 = arith.constant 5.000000e-01 : f32
    %27 = vector.broadcast %cst_23 : f32 to vector<8x128xf32>
    %28 = arith.addf %26, %27 : vector<8x128xf32>
    %29 = vector.extract_strided_slice %20 {offsets = [0, 128], sizes = [8, 128], strides = [1, 1]} : vector<8x512xf32> to vector<8x128xf32>
    %cst_24 = arith.constant 5.000000e-01 : f32
    %30 = vector.broadcast %cst_24 : f32 to vector<8x128xf32>
    %31 = arith.mulf %30, %29 : vector<8x128xf32>
    %32 = math.tanh %31 : vector<8x128xf32>
    %cst_25 = arith.constant 5.000000e-01 : f32
    %33 = vector.broadcast %cst_25 : f32 to vector<8x128xf32>
    %34 = arith.mulf %33, %32 : vector<8x128xf32>
    %cst_26 = arith.constant 5.000000e-01 : f32
    %35 = vector.broadcast %cst_26 : f32 to vector<8x128xf32>
    %36 = arith.addf %34, %35 : vector<8x128xf32>
    %37 = vector.extract_strided_slice %20 {offsets = [0, 256], sizes = [8, 128], strides = [1, 1]} : vector<8x512xf32> to vector<8x128xf32>
    %38 = math.tanh %37 : vector<8x128xf32>
    %39 = vector.extract_strided_slice %20 {offsets = [0, 384], sizes = [8, 128], strides = [1, 1]} : vector<8x512xf32> to vector<8x128xf32>
    %cst_27 = arith.constant 5.000000e-01 : f32
    %40 = vector.broadcast %cst_27 : f32 to vector<8x128xf32>
    %41 = arith.mulf %40, %39 : vector<8x128xf32>
    %42 = math.tanh %41 : vector<8x128xf32>
    %cst_28 = arith.constant 5.000000e-01 : f32
    %43 = vector.broadcast %cst_28 : f32 to vector<8x128xf32>
    %44 = arith.mulf %43, %42 : vector<8x128xf32>
    %cst_29 = arith.constant 5.000000e-01 : f32
    %45 = vector.broadcast %cst_29 : f32 to vector<8x128xf32>
    %46 = arith.addf %44, %45 : vector<8x128xf32>
    %47 = arith.mulf %36, %12 : vector<8x128xf32>
    %48 = arith.mulf %28, %38 : vector<8x128xf32>
    %49 = arith.addf %47, %48 : vector<8x128xf32>
    %50 = math.tanh %49 : vector<8x128xf32>
    %51 = arith.mulf %46, %50 : vector<8x128xf32>
    %c0_30 = arith.constant 0 : index
    %c0_31 = arith.constant 0 : index
    %c0_32 = arith.constant 0 : index
    %52 = vector.load %arg7[%c0_30, %c0_31, %c0_32] : memref<2x8x128xf32, #tpu.memory_space<vmem>>, vector<1x8x128xf32>
    %53 = vector.shape_cast %52 : vector<1x8x128xf32> to vector<8x128xf32>
    %54 = vector.shape_cast %49 : vector<8x128xf32> to vector<1x8x128xf32>
    tpu.vector_store %arg7[%c0_30, %c0_31, %c0_32], %54 {strides = array<i32>} : memref<2x8x128xf32, #tpu.memory_space<vmem>>, vector<1x8x128xf32>,
    %c0_33 = arith.constant 0 : index
    %c0_34 = arith.constant 0 : index
    %c0_35 = arith.constant 0 : index
    %55 = vector.load %arg6[%c0_33, %c0_34, %c0_35] : memref<2x8x128xf32, #tpu.memory_space<vmem>>, vector<1x8x128xf32>
    %56 = vector.shape_cast %55 : vector<1x8x128xf32> to vector<8x128xf32>
    %57 = vector.shape_cast %51 : vector<8x128xf32> to vector<1x8x128xf32>
    tpu.vector_store %arg6[%c0_33, %c0_34, %c0_35], %57 {strides = array<i32>} : memref<2x8x128xf32, #tpu.memory_space<vmem>>, vector<1x8x128xf32>,
    %58 = arith.truncf %51 : vector<8x128xf32> to vector<8x128xbf16>
    %c1 = arith.constant 1 : index
    %c0_36 = arith.constant 0 : index
    %c0_37 = arith.constant 0 : index
    %59 = vector.load %arg6[%c1, %c0_36, %c0_37] : memref<2x8x128xf32, #tpu.memory_space<vmem>>, vector<1x8x128xf32>
    %60 = vector.shape_cast %59 : vector<1x8x128xf32> to vector<8x128xf32>
    %c1_38 = arith.constant 1 : index
    %c0_39 = arith.constant 0 : index
    %c0_40 = arith.constant 0 : index
    %61 = vector.load %arg7[%c1_38, %c0_39, %c0_40] : memref<2x8x128xf32, #tpu.memory_space<vmem>>, vector<1x8x128xf32>
    %62 = vector.shape_cast %61 : vector<1x8x128xf32> to vector<8x128xf32>
    %63 = arith.truncf %60 : vector<8x128xf32> to vector<8x128xbf16>
    %c1_41 = arith.constant 1 : index
    %c0_42 = arith.constant 0 : index
    %c0_43 = arith.constant 0 : index
    %64 = vector.load %arg3[%c1_41, %c0_42, %c0_43] : memref<2x128x512xbf16, #tpu.memory_space<vmem>>, vector<1x128x512xbf16>
    %65 = vector.shape_cast %64 : vector<1x128x512xbf16> to vector<128x512xbf16>
    %cst_44 = arith.constant dense<0.000000e+00> : vector<8x512xf32>
    %66 = tpu.matmul %63, %65, %cst_44 {dimension_numbers = #tpu.dot_dimension_numbers<[1], [0], [0], [1], [0, 0, 1, 1], [], []>} : vector<8x128xbf16>, vector<128x512xbf16>, vector<8x512xf32> -> vector<8x512xf32>
    %c0_45 = arith.constant 0 : index
    %c0_46 = arith.constant 0 : index
    %c0_47 = arith.constant 0 : index
    %67 = vector.load %arg4[%c0_45, %c0_46, %c0_47] : memref<1x128x512xbf16, #tpu.memory_space<vmem>>, vector<1x128x512xbf16>
    %68 = vector.shape_cast %67 : vector<1x128x512xbf16> to vector<128x512xbf16>
    %cst_48 = arith.constant dense<0.000000e+00> : vector<8x512xf32>
    %69 = tpu.matmul %58, %68, %cst_48 {dimension_numbers = #tpu.dot_dimension_numbers<[1], [0], [0], [1], [0, 0, 1, 1], [], []>} : vector<8x128xbf16>, vector<128x512xbf16>, vector<8x512xf32> -> vector<8x512xf32>
    %70 = arith.addf %66, %69 : vector<8x512xf32>
    %71 = vector.extract_strided_slice %70 {offsets = [0, 0], sizes = [8, 128], strides = [1, 1]} : vector<8x512xf32> to vector<8x128xf32>
    %cst_49 = arith.constant 5.000000e-01 : f32
    %72 = vector.broadcast %cst_49 : f32 to vector<8x128xf32>
    %73 = arith.mulf %72, %71 : vector<8x128xf32>
    %74 = math.tanh %73 : vector<8x128xf32>
    %cst_50 = arith.constant 5.000000e-01 : f32
    %75 = vector.broadcast %cst_50 : f32 to vector<8x128xf32>
    %76 = arith.mulf %75, %74 : vector<8x128xf32>
    %cst_51 = arith.constant 5.000000e-01 : f32
    %77 = vector.broadcast %cst_51 : f32 to vector<8x128xf32>
    %78 = arith.addf %76, %77 : vector<8x128xf32>
    %79 = vector.extract_strided_slice %70 {offsets = [0, 128], sizes = [8, 128], strides = [1, 1]} : vector<8x512xf32> to vector<8x128xf32>
    %cst_52 = arith.constant 5.000000e-01 : f32
    %80 = vector.broadcast %cst_52 : f32 to vector<8x128xf32>
    %81 = arith.mulf %80, %79 : vector<8x128xf32>
    %82 = math.tanh %81 : vector<8x128xf32>
    %cst_53 = arith.constant 5.000000e-01 : f32
    %83 = vector.broadcast %cst_53 : f32 to vector<8x128xf32>
    %84 = arith.mulf %83, %82 : vector<8x128xf32>
    %cst_54 = arith.constant 5.000000e-01 : f32
    %85 = vector.broadcast %cst_54 : f32 to vector<8x128xf32>
    %86 = arith.addf %84, %85 : vector<8x128xf32>
    %87 = vector.extract_strided_slice %70 {offsets = [0, 256], sizes = [8, 128], strides = [1, 1]} : vector<8x512xf32> to vector<8x128xf32>
    %88 = math.tanh %87 : vector<8x128xf32>
    %89 = vector.extract_strided_slice %70 {offsets = [0, 384], sizes = [8, 128], strides = [1, 1]} : vector<8x512xf32> to vector<8x128xf32>
    %cst_55 = arith.constant 5.000000e-01 : f32
    %90 = vector.broadcast %cst_55 : f32 to vector<8x128xf32>
    %91 = arith.mulf %90, %89 : vector<8x128xf32>
    %92 = math.tanh %91 : vector<8x128xf32>
    %cst_56 = arith.constant 5.000000e-01 : f32
    %93 = vector.broadcast %cst_56 : f32 to vector<8x128xf32>
    %94 = arith.mulf %93, %92 : vector<8x128xf32>
    %cst_57 = arith.constant 5.000000e-01 : f32
    %95 = vector.broadcast %cst_57 : f32 to vector<8x128xf32>
    %96 = arith.addf %94, %95 : vector<8x128xf32>
    %97 = arith.mulf %86, %62 : vector<8x128xf32>
    %98 = arith.mulf %78, %88 : vector<8x128xf32>
    %99 = arith.addf %97, %98 : vector<8x128xf32>
    %100 = math.tanh %99 : vector<8x128xf32>
    %101 = arith.mulf %96, %100 : vector<8x128xf32>
    %c1_58 = arith.constant 1 : index
    %c0_59 = arith.constant 0 : index
    %c0_60 = arith.constant 0 : index
    %102 = vector.load %arg7[%c1_58, %c0_59, %c0_60] : memref<2x8x128xf32, #tpu.memory_space<vmem>>, vector<1x8x128xf32>
    %103 = vector.shape_cast %102 : vector<1x8x128xf32> to vector<8x128xf32>
    %104 = vector.shape_cast %99 : vector<8x128xf32> to vector<1x8x128xf32>
    tpu.vector_store %arg7[%c1_58, %c0_59, %c0_60], %104 {strides = array<i32>} : memref<2x8x128xf32, #tpu.memory_space<vmem>>, vector<1x8x128xf32>,
    %c1_61 = arith.constant 1 : index
    %c0_62 = arith.constant 0 : index
    %c0_63 = arith.constant 0 : index
    %105 = vector.load %arg6[%c1_61, %c0_62, %c0_63] : memref<2x8x128xf32, #tpu.memory_space<vmem>>, vector<1x8x128xf32>
    %106 = vector.shape_cast %105 : vector<1x8x128xf32> to vector<8x128xf32>
    %107 = vector.shape_cast %101 : vector<8x128xf32> to vector<1x8x128xf32>
    tpu.vector_store %arg6[%c1_61, %c0_62, %c0_63], %107 {strides = array<i32>} : memref<2x8x128xf32, #tpu.memory_space<vmem>>, vector<1x8x128xf32>,
    %108 = arith.index_cast %c0_i32_8 : i32 to index
    %c0_64 = arith.constant 0 : index
    %c0_65 = arith.constant 0 : index
    %109 = vector.load %arg5[%108, %c0_64, %c0_65] : memref<8x8x128xf32, #tpu.memory_space<vmem>>, vector<1x8x128xf32>
    %110 = vector.shape_cast %109 : vector<1x8x128xf32> to vector<8x128xf32>
    %111 = vector.shape_cast %101 : vector<8x128xf32> to vector<1x8x128xf32>
    tpu.vector_store %arg5[%108, %c0_64, %c0_65], %111 {strides = array<i32>} : memref<8x8x128xf32, #tpu.memory_space<vmem>>, vector<1x8x128xf32>,
    %c1_i32 = arith.constant 1 : i32
    %c0_66 = arith.constant 0 : index
    %c0_67 = arith.constant 0 : index
    %c0_68 = arith.constant 0 : index
    %112 = vector.load %arg6[%c0_66, %c0_67, %c0_68] : memref<2x8x128xf32, #tpu.memory_space<vmem>>, vector<1x8x128xf32>
    %113 = vector.shape_cast %112 : vector<1x8x128xf32> to vector<8x128xf32>
    %c0_69 = arith.constant 0 : index
    %c0_70 = arith.constant 0 : index
    %c0_71 = arith.constant 0 : index
    %114 = vector.load %arg7[%c0_69, %c0_70, %c0_71] : memref<2x8x128xf32, #tpu.memory_space<vmem>>, vector<1x8x128xf32>
    %115 = vector.shape_cast %114 : vector<1x8x128xf32> to vector<8x128xf32>
    %116 = arith.truncf %113 : vector<8x128xf32> to vector<8x128xbf16>
    %c0_72 = arith.constant 0 : index
    %c0_73 = arith.constant 0 : index
    %c0_74 = arith.constant 0 : index
    %117 = vector.load %arg3[%c0_72, %c0_73, %c0_74] : memref<2x128x512xbf16, #tpu.memory_space<vmem>>, vector<1x128x512xbf16>
    %118 = vector.shape_cast %117 : vector<1x128x512xbf16> to vector<128x512xbf16>
    %cst_75 = arith.constant dense<0.000000e+00> : vector<8x512xf32>
    %119 = tpu.matmul %116, %118, %cst_75 {dimension_numbers = #tpu.dot_dimension_numbers<[1], [0], [0], [1], [0, 0, 1, 1], [], []>} : vector<8x128xbf16>, vector<128x512xbf16>, vector<8x512xf32> -> vector<8x512xf32>
    %120 = arith.index_cast %c1_i32 : i32 to index
    %c0_76 = arith.constant 0 : index
    %c0_77 = arith.constant 0 : index
    %121 = vector.load %arg8[%120, %c0_76, %c0_77] : memref<8x8x512xf32, #tpu.memory_space<vmem>>, vector<1x8x512xf32>
    %122 = vector.shape_cast %121 : vector<1x8x512xf32> to vector<8x512xf32>
    %123 = arith.addf %119, %122 : vector<8x512xf32>
    %124 = vector.extract_strided_slice %123 {offsets = [0, 0], sizes = [8, 128], strides = [1, 1]} : vector<8x512xf32> to vector<8x128xf32>
    %cst_78 = arith.constant 5.000000e-01 : f32
    %125 = vector.broadcast %cst_78 : f32 to vector<8x128xf32>
    %126 = arith.mulf %125, %124 : vector<8x128xf32>
    %127 = math.tanh %126 : vector<8x128xf32>
    %cst_79 = arith.constant 5.000000e-01 : f32
    %128 = vector.broadcast %cst_79 : f32 to vector<8x128xf32>
    %129 = arith.mulf %128, %127 : vector<8x128xf32>
    %cst_80 = arith.constant 5.000000e-01 : f32
    %130 = vector.broadcast %cst_80 : f32 to vector<8x128xf32>
    %131 = arith.addf %129, %130 : vector<8x128xf32>
    %132 = vector.extract_strided_slice %123 {offsets = [0, 128], sizes = [8, 128], strides = [1, 1]} : vector<8x512xf32> to vector<8x128xf32>
    %cst_81 = arith.constant 5.000000e-01 : f32
    %133 = vector.broadcast %cst_81 : f32 to vector<8x128xf32>
    %134 = arith.mulf %133, %132 : vector<8x128xf32>
    %135 = math.tanh %134 : vector<8x128xf32>
    %cst_82 = arith.constant 5.000000e-01 : f32
    %136 = vector.broadcast %cst_82 : f32 to vector<8x128xf32>
    %137 = arith.mulf %136, %135 : vector<8x128xf32>
    %cst_83 = arith.constant 5.000000e-01 : f32
    %138 = vector.broadcast %cst_83 : f32 to vector<8x128xf32>
    %139 = arith.addf %137, %138 : vector<8x128xf32>
    %140 = vector.extract_strided_slice %123 {offsets = [0, 256], sizes = [8, 128], strides = [1, 1]} : vector<8x512xf32> to vector<8x128xf32>
    %141 = math.tanh %140 : vector<8x128xf32>
    %142 = vector.extract_strided_slice %123 {offsets = [0, 384], sizes = [8, 128], strides = [1, 1]} : vector<8x512xf32> to vector<8x128xf32>
    %cst_84 = arith.constant 5.000000e-01 : f32
    %143 = vector.broadcast %cst_84 : f32 to vector<8x128xf32>
    %144 = arith.mulf %143, %142 : vector<8x128xf32>
    %145 = math.tanh %144 : vector<8x128xf32>
    %cst_85 = arith.constant 5.000000e-01 : f32
    %146 = vector.broadcast %cst_85 : f32 to vector<8x128xf32>
    %147 = arith.mulf %146, %145 : vector<8x128xf32>
    %cst_86 = arith.constant 5.000000e-01 : f32
    %148 = vector.broadcast %cst_86 : f32 to vector<8x128xf32>
    %149 = arith.addf %147, %148 : vector<8x128xf32>
    %150 = arith.mulf %139, %115 : vector<8x128xf32>
    %151 = arith.mulf %131, %141 : vector<8x128xf32>
    %152 = arith.addf %150, %151 : vector<8x128xf32>
    %153 = math.tanh %152 : vector<8x128xf32>
    %154 = arith.mulf %149, %153 : vector<8x128xf32>
    %c0_87 = arith.constant 0 : index
    %c0_88 = arith.constant 0 : index
    %c0_89 = arith.constant 0 : index
    %155 = vector.load %arg7[%c0_87, %c0_88, %c0_89] : memref<2x8x128xf32, #tpu.memory_space<vmem>>, vector<1x8x128xf32>
    %156 = vector.shape_cast %155 : vector<1x8x128xf32> to vector<8x128xf32>
    %157 = vector.shape_cast %152 : vector<8x128xf32> to vector<1x8x128xf32>
    tpu.vector_store %arg7[%c0_87, %c0_88, %c0_89], %157 {strides = array<i32>} : memref<2x8x128xf32, #tpu.memory_space<vmem>>, vector<1x8x128xf32>,
    %c0_90 = arith.constant 0 : index
    %c0_91 = arith.constant 0 : index
    %c0_92 = arith.constant 0 : index
    %158 = vector.load %arg6[%c0_90, %c0_91, %c0_92] : memref<2x8x128xf32, #tpu.memory_space<vmem>>, vector<1x8x128xf32>
    %159 = vector.shape_cast %158 : vector<1x8x128xf32> to vector<8x128xf32>
    %160 = vector.shape_cast %154 : vector<8x128xf32> to vector<1x8x128xf32>
    tpu.vector_store %arg6[%c0_90, %c0_91, %c0_92], %160 {strides = array<i32>} : memref<2x8x128xf32, #tpu.memory_space<vmem>>, vector<1x8x128xf32>,
    %161 = arith.truncf %154 : vector<8x128xf32> to vector<8x128xbf16>
    %c1_93 = arith.constant 1 : index
    %c0_94 = arith.constant 0 : index
    %c0_95 = arith.constant 0 : index
    %162 = vector.load %arg6[%c1_93, %c0_94, %c0_95] : memref<2x8x128xf32, #tpu.memory_space<vmem>>, vector<1x8x128xf32>
    %163 = vector.shape_cast %162 : vector<1x8x128xf32> to vector<8x128xf32>
    %c1_96 = arith.constant 1 : index
    %c0_97 = arith.constant 0 : index
    %c0_98 = arith.constant 0 : index
    %164 = vector.load %arg7[%c1_96, %c0_97, %c0_98] : memref<2x8x128xf32, #tpu.memory_space<vmem>>, vector<1x8x128xf32>
    %165 = vector.shape_cast %164 : vector<1x8x128xf32> to vector<8x128xf32>
    %166 = arith.truncf %163 : vector<8x128xf32> to vector<8x128xbf16>
    %c1_99 = arith.constant 1 : index
    %c0_100 = arith.constant 0 : index
    %c0_101 = arith.constant 0 : index
    %167 = vector.load %arg3[%c1_99, %c0_100, %c0_101] : memref<2x128x512xbf16, #tpu.memory_space<vmem>>, vector<1x128x512xbf16>
    %168 = vector.shape_cast %167 : vector<1x128x512xbf16> to vector<128x512xbf16>
    %cst_102 = arith.constant dense<0.000000e+00> : vector<8x512xf32>
    %169 = tpu.matmul %166, %168, %cst_102 {dimension_numbers = #tpu.dot_dimension_numbers<[1], [0], [0], [1], [0, 0, 1, 1], [], []>} : vector<8x128xbf16>, vector<128x512xbf16>, vector<8x512xf32> -> vector<8x512xf32>
    %c0_103 = arith.constant 0 : index
    %c0_104 = arith.constant 0 : index
    %c0_105 = arith.constant 0 : index
    %170 = vector.load %arg4[%c0_103, %c0_104, %c0_105] : memref<1x128x512xbf16, #tpu.memory_space<vmem>>, vector<1x128x512xbf16>
    %171 = vector.shape_cast %170 : vector<1x128x512xbf16> to vector<128x512xbf16>
    %cst_106 = arith.constant dense<0.000000e+00> : vector<8x512xf32>
    %172 = tpu.matmul %161, %171, %cst_106 {dimension_numbers = #tpu.dot_dimension_numbers<[1], [0], [0], [1], [0, 0, 1, 1], [], []>} : vector<8x128xbf16>, vector<128x512xbf16>, vector<8x512xf32> -> vector<8x512xf32>
    %173 = arith.addf %169, %172 : vector<8x512xf32>
    %174 = vector.extract_strided_slice %173 {offsets = [0, 0], sizes = [8, 128], strides = [1, 1]} : vector<8x512xf32> to vector<8x128xf32>
    %cst_107 = arith.constant 5.000000e-01 : f32
    %175 = vector.broadcast %cst_107 : f32 to vector<8x128xf32>
    %176 = arith.mulf %175, %174 : vector<8x128xf32>
    %177 = math.tanh %176 : vector<8x128xf32>
    %cst_108 = arith.constant 5.000000e-01 : f32
    %178 = vector.broadcast %cst_108 : f32 to vector<8x128xf32>
    %179 = arith.mulf %178, %177 : vector<8x128xf32>
    %cst_109 = arith.constant 5.000000e-01 : f32
    %180 = vector.broadcast %cst_109 : f32 to vector<8x128xf32>
    %181 = arith.addf %179, %180 : vector<8x128xf32>
    %182 = vector.extract_strided_slice %173 {offsets = [0, 128], sizes = [8, 128], strides = [1, 1]} : vector<8x512xf32> to vector<8x128xf32>
    %cst_110 = arith.constant 5.000000e-01 : f32
    %183 = vector.broadcast %cst_110 : f32 to vector<8x128xf32>
    %184 = arith.mulf %183, %182 : vector<8x128xf32>
    %185 = math.tanh %184 : vector<8x128xf32>
    %cst_111 = arith.constant 5.000000e-01 : f32
    %186 = vector.broadcast %cst_111 : f32 to vector<8x128xf32>
    %187 = arith.mulf %186, %185 : vector<8x128xf32>
    %cst_112 = arith.constant 5.000000e-01 : f32
    %188 = vector.broadcast %cst_112 : f32 to vector<8x128xf32>
    %189 = arith.addf %187, %188 : vector<8x128xf32>
    %190 = vector.extract_strided_slice %173 {offsets = [0, 256], sizes = [8, 128], strides = [1, 1]} : vector<8x512xf32> to vector<8x128xf32>
    %191 = math.tanh %190 : vector<8x128xf32>
    %192 = vector.extract_strided_slice %173 {offsets = [0, 384], sizes = [8, 128], strides = [1, 1]} : vector<8x512xf32> to vector<8x128xf32>
    %cst_113 = arith.constant 5.000000e-01 : f32
    %193 = vector.broadcast %cst_113 : f32 to vector<8x128xf32>
    %194 = arith.mulf %193, %192 : vector<8x128xf32>
    %195 = math.tanh %194 : vector<8x128xf32>
    %cst_114 = arith.constant 5.000000e-01 : f32
    %196 = vector.broadcast %cst_114 : f32 to vector<8x128xf32>
    %197 = arith.mulf %196, %195 : vector<8x128xf32>
    %cst_115 = arith.constant 5.000000e-01 : f32
    %198 = vector.broadcast %cst_115 : f32 to vector<8x128xf32>
    %199 = arith.addf %197, %198 : vector<8x128xf32>
    %200 = arith.mulf %189, %165 : vector<8x128xf32>
    %201 = arith.mulf %181, %191 : vector<8x128xf32>
    %202 = arith.addf %200, %201 : vector<8x128xf32>
    %203 = math.tanh %202 : vector<8x128xf32>
    %204 = arith.mulf %199, %203 : vector<8x128xf32>
    %c1_116 = arith.constant 1 : index
    %c0_117 = arith.constant 0 : index
    %c0_118 = arith.constant 0 : index
    %205 = vector.load %arg7[%c1_116, %c0_117, %c0_118] : memref<2x8x128xf32, #tpu.memory_space<vmem>>, vector<1x8x128xf32>
    %206 = vector.shape_cast %205 : vector<1x8x128xf32> to vector<8x128xf32>
    %207 = vector.shape_cast %202 : vector<8x128xf32> to vector<1x8x128xf32>
    tpu.vector_store %arg7[%c1_116, %c0_117, %c0_118], %207 {strides = array<i32>} : memref<2x8x128xf32, #tpu.memory_space<vmem>>, vector<1x8x128xf32>,
    %c1_119 = arith.constant 1 : index
    %c0_120 = arith.constant 0 : index
    %c0_121 = arith.constant 0 : index
    %208 = vector.load %arg6[%c1_119, %c0_120, %c0_121] : memref<2x8x128xf32, #tpu.memory_space<vmem>>, vector<1x8x128xf32>
    %209 = vector.shape_cast %208 : vector<1x8x128xf32> to vector<8x128xf32>
    %210 = vector.shape_cast %204 : vector<8x128xf32> to vector<1x8x128xf32>
    tpu.vector_store %arg6[%c1_119, %c0_120, %c0_121], %210 {strides = array<i32>} : memref<2x8x128xf32, #tpu.memory_space<vmem>>, vector<1x8x128xf32>,
    %211 = arith.index_cast %c1_i32 : i32 to index
    %c0_122 = arith.constant 0 : index
    %c0_123 = arith.constant 0 : index
    %212 = vector.load %arg5[%211, %c0_122, %c0_123] : memref<8x8x128xf32, #tpu.memory_space<vmem>>, vector<1x8x128xf32>
    %213 = vector.shape_cast %212 : vector<1x8x128xf32> to vector<8x128xf32>
    %214 = vector.shape_cast %204 : vector<8x128xf32> to vector<1x8x128xf32>
    tpu.vector_store %arg5[%211, %c0_122, %c0_123], %214 {strides = array<i32>} : memref<8x8x128xf32, #tpu.memory_space<vmem>>, vector<1x8x128xf32>,
    %c2_i32 = arith.constant 2 : i32
    %c0_124 = arith.constant 0 : index
    %c0_125 = arith.constant 0 : index
    %c0_126 = arith.constant 0 : index
    %215 = vector.load %arg6[%c0_124, %c0_125, %c0_126] : memref<2x8x128xf32, #tpu.memory_space<vmem>>, vector<1x8x128xf32>
    %216 = vector.shape_cast %215 : vector<1x8x128xf32> to vector<8x128xf32>
    %c0_127 = arith.constant 0 : index
    %c0_128 = arith.constant 0 : index
    %c0_129 = arith.constant 0 : index
    %217 = vector.load %arg7[%c0_127, %c0_128, %c0_129] : memref<2x8x128xf32, #tpu.memory_space<vmem>>, vector<1x8x128xf32>
    %218 = vector.shape_cast %217 : vector<1x8x128xf32> to vector<8x128xf32>
    %219 = arith.truncf %216 : vector<8x128xf32> to vector<8x128xbf16>
    %c0_130 = arith.constant 0 : index
    %c0_131 = arith.constant 0 : index
    %c0_132 = arith.constant 0 : index
    %220 = vector.load %arg3[%c0_130, %c0_131, %c0_132] : memref<2x128x512xbf16, #tpu.memory_space<vmem>>, vector<1x128x512xbf16>
    %221 = vector.shape_cast %220 : vector<1x128x512xbf16> to vector<128x512xbf16>
    %cst_133 = arith.constant dense<0.000000e+00> : vector<8x512xf32>
    %222 = tpu.matmul %219, %221, %cst_133 {dimension_numbers = #tpu.dot_dimension_numbers<[1], [0], [0], [1], [0, 0, 1, 1], [], []>} : vector<8x128xbf16>, vector<128x512xbf16>, vector<8x512xf32> -> vector<8x512xf32>
    %223 = arith.index_cast %c2_i32 : i32 to index
    %c0_134 = arith.constant 0 : index
    %c0_135 = arith.constant 0 : index
    %224 = vector.load %arg8[%223, %c0_134, %c0_135] : memref<8x8x512xf32, #tpu.memory_space<vmem>>, vector<1x8x512xf32>
    %225 = vector.shape_cast %224 : vector<1x8x512xf32> to vector<8x512xf32>
    %226 = arith.addf %222, %225 : vector<8x512xf32>
    %227 = vector.extract_strided_slice %226 {offsets = [0, 0], sizes = [8, 128], strides = [1, 1]} : vector<8x512xf32> to vector<8x128xf32>
    %cst_136 = arith.constant 5.000000e-01 : f32
    %228 = vector.broadcast %cst_136 : f32 to vector<8x128xf32>
    %229 = arith.mulf %228, %227 : vector<8x128xf32>
    %230 = math.tanh %229 : vector<8x128xf32>
    %cst_137 = arith.constant 5.000000e-01 : f32
    %231 = vector.broadcast %cst_137 : f32 to vector<8x128xf32>
    %232 = arith.mulf %231, %230 : vector<8x128xf32>
    %cst_138 = arith.constant 5.000000e-01 : f32
    %233 = vector.broadcast %cst_138 : f32 to vector<8x128xf32>
    %234 = arith.addf %232, %233 : vector<8x128xf32>
    %235 = vector.extract_strided_slice %226 {offsets = [0, 128], sizes = [8, 128], strides = [1, 1]} : vector<8x512xf32> to vector<8x128xf32>
    %cst_139 = arith.constant 5.000000e-01 : f32
    %236 = vector.broadcast %cst_139 : f32 to vector<8x128xf32>
    %237 = arith.mulf %236, %235 : vector<8x128xf32>
    %238 = math.tanh %237 : vector<8x128xf32>
    %cst_140 = arith.constant 5.000000e-01 : f32
    %239 = vector.broadcast %cst_140 : f32 to vector<8x128xf32>
    %240 = arith.mulf %239, %238 : vector<8x128xf32>
    %cst_141 = arith.constant 5.000000e-01 : f32
    %241 = vector.broadcast %cst_141 : f32 to vector<8x128xf32>
    %242 = arith.addf %240, %241 : vector<8x128xf32>
    %243 = vector.extract_strided_slice %226 {offsets = [0, 256], sizes = [8, 128], strides = [1, 1]} : vector<8x512xf32> to vector<8x128xf32>
    %244 = math.tanh %243 : vector<8x128xf32>
    %245 = vector.extract_strided_slice %226 {offsets = [0, 384], sizes = [8, 128], strides = [1, 1]} : vector<8x512xf32> to vector<8x128xf32>
    %cst_142 = arith.constant 5.000000e-01 : f32
    %246 = vector.broadcast %cst_142 : f32 to vector<8x128xf32>
    %247 = arith.mulf %246, %245 : vector<8x128xf32>
    %248 = math.tanh %247 : vector<8x128xf32>
    %cst_143 = arith.constant 5.000000e-01 : f32
    %249 = vector.broadcast %cst_143 : f32 to vector<8x128xf32>
    %250 = arith.mulf %249, %248 : vector<8x128xf32>
    %cst_144 = arith.constant 5.000000e-01 : f32
    %251 = vector.broadcast %cst_144 : f32 to vector<8x128xf32>
    %252 = arith.addf %250, %251 : vector<8x128xf32>
    %253 = arith.mulf %242, %218 : vector<8x128xf32>
    %254 = arith.mulf %234, %244 : vector<8x128xf32>
    %255 = arith.addf %253, %254 : vector<8x128xf32>
    %256 = math.tanh %255 : vector<8x128xf32>
    %257 = arith.mulf %252, %256 : vector<8x128xf32>
    %c0_145 = arith.constant 0 : index
    %c0_146 = arith.constant 0 : index
    %c0_147 = arith.constant 0 : index
    %258 = vector.load %arg7[%c0_145, %c0_146, %c0_147] : memref<2x8x128xf32, #tpu.memory_space<vmem>>, vector<1x8x128xf32>
    %259 = vector.shape_cast %258 : vector<1x8x128xf32> to vector<8x128xf32>
    %260 = vector.shape_cast %255 : vector<8x128xf32> to vector<1x8x128xf32>
    tpu.vector_store %arg7[%c0_145, %c0_146, %c0_147], %260 {strides = array<i32>} : memref<2x8x128xf32, #tpu.memory_space<vmem>>, vector<1x8x128xf32>,
    %c0_148 = arith.constant 0 : index
    %c0_149 = arith.constant 0 : index
    %c0_150 = arith.constant 0 : index
    %261 = vector.load %arg6[%c0_148, %c0_149, %c0_150] : memref<2x8x128xf32, #tpu.memory_space<vmem>>, vector<1x8x128xf32>
    %262 = vector.shape_cast %261 : vector<1x8x128xf32> to vector<8x128xf32>
    %263 = vector.shape_cast %257 : vector<8x128xf32> to vector<1x8x128xf32>
    tpu.vector_store %arg6[%c0_148, %c0_149, %c0_150], %263 {strides = array<i32>} : memref<2x8x128xf32, #tpu.memory_space<vmem>>, vector<1x8x128xf32>,
    %264 = arith.truncf %257 : vector<8x128xf32> to vector<8x128xbf16>
    %c1_151 = arith.constant 1 : index
    %c0_152 = arith.constant 0 : index
    %c0_153 = arith.constant 0 : index
    %265 = vector.load %arg6[%c1_151, %c0_152, %c0_153] : memref<2x8x128xf32, #tpu.memory_space<vmem>>, vector<1x8x128xf32>
    %266 = vector.shape_cast %265 : vector<1x8x128xf32> to vector<8x128xf32>
    %c1_154 = arith.constant 1 : index
    %c0_155 = arith.constant 0 : index
    %c0_156 = arith.constant 0 : index
    %267 = vector.load %arg7[%c1_154, %c0_155, %c0_156] : memref<2x8x128xf32, #tpu.memory_space<vmem>>, vector<1x8x128xf32>
    %268 = vector.shape_cast %267 : vector<1x8x128xf32> to vector<8x128xf32>
    %269 = arith.truncf %266 : vector<8x128xf32> to vector<8x128xbf16>
    %c1_157 = arith.constant 1 : index
    %c0_158 = arith.constant 0 : index
    %c0_159 = arith.constant 0 : index
    %270 = vector.load %arg3[%c1_157, %c0_158, %c0_159] : memref<2x128x512xbf16, #tpu.memory_space<vmem>>, vector<1x128x512xbf16>
    %271 = vector.shape_cast %270 : vector<1x128x512xbf16> to vector<128x512xbf16>
    %cst_160 = arith.constant dense<0.000000e+00> : vector<8x512xf32>
    %272 = tpu.matmul %269, %271, %cst_160 {dimension_numbers = #tpu.dot_dimension_numbers<[1], [0], [0], [1], [0, 0, 1, 1], [], []>} : vector<8x128xbf16>, vector<128x512xbf16>, vector<8x512xf32> -> vector<8x512xf32>
    %c0_161 = arith.constant 0 : index
    %c0_162 = arith.constant 0 : index
    %c0_163 = arith.constant 0 : index
    %273 = vector.load %arg4[%c0_161, %c0_162, %c0_163] : memref<1x128x512xbf16, #tpu.memory_space<vmem>>, vector<1x128x512xbf16>
    %274 = vector.shape_cast %273 : vector<1x128x512xbf16> to vector<128x512xbf16>
    %cst_164 = arith.constant dense<0.000000e+00> : vector<8x512xf32>
    %275 = tpu.matmul %264, %274, %cst_164 {dimension_numbers = #tpu.dot_dimension_numbers<[1], [0], [0], [1], [0, 0, 1, 1], [], []>} : vector<8x128xbf16>, vector<128x512xbf16>, vector<8x512xf32> -> vector<8x512xf32>
    %276 = arith.addf %272, %275 : vector<8x512xf32>
    %277 = vector.extract_strided_slice %276 {offsets = [0, 0], sizes = [8, 128], strides = [1, 1]} : vector<8x512xf32> to vector<8x128xf32>
    %cst_165 = arith.constant 5.000000e-01 : f32
    %278 = vector.broadcast %cst_165 : f32 to vector<8x128xf32>
    %279 = arith.mulf %278, %277 : vector<8x128xf32>
    %280 = math.tanh %279 : vector<8x128xf32>
    %cst_166 = arith.constant 5.000000e-01 : f32
    %281 = vector.broadcast %cst_166 : f32 to vector<8x128xf32>
    %282 = arith.mulf %281, %280 : vector<8x128xf32>
    %cst_167 = arith.constant 5.000000e-01 : f32
    %283 = vector.broadcast %cst_167 : f32 to vector<8x128xf32>
    %284 = arith.addf %282, %283 : vector<8x128xf32>
    %285 = vector.extract_strided_slice %276 {offsets = [0, 128], sizes = [8, 128], strides = [1, 1]} : vector<8x512xf32> to vector<8x128xf32>
    %cst_168 = arith.constant 5.000000e-01 : f32
    %286 = vector.broadcast %cst_168 : f32 to vector<8x128xf32>
    %287 = arith.mulf %286, %285 : vector<8x128xf32>
    %288 = math.tanh %287 : vector<8x128xf32>
    %cst_169 = arith.constant 5.000000e-01 : f32
    %289 = vector.broadcast %cst_169 : f32 to vector<8x128xf32>
    %290 = arith.mulf %289, %288 : vector<8x128xf32>
    %cst_170 = arith.constant 5.000000e-01 : f32
    %291 = vector.broadcast %cst_170 : f32 to vector<8x128xf32>
    %292 = arith.addf %290, %291 : vector<8x128xf32>
    %293 = vector.extract_strided_slice %276 {offsets = [0, 256], sizes = [8, 128], strides = [1, 1]} : vector<8x512xf32> to vector<8x128xf32>
    %294 = math.tanh %293 : vector<8x128xf32>
    %295 = vector.extract_strided_slice %276 {offsets = [0, 384], sizes = [8, 128], strides = [1, 1]} : vector<8x512xf32> to vector<8x128xf32>
    %cst_171 = arith.constant 5.000000e-01 : f32
    %296 = vector.broadcast %cst_171 : f32 to vector<8x128xf32>
    %297 = arith.mulf %296, %295 : vector<8x128xf32>
    %298 = math.tanh %297 : vector<8x128xf32>
    %cst_172 = arith.constant 5.000000e-01 : f32
    %299 = vector.broadcast %cst_172 : f32 to vector<8x128xf32>
    %300 = arith.mulf %299, %298 : vector<8x128xf32>
    %cst_173 = arith.constant 5.000000e-01 : f32
    %301 = vector.broadcast %cst_173 : f32 to vector<8x128xf32>
    %302 = arith.addf %300, %301 : vector<8x128xf32>
    %303 = arith.mulf %292, %268 : vector<8x128xf32>
    %304 = arith.mulf %284, %294 : vector<8x128xf32>
    %305 = arith.addf %303, %304 : vector<8x128xf32>
    %306 = math.tanh %305 : vector<8x128xf32>
    %307 = arith.mulf %302, %306 : vector<8x128xf32>
    %c1_174 = arith.constant 1 : index
    %c0_175 = arith.constant 0 : index
    %c0_176 = arith.constant 0 : index
    %308 = vector.load %arg7[%c1_174, %c0_175, %c0_176] : memref<2x8x128xf32, #tpu.memory_space<vmem>>, vector<1x8x128xf32>
    %309 = vector.shape_cast %308 : vector<1x8x128xf32> to vector<8x128xf32>
    %310 = vector.shape_cast %305 : vector<8x128xf32> to vector<1x8x128xf32>
    tpu.vector_store %arg7[%c1_174, %c0_175, %c0_176], %310 {strides = array<i32>} : memref<2x8x128xf32, #tpu.memory_space<vmem>>, vector<1x8x128xf32>,
    %c1_177 = arith.constant 1 : index
    %c0_178 = arith.constant 0 : index
    %c0_179 = arith.constant 0 : index
    %311 = vector.load %arg6[%c1_177, %c0_178, %c0_179] : memref<2x8x128xf32, #tpu.memory_space<vmem>>, vector<1x8x128xf32>
    %312 = vector.shape_cast %311 : vector<1x8x128xf32> to vector<8x128xf32>
    %313 = vector.shape_cast %307 : vector<8x128xf32> to vector<1x8x128xf32>
    tpu.vector_store %arg6[%c1_177, %c0_178, %c0_179], %313 {strides = array<i32>} : memref<2x8x128xf32, #tpu.memory_space<vmem>>, vector<1x8x128xf32>,
    %314 = arith.index_cast %c2_i32 : i32 to index
    %c0_180 = arith.constant 0 : index
    %c0_181 = arith.constant 0 : index
    %315 = vector.load %arg5[%314, %c0_180, %c0_181] : memref<8x8x128xf32, #tpu.memory_space<vmem>>, vector<1x8x128xf32>
    %316 = vector.shape_cast %315 : vector<1x8x128xf32> to vector<8x128xf32>
    %317 = vector.shape_cast %307 : vector<8x128xf32> to vector<1x8x128xf32>
    tpu.vector_store %arg5[%314, %c0_180, %c0_181], %317 {strides = array<i32>} : memref<8x8x128xf32, #tpu.memory_space<vmem>>, vector<1x8x128xf32>,
    %c3_i32 = arith.constant 3 : i32
    %c0_182 = arith.constant 0 : index
    %c0_183 = arith.constant 0 : index
    %c0_184 = arith.constant 0 : index
    %318 = vector.load %arg6[%c0_182, %c0_183, %c0_184] : memref<2x8x128xf32, #tpu.memory_space<vmem>>, vector<1x8x128xf32>
    %319 = vector.shape_cast %318 : vector<1x8x128xf32> to vector<8x128xf32>
    %c0_185 = arith.constant 0 : index
    %c0_186 = arith.constant 0 : index
    %c0_187 = arith.constant 0 : index
    %320 = vector.load %arg7[%c0_185, %c0_186, %c0_187] : memref<2x8x128xf32, #tpu.memory_space<vmem>>, vector<1x8x128xf32>
    %321 = vector.shape_cast %320 : vector<1x8x128xf32> to vector<8x128xf32>
    %322 = arith.truncf %319 : vector<8x128xf32> to vector<8x128xbf16>
    %c0_188 = arith.constant 0 : index
    %c0_189 = arith.constant 0 : index
    %c0_190 = arith.constant 0 : index
    %323 = vector.load %arg3[%c0_188, %c0_189, %c0_190] : memref<2x128x512xbf16, #tpu.memory_space<vmem>>, vector<1x128x512xbf16>
    %324 = vector.shape_cast %323 : vector<1x128x512xbf16> to vector<128x512xbf16>
    %cst_191 = arith.constant dense<0.000000e+00> : vector<8x512xf32>
    %325 = tpu.matmul %322, %324, %cst_191 {dimension_numbers = #tpu.dot_dimension_numbers<[1], [0], [0], [1], [0, 0, 1, 1], [], []>} : vector<8x128xbf16>, vector<128x512xbf16>, vector<8x512xf32> -> vector<8x512xf32>
    %326 = arith.index_cast %c3_i32 : i32 to index
    %c0_192 = arith.constant 0 : index
    %c0_193 = arith.constant 0 : index
    %327 = vector.load %arg8[%326, %c0_192, %c0_193] : memref<8x8x512xf32, #tpu.memory_space<vmem>>, vector<1x8x512xf32>
    %328 = vector.shape_cast %327 : vector<1x8x512xf32> to vector<8x512xf32>
    %329 = arith.addf %325, %328 : vector<8x512xf32>
    %330 = vector.extract_strided_slice %329 {offsets = [0, 0], sizes = [8, 128], strides = [1, 1]} : vector<8x512xf32> to vector<8x128xf32>
    %cst_194 = arith.constant 5.000000e-01 : f32
    %331 = vector.broadcast %cst_194 : f32 to vector<8x128xf32>
    %332 = arith.mulf %331, %330 : vector<8x128xf32>
    %333 = math.tanh %332 : vector<8x128xf32>
    %cst_195 = arith.constant 5.000000e-01 : f32
    %334 = vector.broadcast %cst_195 : f32 to vector<8x128xf32>
    %335 = arith.mulf %334, %333 : vector<8x128xf32>
    %cst_196 = arith.constant 5.000000e-01 : f32
    %336 = vector.broadcast %cst_196 : f32 to vector<8x128xf32>
    %337 = arith.addf %335, %336 : vector<8x128xf32>
    %338 = vector.extract_strided_slice %329 {offsets = [0, 128], sizes = [8, 128], strides = [1, 1]} : vector<8x512xf32> to vector<8x128xf32>
    %cst_197 = arith.constant 5.000000e-01 : f32
    %339 = vector.broadcast %cst_197 : f32 to vector<8x128xf32>
    %340 = arith.mulf %339, %338 : vector<8x128xf32>
    %341 = math.tanh %340 : vector<8x128xf32>
    %cst_198 = arith.constant 5.000000e-01 : f32
    %342 = vector.broadcast %cst_198 : f32 to vector<8x128xf32>
    %343 = arith.mulf %342, %341 : vector<8x128xf32>
    %cst_199 = arith.constant 5.000000e-01 : f32
    %344 = vector.broadcast %cst_199 : f32 to vector<8x128xf32>
    %345 = arith.addf %343, %344 : vector<8x128xf32>
    %346 = vector.extract_strided_slice %329 {offsets = [0, 256], sizes = [8, 128], strides = [1, 1]} : vector<8x512xf32> to vector<8x128xf32>
    %347 = math.tanh %346 : vector<8x128xf32>
    %348 = vector.extract_strided_slice %329 {offsets = [0, 384], sizes = [8, 128], strides = [1, 1]} : vector<8x512xf32> to vector<8x128xf32>
    %cst_200 = arith.constant 5.000000e-01 : f32
    %349 = vector.broadcast %cst_200 : f32 to vector<8x128xf32>
    %350 = arith.mulf %349, %348 : vector<8x128xf32>
    %351 = math.tanh %350 : vector<8x128xf32>
    %cst_201 = arith.constant 5.000000e-01 : f32
    %352 = vector.broadcast %cst_201 : f32 to vector<8x128xf32>
    %353 = arith.mulf %352, %351 : vector<8x128xf32>
    %cst_202 = arith.constant 5.000000e-01 : f32
    %354 = vector.broadcast %cst_202 : f32 to vector<8x128xf32>
    %355 = arith.addf %353, %354 : vector<8x128xf32>
    %356 = arith.mulf %345, %321 : vector<8x128xf32>
    %357 = arith.mulf %337, %347 : vector<8x128xf32>
    %358 = arith.addf %356, %357 : vector<8x128xf32>
    %359 = math.tanh %358 : vector<8x128xf32>
    %360 = arith.mulf %355, %359 : vector<8x128xf32>
    %c0_203 = arith.constant 0 : index
    %c0_204 = arith.constant 0 : index
    %c0_205 = arith.constant 0 : index
    %361 = vector.load %arg7[%c0_203, %c0_204, %c0_205] : memref<2x8x128xf32, #tpu.memory_space<vmem>>, vector<1x8x128xf32>
    %362 = vector.shape_cast %361 : vector<1x8x128xf32> to vector<8x128xf32>
    %363 = vector.shape_cast %358 : vector<8x128xf32> to vector<1x8x128xf32>
    tpu.vector_store %arg7[%c0_203, %c0_204, %c0_205], %363 {strides = array<i32>} : memref<2x8x128xf32, #tpu.memory_space<vmem>>, vector<1x8x128xf32>,
    %c0_206 = arith.constant 0 : index
    %c0_207 = arith.constant 0 : index
    %c0_208 = arith.constant 0 : index
    %364 = vector.load %arg6[%c0_206, %c0_207, %c0_208] : memref<2x8x128xf32, #tpu.memory_space<vmem>>, vector<1x8x128xf32>
    %365 = vector.shape_cast %364 : vector<1x8x128xf32> to vector<8x128xf32>
    %366 = vector.shape_cast %360 : vector<8x128xf32> to vector<1x8x128xf32>
    tpu.vector_store %arg6[%c0_206, %c0_207, %c0_208], %366 {strides = array<i32>} : memref<2x8x128xf32, #tpu.memory_space<vmem>>, vector<1x8x128xf32>,
    %367 = arith.truncf %360 : vector<8x128xf32> to vector<8x128xbf16>
    %c1_209 = arith.constant 1 : index
    %c0_210 = arith.constant 0 : index
    %c0_211 = arith.constant 0 : index
    %368 = vector.load %arg6[%c1_209, %c0_210, %c0_211] : memref<2x8x128xf32, #tpu.memory_space<vmem>>, vector<1x8x128xf32>
    %369 = vector.shape_cast %368 : vector<1x8x128xf32> to vector<8x128xf32>
    %c1_212 = arith.constant 1 : index
    %c0_213 = arith.constant 0 : index
    %c0_214 = arith.constant 0 : index
    %370 = vector.load %arg7[%c1_212, %c0_213, %c0_214] : memref<2x8x128xf32, #tpu.memory_space<vmem>>, vector<1x8x128xf32>
    %371 = vector.shape_cast %370 : vector<1x8x128xf32> to vector<8x128xf32>
    %372 = arith.truncf %369 : vector<8x128xf32> to vector<8x128xbf16>
    %c1_215 = arith.constant 1 : index
    %c0_216 = arith.constant 0 : index
    %c0_217 = arith.constant 0 : index
    %373 = vector.load %arg3[%c1_215, %c0_216, %c0_217] : memref<2x128x512xbf16, #tpu.memory_space<vmem>>, vector<1x128x512xbf16>
    %374 = vector.shape_cast %373 : vector<1x128x512xbf16> to vector<128x512xbf16>
    %cst_218 = arith.constant dense<0.000000e+00> : vector<8x512xf32>
    %375 = tpu.matmul %372, %374, %cst_218 {dimension_numbers = #tpu.dot_dimension_numbers<[1], [0], [0], [1], [0, 0, 1, 1], [], []>} : vector<8x128xbf16>, vector<128x512xbf16>, vector<8x512xf32> -> vector<8x512xf32>
    %c0_219 = arith.constant 0 : index
    %c0_220 = arith.constant 0 : index
    %c0_221 = arith.constant 0 : index
    %376 = vector.load %arg4[%c0_219, %c0_220, %c0_221] : memref<1x128x512xbf16, #tpu.memory_space<vmem>>, vector<1x128x512xbf16>
    %377 = vector.shape_cast %376 : vector<1x128x512xbf16> to vector<128x512xbf16>
    %cst_222 = arith.constant dense<0.000000e+00> : vector<8x512xf32>
    %378 = tpu.matmul %367, %377, %cst_222 {dimension_numbers = #tpu.dot_dimension_numbers<[1], [0], [0], [1], [0, 0, 1, 1], [], []>} : vector<8x128xbf16>, vector<128x512xbf16>, vector<8x512xf32> -> vector<8x512xf32>
    %379 = arith.addf %375, %378 : vector<8x512xf32>
    %380 = vector.extract_strided_slice %379 {offsets = [0, 0], sizes = [8, 128], strides = [1, 1]} : vector<8x512xf32> to vector<8x128xf32>
    %cst_223 = arith.constant 5.000000e-01 : f32
    %381 = vector.broadcast %cst_223 : f32 to vector<8x128xf32>
    %382 = arith.mulf %381, %380 : vector<8x128xf32>
    %383 = math.tanh %382 : vector<8x128xf32>
    %cst_224 = arith.constant 5.000000e-01 : f32
    %384 = vector.broadcast %cst_224 : f32 to vector<8x128xf32>
    %385 = arith.mulf %384, %383 : vector<8x128xf32>
    %cst_225 = arith.constant 5.000000e-01 : f32
    %386 = vector.broadcast %cst_225 : f32 to vector<8x128xf32>
    %387 = arith.addf %385, %386 : vector<8x128xf32>
    %388 = vector.extract_strided_slice %379 {offsets = [0, 128], sizes = [8, 128], strides = [1, 1]} : vector<8x512xf32> to vector<8x128xf32>
    %cst_226 = arith.constant 5.000000e-01 : f32
    %389 = vector.broadcast %cst_226 : f32 to vector<8x128xf32>
    %390 = arith.mulf %389, %388 : vector<8x128xf32>
    %391 = math.tanh %390 : vector<8x128xf32>
    %cst_227 = arith.constant 5.000000e-01 : f32
    %392 = vector.broadcast %cst_227 : f32 to vector<8x128xf32>
    %393 = arith.mulf %392, %391 : vector<8x128xf32>
    %cst_228 = arith.constant 5.000000e-01 : f32
    %394 = vector.broadcast %cst_228 : f32 to vector<8x128xf32>
    %395 = arith.addf %393, %394 : vector<8x128xf32>
    %396 = vector.extract_strided_slice %379 {offsets = [0, 256], sizes = [8, 128], strides = [1, 1]} : vector<8x512xf32> to vector<8x128xf32>
    %397 = math.tanh %396 : vector<8x128xf32>
    %398 = vector.extract_strided_slice %379 {offsets = [0, 384], sizes = [8, 128], strides = [1, 1]} : vector<8x512xf32> to vector<8x128xf32>
    %cst_229 = arith.constant 5.000000e-01 : f32
    %399 = vector.broadcast %cst_229 : f32 to vector<8x128xf32>
    %400 = arith.mulf %399, %398 : vector<8x128xf32>
    %401 = math.tanh %400 : vector<8x128xf32>
    %cst_230 = arith.constant 5.000000e-01 : f32
    %402 = vector.broadcast %cst_230 : f32 to vector<8x128xf32>
    %403 = arith.mulf %402, %401 : vector<8x128xf32>
    %cst_231 = arith.constant 5.000000e-01 : f32
    %404 = vector.broadcast %cst_231 : f32 to vector<8x128xf32>
    %405 = arith.addf %403, %404 : vector<8x128xf32>
    %406 = arith.mulf %395, %371 : vector<8x128xf32>
    %407 = arith.mulf %387, %397 : vector<8x128xf32>
    %408 = arith.addf %406, %407 : vector<8x128xf32>
    %409 = math.tanh %408 : vector<8x128xf32>
    %410 = arith.mulf %405, %409 : vector<8x128xf32>
    %c1_232 = arith.constant 1 : index
    %c0_233 = arith.constant 0 : index
    %c0_234 = arith.constant 0 : index
    %411 = vector.load %arg7[%c1_232, %c0_233, %c0_234] : memref<2x8x128xf32, #tpu.memory_space<vmem>>, vector<1x8x128xf32>
    %412 = vector.shape_cast %411 : vector<1x8x128xf32> to vector<8x128xf32>
    %413 = vector.shape_cast %408 : vector<8x128xf32> to vector<1x8x128xf32>
    tpu.vector_store %arg7[%c1_232, %c0_233, %c0_234], %413 {strides = array<i32>} : memref<2x8x128xf32, #tpu.memory_space<vmem>>, vector<1x8x128xf32>,
    %c1_235 = arith.constant 1 : index
    %c0_236 = arith.constant 0 : index
    %c0_237 = arith.constant 0 : index
    %414 = vector.load %arg6[%c1_235, %c0_236, %c0_237] : memref<2x8x128xf32, #tpu.memory_space<vmem>>, vector<1x8x128xf32>
    %415 = vector.shape_cast %414 : vector<1x8x128xf32> to vector<8x128xf32>
    %416 = vector.shape_cast %410 : vector<8x128xf32> to vector<1x8x128xf32>
    tpu.vector_store %arg6[%c1_235, %c0_236, %c0_237], %416 {strides = array<i32>} : memref<2x8x128xf32, #tpu.memory_space<vmem>>, vector<1x8x128xf32>,
    %417 = arith.index_cast %c3_i32 : i32 to index
    %c0_238 = arith.constant 0 : index
    %c0_239 = arith.constant 0 : index
    %418 = vector.load %arg5[%417, %c0_238, %c0_239] : memref<8x8x128xf32, #tpu.memory_space<vmem>>, vector<1x8x128xf32>
    %419 = vector.shape_cast %418 : vector<1x8x128xf32> to vector<8x128xf32>
    %420 = vector.shape_cast %410 : vector<8x128xf32> to vector<1x8x128xf32>
    tpu.vector_store %arg5[%417, %c0_238, %c0_239], %420 {strides = array<i32>} : memref<8x8x128xf32, #tpu.memory_space<vmem>>, vector<1x8x128xf32>,
    %c4_i32 = arith.constant 4 : i32
    %c0_240 = arith.constant 0 : index
    %c0_241 = arith.constant 0 : index
    %c0_242 = arith.constant 0 : index
    %421 = vector.load %arg6[%c0_240, %c0_241, %c0_242] : memref<2x8x128xf32, #tpu.memory_space<vmem>>, vector<1x8x128xf32>
    %422 = vector.shape_cast %421 : vector<1x8x128xf32> to vector<8x128xf32>
    %c0_243 = arith.constant 0 : index
    %c0_244 = arith.constant 0 : index
    %c0_245 = arith.constant 0 : index
    %423 = vector.load %arg7[%c0_243, %c0_244, %c0_245] : memref<2x8x128xf32, #tpu.memory_space<vmem>>, vector<1x8x128xf32>
    %424 = vector.shape_cast %423 : vector<1x8x128xf32> to vector<8x128xf32>
    %425 = arith.truncf %422 : vector<8x128xf32> to vector<8x128xbf16>
    %c0_246 = arith.constant 0 : index
    %c0_247 = arith.constant 0 : index
    %c0_248 = arith.constant 0 : index
    %426 = vector.load %arg3[%c0_246, %c0_247, %c0_248] : memref<2x128x512xbf16, #tpu.memory_space<vmem>>, vector<1x128x512xbf16>
    %427 = vector.shape_cast %426 : vector<1x128x512xbf16> to vector<128x512xbf16>
    %cst_249 = arith.constant dense<0.000000e+00> : vector<8x512xf32>
    %428 = tpu.matmul %425, %427, %cst_249 {dimension_numbers = #tpu.dot_dimension_numbers<[1], [0], [0], [1], [0, 0, 1, 1], [], []>} : vector<8x128xbf16>, vector<128x512xbf16>, vector<8x512xf32> -> vector<8x512xf32>
    %429 = arith.index_cast %c4_i32 : i32 to index
    %c0_250 = arith.constant 0 : index
    %c0_251 = arith.constant 0 : index
    %430 = vector.load %arg8[%429, %c0_250, %c0_251] : memref<8x8x512xf32, #tpu.memory_space<vmem>>, vector<1x8x512xf32>
    %431 = vector.shape_cast %430 : vector<1x8x512xf32> to vector<8x512xf32>
    %432 = arith.addf %428, %431 : vector<8x512xf32>
    %433 = vector.extract_strided_slice %432 {offsets = [0, 0], sizes = [8, 128], strides = [1, 1]} : vector<8x512xf32> to vector<8x128xf32>
    %cst_252 = arith.constant 5.000000e-01 : f32
    %434 = vector.broadcast %cst_252 : f32 to vector<8x128xf32>
    %435 = arith.mulf %434, %433 : vector<8x128xf32>
    %436 = math.tanh %435 : vector<8x128xf32>
    %cst_253 = arith.constant 5.000000e-01 : f32
    %437 = vector.broadcast %cst_253 : f32 to vector<8x128xf32>
    %438 = arith.mulf %437, %436 : vector<8x128xf32>
    %cst_254 = arith.constant 5.000000e-01 : f32
    %439 = vector.broadcast %cst_254 : f32 to vector<8x128xf32>
    %440 = arith.addf %438, %439 : vector<8x128xf32>
    %441 = vector.extract_strided_slice %432 {offsets = [0, 128], sizes = [8, 128], strides = [1, 1]} : vector<8x512xf32> to vector<8x128xf32>
    %cst_255 = arith.constant 5.000000e-01 : f32
    %442 = vector.broadcast %cst_255 : f32 to vector<8x128xf32>
    %443 = arith.mulf %442, %441 : vector<8x128xf32>
    %444 = math.tanh %443 : vector<8x128xf32>
    %cst_256 = arith.constant 5.000000e-01 : f32
    %445 = vector.broadcast %cst_256 : f32 to vector<8x128xf32>
    %446 = arith.mulf %445, %444 : vector<8x128xf32>
    %cst_257 = arith.constant 5.000000e-01 : f32
    %447 = vector.broadcast %cst_257 : f32 to vector<8x128xf32>
    %448 = arith.addf %446, %447 : vector<8x128xf32>
    %449 = vector.extract_strided_slice %432 {offsets = [0, 256], sizes = [8, 128], strides = [1, 1]} : vector<8x512xf32> to vector<8x128xf32>
    %450 = math.tanh %449 : vector<8x128xf32>
    %451 = vector.extract_strided_slice %432 {offsets = [0, 384], sizes = [8, 128], strides = [1, 1]} : vector<8x512xf32> to vector<8x128xf32>
    %cst_258 = arith.constant 5.000000e-01 : f32
    %452 = vector.broadcast %cst_258 : f32 to vector<8x128xf32>
    %453 = arith.mulf %452, %451 : vector<8x128xf32>
    %454 = math.tanh %453 : vector<8x128xf32>
    %cst_259 = arith.constant 5.000000e-01 : f32
    %455 = vector.broadcast %cst_259 : f32 to vector<8x128xf32>
    %456 = arith.mulf %455, %454 : vector<8x128xf32>
    %cst_260 = arith.constant 5.000000e-01 : f32
    %457 = vector.broadcast %cst_260 : f32 to vector<8x128xf32>
    %458 = arith.addf %456, %457 : vector<8x128xf32>
    %459 = arith.mulf %448, %424 : vector<8x128xf32>
    %460 = arith.mulf %440, %450 : vector<8x128xf32>
    %461 = arith.addf %459, %460 : vector<8x128xf32>
    %462 = math.tanh %461 : vector<8x128xf32>
    %463 = arith.mulf %458, %462 : vector<8x128xf32>
    %c0_261 = arith.constant 0 : index
    %c0_262 = arith.constant 0 : index
    %c0_263 = arith.constant 0 : index
    %464 = vector.load %arg7[%c0_261, %c0_262, %c0_263] : memref<2x8x128xf32, #tpu.memory_space<vmem>>, vector<1x8x128xf32>
    %465 = vector.shape_cast %464 : vector<1x8x128xf32> to vector<8x128xf32>
    %466 = vector.shape_cast %461 : vector<8x128xf32> to vector<1x8x128xf32>
    tpu.vector_store %arg7[%c0_261, %c0_262, %c0_263], %466 {strides = array<i32>} : memref<2x8x128xf32, #tpu.memory_space<vmem>>, vector<1x8x128xf32>,
    %c0_264 = arith.constant 0 : index
    %c0_265 = arith.constant 0 : index
    %c0_266 = arith.constant 0 : index
    %467 = vector.load %arg6[%c0_264, %c0_265, %c0_266] : memref<2x8x128xf32, #tpu.memory_space<vmem>>, vector<1x8x128xf32>
    %468 = vector.shape_cast %467 : vector<1x8x128xf32> to vector<8x128xf32>
    %469 = vector.shape_cast %463 : vector<8x128xf32> to vector<1x8x128xf32>
    tpu.vector_store %arg6[%c0_264, %c0_265, %c0_266], %469 {strides = array<i32>} : memref<2x8x128xf32, #tpu.memory_space<vmem>>, vector<1x8x128xf32>,
    %470 = arith.truncf %463 : vector<8x128xf32> to vector<8x128xbf16>
    %c1_267 = arith.constant 1 : index
    %c0_268 = arith.constant 0 : index
    %c0_269 = arith.constant 0 : index
    %471 = vector.load %arg6[%c1_267, %c0_268, %c0_269] : memref<2x8x128xf32, #tpu.memory_space<vmem>>, vector<1x8x128xf32>
    %472 = vector.shape_cast %471 : vector<1x8x128xf32> to vector<8x128xf32>
    %c1_270 = arith.constant 1 : index
    %c0_271 = arith.constant 0 : index
    %c0_272 = arith.constant 0 : index
    %473 = vector.load %arg7[%c1_270, %c0_271, %c0_272] : memref<2x8x128xf32, #tpu.memory_space<vmem>>, vector<1x8x128xf32>
    %474 = vector.shape_cast %473 : vector<1x8x128xf32> to vector<8x128xf32>
    %475 = arith.truncf %472 : vector<8x128xf32> to vector<8x128xbf16>
    %c1_273 = arith.constant 1 : index
    %c0_274 = arith.constant 0 : index
    %c0_275 = arith.constant 0 : index
    %476 = vector.load %arg3[%c1_273, %c0_274, %c0_275] : memref<2x128x512xbf16, #tpu.memory_space<vmem>>, vector<1x128x512xbf16>
    %477 = vector.shape_cast %476 : vector<1x128x512xbf16> to vector<128x512xbf16>
    %cst_276 = arith.constant dense<0.000000e+00> : vector<8x512xf32>
    %478 = tpu.matmul %475, %477, %cst_276 {dimension_numbers = #tpu.dot_dimension_numbers<[1], [0], [0], [1], [0, 0, 1, 1], [], []>} : vector<8x128xbf16>, vector<128x512xbf16>, vector<8x512xf32> -> vector<8x512xf32>
    %c0_277 = arith.constant 0 : index
    %c0_278 = arith.constant 0 : index
    %c0_279 = arith.constant 0 : index
    %479 = vector.load %arg4[%c0_277, %c0_278, %c0_279] : memref<1x128x512xbf16, #tpu.memory_space<vmem>>, vector<1x128x512xbf16>
    %480 = vector.shape_cast %479 : vector<1x128x512xbf16> to vector<128x512xbf16>
    %cst_280 = arith.constant dense<0.000000e+00> : vector<8x512xf32>
    %481 = tpu.matmul %470, %480, %cst_280 {dimension_numbers = #tpu.dot_dimension_numbers<[1], [0], [0], [1], [0, 0, 1, 1], [], []>} : vector<8x128xbf16>, vector<128x512xbf16>, vector<8x512xf32> -> vector<8x512xf32>
    %482 = arith.addf %478, %481 : vector<8x512xf32>
    %483 = vector.extract_strided_slice %482 {offsets = [0, 0], sizes = [8, 128], strides = [1, 1]} : vector<8x512xf32> to vector<8x128xf32>
    %cst_281 = arith.constant 5.000000e-01 : f32
    %484 = vector.broadcast %cst_281 : f32 to vector<8x128xf32>
    %485 = arith.mulf %484, %483 : vector<8x128xf32>
    %486 = math.tanh %485 : vector<8x128xf32>
    %cst_282 = arith.constant 5.000000e-01 : f32
    %487 = vector.broadcast %cst_282 : f32 to vector<8x128xf32>
    %488 = arith.mulf %487, %486 : vector<8x128xf32>
    %cst_283 = arith.constant 5.000000e-01 : f32
    %489 = vector.broadcast %cst_283 : f32 to vector<8x128xf32>
    %490 = arith.addf %488, %489 : vector<8x128xf32>
    %491 = vector.extract_strided_slice %482 {offsets = [0, 128], sizes = [8, 128], strides = [1, 1]} : vector<8x512xf32> to vector<8x128xf32>
    %cst_284 = arith.constant 5.000000e-01 : f32
    %492 = vector.broadcast %cst_284 : f32 to vector<8x128xf32>
    %493 = arith.mulf %492, %491 : vector<8x128xf32>
    %494 = math.tanh %493 : vector<8x128xf32>
    %cst_285 = arith.constant 5.000000e-01 : f32
    %495 = vector.broadcast %cst_285 : f32 to vector<8x128xf32>
    %496 = arith.mulf %495, %494 : vector<8x128xf32>
    %cst_286 = arith.constant 5.000000e-01 : f32
    %497 = vector.broadcast %cst_286 : f32 to vector<8x128xf32>
    %498 = arith.addf %496, %497 : vector<8x128xf32>
    %499 = vector.extract_strided_slice %482 {offsets = [0, 256], sizes = [8, 128], strides = [1, 1]} : vector<8x512xf32> to vector<8x128xf32>
    %500 = math.tanh %499 : vector<8x128xf32>
    %501 = vector.extract_strided_slice %482 {offsets = [0, 384], sizes = [8, 128], strides = [1, 1]} : vector<8x512xf32> to vector<8x128xf32>
    %cst_287 = arith.constant 5.000000e-01 : f32
    %502 = vector.broadcast %cst_287 : f32 to vector<8x128xf32>
    %503 = arith.mulf %502, %501 : vector<8x128xf32>
    %504 = math.tanh %503 : vector<8x128xf32>
    %cst_288 = arith.constant 5.000000e-01 : f32
    %505 = vector.broadcast %cst_288 : f32 to vector<8x128xf32>
    %506 = arith.mulf %505, %504 : vector<8x128xf32>
    %cst_289 = arith.constant 5.000000e-01 : f32
    %507 = vector.broadcast %cst_289 : f32 to vector<8x128xf32>
    %508 = arith.addf %506, %507 : vector<8x128xf32>
    %509 = arith.mulf %498, %474 : vector<8x128xf32>
    %510 = arith.mulf %490, %500 : vector<8x128xf32>
    %511 = arith.addf %509, %510 : vector<8x128xf32>
    %512 = math.tanh %511 : vector<8x128xf32>
    %513 = arith.mulf %508, %512 : vector<8x128xf32>
    %c1_290 = arith.constant 1 : index
    %c0_291 = arith.constant 0 : index
    %c0_292 = arith.constant 0 : index
    %514 = vector.load %arg7[%c1_290, %c0_291, %c0_292] : memref<2x8x128xf32, #tpu.memory_space<vmem>>, vector<1x8x128xf32>
    %515 = vector.shape_cast %514 : vector<1x8x128xf32> to vector<8x128xf32>
    %516 = vector.shape_cast %511 : vector<8x128xf32> to vector<1x8x128xf32>
    tpu.vector_store %arg7[%c1_290, %c0_291, %c0_292], %516 {strides = array<i32>} : memref<2x8x128xf32, #tpu.memory_space<vmem>>, vector<1x8x128xf32>,
    %c1_293 = arith.constant 1 : index
    %c0_294 = arith.constant 0 : index
    %c0_295 = arith.constant 0 : index
    %517 = vector.load %arg6[%c1_293, %c0_294, %c0_295] : memref<2x8x128xf32, #tpu.memory_space<vmem>>, vector<1x8x128xf32>
    %518 = vector.shape_cast %517 : vector<1x8x128xf32> to vector<8x128xf32>
    %519 = vector.shape_cast %513 : vector<8x128xf32> to vector<1x8x128xf32>
    tpu.vector_store %arg6[%c1_293, %c0_294, %c0_295], %519 {strides = array<i32>} : memref<2x8x128xf32, #tpu.memory_space<vmem>>, vector<1x8x128xf32>,
    %520 = arith.index_cast %c4_i32 : i32 to index
    %c0_296 = arith.constant 0 : index
    %c0_297 = arith.constant 0 : index
    %521 = vector.load %arg5[%520, %c0_296, %c0_297] : memref<8x8x128xf32, #tpu.memory_space<vmem>>, vector<1x8x128xf32>
    %522 = vector.shape_cast %521 : vector<1x8x128xf32> to vector<8x128xf32>
    %523 = vector.shape_cast %513 : vector<8x128xf32> to vector<1x8x128xf32>
    tpu.vector_store %arg5[%520, %c0_296, %c0_297], %523 {strides = array<i32>} : memref<8x8x128xf32, #tpu.memory_space<vmem>>, vector<1x8x128xf32>,
    %c5_i32 = arith.constant 5 : i32
    %c0_298 = arith.constant 0 : index
    %c0_299 = arith.constant 0 : index
    %c0_300 = arith.constant 0 : index
    %524 = vector.load %arg6[%c0_298, %c0_299, %c0_300] : memref<2x8x128xf32, #tpu.memory_space<vmem>>, vector<1x8x128xf32>
    %525 = vector.shape_cast %524 : vector<1x8x128xf32> to vector<8x128xf32>
    %c0_301 = arith.constant 0 : index
    %c0_302 = arith.constant 0 : index
    %c0_303 = arith.constant 0 : index
    %526 = vector.load %arg7[%c0_301, %c0_302, %c0_303] : memref<2x8x128xf32, #tpu.memory_space<vmem>>, vector<1x8x128xf32>
    %527 = vector.shape_cast %526 : vector<1x8x128xf32> to vector<8x128xf32>
    %528 = arith.truncf %525 : vector<8x128xf32> to vector<8x128xbf16>
    %c0_304 = arith.constant 0 : index
    %c0_305 = arith.constant 0 : index
    %c0_306 = arith.constant 0 : index
    %529 = vector.load %arg3[%c0_304, %c0_305, %c0_306] : memref<2x128x512xbf16, #tpu.memory_space<vmem>>, vector<1x128x512xbf16>
    %530 = vector.shape_cast %529 : vector<1x128x512xbf16> to vector<128x512xbf16>
    %cst_307 = arith.constant dense<0.000000e+00> : vector<8x512xf32>
    %531 = tpu.matmul %528, %530, %cst_307 {dimension_numbers = #tpu.dot_dimension_numbers<[1], [0], [0], [1], [0, 0, 1, 1], [], []>} : vector<8x128xbf16>, vector<128x512xbf16>, vector<8x512xf32> -> vector<8x512xf32>
    %532 = arith.index_cast %c5_i32 : i32 to index
    %c0_308 = arith.constant 0 : index
    %c0_309 = arith.constant 0 : index
    %533 = vector.load %arg8[%532, %c0_308, %c0_309] : memref<8x8x512xf32, #tpu.memory_space<vmem>>, vector<1x8x512xf32>
    %534 = vector.shape_cast %533 : vector<1x8x512xf32> to vector<8x512xf32>
    %535 = arith.addf %531, %534 : vector<8x512xf32>
    %536 = vector.extract_strided_slice %535 {offsets = [0, 0], sizes = [8, 128], strides = [1, 1]} : vector<8x512xf32> to vector<8x128xf32>
    %cst_310 = arith.constant 5.000000e-01 : f32
    %537 = vector.broadcast %cst_310 : f32 to vector<8x128xf32>
    %538 = arith.mulf %537, %536 : vector<8x128xf32>
    %539 = math.tanh %538 : vector<8x128xf32>
    %cst_311 = arith.constant 5.000000e-01 : f32
    %540 = vector.broadcast %cst_311 : f32 to vector<8x128xf32>
    %541 = arith.mulf %540, %539 : vector<8x128xf32>
    %cst_312 = arith.constant 5.000000e-01 : f32
    %542 = vector.broadcast %cst_312 : f32 to vector<8x128xf32>
    %543 = arith.addf %541, %542 : vector<8x128xf32>
    %544 = vector.extract_strided_slice %535 {offsets = [0, 128], sizes = [8, 128], strides = [1, 1]} : vector<8x512xf32> to vector<8x128xf32>
    %cst_313 = arith.constant 5.000000e-01 : f32
    %545 = vector.broadcast %cst_313 : f32 to vector<8x128xf32>
    %546 = arith.mulf %545, %544 : vector<8x128xf32>
    %547 = math.tanh %546 : vector<8x128xf32>
    %cst_314 = arith.constant 5.000000e-01 : f32
    %548 = vector.broadcast %cst_314 : f32 to vector<8x128xf32>
    %549 = arith.mulf %548, %547 : vector<8x128xf32>
    %cst_315 = arith.constant 5.000000e-01 : f32
    %550 = vector.broadcast %cst_315 : f32 to vector<8x128xf32>
    %551 = arith.addf %549, %550 : vector<8x128xf32>
    %552 = vector.extract_strided_slice %535 {offsets = [0, 256], sizes = [8, 128], strides = [1, 1]} : vector<8x512xf32> to vector<8x128xf32>
    %553 = math.tanh %552 : vector<8x128xf32>
    %554 = vector.extract_strided_slice %535 {offsets = [0, 384], sizes = [8, 128], strides = [1, 1]} : vector<8x512xf32> to vector<8x128xf32>
    %cst_316 = arith.constant 5.000000e-01 : f32
    %555 = vector.broadcast %cst_316 : f32 to vector<8x128xf32>
    %556 = arith.mulf %555, %554 : vector<8x128xf32>
    %557 = math.tanh %556 : vector<8x128xf32>
    %cst_317 = arith.constant 5.000000e-01 : f32
    %558 = vector.broadcast %cst_317 : f32 to vector<8x128xf32>
    %559 = arith.mulf %558, %557 : vector<8x128xf32>
    %cst_318 = arith.constant 5.000000e-01 : f32
    %560 = vector.broadcast %cst_318 : f32 to vector<8x128xf32>
    %561 = arith.addf %559, %560 : vector<8x128xf32>
    %562 = arith.mulf %551, %527 : vector<8x128xf32>
    %563 = arith.mulf %543, %553 : vector<8x128xf32>
    %564 = arith.addf %562, %563 : vector<8x128xf32>
    %565 = math.tanh %564 : vector<8x128xf32>
    %566 = arith.mulf %561, %565 : vector<8x128xf32>
    %c0_319 = arith.constant 0 : index
    %c0_320 = arith.constant 0 : index
    %c0_321 = arith.constant 0 : index
    %567 = vector.load %arg7[%c0_319, %c0_320, %c0_321] : memref<2x8x128xf32, #tpu.memory_space<vmem>>, vector<1x8x128xf32>
    %568 = vector.shape_cast %567 : vector<1x8x128xf32> to vector<8x128xf32>
    %569 = vector.shape_cast %564 : vector<8x128xf32> to vector<1x8x128xf32>
    tpu.vector_store %arg7[%c0_319, %c0_320, %c0_321], %569 {strides = array<i32>} : memref<2x8x128xf32, #tpu.memory_space<vmem>>, vector<1x8x128xf32>,
    %c0_322 = arith.constant 0 : index
    %c0_323 = arith.constant 0 : index
    %c0_324 = arith.constant 0 : index
    %570 = vector.load %arg6[%c0_322, %c0_323, %c0_324] : memref<2x8x128xf32, #tpu.memory_space<vmem>>, vector<1x8x128xf32>
    %571 = vector.shape_cast %570 : vector<1x8x128xf32> to vector<8x128xf32>
    %572 = vector.shape_cast %566 : vector<8x128xf32> to vector<1x8x128xf32>
    tpu.vector_store %arg6[%c0_322, %c0_323, %c0_324], %572 {strides = array<i32>} : memref<2x8x128xf32, #tpu.memory_space<vmem>>, vector<1x8x128xf32>,
    %573 = arith.truncf %566 : vector<8x128xf32> to vector<8x128xbf16>
    %c1_325 = arith.constant 1 : index
    %c0_326 = arith.constant 0 : index
    %c0_327 = arith.constant 0 : index
    %574 = vector.load %arg6[%c1_325, %c0_326, %c0_327] : memref<2x8x128xf32, #tpu.memory_space<vmem>>, vector<1x8x128xf32>
    %575 = vector.shape_cast %574 : vector<1x8x128xf32> to vector<8x128xf32>
    %c1_328 = arith.constant 1 : index
    %c0_329 = arith.constant 0 : index
    %c0_330 = arith.constant 0 : index
    %576 = vector.load %arg7[%c1_328, %c0_329, %c0_330] : memref<2x8x128xf32, #tpu.memory_space<vmem>>, vector<1x8x128xf32>
    %577 = vector.shape_cast %576 : vector<1x8x128xf32> to vector<8x128xf32>
    %578 = arith.truncf %575 : vector<8x128xf32> to vector<8x128xbf16>
    %c1_331 = arith.constant 1 : index
    %c0_332 = arith.constant 0 : index
    %c0_333 = arith.constant 0 : index
    %579 = vector.load %arg3[%c1_331, %c0_332, %c0_333] : memref<2x128x512xbf16, #tpu.memory_space<vmem>>, vector<1x128x512xbf16>
    %580 = vector.shape_cast %579 : vector<1x128x512xbf16> to vector<128x512xbf16>
    %cst_334 = arith.constant dense<0.000000e+00> : vector<8x512xf32>
    %581 = tpu.matmul %578, %580, %cst_334 {dimension_numbers = #tpu.dot_dimension_numbers<[1], [0], [0], [1], [0, 0, 1, 1], [], []>} : vector<8x128xbf16>, vector<128x512xbf16>, vector<8x512xf32> -> vector<8x512xf32>
    %c0_335 = arith.constant 0 : index
    %c0_336 = arith.constant 0 : index
    %c0_337 = arith.constant 0 : index
    %582 = vector.load %arg4[%c0_335, %c0_336, %c0_337] : memref<1x128x512xbf16, #tpu.memory_space<vmem>>, vector<1x128x512xbf16>
    %583 = vector.shape_cast %582 : vector<1x128x512xbf16> to vector<128x512xbf16>
    %cst_338 = arith.constant dense<0.000000e+00> : vector<8x512xf32>
    %584 = tpu.matmul %573, %583, %cst_338 {dimension_numbers = #tpu.dot_dimension_numbers<[1], [0], [0], [1], [0, 0, 1, 1], [], []>} : vector<8x128xbf16>, vector<128x512xbf16>, vector<8x512xf32> -> vector<8x512xf32>
    %585 = arith.addf %581, %584 : vector<8x512xf32>
    %586 = vector.extract_strided_slice %585 {offsets = [0, 0], sizes = [8, 128], strides = [1, 1]} : vector<8x512xf32> to vector<8x128xf32>
    %cst_339 = arith.constant 5.000000e-01 : f32
    %587 = vector.broadcast %cst_339 : f32 to vector<8x128xf32>
    %588 = arith.mulf %587, %586 : vector<8x128xf32>
    %589 = math.tanh %588 : vector<8x128xf32>
    %cst_340 = arith.constant 5.000000e-01 : f32
    %590 = vector.broadcast %cst_340 : f32 to vector<8x128xf32>
    %591 = arith.mulf %590, %589 : vector<8x128xf32>
    %cst_341 = arith.constant 5.000000e-01 : f32
    %592 = vector.broadcast %cst_341 : f32 to vector<8x128xf32>
    %593 = arith.addf %591, %592 : vector<8x128xf32>
    %594 = vector.extract_strided_slice %585 {offsets = [0, 128], sizes = [8, 128], strides = [1, 1]} : vector<8x512xf32> to vector<8x128xf32>
    %cst_342 = arith.constant 5.000000e-01 : f32
    %595 = vector.broadcast %cst_342 : f32 to vector<8x128xf32>
    %596 = arith.mulf %595, %594 : vector<8x128xf32>
    %597 = math.tanh %596 : vector<8x128xf32>
    %cst_343 = arith.constant 5.000000e-01 : f32
    %598 = vector.broadcast %cst_343 : f32 to vector<8x128xf32>
    %599 = arith.mulf %598, %597 : vector<8x128xf32>
    %cst_344 = arith.constant 5.000000e-01 : f32
    %600 = vector.broadcast %cst_344 : f32 to vector<8x128xf32>
    %601 = arith.addf %599, %600 : vector<8x128xf32>
    %602 = vector.extract_strided_slice %585 {offsets = [0, 256], sizes = [8, 128], strides = [1, 1]} : vector<8x512xf32> to vector<8x128xf32>
    %603 = math.tanh %602 : vector<8x128xf32>
    %604 = vector.extract_strided_slice %585 {offsets = [0, 384], sizes = [8, 128], strides = [1, 1]} : vector<8x512xf32> to vector<8x128xf32>
    %cst_345 = arith.constant 5.000000e-01 : f32
    %605 = vector.broadcast %cst_345 : f32 to vector<8x128xf32>
    %606 = arith.mulf %605, %604 : vector<8x128xf32>
    %607 = math.tanh %606 : vector<8x128xf32>
    %cst_346 = arith.constant 5.000000e-01 : f32
    %608 = vector.broadcast %cst_346 : f32 to vector<8x128xf32>
    %609 = arith.mulf %608, %607 : vector<8x128xf32>
    %cst_347 = arith.constant 5.000000e-01 : f32
    %610 = vector.broadcast %cst_347 : f32 to vector<8x128xf32>
    %611 = arith.addf %609, %610 : vector<8x128xf32>
    %612 = arith.mulf %601, %577 : vector<8x128xf32>
    %613 = arith.mulf %593, %603 : vector<8x128xf32>
    %614 = arith.addf %612, %613 : vector<8x128xf32>
    %615 = math.tanh %614 : vector<8x128xf32>
    %616 = arith.mulf %611, %615 : vector<8x128xf32>
    %c1_348 = arith.constant 1 : index
    %c0_349 = arith.constant 0 : index
    %c0_350 = arith.constant 0 : index
    %617 = vector.load %arg7[%c1_348, %c0_349, %c0_350] : memref<2x8x128xf32, #tpu.memory_space<vmem>>, vector<1x8x128xf32>
    %618 = vector.shape_cast %617 : vector<1x8x128xf32> to vector<8x128xf32>
    %619 = vector.shape_cast %614 : vector<8x128xf32> to vector<1x8x128xf32>
    tpu.vector_store %arg7[%c1_348, %c0_349, %c0_350], %619 {strides = array<i32>} : memref<2x8x128xf32, #tpu.memory_space<vmem>>, vector<1x8x128xf32>,
    %c1_351 = arith.constant 1 : index
    %c0_352 = arith.constant 0 : index
    %c0_353 = arith.constant 0 : index
    %620 = vector.load %arg6[%c1_351, %c0_352, %c0_353] : memref<2x8x128xf32, #tpu.memory_space<vmem>>, vector<1x8x128xf32>
    %621 = vector.shape_cast %620 : vector<1x8x128xf32> to vector<8x128xf32>
    %622 = vector.shape_cast %616 : vector<8x128xf32> to vector<1x8x128xf32>
    tpu.vector_store %arg6[%c1_351, %c0_352, %c0_353], %622 {strides = array<i32>} : memref<2x8x128xf32, #tpu.memory_space<vmem>>, vector<1x8x128xf32>,
    %623 = arith.index_cast %c5_i32 : i32 to index
    %c0_354 = arith.constant 0 : index
    %c0_355 = arith.constant 0 : index
    %624 = vector.load %arg5[%623, %c0_354, %c0_355] : memref<8x8x128xf32, #tpu.memory_space<vmem>>, vector<1x8x128xf32>
    %625 = vector.shape_cast %624 : vector<1x8x128xf32> to vector<8x128xf32>
    %626 = vector.shape_cast %616 : vector<8x128xf32> to vector<1x8x128xf32>
    tpu.vector_store %arg5[%623, %c0_354, %c0_355], %626 {strides = array<i32>} : memref<8x8x128xf32, #tpu.memory_space<vmem>>, vector<1x8x128xf32>,
    %c6_i32 = arith.constant 6 : i32
    %c0_356 = arith.constant 0 : index
    %c0_357 = arith.constant 0 : index
    %c0_358 = arith.constant 0 : index
    %627 = vector.load %arg6[%c0_356, %c0_357, %c0_358] : memref<2x8x128xf32, #tpu.memory_space<vmem>>, vector<1x8x128xf32>
    %628 = vector.shape_cast %627 : vector<1x8x128xf32> to vector<8x128xf32>
    %c0_359 = arith.constant 0 : index
    %c0_360 = arith.constant 0 : index
    %c0_361 = arith.constant 0 : index
    %629 = vector.load %arg7[%c0_359, %c0_360, %c0_361] : memref<2x8x128xf32, #tpu.memory_space<vmem>>, vector<1x8x128xf32>
    %630 = vector.shape_cast %629 : vector<1x8x128xf32> to vector<8x128xf32>
    %631 = arith.truncf %628 : vector<8x128xf32> to vector<8x128xbf16>
    %c0_362 = arith.constant 0 : index
    %c0_363 = arith.constant 0 : index
    %c0_364 = arith.constant 0 : index
    %632 = vector.load %arg3[%c0_362, %c0_363, %c0_364] : memref<2x128x512xbf16, #tpu.memory_space<vmem>>, vector<1x128x512xbf16>
    %633 = vector.shape_cast %632 : vector<1x128x512xbf16> to vector<128x512xbf16>
    %cst_365 = arith.constant dense<0.000000e+00> : vector<8x512xf32>
    %634 = tpu.matmul %631, %633, %cst_365 {dimension_numbers = #tpu.dot_dimension_numbers<[1], [0], [0], [1], [0, 0, 1, 1], [], []>} : vector<8x128xbf16>, vector<128x512xbf16>, vector<8x512xf32> -> vector<8x512xf32>
    %635 = arith.index_cast %c6_i32 : i32 to index
    %c0_366 = arith.constant 0 : index
    %c0_367 = arith.constant 0 : index
    %636 = vector.load %arg8[%635, %c0_366, %c0_367] : memref<8x8x512xf32, #tpu.memory_space<vmem>>, vector<1x8x512xf32>
    %637 = vector.shape_cast %636 : vector<1x8x512xf32> to vector<8x512xf32>
    %638 = arith.addf %634, %637 : vector<8x512xf32>
    %639 = vector.extract_strided_slice %638 {offsets = [0, 0], sizes = [8, 128], strides = [1, 1]} : vector<8x512xf32> to vector<8x128xf32>
    %cst_368 = arith.constant 5.000000e-01 : f32
    %640 = vector.broadcast %cst_368 : f32 to vector<8x128xf32>
    %641 = arith.mulf %640, %639 : vector<8x128xf32>
    %642 = math.tanh %641 : vector<8x128xf32>
    %cst_369 = arith.constant 5.000000e-01 : f32
    %643 = vector.broadcast %cst_369 : f32 to vector<8x128xf32>
    %644 = arith.mulf %643, %642 : vector<8x128xf32>
    %cst_370 = arith.constant 5.000000e-01 : f32
    %645 = vector.broadcast %cst_370 : f32 to vector<8x128xf32>
    %646 = arith.addf %644, %645 : vector<8x128xf32>
    %647 = vector.extract_strided_slice %638 {offsets = [0, 128], sizes = [8, 128], strides = [1, 1]} : vector<8x512xf32> to vector<8x128xf32>
    %cst_371 = arith.constant 5.000000e-01 : f32
    %648 = vector.broadcast %cst_371 : f32 to vector<8x128xf32>
    %649 = arith.mulf %648, %647 : vector<8x128xf32>
    %650 = math.tanh %649 : vector<8x128xf32>
    %cst_372 = arith.constant 5.000000e-01 : f32
    %651 = vector.broadcast %cst_372 : f32 to vector<8x128xf32>
    %652 = arith.mulf %651, %650 : vector<8x128xf32>
    %cst_373 = arith.constant 5.000000e-01 : f32
    %653 = vector.broadcast %cst_373 : f32 to vector<8x128xf32>
    %654 = arith.addf %652, %653 : vector<8x128xf32>
    %655 = vector.extract_strided_slice %638 {offsets = [0, 256], sizes = [8, 128], strides = [1, 1]} : vector<8x512xf32> to vector<8x128xf32>
    %656 = math.tanh %655 : vector<8x128xf32>
    %657 = vector.extract_strided_slice %638 {offsets = [0, 384], sizes = [8, 128], strides = [1, 1]} : vector<8x512xf32> to vector<8x128xf32>
    %cst_374 = arith.constant 5.000000e-01 : f32
    %658 = vector.broadcast %cst_374 : f32 to vector<8x128xf32>
    %659 = arith.mulf %658, %657 : vector<8x128xf32>
    %660 = math.tanh %659 : vector<8x128xf32>
    %cst_375 = arith.constant 5.000000e-01 : f32
    %661 = vector.broadcast %cst_375 : f32 to vector<8x128xf32>
    %662 = arith.mulf %661, %660 : vector<8x128xf32>
    %cst_376 = arith.constant 5.000000e-01 : f32
    %663 = vector.broadcast %cst_376 : f32 to vector<8x128xf32>
    %664 = arith.addf %662, %663 : vector<8x128xf32>
    %665 = arith.mulf %654, %630 : vector<8x128xf32>
    %666 = arith.mulf %646, %656 : vector<8x128xf32>
    %667 = arith.addf %665, %666 : vector<8x128xf32>
    %668 = math.tanh %667 : vector<8x128xf32>
    %669 = arith.mulf %664, %668 : vector<8x128xf32>
    %c0_377 = arith.constant 0 : index
    %c0_378 = arith.constant 0 : index
    %c0_379 = arith.constant 0 : index
    %670 = vector.load %arg7[%c0_377, %c0_378, %c0_379] : memref<2x8x128xf32, #tpu.memory_space<vmem>>, vector<1x8x128xf32>
    %671 = vector.shape_cast %670 : vector<1x8x128xf32> to vector<8x128xf32>
    %672 = vector.shape_cast %667 : vector<8x128xf32> to vector<1x8x128xf32>
    tpu.vector_store %arg7[%c0_377, %c0_378, %c0_379], %672 {strides = array<i32>} : memref<2x8x128xf32, #tpu.memory_space<vmem>>, vector<1x8x128xf32>,
    %c0_380 = arith.constant 0 : index
    %c0_381 = arith.constant 0 : index
    %c0_382 = arith.constant 0 : index
    %673 = vector.load %arg6[%c0_380, %c0_381, %c0_382] : memref<2x8x128xf32, #tpu.memory_space<vmem>>, vector<1x8x128xf32>
    %674 = vector.shape_cast %673 : vector<1x8x128xf32> to vector<8x128xf32>
    %675 = vector.shape_cast %669 : vector<8x128xf32> to vector<1x8x128xf32>
    tpu.vector_store %arg6[%c0_380, %c0_381, %c0_382], %675 {strides = array<i32>} : memref<2x8x128xf32, #tpu.memory_space<vmem>>, vector<1x8x128xf32>,
    %676 = arith.truncf %669 : vector<8x128xf32> to vector<8x128xbf16>
    %c1_383 = arith.constant 1 : index
    %c0_384 = arith.constant 0 : index
    %c0_385 = arith.constant 0 : index
    %677 = vector.load %arg6[%c1_383, %c0_384, %c0_385] : memref<2x8x128xf32, #tpu.memory_space<vmem>>, vector<1x8x128xf32>
    %678 = vector.shape_cast %677 : vector<1x8x128xf32> to vector<8x128xf32>
    %c1_386 = arith.constant 1 : index
    %c0_387 = arith.constant 0 : index
    %c0_388 = arith.constant 0 : index
    %679 = vector.load %arg7[%c1_386, %c0_387, %c0_388] : memref<2x8x128xf32, #tpu.memory_space<vmem>>, vector<1x8x128xf32>
    %680 = vector.shape_cast %679 : vector<1x8x128xf32> to vector<8x128xf32>
    %681 = arith.truncf %678 : vector<8x128xf32> to vector<8x128xbf16>
    %c1_389 = arith.constant 1 : index
    %c0_390 = arith.constant 0 : index
    %c0_391 = arith.constant 0 : index
    %682 = vector.load %arg3[%c1_389, %c0_390, %c0_391] : memref<2x128x512xbf16, #tpu.memory_space<vmem>>, vector<1x128x512xbf16>
    %683 = vector.shape_cast %682 : vector<1x128x512xbf16> to vector<128x512xbf16>
    %cst_392 = arith.constant dense<0.000000e+00> : vector<8x512xf32>
    %684 = tpu.matmul %681, %683, %cst_392 {dimension_numbers = #tpu.dot_dimension_numbers<[1], [0], [0], [1], [0, 0, 1, 1], [], []>} : vector<8x128xbf16>, vector<128x512xbf16>, vector<8x512xf32> -> vector<8x512xf32>
    %c0_393 = arith.constant 0 : index
    %c0_394 = arith.constant 0 : index
    %c0_395 = arith.constant 0 : index
    %685 = vector.load %arg4[%c0_393, %c0_394, %c0_395] : memref<1x128x512xbf16, #tpu.memory_space<vmem>>, vector<1x128x512xbf16>
    %686 = vector.shape_cast %685 : vector<1x128x512xbf16> to vector<128x512xbf16>
    %cst_396 = arith.constant dense<0.000000e+00> : vector<8x512xf32>
    %687 = tpu.matmul %676, %686, %cst_396 {dimension_numbers = #tpu.dot_dimension_numbers<[1], [0], [0], [1], [0, 0, 1, 1], [], []>} : vector<8x128xbf16>, vector<128x512xbf16>, vector<8x512xf32> -> vector<8x512xf32>
    %688 = arith.addf %684, %687 : vector<8x512xf32>
    %689 = vector.extract_strided_slice %688 {offsets = [0, 0], sizes = [8, 128], strides = [1, 1]} : vector<8x512xf32> to vector<8x128xf32>
    %cst_397 = arith.constant 5.000000e-01 : f32
    %690 = vector.broadcast %cst_397 : f32 to vector<8x128xf32>
    %691 = arith.mulf %690, %689 : vector<8x128xf32>
    %692 = math.tanh %691 : vector<8x128xf32>
    %cst_398 = arith.constant 5.000000e-01 : f32
    %693 = vector.broadcast %cst_398 : f32 to vector<8x128xf32>
    %694 = arith.mulf %693, %692 : vector<8x128xf32>
    %cst_399 = arith.constant 5.000000e-01 : f32
    %695 = vector.broadcast %cst_399 : f32 to vector<8x128xf32>
    %696 = arith.addf %694, %695 : vector<8x128xf32>
    %697 = vector.extract_strided_slice %688 {offsets = [0, 128], sizes = [8, 128], strides = [1, 1]} : vector<8x512xf32> to vector<8x128xf32>
    %cst_400 = arith.constant 5.000000e-01 : f32
    %698 = vector.broadcast %cst_400 : f32 to vector<8x128xf32>
    %699 = arith.mulf %698, %697 : vector<8x128xf32>
    %700 = math.tanh %699 : vector<8x128xf32>
    %cst_401 = arith.constant 5.000000e-01 : f32
    %701 = vector.broadcast %cst_401 : f32 to vector<8x128xf32>
    %702 = arith.mulf %701, %700 : vector<8x128xf32>
    %cst_402 = arith.constant 5.000000e-01 : f32
    %703 = vector.broadcast %cst_402 : f32 to vector<8x128xf32>
    %704 = arith.addf %702, %703 : vector<8x128xf32>
    %705 = vector.extract_strided_slice %688 {offsets = [0, 256], sizes = [8, 128], strides = [1, 1]} : vector<8x512xf32> to vector<8x128xf32>
    %706 = math.tanh %705 : vector<8x128xf32>
    %707 = vector.extract_strided_slice %688 {offsets = [0, 384], sizes = [8, 128], strides = [1, 1]} : vector<8x512xf32> to vector<8x128xf32>
    %cst_403 = arith.constant 5.000000e-01 : f32
    %708 = vector.broadcast %cst_403 : f32 to vector<8x128xf32>
    %709 = arith.mulf %708, %707 : vector<8x128xf32>
    %710 = math.tanh %709 : vector<8x128xf32>
    %cst_404 = arith.constant 5.000000e-01 : f32
    %711 = vector.broadcast %cst_404 : f32 to vector<8x128xf32>
    %712 = arith.mulf %711, %710 : vector<8x128xf32>
    %cst_405 = arith.constant 5.000000e-01 : f32
    %713 = vector.broadcast %cst_405 : f32 to vector<8x128xf32>
    %714 = arith.addf %712, %713 : vector<8x128xf32>
    %715 = arith.mulf %704, %680 : vector<8x128xf32>
    %716 = arith.mulf %696, %706 : vector<8x128xf32>
    %717 = arith.addf %715, %716 : vector<8x128xf32>
    %718 = math.tanh %717 : vector<8x128xf32>
    %719 = arith.mulf %714, %718 : vector<8x128xf32>
    %c1_406 = arith.constant 1 : index
    %c0_407 = arith.constant 0 : index
    %c0_408 = arith.constant 0 : index
    %720 = vector.load %arg7[%c1_406, %c0_407, %c0_408] : memref<2x8x128xf32, #tpu.memory_space<vmem>>, vector<1x8x128xf32>
    %721 = vector.shape_cast %720 : vector<1x8x128xf32> to vector<8x128xf32>
    %722 = vector.shape_cast %717 : vector<8x128xf32> to vector<1x8x128xf32>
    tpu.vector_store %arg7[%c1_406, %c0_407, %c0_408], %722 {strides = array<i32>} : memref<2x8x128xf32, #tpu.memory_space<vmem>>, vector<1x8x128xf32>,
    %c1_409 = arith.constant 1 : index
    %c0_410 = arith.constant 0 : index
    %c0_411 = arith.constant 0 : index
    %723 = vector.load %arg6[%c1_409, %c0_410, %c0_411] : memref<2x8x128xf32, #tpu.memory_space<vmem>>, vector<1x8x128xf32>
    %724 = vector.shape_cast %723 : vector<1x8x128xf32> to vector<8x128xf32>
    %725 = vector.shape_cast %719 : vector<8x128xf32> to vector<1x8x128xf32>
    tpu.vector_store %arg6[%c1_409, %c0_410, %c0_411], %725 {strides = array<i32>} : memref<2x8x128xf32, #tpu.memory_space<vmem>>, vector<1x8x128xf32>,
    %726 = arith.index_cast %c6_i32 : i32 to index
    %c0_412 = arith.constant 0 : index
    %c0_413 = arith.constant 0 : index
    %727 = vector.load %arg5[%726, %c0_412, %c0_413] : memref<8x8x128xf32, #tpu.memory_space<vmem>>, vector<1x8x128xf32>
    %728 = vector.shape_cast %727 : vector<1x8x128xf32> to vector<8x128xf32>
    %729 = vector.shape_cast %719 : vector<8x128xf32> to vector<1x8x128xf32>
    tpu.vector_store %arg5[%726, %c0_412, %c0_413], %729 {strides = array<i32>} : memref<8x8x128xf32, #tpu.memory_space<vmem>>, vector<1x8x128xf32>,
    %c7_i32 = arith.constant 7 : i32
    %c0_414 = arith.constant 0 : index
    %c0_415 = arith.constant 0 : index
    %c0_416 = arith.constant 0 : index
    %730 = vector.load %arg6[%c0_414, %c0_415, %c0_416] : memref<2x8x128xf32, #tpu.memory_space<vmem>>, vector<1x8x128xf32>
    %731 = vector.shape_cast %730 : vector<1x8x128xf32> to vector<8x128xf32>
    %c0_417 = arith.constant 0 : index
    %c0_418 = arith.constant 0 : index
    %c0_419 = arith.constant 0 : index
    %732 = vector.load %arg7[%c0_417, %c0_418, %c0_419] : memref<2x8x128xf32, #tpu.memory_space<vmem>>, vector<1x8x128xf32>
    %733 = vector.shape_cast %732 : vector<1x8x128xf32> to vector<8x128xf32>
    %734 = arith.truncf %731 : vector<8x128xf32> to vector<8x128xbf16>
    %c0_420 = arith.constant 0 : index
    %c0_421 = arith.constant 0 : index
    %c0_422 = arith.constant 0 : index
    %735 = vector.load %arg3[%c0_420, %c0_421, %c0_422] : memref<2x128x512xbf16, #tpu.memory_space<vmem>>, vector<1x128x512xbf16>
    %736 = vector.shape_cast %735 : vector<1x128x512xbf16> to vector<128x512xbf16>
    %cst_423 = arith.constant dense<0.000000e+00> : vector<8x512xf32>
    %737 = tpu.matmul %734, %736, %cst_423 {dimension_numbers = #tpu.dot_dimension_numbers<[1], [0], [0], [1], [0, 0, 1, 1], [], []>} : vector<8x128xbf16>, vector<128x512xbf16>, vector<8x512xf32> -> vector<8x512xf32>
    %738 = arith.index_cast %c7_i32 : i32 to index
    %c0_424 = arith.constant 0 : index
    %c0_425 = arith.constant 0 : index
    %739 = vector.load %arg8[%738, %c0_424, %c0_425] : memref<8x8x512xf32, #tpu.memory_space<vmem>>, vector<1x8x512xf32>
    %740 = vector.shape_cast %739 : vector<1x8x512xf32> to vector<8x512xf32>
    %741 = arith.addf %737, %740 : vector<8x512xf32>
    %742 = vector.extract_strided_slice %741 {offsets = [0, 0], sizes = [8, 128], strides = [1, 1]} : vector<8x512xf32> to vector<8x128xf32>
    %cst_426 = arith.constant 5.000000e-01 : f32
    %743 = vector.broadcast %cst_426 : f32 to vector<8x128xf32>
    %744 = arith.mulf %743, %742 : vector<8x128xf32>
    %745 = math.tanh %744 : vector<8x128xf32>
    %cst_427 = arith.constant 5.000000e-01 : f32
    %746 = vector.broadcast %cst_427 : f32 to vector<8x128xf32>
    %747 = arith.mulf %746, %745 : vector<8x128xf32>
    %cst_428 = arith.constant 5.000000e-01 : f32
    %748 = vector.broadcast %cst_428 : f32 to vector<8x128xf32>
    %749 = arith.addf %747, %748 : vector<8x128xf32>
    %750 = vector.extract_strided_slice %741 {offsets = [0, 128], sizes = [8, 128], strides = [1, 1]} : vector<8x512xf32> to vector<8x128xf32>
    %cst_429 = arith.constant 5.000000e-01 : f32
    %751 = vector.broadcast %cst_429 : f32 to vector<8x128xf32>
    %752 = arith.mulf %751, %750 : vector<8x128xf32>
    %753 = math.tanh %752 : vector<8x128xf32>
    %cst_430 = arith.constant 5.000000e-01 : f32
    %754 = vector.broadcast %cst_430 : f32 to vector<8x128xf32>
    %755 = arith.mulf %754, %753 : vector<8x128xf32>
    %cst_431 = arith.constant 5.000000e-01 : f32
    %756 = vector.broadcast %cst_431 : f32 to vector<8x128xf32>
    %757 = arith.addf %755, %756 : vector<8x128xf32>
    %758 = vector.extract_strided_slice %741 {offsets = [0, 256], sizes = [8, 128], strides = [1, 1]} : vector<8x512xf32> to vector<8x128xf32>
    %759 = math.tanh %758 : vector<8x128xf32>
    %760 = vector.extract_strided_slice %741 {offsets = [0, 384], sizes = [8, 128], strides = [1, 1]} : vector<8x512xf32> to vector<8x128xf32>
    %cst_432 = arith.constant 5.000000e-01 : f32
    %761 = vector.broadcast %cst_432 : f32 to vector<8x128xf32>
    %762 = arith.mulf %761, %760 : vector<8x128xf32>
    %763 = math.tanh %762 : vector<8x128xf32>
    %cst_433 = arith.constant 5.000000e-01 : f32
    %764 = vector.broadcast %cst_433 : f32 to vector<8x128xf32>
    %765 = arith.mulf %764, %763 : vector<8x128xf32>
    %cst_434 = arith.constant 5.000000e-01 : f32
    %766 = vector.broadcast %cst_434 : f32 to vector<8x128xf32>
    %767 = arith.addf %765, %766 : vector<8x128xf32>
    %768 = arith.mulf %757, %733 : vector<8x128xf32>
    %769 = arith.mulf %749, %759 : vector<8x128xf32>
    %770 = arith.addf %768, %769 : vector<8x128xf32>
    %771 = math.tanh %770 : vector<8x128xf32>
    %772 = arith.mulf %767, %771 : vector<8x128xf32>
    %c0_435 = arith.constant 0 : index
    %c0_436 = arith.constant 0 : index
    %c0_437 = arith.constant 0 : index
    %773 = vector.load %arg7[%c0_435, %c0_436, %c0_437] : memref<2x8x128xf32, #tpu.memory_space<vmem>>, vector<1x8x128xf32>
    %774 = vector.shape_cast %773 : vector<1x8x128xf32> to vector<8x128xf32>
    %775 = vector.shape_cast %770 : vector<8x128xf32> to vector<1x8x128xf32>
    tpu.vector_store %arg7[%c0_435, %c0_436, %c0_437], %775 {strides = array<i32>} : memref<2x8x128xf32, #tpu.memory_space<vmem>>, vector<1x8x128xf32>,
    %c0_438 = arith.constant 0 : index
    %c0_439 = arith.constant 0 : index
    %c0_440 = arith.constant 0 : index
    %776 = vector.load %arg6[%c0_438, %c0_439, %c0_440] : memref<2x8x128xf32, #tpu.memory_space<vmem>>, vector<1x8x128xf32>
    %777 = vector.shape_cast %776 : vector<1x8x128xf32> to vector<8x128xf32>
    %778 = vector.shape_cast %772 : vector<8x128xf32> to vector<1x8x128xf32>
    tpu.vector_store %arg6[%c0_438, %c0_439, %c0_440], %778 {strides = array<i32>} : memref<2x8x128xf32, #tpu.memory_space<vmem>>, vector<1x8x128xf32>,
    %779 = arith.truncf %772 : vector<8x128xf32> to vector<8x128xbf16>
    %c1_441 = arith.constant 1 : index
    %c0_442 = arith.constant 0 : index
    %c0_443 = arith.constant 0 : index
    %780 = vector.load %arg6[%c1_441, %c0_442, %c0_443] : memref<2x8x128xf32, #tpu.memory_space<vmem>>, vector<1x8x128xf32>
    %781 = vector.shape_cast %780 : vector<1x8x128xf32> to vector<8x128xf32>
    %c1_444 = arith.constant 1 : index
    %c0_445 = arith.constant 0 : index
    %c0_446 = arith.constant 0 : index
    %782 = vector.load %arg7[%c1_444, %c0_445, %c0_446] : memref<2x8x128xf32, #tpu.memory_space<vmem>>, vector<1x8x128xf32>
    %783 = vector.shape_cast %782 : vector<1x8x128xf32> to vector<8x128xf32>
    %784 = arith.truncf %781 : vector<8x128xf32> to vector<8x128xbf16>
    %c1_447 = arith.constant 1 : index
    %c0_448 = arith.constant 0 : index
    %c0_449 = arith.constant 0 : index
    %785 = vector.load %arg3[%c1_447, %c0_448, %c0_449] : memref<2x128x512xbf16, #tpu.memory_space<vmem>>, vector<1x128x512xbf16>
    %786 = vector.shape_cast %785 : vector<1x128x512xbf16> to vector<128x512xbf16>
    %cst_450 = arith.constant dense<0.000000e+00> : vector<8x512xf32>
    %787 = tpu.matmul %784, %786, %cst_450 {dimension_numbers = #tpu.dot_dimension_numbers<[1], [0], [0], [1], [0, 0, 1, 1], [], []>} : vector<8x128xbf16>, vector<128x512xbf16>, vector<8x512xf32> -> vector<8x512xf32>
    %c0_451 = arith.constant 0 : index
    %c0_452 = arith.constant 0 : index
    %c0_453 = arith.constant 0 : index
    %788 = vector.load %arg4[%c0_451, %c0_452, %c0_453] : memref<1x128x512xbf16, #tpu.memory_space<vmem>>, vector<1x128x512xbf16>
    %789 = vector.shape_cast %788 : vector<1x128x512xbf16> to vector<128x512xbf16>
    %cst_454 = arith.constant dense<0.000000e+00> : vector<8x512xf32>
    %790 = tpu.matmul %779, %789, %cst_454 {dimension_numbers = #tpu.dot_dimension_numbers<[1], [0], [0], [1], [0, 0, 1, 1], [], []>} : vector<8x128xbf16>, vector<128x512xbf16>, vector<8x512xf32> -> vector<8x512xf32>
    %791 = arith.addf %787, %790 : vector<8x512xf32>
    %792 = vector.extract_strided_slice %791 {offsets = [0, 0], sizes = [8, 128], strides = [1, 1]} : vector<8x512xf32> to vector<8x128xf32>
    %cst_455 = arith.constant 5.000000e-01 : f32
    %793 = vector.broadcast %cst_455 : f32 to vector<8x128xf32>
    %794 = arith.mulf %793, %792 : vector<8x128xf32>
    %795 = math.tanh %794 : vector<8x128xf32>
    %cst_456 = arith.constant 5.000000e-01 : f32
    %796 = vector.broadcast %cst_456 : f32 to vector<8x128xf32>
    %797 = arith.mulf %796, %795 : vector<8x128xf32>
    %cst_457 = arith.constant 5.000000e-01 : f32
    %798 = vector.broadcast %cst_457 : f32 to vector<8x128xf32>
    %799 = arith.addf %797, %798 : vector<8x128xf32>
    %800 = vector.extract_strided_slice %791 {offsets = [0, 128], sizes = [8, 128], strides = [1, 1]} : vector<8x512xf32> to vector<8x128xf32>
    %cst_458 = arith.constant 5.000000e-01 : f32
    %801 = vector.broadcast %cst_458 : f32 to vector<8x128xf32>
    %802 = arith.mulf %801, %800 : vector<8x128xf32>
    %803 = math.tanh %802 : vector<8x128xf32>
    %cst_459 = arith.constant 5.000000e-01 : f32
    %804 = vector.broadcast %cst_459 : f32 to vector<8x128xf32>
    %805 = arith.mulf %804, %803 : vector<8x128xf32>
    %cst_460 = arith.constant 5.000000e-01 : f32
    %806 = vector.broadcast %cst_460 : f32 to vector<8x128xf32>
    %807 = arith.addf %805, %806 : vector<8x128xf32>
    %808 = vector.extract_strided_slice %791 {offsets = [0, 256], sizes = [8, 128], strides = [1, 1]} : vector<8x512xf32> to vector<8x128xf32>
    %809 = math.tanh %808 : vector<8x128xf32>
    %810 = vector.extract_strided_slice %791 {offsets = [0, 384], sizes = [8, 128], strides = [1, 1]} : vector<8x512xf32> to vector<8x128xf32>
    %cst_461 = arith.constant 5.000000e-01 : f32
    %811 = vector.broadcast %cst_461 : f32 to vector<8x128xf32>
    %812 = arith.mulf %811, %810 : vector<8x128xf32>
    %813 = math.tanh %812 : vector<8x128xf32>
    %cst_462 = arith.constant 5.000000e-01 : f32
    %814 = vector.broadcast %cst_462 : f32 to vector<8x128xf32>
    %815 = arith.mulf %814, %813 : vector<8x128xf32>
    %cst_463 = arith.constant 5.000000e-01 : f32
    %816 = vector.broadcast %cst_463 : f32 to vector<8x128xf32>
    %817 = arith.addf %815, %816 : vector<8x128xf32>
    %818 = arith.mulf %807, %783 : vector<8x128xf32>
    %819 = arith.mulf %799, %809 : vector<8x128xf32>
    %820 = arith.addf %818, %819 : vector<8x128xf32>
    %821 = math.tanh %820 : vector<8x128xf32>
    %822 = arith.mulf %817, %821 : vector<8x128xf32>
    %c1_464 = arith.constant 1 : index
    %c0_465 = arith.constant 0 : index
    %c0_466 = arith.constant 0 : index
    %823 = vector.load %arg7[%c1_464, %c0_465, %c0_466] : memref<2x8x128xf32, #tpu.memory_space<vmem>>, vector<1x8x128xf32>
    %824 = vector.shape_cast %823 : vector<1x8x128xf32> to vector<8x128xf32>
    %825 = vector.shape_cast %820 : vector<8x128xf32> to vector<1x8x128xf32>
    tpu.vector_store %arg7[%c1_464, %c0_465, %c0_466], %825 {strides = array<i32>} : memref<2x8x128xf32, #tpu.memory_space<vmem>>, vector<1x8x128xf32>,
    %c1_467 = arith.constant 1 : index
    %c0_468 = arith.constant 0 : index
    %c0_469 = arith.constant 0 : index
    %826 = vector.load %arg6[%c1_467, %c0_468, %c0_469] : memref<2x8x128xf32, #tpu.memory_space<vmem>>, vector<1x8x128xf32>
    %827 = vector.shape_cast %826 : vector<1x8x128xf32> to vector<8x128xf32>
    %828 = vector.shape_cast %822 : vector<8x128xf32> to vector<1x8x128xf32>
    tpu.vector_store %arg6[%c1_467, %c0_468, %c0_469], %828 {strides = array<i32>} : memref<2x8x128xf32, #tpu.memory_space<vmem>>, vector<1x8x128xf32>,
    %829 = arith.index_cast %c7_i32 : i32 to index
    %c0_470 = arith.constant 0 : index
    %c0_471 = arith.constant 0 : index
    %830 = vector.load %arg5[%829, %c0_470, %c0_471] : memref<8x8x128xf32, #tpu.memory_space<vmem>>, vector<1x8x128xf32>
    %831 = vector.shape_cast %830 : vector<1x8x128xf32> to vector<8x128xf32>
    %832 = vector.shape_cast %822 : vector<8x128xf32> to vector<1x8x128xf32>
    tpu.vector_store %arg5[%829, %c0_470, %c0_471], %832 {strides = array<i32>} : memref<8x8x128xf32, #tpu.memory_space<vmem>>, vector<1x8x128xf32>,
    %c8_i32 = arith.constant 8 : i32
    return
  }
  func.func @transform_0(%arg0: i32) -> (i32, i32, i32) {
    %c0_i32 = arith.constant 0 : i32
    %c0_i32_0 = arith.constant 0 : i32
    %c0_i32_1 = arith.constant 0 : i32
    return %arg0, %c0_i32, %c0_i32_0 : i32, i32, i32
  }
  func.func @transform_1(%arg0: i32) -> (i32, i32) {
    %c0_i32 = arith.constant 0 : i32
    %c0_i32_0 = arith.constant 0 : i32
    %c0_i32_1 = arith.constant 0 : i32
    return %c0_i32, %c0_i32_0 : i32, i32
  }
  func.func @transform_2(%arg0: i32) -> (i32, i32, i32) {
    %c0_i32 = arith.constant 0 : i32
    %c0_i32_0 = arith.constant 0 : i32
    %c0_i32_1 = arith.constant 0 : i32
    %c0_i32_2 = arith.constant 0 : i32
    return %c0_i32, %c0_i32_0, %c0_i32_1 : i32, i32, i32
  }
  func.func @transform_3(%arg0: i32) -> (i32, i32, i32) {
    %c0_i32 = arith.constant 0 : i32
    %c0_i32_0 = arith.constant 0 : i32
    %c0_i32_1 = arith.constant 0 : i32
    %c0_i32_2 = arith.constant 0 : i32
    return %c0_i32, %c0_i32_0, %c0_i32_1 : i32, i32, i32
  }
  func.func @transform_4(%arg0: i32) -> (i32, i32, i32) {
    %c0_i32 = arith.constant 0 : i32
    %c0_i32_0 = arith.constant 0 : i32
    %c0_i32_1 = arith.constant 0 : i32
    return %arg0, %c0_i32, %c0_i32_0 : i32, i32, i32
  }
  func.func @transform_5(%arg0: i32) -> (i32, i32, i32) {
    %c0_i32 = arith.constant 0 : i32
    %c0_i32_0 = arith.constant 0 : i32
    %c0_i32_1 = arith.constant 0 : i32
    %c0_i32_2 = arith.constant 0 : i32
    return %c0_i32, %c0_i32_0, %c0_i32_1 : i32, i32, i32
  }
  func.func @transform_6(%arg0: i32) -> (i32, i32, i32) {
    %c0_i32 = arith.constant 0 : i32
    %c0_i32_0 = arith.constant 0 : i32
    %c0_i32_1 = arith.constant 0 : i32
    %c0_i32_2 = arith.constant 0 : i32
    return %c0_i32, %c0_i32_0, %c0_i32_1 : i32, i32, i32
  }
}

</mosaic_0001>

<llo_original>
// kernel: tpu_custom_call.1
$region0: #{tpu_custom_call.1}
  #allocation0 [shape = 'u32[]', space=smem, size = 0x4, offset = 0x4, fixed_abs, tag = 'smem constant byte address 0x4 - core index']
  #allocation1 [shape = 'u32[72,128]{1,0:T(1,128)}', space=vmem, size = 0x9000, scoped, tag = 'internal scratch']
  #allocation2 [shape = 'f32[8,8,512]{2,1,0:T(8,128)}', space=vmem, size = 0x20000, scoped, tag = 'scratch operand']
  %s0 = inlined_call_operand.hbm [shape: bf16[8,8,128], index: 0, kind: input, shape index: {}]
  %s1 = inlined_call_operand.hbm [shape: bf16[128,512], index: 1, kind: input, shape index: {}]
  %s2 = inlined_call_operand.hbm [shape: bf16[2,128,512], index: 2, kind: input, shape index: {}]
  %s3 = inlined_call_operand.hbm [shape: bf16[1,128,512], index: 3, kind: input, shape index: {}]
  %s4 = inlined_call_operand.hbm [shape: f32[8,8,128], index: 4, kind: output, shape index: {0}]
  %s5 = inlined_call_operand.hbm [shape: f32[2,8,128], index: 5, kind: output, shape index: {1}]
  %s6 = inlined_call_operand.hbm [shape: f32[2,8,128], index: 6, kind: output, shape index: {2}]
  %7 = xla_tuple %s4, %s5, %s6
  %s8 = sld [smem:[#allocation0]]
  $region62: #{tpu_custom_call.1} parent=0
    _
  %s10 = ssub.s32 1, %s8
  %s11 = scalar_select 0, %s10, %s8
  $region1: #{tpu_custom_call.1} parent=0
    #allocation3 [shape = 'u8[16384]{0}', space=vmem, size = 0x4000, scoped, tag = 'input window, operand 0, single buffered']
    #allocation4 [shape = 's32[1]{0}', space=sflag, size = 0x4, scoped, tag = 'scoped memory for tpu_custom_call.1']
    #allocation5 [shape = 's32[1]{0}', space=sflag, size = 0x4, scoped, tag = 'scoped memory for tpu_custom_call.1']
    #allocation6 [shape = 'u8[131072]{0}', space=vmem, size = 0x20000, scoped, tag = 'input window, operand 1, single buffered']
    #allocation7 [shape = 's32[1]{0}', space=sflag, size = 0x4, scoped, tag = 'scoped memory for tpu_custom_call.1']
    #allocation8 [shape = 'u8[262144]{0}', space=vmem, size = 0x40000, scoped, tag = 'input window, operand 2, single buffered']
    #allocation9 [shape = 'u8[131072]{0}', space=vmem, size = 0x20000, scoped, tag = 'input window, operand 3, single buffered']
    #allocation10 [shape = 's32[1]{0}', space=sflag, size = 0x4, scoped, tag = 'scoped memory for tpu_custom_call.1']
    #allocation11 [shape = 'u8[32768]{0}', space=vmem, size = 0x8000, scoped, tag = 'output window, operand 0, single buffered']
    #allocation12 [shape = 'u8[8192]{0}', space=vmem, size = 0x2000, scoped, tag = 'output window, operand 1, single buffered']
    #allocation13 [shape = 's32[1]{0}', space=sflag, size = 0x4, scoped, tag = 'scoped memory for tpu_custom_call.1']
    #allocation14 [shape = 'u8[8192]{0}', space=vmem, size = 0x2000, scoped, tag = 'output window, operand 2, single buffered']
    %12 = vsyncpa [#allocation4], 0
    %13 = vsyncpa [#allocation7], 0
    %14 = vsyncpa [#allocation10], 0
    %15 = vsyncpa [#allocation5], 0
    %16 = vsyncpa [#allocation13], 0
    // Predicated region
    $region2: #{tpu_custom_call.1} parent=1 // pred_check
      _
    $region3: #{tpu_custom_call.1} parent=1 // pred_check_branch
      %18 = sbr.rel (0) target = $region5
    $region4: #{tpu_custom_call.1} parent=1 // pred_region
      %20 = vsyncadd [#allocation4], 0
      %s21 = sshll.u32 %s0, 4
      %s22 = int_to_ptr.hbm [resolvable:$true] %s21
      %s23 = sshll.u32 [#allocation3], 4
      %s24 = int_to_ptr.vmem [resolvable:$true] %s23
      %29 = dma.hbm_to_vmem [thread:$0]  %s22, 512, %s24, [#allocation4], 64, 64, 4
    $region5: #{tpu_custom_call.1} parent=1 // pred_fallthru
      _
    // Predicated region
    $region6: #{tpu_custom_call.1} parent=1 // pred_check
      _
    $region7: #{tpu_custom_call.1} parent=1 // pred_check_branch
      %31 = sbr.rel (0) target = $region9
    $region8: #{tpu_custom_call.1} parent=1 // pred_region
      %33 = vsyncadd [#allocation7], 0
      %s34 = sshll.u32 %s1, 4
      %s35 = int_to_ptr.hbm [resolvable:$true] %s34
      %s36 = sshll.u32 [#allocation6], 4
      %s37 = int_to_ptr.vmem [resolvable:$true] %s36
      %42 = dma.hbm_to_vmem [thread:$0]  %s35, 4096, %s37, [#allocation7], 256, 256, 16
    $region9: #{tpu_custom_call.1} parent=1 // pred_fallthru
      _
    // Predicated region
    $region10: #{tpu_custom_call.1} parent=1 // pred_check
      _
    $region11: #{tpu_custom_call.1} parent=1 // pred_check_branch
      %44 = sbr.rel (0) target = $region13
    $region12: #{tpu_custom_call.1} parent=1 // pred_region
      %46 = vsyncadd [#allocation7], 0
      %s47 = sshll.u32 %s2, 4
      %s48 = int_to_ptr.hbm [resolvable:$true] %s47
      %s49 = sshll.u32 [#allocation8], 4
      %s50 = int_to_ptr.vmem [resolvable:$true] %s49
      %55 = dma.hbm_to_vmem [thread:$0]  %s48, 8192, %s50, [#allocation7], 256, 256, 16
    $region13: #{tpu_custom_call.1} parent=1 // pred_fallthru
      _
    // Predicated region
    $region14: #{tpu_custom_call.1} parent=1 // pred_check
      _
    $region15: #{tpu_custom_call.1} parent=1 // pred_check_branch
      %57 = sbr.rel (0) target = $region17
    $region16: #{tpu_custom_call.1} parent=1 // pred_region
      %59 = vsyncadd [#allocation10], 0
      %s60 = sshll.u32 %s3, 4
      %s61 = int_to_ptr.hbm [resolvable:$true] %s60
      %s62 = sshll.u32 [#allocation9], 4
      %s63 = int_to_ptr.vmem [resolvable:$true] %s62
      %68 = dma.hbm_to_vmem [thread:$0]  %s61, 4096, %s63, [#allocation10], 256, 256, 16
    $region17: #{tpu_custom_call.1} parent=1 // pred_fallthru
      _
    // Predicated region
    $region18: #{tpu_custom_call.1} parent=1 // pred_check
      _
    $region19: #{tpu_custom_call.1} parent=1 // pred_check_branch
      %70 = sbr.rel (0) target = $region21
    $region20: #{tpu_custom_call.1} parent=1 // pred_region
      %72 = dma.done [#allocation4], 512
    $region21: #{tpu_custom_call.1} parent=1 // pred_fallthru
      _
    // Predicated region
    $region22: #{tpu_custom_call.1} parent=1 // pred_check
      _
    $region23: #{tpu_custom_call.1} parent=1 // pred_check_branch
      %74 = sbr.rel (0) target = $region25
    $region24: #{tpu_custom_call.1} parent=1 // pred_region
      %76 = dma.done [#allocation7], 4096
    $region25: #{tpu_custom_call.1} parent=1 // pred_fallthru
      _
    // Predicated region
    $region26: #{tpu_custom_call.1} parent=1 // pred_check
      _
    $region27: #{tpu_custom_call.1} parent=1 // pred_check_branch
      %78 = sbr.rel (0) target = $region29
    $region28: #{tpu_custom_call.1} parent=1 // pred_region
      %80 = dma.done [#allocation7], 8192
    $region29: #{tpu_custom_call.1} parent=1 // pred_fallthru
      _
    // Predicated region
    $region30: #{tpu_custom_call.1} parent=1 // pred_check
      _
    $region31: #{tpu_custom_call.1} parent=1 // pred_check_branch
      %82 = sbr.rel (0) target = $region33
    $region32: #{tpu_custom_call.1} parent=1 // pred_region
      %84 = dma.done [#allocation10], 4096
    $region33: #{tpu_custom_call.1} parent=1 // pred_fallthru
      _
    %p85 = scmp.eq.s32.totalorder 0, 0
    // Predicated region
    $region34: #{tpu_custom_call.1} parent=1 // pred_check
      %p86 = pneg %p85
    $region35: #{tpu_custom_call.1} parent=1 // pred_check_branch
      %88 = sbr.rel (%p86) target = $region37
    $region36: #{tpu_custom_call.1} parent=1 // pred_region
      %89 = vst [vmem:[#allocation12] sm:$0xff] 0.0
      %90 = vst [vmem:[#allocation12 + $0x8] sm:$0xff] 0.0
      %91 = vst [vmem:[#allocation14] sm:$0xff] 0.0
      %92 = vst [vmem:[#allocation14 + $0x8] sm:$0xff] 0.0
    $region37: #{tpu_custom_call.1} parent=1 // pred_fallthru
      _
    %v93 = vld [vmem:[#allocation3] sm:$0xf]
    %v94 = vld [vmem:[#allocation3 + $0x4] sm:$0xf]
    %v95 = vld [vmem:[#allocation3 + $0x8] sm:$0xf]
    %v96 = vld [vmem:[#allocation3 + $0xc] sm:$0xf]
    %v97 = vld [vmem:[#allocation3 + $0x10] sm:$0xf]
    %v98 = vld [vmem:[#allocation3 + $0x14] sm:$0xf]
    %v99 = vld [vmem:[#allocation3 + $0x18] sm:$0xf]
    %v100 = vld [vmem:[#allocation3 + $0x1c] sm:$0xf]
    %v101 = vld [vmem:[#allocation6] sm:$0xff]
    %v102 = vld [vmem:[#allocation6 + $0x8] sm:$0xff]
    %v103 = vld [vmem:[#allocation6 + $0x10] sm:$0xff]
    %v104 = vld [vmem:[#allocation6 + $0x18] sm:$0xff]
    %v105 = vld [vmem:[#allocation6 + $0x20] sm:$0xff]
    %v106 = vld [vmem:[#allocation6 + $0x28] sm:$0xff]
    %v107 = vld [vmem:[#allocation6 + $0x30] sm:$0xff]
    %v108 = vld [vmem:[#allocation6 + $0x38] sm:$0xff]
    %v109 = vld [vmem:[#allocation6 + $0x40] sm:$0xff]
    %v110 = vld [vmem:[#allocation6 + $0x48] sm:$0xff]
    %v111 = vld [vmem:[#allocation6 + $0x50] sm:$0xff]
    %v112 = vld [vmem:[#allocation6 + $0x58] sm:$0xff]
    %v113 = vld [vmem:[#allocation6 + $0x60] sm:$0xff]
    %v114 = vld [vmem:[#allocation6 + $0x68] sm:$0xff]
    %v115 = vld [vmem:[#allocation6 + $0x70] sm:$0xff]
    %v116 = vld [vmem:[#allocation6 + $0x78] sm:$0xff]
    %v117 = vld [vmem:[#allocation6 + $0x80] sm:$0xff]
    %v118 = vld [vmem:[#allocation6 + $0x88] sm:$0xff]
    %v119 = vld [vmem:[#allocation6 + $0x90] sm:$0xff]
    %v120 = vld [vmem:[#allocation6 + $0x98] sm:$0xff]
    %v121 = vld [vmem:[#allocation6 + $0xa0] sm:$0xff]
    %v122 = vld [vmem:[#allocation6 + $0xa8] sm:$0xff]
    %v123 = vld [vmem:[#allocation6 + $0xb0] sm:$0xff]
    %v124 = vld [vmem:[#allocation6 + $0xb8] sm:$0xff]
    %v125 = vld [vmem:[#allocation6 + $0xc0] sm:$0xff]
    %v126 = vld [vmem:[#allocation6 + $0xc8] sm:$0xff]
    %v127 = vld [vmem:[#allocation6 + $0xd0] sm:$0xff]
    %v128 = vld [vmem:[#allocation6 + $0xd8] sm:$0xff]
    %v129 = vld [vmem:[#allocation6 + $0xe0] sm:$0xff]
    %v130 = vld [vmem:[#allocation6 + $0xe8] sm:$0xff]
    %v131 = vld [vmem:[#allocation6 + $0xf0] sm:$0xff]
    %v132 = vld [vmem:[#allocation6 + $0xf8] sm:$0xff]
    %v141 = vunpack.c.l.b16 %v93
    %v142 = vunpack.c.l.b16 %v94
    %v143 = vunpack.c.l.b16 %v95
    %v144 = vunpack.c.l.b16 %v96
    %v145 = vunpack.c.l.b16 %v97
    %v146 = vunpack.c.l.b16 %v98
    %v147 = vunpack.c.l.b16 %v99
    %v148 = vunpack.c.l.b16 %v100
    %v149 = vpack.c.b16 %v142, %v141
    %v150 = vpack.c.b16 %v144, %v143
    %v151 = vpack.c.b16 %v146, %v145
    %v152 = vpack.c.b16 %v148, %v147
    %v189 = vunpack.c.l.b16 %v101
    %v190 = vunpack.c.h.b16 %v101
    %v191 = vunpack.c.l.b16 %v102
    %v192 = vunpack.c.h.b16 %v102
    %v193 = vunpack.c.l.b16 %v103
    %v194 = vunpack.c.h.b16 %v103
    %v195 = vunpack.c.l.b16 %v104
    %v196 = vunpack.c.h.b16 %v104
    %v197 = vunpack.c.l.b16 %v105
    %v198 = vunpack.c.h.b16 %v105
    %v199 = vunpack.c.l.b16 %v106
    %v200 = vunpack.c.h.b16 %v106
    %v201 = vunpack.c.l.b16 %v107
    %v202 = vunpack.c.h.b16 %v107
    %v203 = vunpack.c.l.b16 %v108
    %v204 = vunpack.c.h.b16 %v108
    %v205 = vunpack.c.l.b16 %v109
    %v206 = vunpack.c.h.b16 %v109
    %v207 = vunpack.c.l.b16 %v110
    %v208 = vunpack.c.h.b16 %v110
    %v209 = vunpack.c.l.b16 %v111
    %v210 = vunpack.c.h.b16 %v111
    %v211 = vunpack.c.l.b16 %v112
    %v212 = vunpack.c.h.b16 %v112
    %v213 = vunpack.c.l.b16 %v113
    %v214 = vunpack.c.h.b16 %v113
    %v215 = vunpack.c.l.b16 %v114
    %v216 = vunpack.c.h.b16 %v114
    %v217 = vunpack.c.l.b16 %v115
    %v218 = vunpack.c.h.b16 %v115
    %v219 = vunpack.c.l.b16 %v116
    %v220 = vunpack.c.h.b16 %v116
    %v221 = vunpack.c.l.b16 %v117
    %v222 = vunpack.c.h.b16 %v117
    %v223 = vunpack.c.l.b16 %v118
    %v224 = vunpack.c.h.b16 %v118
    %v225 = vunpack.c.l.b16 %v119
    %v226 = vunpack.c.h.b16 %v119
    %v227 = vunpack.c.l.b16 %v120
    %v228 = vunpack.c.h.b16 %v120
    %v229 = vunpack.c.l.b16 %v121
    %v230 = vunpack.c.h.b16 %v121
    %v231 = vunpack.c.l.b16 %v122
    %v232 = vunpack.c.h.b16 %v122
    %v233 = vunpack.c.l.b16 %v123
    %v234 = vunpack.c.h.b16 %v123
    %v235 = vunpack.c.l.b16 %v124
    %v236 = vunpack.c.h.b16 %v124
    %v237 = vunpack.c.l.b16 %v125
    %v238 = vunpack.c.h.b16 %v125
    %v239 = vunpack.c.l.b16 %v126
    %v240 = vunpack.c.h.b16 %v126
    %v241 = vunpack.c.l.b16 %v127
    %v242 = vunpack.c.h.b16 %v127
    %v243 = vunpack.c.l.b16 %v128
    %v244 = vunpack.c.h.b16 %v128
    %v245 = vunpack.c.l.b16 %v129
    %v246 = vunpack.c.h.b16 %v129
    %v247 = vunpack.c.l.b16 %v130
    %v248 = vunpack.c.h.b16 %v130
    %v249 = vunpack.c.l.b16 %v131
    %v250 = vunpack.c.h.b16 %v131
    %v251 = vunpack.c.l.b16 %v132
    %v252 = vunpack.c.h.b16 %v132
    %v253 = vpack.c.b16 %v193, %v189
    %v254 = vpack.c.b16 %v194, %v190
    %v255 = vpack.c.b16 %v195, %v191
    %v256 = vpack.c.b16 %v196, %v192
    %v257 = vpack.c.b16 %v201, %v197
    %v258 = vpack.c.b16 %v202, %v198
    %v259 = vpack.c.b16 %v203, %v199
    %v260 = vpack.c.b16 %v204, %v200
    %v261 = vpack.c.b16 %v209, %v205
    %v262 = vpack.c.b16 %v210, %v206
    %v263 = vpack.c.b16 %v211, %v207
    %v264 = vpack.c.b16 %v212, %v208
    %v265 = vpack.c.b16 %v217, %v213
    %v266 = vpack.c.b16 %v218, %v214
    %v267 = vpack.c.b16 %v219, %v215
    %v268 = vpack.c.b16 %v220, %v216
    %v269 = vpack.c.b16 %v225, %v221
    %v270 = vpack.c.b16 %v226, %v222
    %v271 = vpack.c.b16 %v227, %v223
    %v272 = vpack.c.b16 %v228, %v224
    %v273 = vpack.c.b16 %v233, %v229
    %v274 = vpack.c.b16 %v234, %v230
    %v275 = vpack.c.b16 %v235, %v231
    %v276 = vpack.c.b16 %v236, %v232
    %v277 = vpack.c.b16 %v241, %v237
    %v278 = vpack.c.b16 %v242, %v238
    %v279 = vpack.c.b16 %v243, %v239
    %v280 = vpack.c.b16 %v244, %v240
    %v281 = vpack.c.b16 %v249, %v245
    %v282 = vpack.c.b16 %v250, %v246
    %v283 = vpack.c.b16 %v251, %v247
    %v284 = vpack.c.b16 %v252, %v248
    %317 = vmatpush.bf16.msra.mxu0 %v281
    %318 = vmatpush.bf16.msra.mxu0 %v277
    %319 = vmatpush.bf16.msra.mxu0 %v273
    %320 = vmatpush.bf16.msra.mxu0 %v269
    %321 = vmatpush.bf16.msra.mxu0 %v265
    %322 = vmatpush.bf16.msra.mxu0 %v261
    %323 = vmatpush.bf16.msra.mxu0 %v257
    %324 = vmatpush.bf16.msra.mxu0 %v253
    %325 = vmatmul.bf16.gmra.mxu0 %v149
    %v326 = vpop.f32.mrf.mxu0
    %v327 = vadd.f32 0.0, %v326
    %v328 = vpop.f32.mrf.mxu0
    %v329 = vadd.f32 0.0, %v328
    %330 = vmatmul.bf16.gmra.mxu0 %v150
    %v331 = vpop.f32.mrf.mxu0
    %v332 = vadd.f32 0.0, %v331
    %v333 = vpop.f32.mrf.mxu0
    %v334 = vadd.f32 0.0, %v333
    %335 = vmatmul.bf16.gmra.mxu0 %v151
    %v336 = vpop.f32.mrf.mxu0
    %v337 = vadd.f32 0.0, %v336
    %v338 = vpop.f32.mrf.mxu0
    %v339 = vadd.f32 0.0, %v338
    %340 = vmatmul.bf16.gmra.mxu0 %v152
    %v341 = vpop.f32.mrf.mxu0
    %v342 = vadd.f32 0.0, %v341
    %v343 = vpop.f32.mrf.mxu0
    %v344 = vadd.f32 0.0, %v343
    %345 = vdwg.mxu0
    %346 = vmatpush.bf16.msra.mxu0 %v282
    %347 = vmatpush.bf16.msra.mxu0 %v278
    %348 = vmatpush.bf16.msra.mxu0 %v274
    %349 = vmatpush.bf16.msra.mxu0 %v270
    %350 = vmatpush.bf16.msra.mxu0 %v266
    %351 = vmatpush.bf16.msra.mxu0 %v262
    %352 = vmatpush.bf16.msra.mxu0 %v258
    %353 = vmatpush.bf16.msra.mxu0 %v254
    %354 = vmatmul.bf16.gmra.mxu0 %v149
    %v355 = vpop.f32.mrf.mxu0
    %v356 = vadd.f32 0.0, %v355
    %v357 = vpop.f32.mrf.mxu0
    %v358 = vadd.f32 0.0, %v357
    %359 = vmatmul.bf16.gmra.mxu0 %v150
    %v360 = vpop.f32.mrf.mxu0
    %v361 = vadd.f32 0.0, %v360
    %v362 = vpop.f32.mrf.mxu0
    %v363 = vadd.f32 0.0, %v362
    %364 = vmatmul.bf16.gmra.mxu0 %v151
    %v365 = vpop.f32.mrf.mxu0
    %v366 = vadd.f32 0.0, %v365
    %v367 = vpop.f32.mrf.mxu0
    %v368 = vadd.f32 0.0, %v367
    %369 = vmatmul.bf16.gmra.mxu0 %v152
    %v370 = vpop.f32.mrf.mxu0
    %v371 = vadd.f32 0.0, %v370
    %v372 = vpop.f32.mrf.mxu0
    %v373 = vadd.f32 0.0, %v372
    %374 = vdwg.mxu0
    %375 = vmatpush.bf16.msra.mxu0 %v283
    %376 = vmatpush.bf16.msra.mxu0 %v279
    %377 = vmatpush.bf16.msra.mxu0 %v275
    %378 = vmatpush.bf16.msra.mxu0 %v271
    %379 = vmatpush.bf16.msra.mxu0 %v267
    %380 = vmatpush.bf16.msra.mxu0 %v263
    %381 = vmatpush.bf16.msra.mxu0 %v259
    %382 = vmatpush.bf16.msra.mxu0 %v255
    %383 = vmatmul.bf16.gmra.mxu0 %v149
    %v384 = vpop.f32.mrf.mxu0
    %v385 = vadd.f32 0.0, %v384
    %v386 = vpop.f32.mrf.mxu0
    %v387 = vadd.f32 0.0, %v386
    %388 = vmatmul.bf16.gmra.mxu0 %v150
    %v389 = vpop.f32.mrf.mxu0
    %v390 = vadd.f32 0.0, %v389
    %v391 = vpop.f32.mrf.mxu0
    %v392 = vadd.f32 0.0, %v391
    %393 = vmatmul.bf16.gmra.mxu0 %v151
    %v394 = vpop.f32.mrf.mxu0
    %v395 = vadd.f32 0.0, %v394
    %v396 = vpop.f32.mrf.mxu0
    %v397 = vadd.f32 0.0, %v396
    %398 = vmatmul.bf16.gmra.mxu0 %v152
    %v399 = vpop.f32.mrf.mxu0
    %v400 = vadd.f32 0.0, %v399
    %v401 = vpop.f32.mrf.mxu0
    %v402 = vadd.f32 0.0, %v401
    %403 = vdwg.mxu0
    %404 = vmatpush.bf16.msra.mxu0 %v284
    %405 = vmatpush.bf16.msra.mxu0 %v280
    %406 = vmatpush.bf16.msra.mxu0 %v276
    %407 = vmatpush.bf16.msra.mxu0 %v272
    %408 = vmatpush.bf16.msra.mxu0 %v268
    %409 = vmatpush.bf16.msra.mxu0 %v264
    %410 = vmatpush.bf16.msra.mxu0 %v260
    %411 = vmatpush.bf16.msra.mxu0 %v256
    %412 = vmatmul.bf16.gmra.mxu0 %v149
    %v413 = vpop.f32.mrf.mxu0
    %v414 = vadd.f32 0.0, %v413
    %v415 = vpop.f32.mrf.mxu0
    %v416 = vadd.f32 0.0, %v415
    %417 = vmatmul.bf16.gmra.mxu0 %v150
    %v418 = vpop.f32.mrf.mxu0
    %v419 = vadd.f32 0.0, %v418
    %v420 = vpop.f32.mrf.mxu0
    %v421 = vadd.f32 0.0, %v420
    %422 = vmatmul.bf16.gmra.mxu0 %v151
    %v423 = vpop.f32.mrf.mxu0
    %v424 = vadd.f32 0.0, %v423
    %v425 = vpop.f32.mrf.mxu0
    %v426 = vadd.f32 0.0, %v425
    %427 = vmatmul.bf16.gmra.mxu0 %v152
    %v428 = vpop.f32.mrf.mxu0
    %v429 = vadd.f32 0.0, %v428
    %v430 = vpop.f32.mrf.mxu0
    %v431 = vadd.f32 0.0, %v430
    %432 = vdwg.mxu0
    %433 = vst [vmem:[#allocation2] sm:$0xff] %v327
    %434 = vst [vmem:[#allocation2 + $0x8] sm:$0xff] %v356
    %435 = vst [vmem:[#allocation2 + $0x10] sm:$0xff] %v385
    %436 = vst [vmem:[#allocation2 + $0x18] sm:$0xff] %v414
    %437 = vst [vmem:[#allocation2 + $0x20] sm:$0xff] %v329
    %438 = vst [vmem:[#allocation2 + $0x28] sm:$0xff] %v358
    %439 = vst [vmem:[#allocation2 + $0x30] sm:$0xff] %v387
    %440 = vst [vmem:[#allocation2 + $0x38] sm:$0xff] %v416
    %441 = vst [vmem:[#allocation2 + $0x40] sm:$0xff] %v332
    %442 = vst [vmem:[#allocation2 + $0x48] sm:$0xff] %v361
    %443 = vst [vmem:[#allocation2 + $0x50] sm:$0xff] %v390
    %444 = vst [vmem:[#allocation2 + $0x58] sm:$0xff] %v419
    %445 = vst [vmem:[#allocation2 + $0x60] sm:$0xff] %v334
    %446 = vst [vmem:[#allocation2 + $0x68] sm:$0xff] %v363
    %447 = vst [vmem:[#allocation2 + $0x70] sm:$0xff] %v392
    %448 = vst [vmem:[#allocation2 + $0x78] sm:$0xff] %v421
    %449 = vst [vmem:[#allocation2 + $0x80] sm:$0xff] %v337
    %450 = vst [vmem:[#allocation2 + $0x88] sm:$0xff] %v366
    %451 = vst [vmem:[#allocation2 + $0x90] sm:$0xff] %v395
    %452 = vst [vmem:[#allocation2 + $0x98] sm:$0xff] %v424
    %453 = vst [vmem:[#allocation2 + $0xa0] sm:$0xff] %v339
    %454 = vst [vmem:[#allocation2 + $0xa8] sm:$0xff] %v368
    %455 = vst [vmem:[#allocation2 + $0xb0] sm:$0xff] %v397
    %456 = vst [vmem:[#allocation2 + $0xb8] sm:$0xff] %v426
    %457 = vst [vmem:[#allocation2 + $0xc0] sm:$0xff] %v342
    %458 = vst [vmem:[#allocation2 + $0xc8] sm:$0xff] %v371
    %459 = vst [vmem:[#allocation2 + $0xd0] sm:$0xff] %v400
    %460 = vst [vmem:[#allocation2 + $0xd8] sm:$0xff] %v429
    %461 = vst [vmem:[#allocation2 + $0xe0] sm:$0xff] %v344
    %462 = vst [vmem:[#allocation2 + $0xe8] sm:$0xff] %v373
    %463 = vst [vmem:[#allocation2 + $0xf0] sm:$0xff] %v402
    %464 = vst [vmem:[#allocation2 + $0xf8] sm:$0xff] %v431
    %v465 = vld [vmem:[#allocation12] sm:$0xff]
    %v466 = vld [vmem:[#allocation14] sm:$0xff]
    %v467 = vpack.c.bf16 %v465, %v465
    %v468 = vld [vmem:[#allocation8] sm:$0xff]
    %v469 = vld [vmem:[#allocation8 + $0x8] sm:$0xff]
    %v470 = vld [vmem:[#allocation8 + $0x10] sm:$0xff]
    %v471 = vld [vmem:[#allocation8 + $0x18] sm:$0xff]
    %v472 = vld [vmem:[#allocation8 + $0x20] sm:$0xff]
    %v473 = vld [vmem:[#allocation8 + $0x28] sm:$0xff]
    %v474 = vld [vmem:[#allocation8 + $0x30] sm:$0xff]
    %v475 = vld [vmem:[#allocation8 + $0x38] sm:$0xff]
    %v476 = vld [vmem:[#allocation8 + $0x40] sm:$0xff]
    %v477 = vld [vmem:[#allocation8 + $0x48] sm:$0xff]
    %v478 = vld [vmem:[#allocation8 + $0x50] sm:$0xff]
    %v479 = vld [vmem:[#allocation8 + $0x58] sm:$0xff]
    %v480 = vld [vmem:[#allocation8 + $0x60] sm:$0xff]
    %v481 = vld [vmem:[#allocation8 + $0x68] sm:$0xff]
    %v482 = vld [vmem:[#allocation8 + $0x70] sm:$0xff]
    %v483 = vld [vmem:[#allocation8 + $0x78] sm:$0xff]
    %v484 = vld [vmem:[#allocation8 + $0x80] sm:$0xff]
    %v485 = vld [vmem:[#allocation8 + $0x88] sm:$0xff]
    %v486 = vld [vmem:[#allocation8 + $0x90] sm:$0xff]
    %v487 = vld [vmem:[#allocation8 + $0x98] sm:$0xff]
    %v488 = vld [vmem:[#allocation8 + $0xa0] sm:$0xff]
    %v489 = vld [vmem:[#allocation8 + $0xa8] sm:$0xff]
    %v490 = vld [vmem:[#allocation8 + $0xb0] sm:$0xff]
    %v491 = vld [vmem:[#allocation8 + $0xb8] sm:$0xff]
    %v492 = vld [vmem:[#allocation8 + $0xc0] sm:$0xff]
    %v493 = vld [vmem:[#allocation8 + $0xc8] sm:$0xff]
    %v494 = vld [vmem:[#allocation8 + $0xd0] sm:$0xff]
    %v495 = vld [vmem:[#allocation8 + $0xd8] sm:$0xff]
    %v496 = vld [vmem:[#allocation8 + $0xe0] sm:$0xff]
    %v497 = vld [vmem:[#allocation8 + $0xe8] sm:$0xff]
    %v498 = vld [vmem:[#allocation8 + $0xf0] sm:$0xff]
    %v499 = vld [vmem:[#allocation8 + $0xf8] sm:$0xff]
    %v500 = vld [vmem:[#allocation2] sm:$0xff]
    %v501 = vld [vmem:[#allocation2 + $0x8] sm:$0xff]
    %v502 = vld [vmem:[#allocation2 + $0x10] sm:$0xff]
    %v503 = vld [vmem:[#allocation2 + $0x18] sm:$0xff]
    %v536 = vunpack.c.l.b16 %v468
    %v537 = vunpack.c.h.b16 %v468
    %v538 = vunpack.c.l.b16 %v469
    %v539 = vunpack.c.h.b16 %v469
    %v540 = vunpack.c.l.b16 %v470
    %v541 = vunpack.c.h.b16 %v470
    %v542 = vunpack.c.l.b16 %v471
    %v543 = vunpack.c.h.b16 %v471
    %v544 = vunpack.c.l.b16 %v472
    %v545 = vunpack.c.h.b16 %v472
    %v546 = vunpack.c.l.b16 %v473
    %v547 = vunpack.c.h.b16 %v473
    %v548 = vunpack.c.l.b16 %v474
    %v549 = vunpack.c.h.b16 %v474
    %v550 = vunpack.c.l.b16 %v475
    %v551 = vunpack.c.h.b16 %v475
    %v552 = vunpack.c.l.b16 %v476
    %v553 = vunpack.c.h.b16 %v476
    %v554 = vunpack.c.l.b16 %v477
    %v555 = vunpack.c.h.b16 %v477
    %v556 = vunpack.c.l.b16 %v478
    %v557 = vunpack.c.h.b16 %v478
    %v558 = vunpack.c.l.b16 %v479
    %v559 = vunpack.c.h.b16 %v479
    %v560 = vunpack.c.l.b16 %v480
    %v561 = vunpack.c.h.b16 %v480
    %v562 = vunpack.c.l.b16 %v481
    %v563 = vunpack.c.h.b16 %v481
    %v564 = vunpack.c.l.b16 %v482
    %v565 = vunpack.c.h.b16 %v482
    %v566 = vunpack.c.l.b16 %v483
    %v567 = vunpack.c.h.b16 %v483
    %v568 = vunpack.c.l.b16 %v484
    %v569 = vunpack.c.h.b16 %v484
    %v570 = vunpack.c.l.b16 %v485
    %v571 = vunpack.c.h.b16 %v485
    %v572 = vunpack.c.l.b16 %v486
    %v573 = vunpack.c.h.b16 %v486
    %v574 = vunpack.c.l.b16 %v487
    %v575 = vunpack.c.h.b16 %v487
    %v576 = vunpack.c.l.b16 %v488
    %v577 = vunpack.c.h.b16 %v488
    %v578 = vunpack.c.l.b16 %v489
    %v579 = vunpack.c.h.b16 %v489
    %v580 = vunpack.c.l.b16 %v490
    %v581 = vunpack.c.h.b16 %v490
    %v582 = vunpack.c.l.b16 %v491
    %v583 = vunpack.c.h.b16 %v491
    %v584 = vunpack.c.l.b16 %v492
    %v585 = vunpack.c.h.b16 %v492
    %v586 = vunpack.c.l.b16 %v493
    %v587 = vunpack.c.h.b16 %v493
    %v588 = vunpack.c.l.b16 %v494
    %v589 = vunpack.c.h.b16 %v494
    %v590 = vunpack.c.l.b16 %v495
    %v591 = vunpack.c.h.b16 %v495
    %v592 = vunpack.c.l.b16 %v496
    %v593 = vunpack.c.h.b16 %v496
    %v594 = vunpack.c.l.b16 %v497
    %v595 = vunpack.c.h.b16 %v497
    %v596 = vunpack.c.l.b16 %v498
    %v597 = vunpack.c.h.b16 %v498
    %v598 = vunpack.c.l.b16 %v499
    %v599 = vunpack.c.h.b16 %v499
    %v600 = vpack.c.b16 %v540, %v536
    %v601 = vpack.c.b16 %v541, %v537
    %v602 = vpack.c.b16 %v542, %v538
    %v603 = vpack.c.b16 %v543, %v539
    %v604 = vpack.c.b16 %v548, %v544
    %v605 = vpack.c.b16 %v549, %v545
    %v606 = vpack.c.b16 %v550, %v546
    %v607 = vpack.c.b16 %v551, %v547
    %v608 = vpack.c.b16 %v556, %v552
    %v609 = vpack.c.b16 %v557, %v553
    %v610 = vpack.c.b16 %v558, %v554
    %v611 = vpack.c.b16 %v559, %v555
    %v612 = vpack.c.b16 %v564, %v560
    %v613 = vpack.c.b16 %v565, %v561
    %v614 = vpack.c.b16 %v566, %v562
    %v615 = vpack.c.b16 %v567, %v563
    %v616 = vpack.c.b16 %v572, %v568
    %v617 = vpack.c.b16 %v573, %v569
    %v618 = vpack.c.b16 %v574, %v570
    %v619 = vpack.c.b16 %v575, %v571
    %v620 = vpack.c.b16 %v580, %v576
    %v621 = vpack.c.b16 %v581, %v577
    %v622 = vpack.c.b16 %v582, %v578
    %v623 = vpack.c.b16 %v583, %v579
    %v624 = vpack.c.b16 %v588, %v584
    %v625 = vpack.c.b16 %v589, %v585
    %v626 = vpack.c.b16 %v590, %v586
    %v627 = vpack.c.b16 %v591, %v587
    %v628 = vpack.c.b16 %v596, %v592
    %v629 = vpack.c.b16 %v597, %v593
    %v630 = vpack.c.b16 %v598, %v594
    %v631 = vpack.c.b16 %v599, %v595
    %664 = vmatpush.bf16.msra.mxu0 %v628
    %665 = vmatpush.bf16.msra.mxu0 %v624
    %666 = vmatpush.bf16.msra.mxu0 %v620
    %667 = vmatpush.bf16.msra.mxu0 %v616
    %668 = vmatpush.bf16.msra.mxu0 %v612
    %669 = vmatpush.bf16.msra.mxu0 %v608
    %670 = vmatpush.bf16.msra.mxu0 %v604
    %671 = vmatpush.bf16.msra.mxu0 %v600
    %672 = vmatmul.bf16.gmra.mxu0 %v467
    %v673 = vpop.f32.mrf.mxu0
    %v674 = vadd.f32 %v500, %v673
    %v675 = vpop.f32.mrf.mxu0
    %676 = vdwg.mxu0
    %677 = vmatpush.bf16.msra.mxu0 %v629
    %678 = vmatpush.bf16.msra.mxu0 %v625
    %679 = vmatpush.bf16.msra.mxu0 %v621
    %680 = vmatpush.bf16.msra.mxu0 %v617
    %681 = vmatpush.bf16.msra.mxu0 %v613
    %682 = vmatpush.bf16.msra.mxu0 %v609
    %683 = vmatpush.bf16.msra.mxu0 %v605
    %684 = vmatpush.bf16.msra.mxu0 %v601
    %685 = vmatmul.bf16.gmra.mxu0 %v467
    %v686 = vpop.f32.mrf.mxu0
    %v687 = vadd.f32 %v501, %v686
    %v688 = vpop.f32.mrf.mxu0
    %689 = vdwg.mxu0
    %690 = vmatpush.bf16.msra.mxu0 %v630
    %691 = vmatpush.bf16.msra.mxu0 %v626
    %692 = vmatpush.bf16.msra.mxu0 %v622
    %693 = vmatpush.bf16.msra.mxu0 %v618
    %694 = vmatpush.bf16.msra.mxu0 %v614
    %695 = vmatpush.bf16.msra.mxu0 %v610
    %696 = vmatpush.bf16.msra.mxu0 %v606
    %697 = vmatpush.bf16.msra.mxu0 %v602
    %698 = vmatmul.bf16.gmra.mxu0 %v467
    %v699 = vpop.f32.mrf.mxu0
    %v700 = vadd.f32 %v502, %v699
    %v701 = vpop.f32.mrf.mxu0
    %702 = vdwg.mxu0
    %703 = vmatpush.bf16.msra.mxu0 %v631
    %704 = vmatpush.bf16.msra.mxu0 %v627
    %705 = vmatpush.bf16.msra.mxu0 %v623
    %706 = vmatpush.bf16.msra.mxu0 %v619
    %707 = vmatpush.bf16.msra.mxu0 %v615
    %708 = vmatpush.bf16.msra.mxu0 %v611
    %709 = vmatpush.bf16.msra.mxu0 %v607
    %710 = vmatpush.bf16.msra.mxu0 %v603
    %711 = vmatmul.bf16.gmra.mxu0 %v467
    %v712 = vpop.f32.mrf.mxu0
    %v713 = vadd.f32 %v503, %v712
    %v714 = vpop.f32.mrf.mxu0
    %715 = vdwg.mxu0
    %v716 = vmul.f32 %v674, 0.5
    %v717 = vtanh.pop %v716
    %v718 = vmul.f32 %v717, 0.5
    %v719 = vadd.f32 %v718, 0.5
    %v720 = vmul.f32 %v687, 0.5
    %v721 = vtanh.pop %v720
    %v722 = vmul.f32 %v721, 0.5
    %v723 = vadd.f32 %v722, 0.5
    %v724 = vtanh.pop %v700
    %v725 = vmul.f32 %v713, 0.5
    %v726 = vtanh.pop %v725
    %v727 = vmul.f32 %v726, 0.5
    %v728 = vadd.f32 %v727, 0.5
    %v729 = vmul.f32 %v723, %v466
    %v730 = vmul.f32 %v719, %v724
    %v731 = vadd.f32 %v729, %v730
    %v732 = vtanh.pop %v731
    %v733 = vmul.f32 %v728, %v732
    %734 = vst [vmem:[#allocation14] sm:$0xff] %v731
    %735 = vst [vmem:[#allocation12] sm:$0xff] %v733
    %v736 = vpack.c.bf16 %v733, %v733
    %s737 = scalar_lea.vmem [#allocation12], 8
    %v738 = vld [vmem:[%s737] sm:$0xff]
    %s739 = scalar_lea.vmem [#allocation14], 8
    %v740 = vld [vmem:[%s739] sm:$0xff]
    %v741 = vpack.c.bf16 %v738, %v738
    %s742 = scalar_lea.vmem [#allocation8], 256
    %v743 = vld [vmem:[%s742] sm:$0xff]
    %v744 = vld [vmem:[%s742 + $0x8] sm:$0xff]
    %v745 = vld [vmem:[%s742 + $0x10] sm:$0xff]
    %v746 = vld [vmem:[%s742 + $0x18] sm:$0xff]
    %v747 = vld [vmem:[%s742 + $0x20] sm:$0xff]
    %v748 = vld [vmem:[%s742 + $0x28] sm:$0xff]
    %v749 = vld [vmem:[%s742 + $0x30] sm:$0xff]
    %v750 = vld [vmem:[%s742 + $0x38] sm:$0xff]
    %v751 = vld [vmem:[%s742 + $0x40] sm:$0xff]
    %v752 = vld [vmem:[%s742 + $0x48] sm:$0xff]
    %v753 = vld [vmem:[%s742 + $0x50] sm:$0xff]
    %v754 = vld [vmem:[%s742 + $0x58] sm:$0xff]
    %v755 = vld [vmem:[%s742 + $0x60] sm:$0xff]
    %v756 = vld [vmem:[%s742 + $0x68] sm:$0xff]
    %v757 = vld [vmem:[%s742 + $0x70] sm:$0xff]
    %v758 = vld [vmem:[%s742 + $0x78] sm:$0xff]
    %v759 = vld [vmem:[%s742 + $0x80] sm:$0xff]
    %v760 = vld [vmem:[%s742 + $0x88] sm:$0xff]
    %v761 = vld [vmem:[%s742 + $0x90] sm:$0xff]
    %v762 = vld [vmem:[%s742 + $0x98] sm:$0xff]
    %v763 = vld [vmem:[%s742 + $0xa0] sm:$0xff]
    %v764 = vld [vmem:[%s742 + $0xa8] sm:$0xff]
    %v765 = vld [vmem:[%s742 + $0xb0] sm:$0xff]
    %v766 = vld [vmem:[%s742 + $0xb8] sm:$0xff]
    %v767 = vld [vmem:[%s742 + $0xc0] sm:$0xff]
    %v768 = vld [vmem:[%s742 + $0xc8] sm:$0xff]
    %v769 = vld [vmem:[%s742 + $0xd0] sm:$0xff]
    %v770 = vld [vmem:[%s742 + $0xd8] sm:$0xff]
    %v771 = vld [vmem:[%s742 + $0xe0] sm:$0xff]
    %v772 = vld [vmem:[%s742 + $0xe8] sm:$0xff]
    %v773 = vld [vmem:[%s742 + $0xf0] sm:$0xff]
    %v774 = vld [vmem:[%s742 + $0xf8] sm:$0xff]
    %v775 = vld [vmem:[#allocation9] sm:$0xff]
    %v776 = vld [vmem:[#allocation9 + $0x8] sm:$0xff]
    %v777 = vld [vmem:[#allocation9 + $0x10] sm:$0xff]
    %v778 = vld [vmem:[#allocation9 + $0x18] sm:$0xff]
    %v779 = vld [vmem:[#allocation9 + $0x20] sm:$0xff]
    %v780 = vld [vmem:[#allocation9 + $0x28] sm:$0xff]
    %v781 = vld [vmem:[#allocation9 + $0x30] sm:$0xff]
    %v782 = vld [vmem:[#allocation9 + $0x38] sm:$0xff]
    %v783 = vld [vmem:[#allocation9 + $0x40] sm:$0xff]
    %v784 = vld [vmem:[#allocation9 + $0x48] sm:$0xff]
    %v785 = vld [vmem:[#allocation9 + $0x50] sm:$0xff]
    %v786 = vld [vmem:[#allocation9 + $0x58] sm:$0xff]
    %v787 = vld [vmem:[#allocation9 + $0x60] sm:$0xff]
    %v788 = vld [vmem:[#allocation9 + $0x68] sm:$0xff]
    %v789 = vld [vmem:[#allocation9 + $0x70] sm:$0xff]
    %v790 = vld [vmem:[#allocation9 + $0x78] sm:$0xff]
    %v791 = vld [vmem:[#allocation9 + $0x80] sm:$0xff]
    %v792 = vld [vmem:[#allocation9 + $0x88] sm:$0xff]
    %v793 = vld [vmem:[#allocation9 + $0x90] sm:$0xff]
    %v794 = vld [vmem:[#allocation9 + $0x98] sm:$0xff]
    %v795 = vld [vmem:[#allocation9 + $0xa0] sm:$0xff]
    %v796 = vld [vmem:[#allocation9 + $0xa8] sm:$0xff]
    %v797 = vld [vmem:[#allocation9 + $0xb0] sm:$0xff]
    %v798 = vld [vmem:[#allocation9 + $0xb8] sm:$0xff]
    %v799 = vld [vmem:[#allocation9 + $0xc0] sm:$0xff]
    %v800 = vld [vmem:[#allocation9 + $0xc8] sm:$0xff]
    %v801 = vld [vmem:[#allocation9 + $0xd0] sm:$0xff]
    %v802 = vld [vmem:[#allocation9 + $0xd8] sm:$0xff]
    %v803 = vld [vmem:[#allocation9 + $0xe0] sm:$0xff]
    %v804 = vld [vmem:[#allocation9 + $0xe8] sm:$0xff]
    %v805 = vld [vmem:[#allocation9 + $0xf0] sm:$0xff]
    %v806 = vld [vmem:[#allocation9 + $0xf8] sm:$0xff]
    %v839 = vunpack.c.l.b16 %v775
    %v840 = vunpack.c.h.b16 %v775
    %v841 = vunpack.c.l.b16 %v776
    %v842 = vunpack.c.h.b16 %v776
    %v843 = vunpack.c.l.b16 %v777
    %v844 = vunpack.c.h.b16 %v777
    %v845 = vunpack.c.l.b16 %v778
    %v846 = vunpack.c.h.b16 %v778
    %v847 = vunpack.c.l.b16 %v779
    %v848 = vunpack.c.h.b16 %v779
    %v849 = vunpack.c.l.b16 %v780
    %v850 = vunpack.c.h.b16 %v780
    %v851 = vunpack.c.l.b16 %v781
    %v852 = vunpack.c.h.b16 %v781
    %v853 = vunpack.c.l.b16 %v782
    %v854 = vunpack.c.h.b16 %v782
    %v855 = vunpack.c.l.b16 %v783
    %v856 = vunpack.c.h.b16 %v783
    %v857 = vunpack.c.l.b16 %v784
    %v858 = vunpack.c.h.b16 %v784
    %v859 = vunpack.c.l.b16 %v785
    %v860 = vunpack.c.h.b16 %v785
    %v861 = vunpack.c.l.b16 %v786
    %v862 = vunpack.c.h.b16 %v786
    %v863 = vunpack.c.l.b16 %v787
    %v864 = vunpack.c.h.b16 %v787
    %v865 = vunpack.c.l.b16 %v788
    %v866 = vunpack.c.h.b16 %v788
    %v867 = vunpack.c.l.b16 %v789
    %v868 = vunpack.c.h.b16 %v789
    %v869 = vunpack.c.l.b16 %v790
    %v870 = vunpack.c.h.b16 %v790
    %v871 = vunpack.c.l.b16 %v791
    %v872 = vunpack.c.h.b16 %v791
    %v873 = vunpack.c.l.b16 %v792
    %v874 = vunpack.c.h.b16 %v792
    %v875 = vunpack.c.l.b16 %v793
    %v876 = vunpack.c.h.b16 %v793
    %v877 = vunpack.c.l.b16 %v794
    %v878 = vunpack.c.h.b16 %v794
    %v879 = vunpack.c.l.b16 %v795
    %v880 = vunpack.c.h.b16 %v795
    %v881 = vunpack.c.l.b16 %v796
    %v882 = vunpack.c.h.b16 %v796
    %v883 = vunpack.c.l.b16 %v797
    %v884 = vunpack.c.h.b16 %v797
    %v885 = vunpack.c.l.b16 %v798
    %v886 = vunpack.c.h.b16 %v798
    %v887 = vunpack.c.l.b16 %v799
    %v888 = vunpack.c.h.b16 %v799
    %v889 = vunpack.c.l.b16 %v800
    %v890 = vunpack.c.h.b16 %v800
    %v891 = vunpack.c.l.b16 %v801
    %v892 = vunpack.c.h.b16 %v801
    %v893 = vunpack.c.l.b16 %v802
    %v894 = vunpack.c.h.b16 %v802
    %v895 = vunpack.c.l.b16 %v803
    %v896 = vunpack.c.h.b16 %v803
    %v897 = vunpack.c.l.b16 %v804
    %v898 = vunpack.c.h.b16 %v804
    %v899 = vunpack.c.l.b16 %v805
    %v900 = vunpack.c.h.b16 %v805
    %v901 = vunpack.c.l.b16 %v806
    %v902 = vunpack.c.h.b16 %v806
    %v903 = vpack.c.b16 %v843, %v839
    %v904 = vpack.c.b16 %v844, %v840
    %v905 = vpack.c.b16 %v845, %v841
    %v906 = vpack.c.b16 %v846, %v842
    %v907 = vpack.c.b16 %v851, %v847
    %v908 = vpack.c.b16 %v852, %v848
    %v909 = vpack.c.b16 %v853, %v849
    %v910 = vpack.c.b16 %v854, %v850
    %v911 = vpack.c.b16 %v859, %v855
    %v912 = vpack.c.b16 %v860, %v856
    %v913 = vpack.c.b16 %v861, %v857
    %v914 = vpack.c.b16 %v862, %v858
    %v915 = vpack.c.b16 %v867, %v863
    %v916 = vpack.c.b16 %v868, %v864
    %v917 = vpack.c.b16 %v869, %v865
    %v918 = vpack.c.b16 %v870, %v866
    %v919 = vpack.c.b16 %v875, %v871
    %v920 = vpack.c.b16 %v876, %v872
    %v921 = vpack.c.b16 %v877, %v873
    %v922 = vpack.c.b16 %v878, %v874
    %v923 = vpack.c.b16 %v883, %v879
    %v924 = vpack.c.b16 %v884, %v880
    %v925 = vpack.c.b16 %v885, %v881
    %v926 = vpack.c.b16 %v886, %v882
    %v927 = vpack.c.b16 %v891, %v887
    %v928 = vpack.c.b16 %v892, %v888
    %v929 = vpack.c.b16 %v893, %v889
    %v930 = vpack.c.b16 %v894, %v890
    %v931 = vpack.c.b16 %v899, %v895
    %v932 = vpack.c.b16 %v900, %v896
    %v933 = vpack.c.b16 %v901, %v897
    %v934 = vpack.c.b16 %v902, %v898
    %967 = vmatpush.bf16.msra.mxu0 %v931
    %968 = vmatpush.bf16.msra.mxu0 %v927
    %969 = vmatpush.bf16.msra.mxu0 %v923
    %970 = vmatpush.bf16.msra.mxu0 %v919
    %971 = vmatpush.bf16.msra.mxu0 %v915
    %972 = vmatpush.bf16.msra.mxu0 %v911
    %973 = vmatpush.bf16.msra.mxu0 %v907
    %974 = vmatpush.bf16.msra.mxu0 %v903
    %975 = vmatmul.bf16.gmra.mxu0 %v736
    %v976 = vpop.f32.mrf.mxu0
    %v977 = vadd.f32 0.0, %v976
    %v978 = vpop.f32.mrf.mxu0
    %979 = vdwg.mxu0
    %980 = vmatpush.bf16.msra.mxu0 %v932
    %981 = vmatpush.bf16.msra.mxu0 %v928
    %982 = vmatpush.bf16.msra.mxu0 %v924
    %983 = vmatpush.bf16.msra.mxu0 %v920
    %984 = vmatpush.bf16.msra.mxu0 %v916
    %985 = vmatpush.bf16.msra.mxu0 %v912
    %986 = vmatpush.bf16.msra.mxu0 %v908
    %987 = vmatpush.bf16.msra.mxu0 %v904
    %988 = vmatmul.bf16.gmra.mxu0 %v736
    %v989 = vpop.f32.mrf.mxu0
    %v990 = vadd.f32 0.0, %v989
    %v991 = vpop.f32.mrf.mxu0
    %992 = vdwg.mxu0
    %993 = vmatpush.bf16.msra.mxu0 %v933
    %994 = vmatpush.bf16.msra.mxu0 %v929
    %995 = vmatpush.bf16.msra.mxu0 %v925
    %996 = vmatpush.bf16.msra.mxu0 %v921
    %997 = vmatpush.bf16.msra.mxu0 %v917
    %998 = vmatpush.bf16.msra.mxu0 %v913
    %999 = vmatpush.bf16.msra.mxu0 %v909
    %1000 = vmatpush.bf16.msra.mxu0 %v905
    %1001 = vmatmul.bf16.gmra.mxu0 %v736
    %v1002 = vpop.f32.mrf.mxu0
    %v1003 = vadd.f32 0.0, %v1002
    %v1004 = vpop.f32.mrf.mxu0
    %1005 = vdwg.mxu0
    %1006 = vmatpush.bf16.msra.mxu0 %v934
    %1007 = vmatpush.bf16.msra.mxu0 %v930
    %1008 = vmatpush.bf16.msra.mxu0 %v926
    %1009 = vmatpush.bf16.msra.mxu0 %v922
    %1010 = vmatpush.bf16.msra.mxu0 %v918
    %1011 = vmatpush.bf16.msra.mxu0 %v914
    %1012 = vmatpush.bf16.msra.mxu0 %v910
    %1013 = vmatpush.bf16.msra.mxu0 %v906
    %1014 = vmatmul.bf16.gmra.mxu0 %v736
    %v1015 = vpop.f32.mrf.mxu0
    %v1016 = vadd.f32 0.0, %v1015
    %v1017 = vpop.f32.mrf.mxu0
    %1018 = vdwg.mxu0
    %v1051 = vunpack.c.l.b16 %v743
    %v1052 = vunpack.c.h.b16 %v743
    %v1053 = vunpack.c.l.b16 %v744
    %v1054 = vunpack.c.h.b16 %v744
    %v1055 = vunpack.c.l.b16 %v745
    %v1056 = vunpack.c.h.b16 %v745
    %v1057 = vunpack.c.l.b16 %v746
    %v1058 = vunpack.c.h.b16 %v746
    %v1059 = vunpack.c.l.b16 %v747
    %v1060 = vunpack.c.h.b16 %v747
    %v1061 = vunpack.c.l.b16 %v748
    %v1062 = vunpack.c.h.b16 %v748
    %v1063 = vunpack.c.l.b16 %v749
    %v1064 = vunpack.c.h.b16 %v749
    %v1065 = vunpack.c.l.b16 %v750
    %v1066 = vunpack.c.h.b16 %v750
    %v1067 = vunpack.c.l.b16 %v751
    %v1068 = vunpack.c.h.b16 %v751
    %v1069 = vunpack.c.l.b16 %v752
    %v1070 = vunpack.c.h.b16 %v752
    %v1071 = vunpack.c.l.b16 %v753
    %v1072 = vunpack.c.h.b16 %v753
    %v1073 = vunpack.c.l.b16 %v754
    %v1074 = vunpack.c.h.b16 %v754
    %v1075 = vunpack.c.l.b16 %v755
    %v1076 = vunpack.c.h.b16 %v755
    %v1077 = vunpack.c.l.b16 %v756
    %v1078 = vunpack.c.h.b16 %v756
    %v1079 = vunpack.c.l.b16 %v757
    %v1080 = vunpack.c.h.b16 %v757
    %v1081 = vunpack.c.l.b16 %v758
    %v1082 = vunpack.c.h.b16 %v758
    %v1083 = vunpack.c.l.b16 %v759
    %v1084 = vunpack.c.h.b16 %v759
    %v1085 = vunpack.c.l.b16 %v760
    %v1086 = vunpack.c.h.b16 %v760
    %v1087 = vunpack.c.l.b16 %v761
    %v1088 = vunpack.c.h.b16 %v761
    %v1089 = vunpack.c.l.b16 %v762
    %v1090 = vunpack.c.h.b16 %v762
    %v1091 = vunpack.c.l.b16 %v763
    %v1092 = vunpack.c.h.b16 %v763
    %v1093 = vunpack.c.l.b16 %v764
    %v1094 = vunpack.c.h.b16 %v764
    %v1095 = vunpack.c.l.b16 %v765
    %v1096 = vunpack.c.h.b16 %v765
    %v1097 = vunpack.c.l.b16 %v766
    %v1098 = vunpack.c.h.b16 %v766
    %v1099 = vunpack.c.l.b16 %v767
    %v1100 = vunpack.c.h.b16 %v767
    %v1101 = vunpack.c.l.b16 %v768
    %v1102 = vunpack.c.h.b16 %v768
    %v1103 = vunpack.c.l.b16 %v769
    %v1104 = vunpack.c.h.b16 %v769
    %v1105 = vunpack.c.l.b16 %v770
    %v1106 = vunpack.c.h.b16 %v770
    %v1107 = vunpack.c.l.b16 %v771
    %v1108 = vunpack.c.h.b16 %v771
    %v1109 = vunpack.c.l.b16 %v772
    %v1110 = vunpack.c.h.b16 %v772
    %v1111 = vunpack.c.l.b16 %v773
    %v1112 = vunpack.c.h.b16 %v773
    %v1113 = vunpack.c.l.b16 %v774
    %v1114 = vunpack.c.h.b16 %v774
    %v1115 = vpack.c.b16 %v1055, %v1051
    %v1116 = vpack.c.b16 %v1056, %v1052
    %v1117 = vpack.c.b16 %v1057, %v1053
    %v1118 = vpack.c.b16 %v1058, %v1054
    %v1119 = vpack.c.b16 %v1063, %v1059
    %v1120 = vpack.c.b16 %v1064, %v1060
    %v1121 = vpack.c.b16 %v1065, %v1061
    %v1122 = vpack.c.b16 %v1066, %v1062
    %v1123 = vpack.c.b16 %v1071, %v1067
    %v1124 = vpack.c.b16 %v1072, %v1068
    %v1125 = vpack.c.b16 %v1073, %v1069
    %v1126 = vpack.c.b16 %v1074, %v1070
    %v1127 = vpack.c.b16 %v1079, %v1075
    %v1128 = vpack.c.b16 %v1080, %v1076
    %v1129 = vpack.c.b16 %v1081, %v1077
    %v1130 = vpack.c.b16 %v1082, %v1078
    %v1131 = vpack.c.b16 %v1087, %v1083
    %v1132 = vpack.c.b16 %v1088, %v1084
    %v1133 = vpack.c.b16 %v1089, %v1085
    %v1134 = vpack.c.b16 %v1090, %v1086
    %v1135 = vpack.c.b16 %v1095, %v1091
    %v1136 = vpack.c.b16 %v1096, %v1092
    %v1137 = vpack.c.b16 %v1097, %v1093
    %v1138 = vpack.c.b16 %v1098, %v1094
    %v1139 = vpack.c.b16 %v1103, %v1099
    %v1140 = vpack.c.b16 %v1104, %v1100
    %v1141 = vpack.c.b16 %v1105, %v1101
    %v1142 = vpack.c.b16 %v1106, %v1102
    %v1143 = vpack.c.b16 %v1111, %v1107
    %v1144 = vpack.c.b16 %v1112, %v1108
    %v1145 = vpack.c.b16 %v1113, %v1109
    %v1146 = vpack.c.b16 %v1114, %v1110
    %1179 = vmatpush.bf16.msra.mxu0 %v1143
    %1180 = vmatpush.bf16.msra.mxu0 %v1139
    %1181 = vmatpush.bf16.msra.mxu0 %v1135
    %1182 = vmatpush.bf16.msra.mxu0 %v1131
    %1183 = vmatpush.bf16.msra.mxu0 %v1127
    %1184 = vmatpush.bf16.msra.mxu0 %v1123
    %1185 = vmatpush.bf16.msra.mxu0 %v1119
    %1186 = vmatpush.bf16.msra.mxu0 %v1115
    %1187 = vmatmul.bf16.gmra.mxu0 %v741
    %v1188 = vpop.f32.mrf.mxu0
    %v1189 = vadd.f32 %v977, %v1188
    %v1190 = vpop.f32.mrf.mxu0
    %1191 = vdwg.mxu0
    %1192 = vmatpush.bf16.msra.mxu0 %v1144
    %1193 = vmatpush.bf16.msra.mxu0 %v1140
    %1194 = vmatpush.bf16.msra.mxu0 %v1136
    %1195 = vmatpush.bf16.msra.mxu0 %v1132
    %1196 = vmatpush.bf16.msra.mxu0 %v1128
    %1197 = vmatpush.bf16.msra.mxu0 %v1124
    %1198 = vmatpush.bf16.msra.mxu0 %v1120
    %1199 = vmatpush.bf16.msra.mxu0 %v1116
    %1200 = vmatmul.bf16.gmra.mxu0 %v741
    %v1201 = vpop.f32.mrf.mxu0
    %v1202 = vadd.f32 %v990, %v1201
    %v1203 = vpop.f32.mrf.mxu0
    %1204 = vdwg.mxu0
    %1205 = vmatpush.bf16.msra.mxu0 %v1145
    %1206 = vmatpush.bf16.msra.mxu0 %v1141
    %1207 = vmatpush.bf16.msra.mxu0 %v1137
    %1208 = vmatpush.bf16.msra.mxu0 %v1133
    %1209 = vmatpush.bf16.msra.mxu0 %v1129
    %1210 = vmatpush.bf16.msra.mxu0 %v1125
    %1211 = vmatpush.bf16.msra.mxu0 %v1121
    %1212 = vmatpush.bf16.msra.mxu0 %v1117
    %1213 = vmatmul.bf16.gmra.mxu0 %v741
    %v1214 = vpop.f32.mrf.mxu0
    %v1215 = vadd.f32 %v1003, %v1214
    %v1216 = vpop.f32.mrf.mxu0
    %1217 = vdwg.mxu0
    %1218 = vmatpush.bf16.msra.mxu0 %v1146
    %1219 = vmatpush.bf16.msra.mxu0 %v1142
    %1220 = vmatpush.bf16.msra.mxu0 %v1138
    %1221 = vmatpush.bf16.msra.mxu0 %v1134
    %1222 = vmatpush.bf16.msra.mxu0 %v1130
    %1223 = vmatpush.bf16.msra.mxu0 %v1126
    %1224 = vmatpush.bf16.msra.mxu0 %v1122
    %1225 = vmatpush.bf16.msra.mxu0 %v1118
    %1226 = vmatmul.bf16.gmra.mxu0 %v741
    %v1227 = vpop.f32.mrf.mxu0
    %v1228 = vadd.f32 %v1016, %v1227
    %v1229 = vpop.f32.mrf.mxu0
    %1230 = vdwg.mxu0
    %v1231 = vmul.f32 %v1189, 0.5
    %v1232 = vtanh.pop %v1231
    %v1233 = vmul.f32 %v1232, 0.5
    %v1234 = vadd.f32 %v1233, 0.5
    %v1235 = vmul.f32 %v1202, 0.5
    %v1236 = vtanh.pop %v1235
    %v1237 = vmul.f32 %v1236, 0.5
    %v1238 = vadd.f32 %v1237, 0.5
    %v1239 = vtanh.pop %v1215
    %v1240 = vmul.f32 %v1228, 0.5
    %v1241 = vtanh.pop %v1240
    %v1242 = vmul.f32 %v1241, 0.5
    %v1243 = vadd.f32 %v1242, 0.5
    %v1244 = vmul.f32 %v1238, %v740
    %v1245 = vmul.f32 %v1234, %v1239
    %v1246 = vadd.f32 %v1244, %v1245
    %v1247 = vtanh.pop %v1246
    %v1248 = vmul.f32 %v1243, %v1247
    %1249 = vst [vmem:[%s739] sm:$0xff] %v1246
    %1250 = vst [vmem:[%s737] sm:$0xff] %v1248
    %1251 = vst [vmem:[#allocation11] sm:$0xff] %v1248
    %v1252 = vld [vmem:[#allocation12] sm:$0xff]
    %v1253 = vld [vmem:[#allocation14] sm:$0xff]
    %v1254 = vpack.c.bf16 %v1252, %v1252
    %v1255 = vld [vmem:[#allocation8] sm:$0xff]
    %v1256 = vld [vmem:[#allocation8 + $0x8] sm:$0xff]
    %v1257 = vld [vmem:[#allocation8 + $0x10] sm:$0xff]
    %v1258 = vld [vmem:[#allocation8 + $0x18] sm:$0xff]
    %v1259 = vld [vmem:[#allocation8 + $0x20] sm:$0xff]
    %v1260 = vld [vmem:[#allocation8 + $0x28] sm:$0xff]
    %v1261 = vld [vmem:[#allocation8 + $0x30] sm:$0xff]
    %v1262 = vld [vmem:[#allocation8 + $0x38] sm:$0xff]
    %v1263 = vld [vmem:[#allocation8 + $0x40] sm:$0xff]
    %v1264 = vld [vmem:[#allocation8 + $0x48] sm:$0xff]
    %v1265 = vld [vmem:[#allocation8 + $0x50] sm:$0xff]
    %v1266 = vld [vmem:[#allocation8 + $0x58] sm:$0xff]
    %v1267 = vld [vmem:[#allocation8 + $0x60] sm:$0xff]
    %v1268 = vld [vmem:[#allocation8 + $0x68] sm:$0xff]
    %v1269 = vld [vmem:[#allocation8 + $0x70] sm:$0xff]
    %v1270 = vld [vmem:[#allocation8 + $0x78] sm:$0xff]
    %v1271 = vld [vmem:[#allocation8 + $0x80] sm:$0xff]
    %v1272 = vld [vmem:[#allocation8 + $0x88] sm:$0xff]
    %v1273 = vld [vmem:[#allocation8 + $0x90] sm:$0xff]
    %v1274 = vld [vmem:[#allocation8 + $0x98] sm:$0xff]
    %v1275 = vld [vmem:[#allocation8 + $0xa0] sm:$0xff]
    %v1276 = vld [vmem:[#allocation8 + $0xa8] sm:$0xff]
    %v1277 = vld [vmem:[#allocation8 + $0xb0] sm:$0xff]
    %v1278 = vld [vmem:[#allocation8 + $0xb8] sm:$0xff]
    %v1279 = vld [vmem:[#allocation8 + $0xc0] sm:$0xff]
    %v1280 = vld [vmem:[#allocation8 + $0xc8] sm:$0xff]
    %v1281 = vld [vmem:[#allocation8 + $0xd0] sm:$0xff]
    %v1282 = vld [vmem:[#allocation8 + $0xd8] sm:$0xff]
    %v1283 = vld [vmem:[#allocation8 + $0xe0] sm:$0xff]
    %v1284 = vld [vmem:[#allocation8 + $0xe8] sm:$0xff]
    %v1285 = vld [vmem:[#allocation8 + $0xf0] sm:$0xff]
    %v1286 = vld [vmem:[#allocation8 + $0xf8] sm:$0xff]
    %s1287 = scalar_lea.vmem [#allocation2], 32
    %v1288 = vld [vmem:[%s1287] sm:$0xff]
    %v1289 = vld [vmem:[%s1287 + $0x8] sm:$0xff]
    %v1290 = vld [vmem:[%s1287 + $0x10] sm:$0xff]
    %v1291 = vld [vmem:[%s1287 + $0x18] sm:$0xff]
    %v1324 = vunpack.c.l.b16 %v1255
    %v1325 = vunpack.c.h.b16 %v1255
    %v1326 = vunpack.c.l.b16 %v1256
    %v1327 = vunpack.c.h.b16 %v1256
    %v1328 = vunpack.c.l.b16 %v1257
    %v1329 = vunpack.c.h.b16 %v1257
    %v1330 = vunpack.c.l.b16 %v1258
    %v1331 = vunpack.c.h.b16 %v1258
    %v1332 = vunpack.c.l.b16 %v1259
    %v1333 = vunpack.c.h.b16 %v1259
    %v1334 = vunpack.c.l.b16 %v1260
    %v1335 = vunpack.c.h.b16 %v1260
    %v1336 = vunpack.c.l.b16 %v1261
    %v1337 = vunpack.c.h.b16 %v1261
    %v1338 = vunpack.c.l.b16 %v1262
    %v1339 = vunpack.c.h.b16 %v1262
    %v1340 = vunpack.c.l.b16 %v1263
    %v1341 = vunpack.c.h.b16 %v1263
    %v1342 = vunpack.c.l.b16 %v1264
    %v1343 = vunpack.c.h.b16 %v1264
    %v1344 = vunpack.c.l.b16 %v1265
    %v1345 = vunpack.c.h.b16 %v1265
    %v1346 = vunpack.c.l.b16 %v1266
    %v1347 = vunpack.c.h.b16 %v1266
    %v1348 = vunpack.c.l.b16 %v1267
    %v1349 = vunpack.c.h.b16 %v1267
    %v1350 = vunpack.c.l.b16 %v1268
    %v1351 = vunpack.c.h.b16 %v1268
    %v1352 = vunpack.c.l.b16 %v1269
    %v1353 = vunpack.c.h.b16 %v1269
    %v1354 = vunpack.c.l.b16 %v1270
    %v1355 = vunpack.c.h.b16 %v1270
    %v1356 = vunpack.c.l.b16 %v1271
    %v1357 = vunpack.c.h.b16 %v1271
    %v1358 = vunpack.c.l.b16 %v1272
    %v1359 = vunpack.c.h.b16 %v1272
    %v1360 = vunpack.c.l.b16 %v1273
    %v1361 = vunpack.c.h.b16 %v1273
    %v1362 = vunpack.c.l.b16 %v1274
    %v1363 = vunpack.c.h.b16 %v1274
    %v1364 = vunpack.c.l.b16 %v1275
    %v1365 = vunpack.c.h.b16 %v1275
    %v1366 = vunpack.c.l.b16 %v1276
    %v1367 = vunpack.c.h.b16 %v1276
    %v1368 = vunpack.c.l.b16 %v1277
    %v1369 = vunpack.c.h.b16 %v1277
    %v1370 = vunpack.c.l.b16 %v1278
    %v1371 = vunpack.c.h.b16 %v1278
    %v1372 = vunpack.c.l.b16 %v1279
    %v1373 = vunpack.c.h.b16 %v1279
    %v1374 = vunpack.c.l.b16 %v1280
    %v1375 = vunpack.c.h.b16 %v1280
    %v1376 = vunpack.c.l.b16 %v1281
    %v1377 = vunpack.c.h.b16 %v1281
    %v1378 = vunpack.c.l.b16 %v1282
    %v1379 = vunpack.c.h.b16 %v1282
    %v1380 = vunpack.c.l.b16 %v1283
    %v1381 = vunpack.c.h.b16 %v1283
    %v1382 = vunpack.c.l.b16 %v1284
    %v1383 = vunpack.c.h.b16 %v1284
    %v1384 = vunpack.c.l.b16 %v1285
    %v1385 = vunpack.c.h.b16 %v1285
    %v1386 = vunpack.c.l.b16 %v1286
    %v1387 = vunpack.c.h.b16 %v1286
    %v1388 = vpack.c.b16 %v1328, %v1324
    %v1389 = vpack.c.b16 %v1329, %v1325
    %v1390 = vpack.c.b16 %v1330, %v1326
    %v1391 = vpack.c.b16 %v1331, %v1327
    %v1392 = vpack.c.b16 %v1336, %v1332
    %v1393 = vpack.c.b16 %v1337, %v1333
    %v1394 = vpack.c.b16 %v1338, %v1334
    %v1395 = vpack.c.b16 %v1339, %v1335
    %v1396 = vpack.c.b16 %v1344, %v1340
    %v1397 = vpack.c.b16 %v1345, %v1341
    %v1398 = vpack.c.b16 %v1346, %v1342
    %v1399 = vpack.c.b16 %v1347, %v1343
    %v1400 = vpack.c.b16 %v1352, %v1348
    %v1401 = vpack.c.b16 %v1353, %v1349
    %v1402 = vpack.c.b16 %v1354, %v1350
    %v1403 = vpack.c.b16 %v1355, %v1351
    %v1404 = vpack.c.b16 %v1360, %v1356
    %v1405 = vpack.c.b16 %v1361, %v1357
    %v1406 = vpack.c.b16 %v1362, %v1358
    %v1407 = vpack.c.b16 %v1363, %v1359
    %v1408 = vpack.c.b16 %v1368, %v1364
    %v1409 = vpack.c.b16 %v1369, %v1365
    %v1410 = vpack.c.b16 %v1370, %v1366
    %v1411 = vpack.c.b16 %v1371, %v1367
    %v1412 = vpack.c.b16 %v1376, %v1372
    %v1413 = vpack.c.b16 %v1377, %v1373
    %v1414 = vpack.c.b16 %v1378, %v1374
    %v1415 = vpack.c.b16 %v1379, %v1375
    %v1416 = vpack.c.b16 %v1384, %v1380
    %v1417 = vpack.c.b16 %v1385, %v1381
    %v1418 = vpack.c.b16 %v1386, %v1382
    %v1419 = vpack.c.b16 %v1387, %v1383
    %1452 = vmatpush.bf16.msra.mxu0 %v1416
    %1453 = vmatpush.bf16.msra.mxu0 %v1412
    %1454 = vmatpush.bf16.msra.mxu0 %v1408
    %1455 = vmatpush.bf16.msra.mxu0 %v1404
    %1456 = vmatpush.bf16.msra.mxu0 %v1400
    %1457 = vmatpush.bf16.msra.mxu0 %v1396
    %1458 = vmatpush.bf16.msra.mxu0 %v1392
    %1459 = vmatpush.bf16.msra.mxu0 %v1388
    %1460 = vmatmul.bf16.gmra.mxu0 %v1254
    %v1461 = vpop.f32.mrf.mxu0
    %v1462 = vadd.f32 %v1288, %v1461
    %v1463 = vpop.f32.mrf.mxu0
    %1464 = vdwg.mxu0
    %1465 = vmatpush.bf16.msra.mxu0 %v1417
    %1466 = vmatpush.bf16.msra.mxu0 %v1413
    %1467 = vmatpush.bf16.msra.mxu0 %v1409
    %1468 = vmatpush.bf16.msra.mxu0 %v1405
    %1469 = vmatpush.bf16.msra.mxu0 %v1401
    %1470 = vmatpush.bf16.msra.mxu0 %v1397
    %1471 = vmatpush.bf16.msra.mxu0 %v1393
    %1472 = vmatpush.bf16.msra.mxu0 %v1389
    %1473 = vmatmul.bf16.gmra.mxu0 %v1254
    %v1474 = vpop.f32.mrf.mxu0
    %v1475 = vadd.f32 %v1289, %v1474
    %v1476 = vpop.f32.mrf.mxu0
    %1477 = vdwg.mxu0
    %1478 = vmatpush.bf16.msra.mxu0 %v1418
    %1479 = vmatpush.bf16.msra.mxu0 %v1414
    %1480 = vmatpush.bf16.msra.mxu0 %v1410
    %1481 = vmatpush.bf16.msra.mxu0 %v1406
    %1482 = vmatpush.bf16.msra.mxu0 %v1402
    %1483 = vmatpush.bf16.msra.mxu0 %v1398
    %1484 = vmatpush.bf16.msra.mxu0 %v1394
    %1485 = vmatpush.bf16.msra.mxu0 %v1390
    %1486 = vmatmul.bf16.gmra.mxu0 %v1254
    %v1487 = vpop.f32.mrf.mxu0
    %v1488 = vadd.f32 %v1290, %v1487
    %v1489 = vpop.f32.mrf.mxu0
    %1490 = vdwg.mxu0
    %1491 = vmatpush.bf16.msra.mxu0 %v1419
    %1492 = vmatpush.bf16.msra.mxu0 %v1415
    %1493 = vmatpush.bf16.msra.mxu0 %v1411
    %1494 = vmatpush.bf16.msra.mxu0 %v1407
    %1495 = vmatpush.bf16.msra.mxu0 %v1403
    %1496 = vmatpush.bf16.msra.mxu0 %v1399
    %1497 = vmatpush.bf16.msra.mxu0 %v1395
    %1498 = vmatpush.bf16.msra.mxu0 %v1391
    %1499 = vmatmul.bf16.gmra.mxu0 %v1254
    %v1500 = vpop.f32.mrf.mxu0
    %v1501 = vadd.f32 %v1291, %v1500
    %v1502 = vpop.f32.mrf.mxu0
    %1503 = vdwg.mxu0
    %v1504 = vmul.f32 %v1462, 0.5
    %v1505 = vtanh.pop %v1504
    %v1506 = vmul.f32 %v1505, 0.5
    %v1507 = vadd.f32 %v1506, 0.5
    %v1508 = vmul.f32 %v1475, 0.5
    %v1509 = vtanh.pop %v1508
    %v1510 = vmul.f32 %v1509, 0.5
    %v1511 = vadd.f32 %v1510, 0.5
    %v1512 = vtanh.pop %v1488
    %v1513 = vmul.f32 %v1501, 0.5
    %v1514 = vtanh.pop %v1513
    %v1515 = vmul.f32 %v1514, 0.5
    %v1516 = vadd.f32 %v1515, 0.5
    %v1517 = vmul.f32 %v1511, %v1253
    %v1518 = vmul.f32 %v1507, %v1512
    %v1519 = vadd.f32 %v1517, %v1518
    %v1520 = vtanh.pop %v1519
    %v1521 = vmul.f32 %v1516, %v1520
    %1522 = vst [vmem:[#allocation14] sm:$0xff] %v1519
    %1523 = vst [vmem:[#allocation12] sm:$0xff] %v1521
    %v1524 = vpack.c.bf16 %v1521, %v1521
    %v1525 = vld [vmem:[%s737] sm:$0xff]
    %v1526 = vld [vmem:[%s739] sm:$0xff]
    %v1527 = vpack.c.bf16 %v1525, %v1525
    %v1528 = vld [vmem:[%s742] sm:$0xff]
    %v1529 = vld [vmem:[%s742 + $0x8] sm:$0xff]
    %v1530 = vld [vmem:[%s742 + $0x10] sm:$0xff]
    %v1531 = vld [vmem:[%s742 + $0x18] sm:$0xff]
    %v1532 = vld [vmem:[%s742 + $0x20] sm:$0xff]
    %v1533 = vld [vmem:[%s742 + $0x28] sm:$0xff]
    %v1534 = vld [vmem:[%s742 + $0x30] sm:$0xff]
    %v1535 = vld [vmem:[%s742 + $0x38] sm:$0xff]
    %v1536 = vld [vmem:[%s742 + $0x40] sm:$0xff]
    %v1537 = vld [vmem:[%s742 + $0x48] sm:$0xff]
    %v1538 = vld [vmem:[%s742 + $0x50] sm:$0xff]
    %v1539 = vld [vmem:[%s742 + $0x58] sm:$0xff]
    %v1540 = vld [vmem:[%s742 + $0x60] sm:$0xff]
    %v1541 = vld [vmem:[%s742 + $0x68] sm:$0xff]
    %v1542 = vld [vmem:[%s742 + $0x70] sm:$0xff]
    %v1543 = vld [vmem:[%s742 + $0x78] sm:$0xff]
    %v1544 = vld [vmem:[%s742 + $0x80] sm:$0xff]
    %v1545 = vld [vmem:[%s742 + $0x88] sm:$0xff]
    %v1546 = vld [vmem:[%s742 + $0x90] sm:$0xff]
    %v1547 = vld [vmem:[%s742 + $0x98] sm:$0xff]
    %v1548 = vld [vmem:[%s742 + $0xa0] sm:$0xff]
    %v1549 = vld [vmem:[%s742 + $0xa8] sm:$0xff]
    %v1550 = vld [vmem:[%s742 + $0xb0] sm:$0xff]
    %v1551 = vld [vmem:[%s742 + $0xb8] sm:$0xff]
    %v1552 = vld [vmem:[%s742 + $0xc0] sm:$0xff]
    %v1553 = vld [vmem:[%s742 + $0xc8] sm:$0xff]
    %v1554 = vld [vmem:[%s742 + $0xd0] sm:$0xff]
    %v1555 = vld [vmem:[%s742 + $0xd8] sm:$0xff]
    %v1556 = vld [vmem:[%s742 + $0xe0] sm:$0xff]
    %v1557 = vld [vmem:[%s742 + $0xe8] sm:$0xff]
    %v1558 = vld [vmem:[%s742 + $0xf0] sm:$0xff]
    %v1559 = vld [vmem:[%s742 + $0xf8] sm:$0xff]
    %v1560 = vld [vmem:[#allocation9] sm:$0xff]
    %v1561 = vld [vmem:[#allocation9 + $0x8] sm:$0xff]
    %v1562 = vld [vmem:[#allocation9 + $0x10] sm:$0xff]
    %v1563 = vld [vmem:[#allocation9 + $0x18] sm:$0xff]
    %v1564 = vld [vmem:[#allocation9 + $0x20] sm:$0xff]
    %v1565 = vld [vmem:[#allocation9 + $0x28] sm:$0xff]
    %v1566 = vld [vmem:[#allocation9 + $0x30] sm:$0xff]
    %v1567 = vld [vmem:[#allocation9 + $0x38] sm:$0xff]
    %v1568 = vld [vmem:[#allocation9 + $0x40] sm:$0xff]
    %v1569 = vld [vmem:[#allocation9 + $0x48] sm:$0xff]
    %v1570 = vld [vmem:[#allocation9 + $0x50] sm:$0xff]
    %v1571 = vld [vmem:[#allocation9 + $0x58] sm:$0xff]
    %v1572 = vld [vmem:[#allocation9 + $0x60] sm:$0xff]
    %v1573 = vld [vmem:[#allocation9 + $0x68] sm:$0xff]
    %v1574 = vld [vmem:[#allocation9 + $0x70] sm:$0xff]
    %v1575 = vld [vmem:[#allocation9 + $0x78] sm:$0xff]
    %v1576 = vld [vmem:[#allocation9 + $0x80] sm:$0xff]
    %v1577 = vld [vmem:[#allocation9 + $0x88] sm:$0xff]
    %v1578 = vld [vmem:[#allocation9 + $0x90] sm:$0xff]
    %v1579 = vld [vmem:[#allocation9 + $0x98] sm:$0xff]
    %v1580 = vld [vmem:[#allocation9 + $0xa0] sm:$0xff]
    %v1581 = vld [vmem:[#allocation9 + $0xa8] sm:$0xff]
    %v1582 = vld [vmem:[#allocation9 + $0xb0] sm:$0xff]
    %v1583 = vld [vmem:[#allocation9 + $0xb8] sm:$0xff]
    %v1584 = vld [vmem:[#allocation9 + $0xc0] sm:$0xff]
    %v1585 = vld [vmem:[#allocation9 + $0xc8] sm:$0xff]
    %v1586 = vld [vmem:[#allocation9 + $0xd0] sm:$0xff]
    %v1587 = vld [vmem:[#allocation9 + $0xd8] sm:$0xff]
    %v1588 = vld [vmem:[#allocation9 + $0xe0] sm:$0xff]
    %v1589 = vld [vmem:[#allocation9 + $0xe8] sm:$0xff]
    %v1590 = vld [vmem:[#allocation9 + $0xf0] sm:$0xff]
    %v1591 = vld [vmem:[#allocation9 + $0xf8] sm:$0xff]
    %v1624 = vunpack.c.l.b16 %v1560
    %v1625 = vunpack.c.h.b16 %v1560
    %v1626 = vunpack.c.l.b16 %v1561
    %v1627 = vunpack.c.h.b16 %v1561
    %v1628 = vunpack.c.l.b16 %v1562
    %v1629 = vunpack.c.h.b16 %v1562
    %v1630 = vunpack.c.l.b16 %v1563
    %v1631 = vunpack.c.h.b16 %v1563
    %v1632 = vunpack.c.l.b16 %v1564
    %v1633 = vunpack.c.h.b16 %v1564
    %v1634 = vunpack.c.l.b16 %v1565
    %v1635 = vunpack.c.h.b16 %v1565
    %v1636 = vunpack.c.l.b16 %v1566
    %v1637 = vunpack.c.h.b16 %v1566
    %v1638 = vunpack.c.l.b16 %v1567
    %v1639 = vunpack.c.h.b16 %v1567
    %v1640 = vunpack.c.l.b16 %v1568
    %v1641 = vunpack.c.h.b16 %v1568
    %v1642 = vunpack.c.l.b16 %v1569
    %v1643 = vunpack.c.h.b16 %v1569
    %v1644 = vunpack.c.l.b16 %v1570
    %v1645 = vunpack.c.h.b16 %v1570
    %v1646 = vunpack.c.l.b16 %v1571
    %v1647 = vunpack.c.h.b16 %v1571
    %v1648 = vunpack.c.l.b16 %v1572
    %v1649 = vunpack.c.h.b16 %v1572
    %v1650 = vunpack.c.l.b16 %v1573
    %v1651 = vunpack.c.h.b16 %v1573
    %v1652 = vunpack.c.l.b16 %v1574
    %v1653 = vunpack.c.h.b16 %v1574
    %v1654 = vunpack.c.l.b16 %v1575
    %v1655 = vunpack.c.h.b16 %v1575
    %v1656 = vunpack.c.l.b16 %v1576
    %v1657 = vunpack.c.h.b16 %v1576
    %v1658 = vunpack.c.l.b16 %v1577
    %v1659 = vunpack.c.h.b16 %v1577
    %v1660 = vunpack.c.l.b16 %v1578
    %v1661 = vunpack.c.h.b16 %v1578
    %v1662 = vunpack.c.l.b16 %v1579
    %v1663 = vunpack.c.h.b16 %v1579
    %v1664 = vunpack.c.l.b16 %v1580
    %v1665 = vunpack.c.h.b16 %v1580
    %v1666 = vunpack.c.l.b16 %v1581
    %v1667 = vunpack.c.h.b16 %v1581
    %v1668 = vunpack.c.l.b16 %v1582
    %v1669 = vunpack.c.h.b16 %v1582
    %v1670 = vunpack.c.l.b16 %v1583
    %v1671 = vunpack.c.h.b16 %v1583
    %v1672 = vunpack.c.l.b16 %v1584
    %v1673 = vunpack.c.h.b16 %v1584
    %v1674 = vunpack.c.l.b16 %v1585
    %v1675 = vunpack.c.h.b16 %v1585
    %v1676 = vunpack.c.l.b16 %v1586
    %v1677 = vunpack.c.h.b16 %v1586
    %v1678 = vunpack.c.l.b16 %v1587
    %v1679 = vunpack.c.h.b16 %v1587
    %v1680 = vunpack.c.l.b16 %v1588
    %v1681 = vunpack.c.h.b16 %v1588
    %v1682 = vunpack.c.l.b16 %v1589
    %v1683 = vunpack.c.h.b16 %v1589
    %v1684 = vunpack.c.l.b16 %v1590
    %v1685 = vunpack.c.h.b16 %v1590
    %v1686 = vunpack.c.l.b16 %v1591
    %v1687 = vunpack.c.h.b16 %v1591
    %v1688 = vpack.c.b16 %v1628, %v1624
    %v1689 = vpack.c.b16 %v1629, %v1625
    %v1690 = vpack.c.b16 %v1630, %v1626
    %v1691 = vpack.c.b16 %v1631, %v1627
    %v1692 = vpack.c.b16 %v1636, %v1632
    %v1693 = vpack.c.b16 %v1637, %v1633
    %v1694 = vpack.c.b16 %v1638, %v1634
    %v1695 = vpack.c.b16 %v1639, %v1635
    %v1696 = vpack.c.b16 %v1644, %v1640
    %v1697 = vpack.c.b16 %v1645, %v1641
    %v1698 = vpack.c.b16 %v1646, %v1642
    %v1699 = vpack.c.b16 %v1647, %v1643
    %v1700 = vpack.c.b16 %v1652, %v1648
    %v1701 = vpack.c.b16 %v1653, %v1649
    %v1702 = vpack.c.b16 %v1654, %v1650
    %v1703 = vpack.c.b16 %v1655, %v1651
    %v1704 = vpack.c.b16 %v1660, %v1656
    %v1705 = vpack.c.b16 %v1661, %v1657
    %v1706 = vpack.c.b16 %v1662, %v1658
    %v1707 = vpack.c.b16 %v1663, %v1659
    %v1708 = vpack.c.b16 %v1668, %v1664
    %v1709 = vpack.c.b16 %v1669, %v1665
    %v1710 = vpack.c.b16 %v1670, %v1666
    %v1711 = vpack.c.b16 %v1671, %v1667
    %v1712 = vpack.c.b16 %v1676, %v1672
    %v1713 = vpack.c.b16 %v1677, %v1673
    %v1714 = vpack.c.b16 %v1678, %v1674
    %v1715 = vpack.c.b16 %v1679, %v1675
    %v1716 = vpack.c.b16 %v1684, %v1680
    %v1717 = vpack.c.b16 %v1685, %v1681
    %v1718 = vpack.c.b16 %v1686, %v1682
    %v1719 = vpack.c.b16 %v1687, %v1683
    %1752 = vmatpush.bf16.msra.mxu0 %v1716
    %1753 = vmatpush.bf16.msra.mxu0 %v1712
    %1754 = vmatpush.bf16.msra.mxu0 %v1708
    %1755 = vmatpush.bf16.msra.mxu0 %v1704
    %1756 = vmatpush.bf16.msra.mxu0 %v1700
    %1757 = vmatpush.bf16.msra.mxu0 %v1696
    %1758 = vmatpush.bf16.msra.mxu0 %v1692
    %1759 = vmatpush.bf16.msra.mxu0 %v1688
    %1760 = vmatmul.bf16.gmra.mxu0 %v1524
    %v1761 = vpop.f32.mrf.mxu0
    %v1762 = vadd.f32 0.0, %v1761
    %v1763 = vpop.f32.mrf.mxu0
    %1764 = vdwg.mxu0
    %1765 = vmatpush.bf16.msra.mxu0 %v1717
    %1766 = vmatpush.bf16.msra.mxu0 %v1713
    %1767 = vmatpush.bf16.msra.mxu0 %v1709
    %1768 = vmatpush.bf16.msra.mxu0 %v1705
    %1769 = vmatpush.bf16.msra.mxu0 %v1701
    %1770 = vmatpush.bf16.msra.mxu0 %v1697
    %1771 = vmatpush.bf16.msra.mxu0 %v1693
    %1772 = vmatpush.bf16.msra.mxu0 %v1689
    %1773 = vmatmul.bf16.gmra.mxu0 %v1524
    %v1774 = vpop.f32.mrf.mxu0
    %v1775 = vadd.f32 0.0, %v1774
    %v1776 = vpop.f32.mrf.mxu0
    %1777 = vdwg.mxu0
    %1778 = vmatpush.bf16.msra.mxu0 %v1718
    %1779 = vmatpush.bf16.msra.mxu0 %v1714
    %1780 = vmatpush.bf16.msra.mxu0 %v1710
    %1781 = vmatpush.bf16.msra.mxu0 %v1706
    %1782 = vmatpush.bf16.msra.mxu0 %v1702
    %1783 = vmatpush.bf16.msra.mxu0 %v1698
    %1784 = vmatpush.bf16.msra.mxu0 %v1694
    %1785 = vmatpush.bf16.msra.mxu0 %v1690
    %1786 = vmatmul.bf16.gmra.mxu0 %v1524
    %v1787 = vpop.f32.mrf.mxu0
    %v1788 = vadd.f32 0.0, %v1787
    %v1789 = vpop.f32.mrf.mxu0
    %1790 = vdwg.mxu0
    %1791 = vmatpush.bf16.msra.mxu0 %v1719
    %1792 = vmatpush.bf16.msra.mxu0 %v1715
    %1793 = vmatpush.bf16.msra.mxu0 %v1711
    %1794 = vmatpush.bf16.msra.mxu0 %v1707
    %1795 = vmatpush.bf16.msra.mxu0 %v1703
    %1796 = vmatpush.bf16.msra.mxu0 %v1699
    %1797 = vmatpush.bf16.msra.mxu0 %v1695
    %1798 = vmatpush.bf16.msra.mxu0 %v1691
    %1799 = vmatmul.bf16.gmra.mxu0 %v1524
    %v1800 = vpop.f32.mrf.mxu0
    %v1801 = vadd.f32 0.0, %v1800
    %v1802 = vpop.f32.mrf.mxu0
    %1803 = vdwg.mxu0
    %v1836 = vunpack.c.l.b16 %v1528
    %v1837 = vunpack.c.h.b16 %v1528
    %v1838 = vunpack.c.l.b16 %v1529
    %v1839 = vunpack.c.h.b16 %v1529
    %v1840 = vunpack.c.l.b16 %v1530
    %v1841 = vunpack.c.h.b16 %v1530
    %v1842 = vunpack.c.l.b16 %v1531
    %v1843 = vunpack.c.h.b16 %v1531
    %v1844 = vunpack.c.l.b16 %v1532
    %v1845 = vunpack.c.h.b16 %v1532
    %v1846 = vunpack.c.l.b16 %v1533
    %v1847 = vunpack.c.h.b16 %v1533
    %v1848 = vunpack.c.l.b16 %v1534
    %v1849 = vunpack.c.h.b16 %v1534
    %v1850 = vunpack.c.l.b16 %v1535
    %v1851 = vunpack.c.h.b16 %v1535
    %v1852 = vunpack.c.l.b16 %v1536
    %v1853 = vunpack.c.h.b16 %v1536
    %v1854 = vunpack.c.l.b16 %v1537
    %v1855 = vunpack.c.h.b16 %v1537
    %v1856 = vunpack.c.l.b16 %v1538
    %v1857 = vunpack.c.h.b16 %v1538
    %v1858 = vunpack.c.l.b16 %v1539
    %v1859 = vunpack.c.h.b16 %v1539
    %v1860 = vunpack.c.l.b16 %v1540
    %v1861 = vunpack.c.h.b16 %v1540
    %v1862 = vunpack.c.l.b16 %v1541
    %v1863 = vunpack.c.h.b16 %v1541
    %v1864 = vunpack.c.l.b16 %v1542
    %v1865 = vunpack.c.h.b16 %v1542
    %v1866 = vunpack.c.l.b16 %v1543
    %v1867 = vunpack.c.h.b16 %v1543
    %v1868 = vunpack.c.l.b16 %v1544
    %v1869 = vunpack.c.h.b16 %v1544
    %v1870 = vunpack.c.l.b16 %v1545
    %v1871 = vunpack.c.h.b16 %v1545
    %v1872 = vunpack.c.l.b16 %v1546
    %v1873 = vunpack.c.h.b16 %v1546
    %v1874 = vunpack.c.l.b16 %v1547
    %v1875 = vunpack.c.h.b16 %v1547
    %v1876 = vunpack.c.l.b16 %v1548
    %v1877 = vunpack.c.h.b16 %v1548
    %v1878 = vunpack.c.l.b16 %v1549
    %v1879 = vunpack.c.h.b16 %v1549
    %v1880 = vunpack.c.l.b16 %v1550
    %v1881 = vunpack.c.h.b16 %v1550
    %v1882 = vunpack.c.l.b16 %v1551
    %v1883 = vunpack.c.h.b16 %v1551
    %v1884 = vunpack.c.l.b16 %v1552
    %v1885 = vunpack.c.h.b16 %v1552
    %v1886 = vunpack.c.l.b16 %v1553
    %v1887 = vunpack.c.h.b16 %v1553
    %v1888 = vunpack.c.l.b16 %v1554
    %v1889 = vunpack.c.h.b16 %v1554
    %v1890 = vunpack.c.l.b16 %v1555
    %v1891 = vunpack.c.h.b16 %v1555
    %v1892 = vunpack.c.l.b16 %v1556
    %v1893 = vunpack.c.h.b16 %v1556
    %v1894 = vunpack.c.l.b16 %v1557
    %v1895 = vunpack.c.h.b16 %v1557
    %v1896 = vunpack.c.l.b16 %v1558
    %v1897 = vunpack.c.h.b16 %v1558
    %v1898 = vunpack.c.l.b16 %v1559
    %v1899 = vunpack.c.h.b16 %v1559
    %v1900 = vpack.c.b16 %v1840, %v1836
    %v1901 = vpack.c.b16 %v1841, %v1837
    %v1902 = vpack.c.b16 %v1842, %v1838
    %v1903 = vpack.c.b16 %v1843, %v1839
    %v1904 = vpack.c.b16 %v1848, %v1844
    %v1905 = vpack.c.b16 %v1849, %v1845
    %v1906 = vpack.c.b16 %v1850, %v1846
    %v1907 = vpack.c.b16 %v1851, %v1847
    %v1908 = vpack.c.b16 %v1856, %v1852
    %v1909 = vpack.c.b16 %v1857, %v1853
    %v1910 = vpack.c.b16 %v1858, %v1854
    %v1911 = vpack.c.b16 %v1859, %v1855
    %v1912 = vpack.c.b16 %v1864, %v1860
    %v1913 = vpack.c.b16 %v1865, %v1861
    %v1914 = vpack.c.b16 %v1866, %v1862
    %v1915 = vpack.c.b16 %v1867, %v1863
    %v1916 = vpack.c.b16 %v1872, %v1868
    %v1917 = vpack.c.b16 %v1873, %v1869
    %v1918 = vpack.c.b16 %v1874, %v1870
    %v1919 = vpack.c.b16 %v1875, %v1871
    %v1920 = vpack.c.b16 %v1880, %v1876
    %v1921 = vpack.c.b16 %v1881, %v1877
    %v1922 = vpack.c.b16 %v1882, %v1878
    %v1923 = vpack.c.b16 %v1883, %v1879
    %v1924 = vpack.c.b16 %v1888, %v1884
    %v1925 = vpack.c.b16 %v1889, %v1885
    %v1926 = vpack.c.b16 %v1890, %v1886
    %v1927 = vpack.c.b16 %v1891, %v1887
    %v1928 = vpack.c.b16 %v1896, %v1892
    %v1929 = vpack.c.b16 %v1897, %v1893
    %v1930 = vpack.c.b16 %v1898, %v1894
    %v1931 = vpack.c.b16 %v1899, %v1895
    %1964 = vmatpush.bf16.msra.mxu0 %v1928
    %1965 = vmatpush.bf16.msra.mxu0 %v1924
    %1966 = vmatpush.bf16.msra.mxu0 %v1920
    %1967 = vmatpush.bf16.msra.mxu0 %v1916
    %1968 = vmatpush.bf16.msra.mxu0 %v1912
    %1969 = vmatpush.bf16.msra.mxu0 %v1908
    %1970 = vmatpush.bf16.msra.mxu0 %v1904
    %1971 = vmatpush.bf16.msra.mxu0 %v1900
    %1972 = vmatmul.bf16.gmra.mxu0 %v1527
    %v1973 = vpop.f32.mrf.mxu0
    %v1974 = vadd.f32 %v1762, %v1973
    %v1975 = vpop.f32.mrf.mxu0
    %1976 = vdwg.mxu0
    %1977 = vmatpush.bf16.msra.mxu0 %v1929
    %1978 = vmatpush.bf16.msra.mxu0 %v1925
    %1979 = vmatpush.bf16.msra.mxu0 %v1921
    %1980 = vmatpush.bf16.msra.mxu0 %v1917
    %1981 = vmatpush.bf16.msra.mxu0 %v1913
    %1982 = vmatpush.bf16.msra.mxu0 %v1909
    %1983 = vmatpush.bf16.msra.mxu0 %v1905
    %1984 = vmatpush.bf16.msra.mxu0 %v1901
    %1985 = vmatmul.bf16.gmra.mxu0 %v1527
    %v1986 = vpop.f32.mrf.mxu0
    %v1987 = vadd.f32 %v1775, %v1986
    %v1988 = vpop.f32.mrf.mxu0
    %1989 = vdwg.mxu0
    %1990 = vmatpush.bf16.msra.mxu0 %v1930
    %1991 = vmatpush.bf16.msra.mxu0 %v1926
    %1992 = vmatpush.bf16.msra.mxu0 %v1922
    %1993 = vmatpush.bf16.msra.mxu0 %v1918
    %1994 = vmatpush.bf16.msra.mxu0 %v1914
    %1995 = vmatpush.bf16.msra.mxu0 %v1910
    %1996 = vmatpush.bf16.msra.mxu0 %v1906
    %1997 = vmatpush.bf16.msra.mxu0 %v1902
    %1998 = vmatmul.bf16.gmra.mxu0 %v1527
    %v1999 = vpop.f32.mrf.mxu0
    %v2000 = vadd.f32 %v1788, %v1999
    %v2001 = vpop.f32.mrf.mxu0
    %2002 = vdwg.mxu0
    %2003 = vmatpush.bf16.msra.mxu0 %v1931
    %2004 = vmatpush.bf16.msra.mxu0 %v1927
    %2005 = vmatpush.bf16.msra.mxu0 %v1923
    %2006 = vmatpush.bf16.msra.mxu0 %v1919
    %2007 = vmatpush.bf16.msra.mxu0 %v1915
    %2008 = vmatpush.bf16.msra.mxu0 %v1911
    %2009 = vmatpush.bf16.msra.mxu0 %v1907
    %2010 = vmatpush.bf16.msra.mxu0 %v1903
    %2011 = vmatmul.bf16.gmra.mxu0 %v1527
    %v2012 = vpop.f32.mrf.mxu0
    %v2013 = vadd.f32 %v1801, %v2012
    %v2014 = vpop.f32.mrf.mxu0
    %2015 = vdwg.mxu0
    %v2016 = vmul.f32 %v1974, 0.5
    %v2017 = vtanh.pop %v2016
    %v2018 = vmul.f32 %v2017, 0.5
    %v2019 = vadd.f32 %v2018, 0.5
    %v2020 = vmul.f32 %v1987, 0.5
    %v2021 = vtanh.pop %v2020
    %v2022 = vmul.f32 %v2021, 0.5
    %v2023 = vadd.f32 %v2022, 0.5
    %v2024 = vtanh.pop %v2000
    %v2025 = vmul.f32 %v2013, 0.5
    %v2026 = vtanh.pop %v2025
    %v2027 = vmul.f32 %v2026, 0.5
    %v2028 = vadd.f32 %v2027, 0.5
    %v2029 = vmul.f32 %v2023, %v1526
    %v2030 = vmul.f32 %v2019, %v2024
    %v2031 = vadd.f32 %v2029, %v2030
    %v2032 = vtanh.pop %v2031
    %v2033 = vmul.f32 %v2028, %v2032
    %2034 = vst [vmem:[%s739] sm:$0xff] %v2031
    %2035 = vst [vmem:[%s737] sm:$0xff] %v2033
    %s2036 = scalar_lea.vmem [#allocation11], 8
    %2037 = vst [vmem:[%s2036] sm:$0xff] %v2033
    %v2038 = vld [vmem:[#allocation12] sm:$0xff]
    %v2039 = vld [vmem:[#allocation14] sm:$0xff]
    %v2040 = vpack.c.bf16 %v2038, %v2038
    %v2041 = vld [vmem:[#allocation8] sm:$0xff]
    %v2042 = vld [vmem:[#allocation8 + $0x8] sm:$0xff]
    %v2043 = vld [vmem:[#allocation8 + $0x10] sm:$0xff]
    %v2044 = vld [vmem:[#allocation8 + $0x18] sm:$0xff]
    %v2045 = vld [vmem:[#allocation8 + $0x20] sm:$0xff]
    %v2046 = vld [vmem:[#allocation8 + $0x28] sm:$0xff]
    %v2047 = vld [vmem:[#allocation8 + $0x30] sm:$0xff]
    %v2048 = vld [vmem:[#allocation8 + $0x38] sm:$0xff]
    %v2049 = vld [vmem:[#allocation8 + $0x40] sm:$0xff]
    %v2050 = vld [vmem:[#allocation8 + $0x48] sm:$0xff]
    %v2051 = vld [vmem:[#allocation8 + $0x50] sm:$0xff]
    %v2052 = vld [vmem:[#allocation8 + $0x58] sm:$0xff]
    %v2053 = vld [vmem:[#allocation8 + $0x60] sm:$0xff]
    %v2054 = vld [vmem:[#allocation8 + $0x68] sm:$0xff]
    %v2055 = vld [vmem:[#allocation8 + $0x70] sm:$0xff]
    %v2056 = vld [vmem:[#allocation8 + $0x78] sm:$0xff]
    %v2057 = vld [vmem:[#allocation8 + $0x80] sm:$0xff]
    %v2058 = vld [vmem:[#allocation8 + $0x88] sm:$0xff]
    %v2059 = vld [vmem:[#allocation8 + $0x90] sm:$0xff]
    %v2060 = vld [vmem:[#allocation8 + $0x98] sm:$0xff]
    %v2061 = vld [vmem:[#allocation8 + $0xa0] sm:$0xff]
    %v2062 = vld [vmem:[#allocation8 + $0xa8] sm:$0xff]
    %v2063 = vld [vmem:[#allocation8 + $0xb0] sm:$0xff]
    %v2064 = vld [vmem:[#allocation8 + $0xb8] sm:$0xff]
    %v2065 = vld [vmem:[#allocation8 + $0xc0] sm:$0xff]
    %v2066 = vld [vmem:[#allocation8 + $0xc8] sm:$0xff]
    %v2067 = vld [vmem:[#allocation8 + $0xd0] sm:$0xff]
    %v2068 = vld [vmem:[#allocation8 + $0xd8] sm:$0xff]
    %v2069 = vld [vmem:[#allocation8 + $0xe0] sm:$0xff]
    %v2070 = vld [vmem:[#allocation8 + $0xe8] sm:$0xff]
    %v2071 = vld [vmem:[#allocation8 + $0xf0] sm:$0xff]
    %v2072 = vld [vmem:[#allocation8 + $0xf8] sm:$0xff]
    %s2073 = scalar_lea.vmem [#allocation2], 64
    %v2074 = vld [vmem:[%s2073] sm:$0xff]
    %v2075 = vld [vmem:[%s2073 + $0x8] sm:$0xff]
    %v2076 = vld [vmem:[%s2073 + $0x10] sm:$0xff]
    %v2077 = vld [vmem:[%s2073 + $0x18] sm:$0xff]
    %v2110 = vunpack.c.l.b16 %v2041
    %v2111 = vunpack.c.h.b16 %v2041
    %v2112 = vunpack.c.l.b16 %v2042
    %v2113 = vunpack.c.h.b16 %v2042
    %v2114 = vunpack.c.l.b16 %v2043
    %v2115 = vunpack.c.h.b16 %v2043
    %v2116 = vunpack.c.l.b16 %v2044
    %v2117 = vunpack.c.h.b16 %v2044
    %v2118 = vunpack.c.l.b16 %v2045
    %v2119 = vunpack.c.h.b16 %v2045
    %v2120 = vunpack.c.l.b16 %v2046
    %v2121 = vunpack.c.h.b16 %v2046
    %v2122 = vunpack.c.l.b16 %v2047
    %v2123 = vunpack.c.h.b16 %v2047
    %v2124 = vunpack.c.l.b16 %v2048
    %v2125 = vunpack.c.h.b16 %v2048
    %v2126 = vunpack.c.l.b16 %v2049
    %v2127 = vunpack.c.h.b16 %v2049
    %v2128 = vunpack.c.l.b16 %v2050
    %v2129 = vunpack.c.h.b16 %v2050
    %v2130 = vunpack.c.l.b16 %v2051
    %v2131 = vunpack.c.h.b16 %v2051
    %v2132 = vunpack.c.l.b16 %v2052
    %v2133 = vunpack.c.h.b16 %v2052
    %v2134 = vunpack.c.l.b16 %v2053
    %v2135 = vunpack.c.h.b16 %v2053
    %v2136 = vunpack.c.l.b16 %v2054
    %v2137 = vunpack.c.h.b16 %v2054
    %v2138 = vunpack.c.l.b16 %v2055
    %v2139 = vunpack.c.h.b16 %v2055
    %v2140 = vunpack.c.l.b16 %v2056
    %v2141 = vunpack.c.h.b16 %v2056
    %v2142 = vunpack.c.l.b16 %v2057
    %v2143 = vunpack.c.h.b16 %v2057
    %v2144 = vunpack.c.l.b16 %v2058
    %v2145 = vunpack.c.h.b16 %v2058
    %v2146 = vunpack.c.l.b16 %v2059
    %v2147 = vunpack.c.h.b16 %v2059
    %v2148 = vunpack.c.l.b16 %v2060
    %v2149 = vunpack.c.h.b16 %v2060
    %v2150 = vunpack.c.l.b16 %v2061
    %v2151 = vunpack.c.h.b16 %v2061
    %v2152 = vunpack.c.l.b16 %v2062
    %v2153 = vunpack.c.h.b16 %v2062
    %v2154 = vunpack.c.l.b16 %v2063
    %v2155 = vunpack.c.h.b16 %v2063
    %v2156 = vunpack.c.l.b16 %v2064
    %v2157 = vunpack.c.h.b16 %v2064
    %v2158 = vunpack.c.l.b16 %v2065
    %v2159 = vunpack.c.h.b16 %v2065
    %v2160 = vunpack.c.l.b16 %v2066
    %v2161 = vunpack.c.h.b16 %v2066
    %v2162 = vunpack.c.l.b16 %v2067
    %v2163 = vunpack.c.h.b16 %v2067
    %v2164 = vunpack.c.l.b16 %v2068
    %v2165 = vunpack.c.h.b16 %v2068
    %v2166 = vunpack.c.l.b16 %v2069
    %v2167 = vunpack.c.h.b16 %v2069
    %v2168 = vunpack.c.l.b16 %v2070
    %v2169 = vunpack.c.h.b16 %v2070
    %v2170 = vunpack.c.l.b16 %v2071
    %v2171 = vunpack.c.h.b16 %v2071
    %v2172 = vunpack.c.l.b16 %v2072
    %v2173 = vunpack.c.h.b16 %v2072
    %v2174 = vpack.c.b16 %v2114, %v2110
    %v2175 = vpack.c.b16 %v2115, %v2111
    %v2176 = vpack.c.b16 %v2116, %v2112
    %v2177 = vpack.c.b16 %v2117, %v2113
    %v2178 = vpack.c.b16 %v2122, %v2118
    %v2179 = vpack.c.b16 %v2123, %v2119
    %v2180 = vpack.c.b16 %v2124, %v2120
    %v2181 = vpack.c.b16 %v2125, %v2121
    %v2182 = vpack.c.b16 %v2130, %v2126
    %v2183 = vpack.c.b16 %v2131, %v2127
    %v2184 = vpack.c.b16 %v2132, %v2128
    %v2185 = vpack.c.b16 %v2133, %v2129
    %v2186 = vpack.c.b16 %v2138, %v2134
    %v2187 = vpack.c.b16 %v2139, %v2135
    %v2188 = vpack.c.b16 %v2140, %v2136
    %v2189 = vpack.c.b16 %v2141, %v2137
    %v2190 = vpack.c.b16 %v2146, %v2142
    %v2191 = vpack.c.b16 %v2147, %v2143
    %v2192 = vpack.c.b16 %v2148, %v2144
    %v2193 = vpack.c.b16 %v2149, %v2145
    %v2194 = vpack.c.b16 %v2154, %v2150
    %v2195 = vpack.c.b16 %v2155, %v2151
    %v2196 = vpack.c.b16 %v2156, %v2152
    %v2197 = vpack.c.b16 %v2157, %v2153
    %v2198 = vpack.c.b16 %v2162, %v2158
    %v2199 = vpack.c.b16 %v2163, %v2159
    %v2200 = vpack.c.b16 %v2164, %v2160
    %v2201 = vpack.c.b16 %v2165, %v2161
    %v2202 = vpack.c.b16 %v2170, %v2166
    %v2203 = vpack.c.b16 %v2171, %v2167
    %v2204 = vpack.c.b16 %v2172, %v2168
    %v2205 = vpack.c.b16 %v2173, %v2169
    %2238 = vmatpush.bf16.msra.mxu0 %v2202
    %2239 = vmatpush.bf16.msra.mxu0 %v2198
    %2240 = vmatpush.bf16.msra.mxu0 %v2194
    %2241 = vmatpush.bf16.msra.mxu0 %v2190
    %2242 = vmatpush.bf16.msra.mxu0 %v2186
    %2243 = vmatpush.bf16.msra.mxu0 %v2182
    %2244 = vmatpush.bf16.msra.mxu0 %v2178
    %2245 = vmatpush.bf16.msra.mxu0 %v2174
    %2246 = vmatmul.bf16.gmra.mxu0 %v2040
    %v2247 = vpop.f32.mrf.mxu0
    %v2248 = vadd.f32 %v2074, %v2247
    %v2249 = vpop.f32.mrf.mxu0
    %2250 = vdwg.mxu0
    %2251 = vmatpush.bf16.msra.mxu0 %v2203
    %2252 = vmatpush.bf16.msra.mxu0 %v2199
    %2253 = vmatpush.bf16.msra.mxu0 %v2195
    %2254 = vmatpush.bf16.msra.mxu0 %v2191
    %2255 = vmatpush.bf16.msra.mxu0 %v2187
    %2256 = vmatpush.bf16.msra.mxu0 %v2183
    %2257 = vmatpush.bf16.msra.mxu0 %v2179
    %2258 = vmatpush.bf16.msra.mxu0 %v2175
    %2259 = vmatmul.bf16.gmra.mxu0 %v2040
    %v2260 = vpop.f32.mrf.mxu0
    %v2261 = vadd.f32 %v2075, %v2260
    %v2262 = vpop.f32.mrf.mxu0
    %2263 = vdwg.mxu0
    %2264 = vmatpush.bf16.msra.mxu0 %v2204
    %2265 = vmatpush.bf16.msra.mxu0 %v2200
    %2266 = vmatpush.bf16.msra.mxu0 %v2196
    %2267 = vmatpush.bf16.msra.mxu0 %v2192
    %2268 = vmatpush.bf16.msra.mxu0 %v2188
    %2269 = vmatpush.bf16.msra.mxu0 %v2184
    %2270 = vmatpush.bf16.msra.mxu0 %v2180
    %2271 = vmatpush.bf16.msra.mxu0 %v2176
    %2272 = vmatmul.bf16.gmra.mxu0 %v2040
    %v2273 = vpop.f32.mrf.mxu0
    %v2274 = vadd.f32 %v2076, %v2273
    %v2275 = vpop.f32.mrf.mxu0
    %2276 = vdwg.mxu0
    %2277 = vmatpush.bf16.msra.mxu0 %v2205
    %2278 = vmatpush.bf16.msra.mxu0 %v2201
    %2279 = vmatpush.bf16.msra.mxu0 %v2197
    %2280 = vmatpush.bf16.msra.mxu0 %v2193
    %2281 = vmatpush.bf16.msra.mxu0 %v2189
    %2282 = vmatpush.bf16.msra.mxu0 %v2185
    %2283 = vmatpush.bf16.msra.mxu0 %v2181
    %2284 = vmatpush.bf16.msra.mxu0 %v2177
    %2285 = vmatmul.bf16.gmra.mxu0 %v2040
    %v2286 = vpop.f32.mrf.mxu0
    %v2287 = vadd.f32 %v2077, %v2286
    %v2288 = vpop.f32.mrf.mxu0
    %2289 = vdwg.mxu0
    %v2290 = vmul.f32 %v2248, 0.5
    %v2291 = vtanh.pop %v2290
    %v2292 = vmul.f32 %v2291, 0.5
    %v2293 = vadd.f32 %v2292, 0.5
    %v2294 = vmul.f32 %v2261, 0.5
    %v2295 = vtanh.pop %v2294
    %v2296 = vmul.f32 %v2295, 0.5
    %v2297 = vadd.f32 %v2296, 0.5
    %v2298 = vtanh.pop %v2274
    %v2299 = vmul.f32 %v2287, 0.5
    %v2300 = vtanh.pop %v2299
    %v2301 = vmul.f32 %v2300, 0.5
    %v2302 = vadd.f32 %v2301, 0.5
    %v2303 = vmul.f32 %v2297, %v2039
    %v2304 = vmul.f32 %v2293, %v2298
    %v2305 = vadd.f32 %v2303, %v2304
    %v2306 = vtanh.pop %v2305
    %v2307 = vmul.f32 %v2302, %v2306
    %2308 = vst [vmem:[#allocation14] sm:$0xff] %v2305
    %2309 = vst [vmem:[#allocation12] sm:$0xff] %v2307
    %v2310 = vpack.c.bf16 %v2307, %v2307
    %v2311 = vld [vmem:[%s737] sm:$0xff]
    %v2312 = vld [vmem:[%s739] sm:$0xff]
    %v2313 = vpack.c.bf16 %v2311, %v2311
    %v2314 = vld [vmem:[%s742] sm:$0xff]
    %v2315 = vld [vmem:[%s742 + $0x8] sm:$0xff]
    %v2316 = vld [vmem:[%s742 + $0x10] sm:$0xff]
    %v2317 = vld [vmem:[%s742 + $0x18] sm:$0xff]
    %v2318 = vld [vmem:[%s742 + $0x20] sm:$0xff]
    %v2319 = vld [vmem:[%s742 + $0x28] sm:$0xff]
    %v2320 = vld [vmem:[%s742 + $0x30] sm:$0xff]
    %v2321 = vld [vmem:[%s742 + $0x38] sm:$0xff]
    %v2322 = vld [vmem:[%s742 + $0x40] sm:$0xff]
    %v2323 = vld [vmem:[%s742 + $0x48] sm:$0xff]
    %v2324 = vld [vmem:[%s742 + $0x50] sm:$0xff]
    %v2325 = vld [vmem:[%s742 + $0x58] sm:$0xff]
    %v2326 = vld [vmem:[%s742 + $0x60] sm:$0xff]
    %v2327 = vld [vmem:[%s742 + $0x68] sm:$0xff]
    %v2328 = vld [vmem:[%s742 + $0x70] sm:$0xff]
    %v2329 = vld [vmem:[%s742 + $0x78] sm:$0xff]
    %v2330 = vld [vmem:[%s742 + $0x80] sm:$0xff]
    %v2331 = vld [vmem:[%s742 + $0x88] sm:$0xff]
    %v2332 = vld [vmem:[%s742 + $0x90] sm:$0xff]
    %v2333 = vld [vmem:[%s742 + $0x98] sm:$0xff]
    %v2334 = vld [vmem:[%s742 + $0xa0] sm:$0xff]
    %v2335 = vld [vmem:[%s742 + $0xa8] sm:$0xff]
    %v2336 = vld [vmem:[%s742 + $0xb0] sm:$0xff]
    %v2337 = vld [vmem:[%s742 + $0xb8] sm:$0xff]
    %v2338 = vld [vmem:[%s742 + $0xc0] sm:$0xff]
    %v2339 = vld [vmem:[%s742 + $0xc8] sm:$0xff]
    %v2340 = vld [vmem:[%s742 + $0xd0] sm:$0xff]
    %v2341 = vld [vmem:[%s742 + $0xd8] sm:$0xff]
    %v2342 = vld [vmem:[%s742 + $0xe0] sm:$0xff]
    %v2343 = vld [vmem:[%s742 + $0xe8] sm:$0xff]
    %v2344 = vld [vmem:[%s742 + $0xf0] sm:$0xff]
    %v2345 = vld [vmem:[%s742 + $0xf8] sm:$0xff]
    %v2346 = vld [vmem:[#allocation9] sm:$0xff]
    %v2347 = vld [vmem:[#allocation9 + $0x8] sm:$0xff]
    %v2348 = vld [vmem:[#allocation9 + $0x10] sm:$0xff]
    %v2349 = vld [vmem:[#allocation9 + $0x18] sm:$0xff]
    %v2350 = vld [vmem:[#allocation9 + $0x20] sm:$0xff]
    %v2351 = vld [vmem:[#allocation9 + $0x28] sm:$0xff]
    %v2352 = vld [vmem:[#allocation9 + $0x30] sm:$0xff]
    %v2353 = vld [vmem:[#allocation9 + $0x38] sm:$0xff]
    %v2354 = vld [vmem:[#allocation9 + $0x40] sm:$0xff]
    %v2355 = vld [vmem:[#allocation9 + $0x48] sm:$0xff]
    %v2356 = vld [vmem:[#allocation9 + $0x50] sm:$0xff]
    %v2357 = vld [vmem:[#allocation9 + $0x58] sm:$0xff]
    %v2358 = vld [vmem:[#allocation9 + $0x60] sm:$0xff]
    %v2359 = vld [vmem:[#allocation9 + $0x68] sm:$0xff]
    %v2360 = vld [vmem:[#allocation9 + $0x70] sm:$0xff]
    %v2361 = vld [vmem:[#allocation9 + $0x78] sm:$0xff]
    %v2362 = vld [vmem:[#allocation9 + $0x80] sm:$0xff]
    %v2363 = vld [vmem:[#allocation9 + $0x88] sm:$0xff]
    %v2364 = vld [vmem:[#allocation9 + $0x90] sm:$0xff]
    %v2365 = vld [vmem:[#allocation9 + $0x98] sm:$0xff]
    %v2366 = vld [vmem:[#allocation9 + $0xa0] sm:$0xff]
    %v2367 = vld [vmem:[#allocation9 + $0xa8] sm:$0xff]
    %v2368 = vld [vmem:[#allocation9 + $0xb0] sm:$0xff]
    %v2369 = vld [vmem:[#allocation9 + $0xb8] sm:$0xff]
    %v2370 = vld [vmem:[#allocation9 + $0xc0] sm:$0xff]
    %v2371 = vld [vmem:[#allocation9 + $0xc8] sm:$0xff]
    %v2372 = vld [vmem:[#allocation9 + $0xd0] sm:$0xff]
    %v2373 = vld [vmem:[#allocation9 + $0xd8] sm:$0xff]
    %v2374 = vld [vmem:[#allocation9 + $0xe0] sm:$0xff]
    %v2375 = vld [vmem:[#allocation9 + $0xe8] sm:$0xff]
    %v2376 = vld [vmem:[#allocation9 + $0xf0] sm:$0xff]
    %v2377 = vld [vmem:[#allocation9 + $0xf8] sm:$0xff]
    %v2410 = vunpack.c.l.b16 %v2346
    %v2411 = vunpack.c.h.b16 %v2346
    %v2412 = vunpack.c.l.b16 %v2347
    %v2413 = vunpack.c.h.b16 %v2347
    %v2414 = vunpack.c.l.b16 %v2348
    %v2415 = vunpack.c.h.b16 %v2348
    %v2416 = vunpack.c.l.b16 %v2349
    %v2417 = vunpack.c.h.b16 %v2349
    %v2418 = vunpack.c.l.b16 %v2350
    %v2419 = vunpack.c.h.b16 %v2350
    %v2420 = vunpack.c.l.b16 %v2351
    %v2421 = vunpack.c.h.b16 %v2351
    %v2422 = vunpack.c.l.b16 %v2352
    %v2423 = vunpack.c.h.b16 %v2352
    %v2424 = vunpack.c.l.b16 %v2353
    %v2425 = vunpack.c.h.b16 %v2353
    %v2426 = vunpack.c.l.b16 %v2354
    %v2427 = vunpack.c.h.b16 %v2354
    %v2428 = vunpack.c.l.b16 %v2355
    %v2429 = vunpack.c.h.b16 %v2355
    %v2430 = vunpack.c.l.b16 %v2356
    %v2431 = vunpack.c.h.b16 %v2356
    %v2432 = vunpack.c.l.b16 %v2357
    %v2433 = vunpack.c.h.b16 %v2357
    %v2434 = vunpack.c.l.b16 %v2358
    %v2435 = vunpack.c.h.b16 %v2358
    %v2436 = vunpack.c.l.b16 %v2359
    %v2437 = vunpack.c.h.b16 %v2359
    %v2438 = vunpack.c.l.b16 %v2360
    %v2439 = vunpack.c.h.b16 %v2360
    %v2440 = vunpack.c.l.b16 %v2361
    %v2441 = vunpack.c.h.b16 %v2361
    %v2442 = vunpack.c.l.b16 %v2362
    %v2443 = vunpack.c.h.b16 %v2362
    %v2444 = vunpack.c.l.b16 %v2363
    %v2445 = vunpack.c.h.b16 %v2363
    %v2446 = vunpack.c.l.b16 %v2364
    %v2447 = vunpack.c.h.b16 %v2364
    %v2448 = vunpack.c.l.b16 %v2365
    %v2449 = vunpack.c.h.b16 %v2365
    %v2450 = vunpack.c.l.b16 %v2366
    %v2451 = vunpack.c.h.b16 %v2366
    %v2452 = vunpack.c.l.b16 %v2367
    %v2453 = vunpack.c.h.b16 %v2367
    %v2454 = vunpack.c.l.b16 %v2368
    %v2455 = vunpack.c.h.b16 %v2368
    %v2456 = vunpack.c.l.b16 %v2369
    %v2457 = vunpack.c.h.b16 %v2369
    %v2458 = vunpack.c.l.b16 %v2370
    %v2459 = vunpack.c.h.b16 %v2370
    %v2460 = vunpack.c.l.b16 %v2371
    %v2461 = vunpack.c.h.b16 %v2371
    %v2462 = vunpack.c.l.b16 %v2372
    %v2463 = vunpack.c.h.b16 %v2372
    %v2464 = vunpack.c.l.b16 %v2373
    %v2465 = vunpack.c.h.b16 %v2373
    %v2466 = vunpack.c.l.b16 %v2374
    %v2467 = vunpack.c.h.b16 %v2374
    %v2468 = vunpack.c.l.b16 %v2375
    %v2469 = vunpack.c.h.b16 %v2375
    %v2470 = vunpack.c.l.b16 %v2376
    %v2471 = vunpack.c.h.b16 %v2376
    %v2472 = vunpack.c.l.b16 %v2377
    %v2473 = vunpack.c.h.b16 %v2377
    %v2474 = vpack.c.b16 %v2414, %v2410
    %v2475 = vpack.c.b16 %v2415, %v2411
    %v2476 = vpack.c.b16 %v2416, %v2412
    %v2477 = vpack.c.b16 %v2417, %v2413
    %v2478 = vpack.c.b16 %v2422, %v2418
    %v2479 = vpack.c.b16 %v2423, %v2419
    %v2480 = vpack.c.b16 %v2424, %v2420
    %v2481 = vpack.c.b16 %v2425, %v2421
    %v2482 = vpack.c.b16 %v2430, %v2426
    %v2483 = vpack.c.b16 %v2431, %v2427
    %v2484 = vpack.c.b16 %v2432, %v2428
    %v2485 = vpack.c.b16 %v2433, %v2429
    %v2486 = vpack.c.b16 %v2438, %v2434
    %v2487 = vpack.c.b16 %v2439, %v2435
    %v2488 = vpack.c.b16 %v2440, %v2436
    %v2489 = vpack.c.b16 %v2441, %v2437
    %v2490 = vpack.c.b16 %v2446, %v2442
    %v2491 = vpack.c.b16 %v2447, %v2443
    %v2492 = vpack.c.b16 %v2448, %v2444
    %v2493 = vpack.c.b16 %v2449, %v2445
    %v2494 = vpack.c.b16 %v2454, %v2450
    %v2495 = vpack.c.b16 %v2455, %v2451
    %v2496 = vpack.c.b16 %v2456, %v2452
    %v2497 = vpack.c.b16 %v2457, %v2453
    %v2498 = vpack.c.b16 %v2462, %v2458
    %v2499 = vpack.c.b16 %v2463, %v2459
    %v2500 = vpack.c.b16 %v2464, %v2460
    %v2501 = vpack.c.b16 %v2465, %v2461
    %v2502 = vpack.c.b16 %v2470, %v2466
    %v2503 = vpack.c.b16 %v2471, %v2467
    %v2504 = vpack.c.b16 %v2472, %v2468
    %v2505 = vpack.c.b16 %v2473, %v2469
    %2538 = vmatpush.bf16.msra.mxu0 %v2502
    %2539 = vmatpush.bf16.msra.mxu0 %v2498
    %2540 = vmatpush.bf16.msra.mxu0 %v2494
    %2541 = vmatpush.bf16.msra.mxu0 %v2490
    %2542 = vmatpush.bf16.msra.mxu0 %v2486
    %2543 = vmatpush.bf16.msra.mxu0 %v2482
    %2544 = vmatpush.bf16.msra.mxu0 %v2478
    %2545 = vmatpush.bf16.msra.mxu0 %v2474
    %2546 = vmatmul.bf16.gmra.mxu0 %v2310
    %v2547 = vpop.f32.mrf.mxu0
    %v2548 = vadd.f32 0.0, %v2547
    %v2549 = vpop.f32.mrf.mxu0
    %2550 = vdwg.mxu0
    %2551 = vmatpush.bf16.msra.mxu0 %v2503
    %2552 = vmatpush.bf16.msra.mxu0 %v2499
    %2553 = vmatpush.bf16.msra.mxu0 %v2495
    %2554 = vmatpush.bf16.msra.mxu0 %v2491
    %2555 = vmatpush.bf16.msra.mxu0 %v2487
    %2556 = vmatpush.bf16.msra.mxu0 %v2483
    %2557 = vmatpush.bf16.msra.mxu0 %v2479
    %2558 = vmatpush.bf16.msra.mxu0 %v2475
    %2559 = vmatmul.bf16.gmra.mxu0 %v2310
    %v2560 = vpop.f32.mrf.mxu0
    %v2561 = vadd.f32 0.0, %v2560
    %v2562 = vpop.f32.mrf.mxu0
    %2563 = vdwg.mxu0
    %2564 = vmatpush.bf16.msra.mxu0 %v2504
    %2565 = vmatpush.bf16.msra.mxu0 %v2500
    %2566 = vmatpush.bf16.msra.mxu0 %v2496
    %2567 = vmatpush.bf16.msra.mxu0 %v2492
    %2568 = vmatpush.bf16.msra.mxu0 %v2488
    %2569 = vmatpush.bf16.msra.mxu0 %v2484
    %2570 = vmatpush.bf16.msra.mxu0 %v2480
    %2571 = vmatpush.bf16.msra.mxu0 %v2476
    %2572 = vmatmul.bf16.gmra.mxu0 %v2310
    %v2573 = vpop.f32.mrf.mxu0
    %v2574 = vadd.f32 0.0, %v2573
    %v2575 = vpop.f32.mrf.mxu0
    %2576 = vdwg.mxu0
    %2577 = vmatpush.bf16.msra.mxu0 %v2505
    %2578 = vmatpush.bf16.msra.mxu0 %v2501
    %2579 = vmatpush.bf16.msra.mxu0 %v2497
    %2580 = vmatpush.bf16.msra.mxu0 %v2493
    %2581 = vmatpush.bf16.msra.mxu0 %v2489
    %2582 = vmatpush.bf16.msra.mxu0 %v2485
    %2583 = vmatpush.bf16.msra.mxu0 %v2481
    %2584 = vmatpush.bf16.msra.mxu0 %v2477
    %2585 = vmatmul.bf16.gmra.mxu0 %v2310
    %v2586 = vpop.f32.mrf.mxu0
    %v2587 = vadd.f32 0.0, %v2586
    %v2588 = vpop.f32.mrf.mxu0
    %2589 = vdwg.mxu0
    %v2622 = vunpack.c.l.b16 %v2314
    %v2623 = vunpack.c.h.b16 %v2314
    %v2624 = vunpack.c.l.b16 %v2315
    %v2625 = vunpack.c.h.b16 %v2315
    %v2626 = vunpack.c.l.b16 %v2316
    %v2627 = vunpack.c.h.b16 %v2316
    %v2628 = vunpack.c.l.b16 %v2317
    %v2629 = vunpack.c.h.b16 %v2317
    %v2630 = vunpack.c.l.b16 %v2318
    %v2631 = vunpack.c.h.b16 %v2318
    %v2632 = vunpack.c.l.b16 %v2319
    %v2633 = vunpack.c.h.b16 %v2319
    %v2634 = vunpack.c.l.b16 %v2320
    %v2635 = vunpack.c.h.b16 %v2320
    %v2636 = vunpack.c.l.b16 %v2321
    %v2637 = vunpack.c.h.b16 %v2321
    %v2638 = vunpack.c.l.b16 %v2322
    %v2639 = vunpack.c.h.b16 %v2322
    %v2640 = vunpack.c.l.b16 %v2323
    %v2641 = vunpack.c.h.b16 %v2323
    %v2642 = vunpack.c.l.b16 %v2324
    %v2643 = vunpack.c.h.b16 %v2324
    %v2644 = vunpack.c.l.b16 %v2325
    %v2645 = vunpack.c.h.b16 %v2325
    %v2646 = vunpack.c.l.b16 %v2326
    %v2647 = vunpack.c.h.b16 %v2326
    %v2648 = vunpack.c.l.b16 %v2327
    %v2649 = vunpack.c.h.b16 %v2327
    %v2650 = vunpack.c.l.b16 %v2328
    %v2651 = vunpack.c.h.b16 %v2328
    %v2652 = vunpack.c.l.b16 %v2329
    %v2653 = vunpack.c.h.b16 %v2329
    %v2654 = vunpack.c.l.b16 %v2330
    %v2655 = vunpack.c.h.b16 %v2330
    %v2656 = vunpack.c.l.b16 %v2331
    %v2657 = vunpack.c.h.b16 %v2331
    %v2658 = vunpack.c.l.b16 %v2332
    %v2659 = vunpack.c.h.b16 %v2332
    %v2660 = vunpack.c.l.b16 %v2333
    %v2661 = vunpack.c.h.b16 %v2333
    %v2662 = vunpack.c.l.b16 %v2334
    %v2663 = vunpack.c.h.b16 %v2334
    %v2664 = vunpack.c.l.b16 %v2335
    %v2665 = vunpack.c.h.b16 %v2335
    %v2666 = vunpack.c.l.b16 %v2336
    %v2667 = vunpack.c.h.b16 %v2336
    %v2668 = vunpack.c.l.b16 %v2337
    %v2669 = vunpack.c.h.b16 %v2337
    %v2670 = vunpack.c.l.b16 %v2338
    %v2671 = vunpack.c.h.b16 %v2338
    %v2672 = vunpack.c.l.b16 %v2339
    %v2673 = vunpack.c.h.b16 %v2339
    %v2674 = vunpack.c.l.b16 %v2340
    %v2675 = vunpack.c.h.b16 %v2340
    %v2676 = vunpack.c.l.b16 %v2341
    %v2677 = vunpack.c.h.b16 %v2341
    %v2678 = vunpack.c.l.b16 %v2342
    %v2679 = vunpack.c.h.b16 %v2342
    %v2680 = vunpack.c.l.b16 %v2343
    %v2681 = vunpack.c.h.b16 %v2343
    %v2682 = vunpack.c.l.b16 %v2344
    %v2683 = vunpack.c.h.b16 %v2344
    %v2684 = vunpack.c.l.b16 %v2345
    %v2685 = vunpack.c.h.b16 %v2345
    %v2686 = vpack.c.b16 %v2626, %v2622
    %v2687 = vpack.c.b16 %v2627, %v2623
    %v2688 = vpack.c.b16 %v2628, %v2624
    %v2689 = vpack.c.b16 %v2629, %v2625
    %v2690 = vpack.c.b16 %v2634, %v2630
    %v2691 = vpack.c.b16 %v2635, %v2631
    %v2692 = vpack.c.b16 %v2636, %v2632
    %v2693 = vpack.c.b16 %v2637, %v2633
    %v2694 = vpack.c.b16 %v2642, %v2638
    %v2695 = vpack.c.b16 %v2643, %v2639
    %v2696 = vpack.c.b16 %v2644, %v2640
    %v2697 = vpack.c.b16 %v2645, %v2641
    %v2698 = vpack.c.b16 %v2650, %v2646
    %v2699 = vpack.c.b16 %v2651, %v2647
    %v2700 = vpack.c.b16 %v2652, %v2648
    %v2701 = vpack.c.b16 %v2653, %v2649
    %v2702 = vpack.c.b16 %v2658, %v2654
    %v2703 = vpack.c.b16 %v2659, %v2655
    %v2704 = vpack.c.b16 %v2660, %v2656
    %v2705 = vpack.c.b16 %v2661, %v2657
    %v2706 = vpack.c.b16 %v2666, %v2662
    %v2707 = vpack.c.b16 %v2667, %v2663
    %v2708 = vpack.c.b16 %v2668, %v2664
    %v2709 = vpack.c.b16 %v2669, %v2665
    %v2710 = vpack.c.b16 %v2674, %v2670
    %v2711 = vpack.c.b16 %v2675, %v2671
    %v2712 = vpack.c.b16 %v2676, %v2672
    %v2713 = vpack.c.b16 %v2677, %v2673
    %v2714 = vpack.c.b16 %v2682, %v2678
    %v2715 = vpack.c.b16 %v2683, %v2679
    %v2716 = vpack.c.b16 %v2684, %v2680
    %v2717 = vpack.c.b16 %v2685, %v2681
    %2750 = vmatpush.bf16.msra.mxu0 %v2714
    %2751 = vmatpush.bf16.msra.mxu0 %v2710
    %2752 = vmatpush.bf16.msra.mxu0 %v2706
    %2753 = vmatpush.bf16.msra.mxu0 %v2702
    %2754 = vmatpush.bf16.msra.mxu0 %v2698
    %2755 = vmatpush.bf16.msra.mxu0 %v2694
    %2756 = vmatpush.bf16.msra.mxu0 %v2690
    %2757 = vmatpush.bf16.msra.mxu0 %v2686
    %2758 = vmatmul.bf16.gmra.mxu0 %v2313
    %v2759 = vpop.f32.mrf.mxu0
    %v2760 = vadd.f32 %v2548, %v2759
    %v2761 = vpop.f32.mrf.mxu0
    %2762 = vdwg.mxu0
    %2763 = vmatpush.bf16.msra.mxu0 %v2715
    %2764 = vmatpush.bf16.msra.mxu0 %v2711
    %2765 = vmatpush.bf16.msra.mxu0 %v2707
    %2766 = vmatpush.bf16.msra.mxu0 %v2703
    %2767 = vmatpush.bf16.msra.mxu0 %v2699
    %2768 = vmatpush.bf16.msra.mxu0 %v2695
    %2769 = vmatpush.bf16.msra.mxu0 %v2691
    %2770 = vmatpush.bf16.msra.mxu0 %v2687
    %2771 = vmatmul.bf16.gmra.mxu0 %v2313
    %v2772 = vpop.f32.mrf.mxu0
    %v2773 = vadd.f32 %v2561, %v2772
    %v2774 = vpop.f32.mrf.mxu0
    %2775 = vdwg.mxu0
    %2776 = vmatpush.bf16.msra.mxu0 %v2716
    %2777 = vmatpush.bf16.msra.mxu0 %v2712
    %2778 = vmatpush.bf16.msra.mxu0 %v2708
    %2779 = vmatpush.bf16.msra.mxu0 %v2704
    %2780 = vmatpush.bf16.msra.mxu0 %v2700
    %2781 = vmatpush.bf16.msra.mxu0 %v2696
    %2782 = vmatpush.bf16.msra.mxu0 %v2692
    %2783 = vmatpush.bf16.msra.mxu0 %v2688
    %2784 = vmatmul.bf16.gmra.mxu0 %v2313
    %v2785 = vpop.f32.mrf.mxu0
    %v2786 = vadd.f32 %v2574, %v2785
    %v2787 = vpop.f32.mrf.mxu0
    %2788 = vdwg.mxu0
    %2789 = vmatpush.bf16.msra.mxu0 %v2717
    %2790 = vmatpush.bf16.msra.mxu0 %v2713
    %2791 = vmatpush.bf16.msra.mxu0 %v2709
    %2792 = vmatpush.bf16.msra.mxu0 %v2705
    %2793 = vmatpush.bf16.msra.mxu0 %v2701
    %2794 = vmatpush.bf16.msra.mxu0 %v2697
    %2795 = vmatpush.bf16.msra.mxu0 %v2693
    %2796 = vmatpush.bf16.msra.mxu0 %v2689
    %2797 = vmatmul.bf16.gmra.mxu0 %v2313
    %v2798 = vpop.f32.mrf.mxu0
    %v2799 = vadd.f32 %v2587, %v2798
    %v2800 = vpop.f32.mrf.mxu0
    %2801 = vdwg.mxu0
    %v2802 = vmul.f32 %v2760, 0.5
    %v2803 = vtanh.pop %v2802
    %v2804 = vmul.f32 %v2803, 0.5
    %v2805 = vadd.f32 %v2804, 0.5
    %v2806 = vmul.f32 %v2773, 0.5
    %v2807 = vtanh.pop %v2806
    %v2808 = vmul.f32 %v2807, 0.5
    %v2809 = vadd.f32 %v2808, 0.5
    %v2810 = vtanh.pop %v2786
    %v2811 = vmul.f32 %v2799, 0.5
    %v2812 = vtanh.pop %v2811
    %v2813 = vmul.f32 %v2812, 0.5
    %v2814 = vadd.f32 %v2813, 0.5
    %v2815 = vmul.f32 %v2809, %v2312
    %v2816 = vmul.f32 %v2805, %v2810
    %v2817 = vadd.f32 %v2815, %v2816
    %v2818 = vtanh.pop %v2817
    %v2819 = vmul.f32 %v2814, %v2818
    %2820 = vst [vmem:[%s739] sm:$0xff] %v2817
    %2821 = vst [vmem:[%s737] sm:$0xff] %v2819
    %s2822 = scalar_lea.vmem [#allocation11], 16
    %2823 = vst [vmem:[%s2822] sm:$0xff] %v2819
    %v2824 = vld [vmem:[#allocation12] sm:$0xff]
    %v2825 = vld [vmem:[#allocation14] sm:$0xff]
    %v2826 = vpack.c.bf16 %v2824, %v2824
    %v2827 = vld [vmem:[#allocation8] sm:$0xff]
    %v2828 = vld [vmem:[#allocation8 + $0x8] sm:$0xff]
    %v2829 = vld [vmem:[#allocation8 + $0x10] sm:$0xff]
    %v2830 = vld [vmem:[#allocation8 + $0x18] sm:$0xff]
    %v2831 = vld [vmem:[#allocation8 + $0x20] sm:$0xff]
    %v2832 = vld [vmem:[#allocation8 + $0x28] sm:$0xff]
    %v2833 = vld [vmem:[#allocation8 + $0x30] sm:$0xff]
    %v2834 = vld [vmem:[#allocation8 + $0x38] sm:$0xff]
    %v2835 = vld [vmem:[#allocation8 + $0x40] sm:$0xff]
    %v2836 = vld [vmem:[#allocation8 + $0x48] sm:$0xff]
    %v2837 = vld [vmem:[#allocation8 + $0x50] sm:$0xff]
    %v2838 = vld [vmem:[#allocation8 + $0x58] sm:$0xff]
    %v2839 = vld [vmem:[#allocation8 + $0x60] sm:$0xff]
    %v2840 = vld [vmem:[#allocation8 + $0x68] sm:$0xff]
    %v2841 = vld [vmem:[#allocation8 + $0x70] sm:$0xff]
    %v2842 = vld [vmem:[#allocation8 + $0x78] sm:$0xff]
    %v2843 = vld [vmem:[#allocation8 + $0x80] sm:$0xff]
    %v2844 = vld [vmem:[#allocation8 + $0x88] sm:$0xff]
    %v2845 = vld [vmem:[#allocation8 + $0x90] sm:$0xff]
    %v2846 = vld [vmem:[#allocation8 + $0x98] sm:$0xff]
    %v2847 = vld [vmem:[#allocation8 + $0xa0] sm:$0xff]
    %v2848 = vld [vmem:[#allocation8 + $0xa8] sm:$0xff]
    %v2849 = vld [vmem:[#allocation8 + $0xb0] sm:$0xff]
    %v2850 = vld [vmem:[#allocation8 + $0xb8] sm:$0xff]
    %v2851 = vld [vmem:[#allocation8 + $0xc0] sm:$0xff]
    %v2852 = vld [vmem:[#allocation8 + $0xc8] sm:$0xff]
    %v2853 = vld [vmem:[#allocation8 + $0xd0] sm:$0xff]
    %v2854 = vld [vmem:[#allocation8 + $0xd8] sm:$0xff]
    %v2855 = vld [vmem:[#allocation8 + $0xe0] sm:$0xff]
    %v2856 = vld [vmem:[#allocation8 + $0xe8] sm:$0xff]
    %v2857 = vld [vmem:[#allocation8 + $0xf0] sm:$0xff]
    %v2858 = vld [vmem:[#allocation8 + $0xf8] sm:$0xff]
    %s2859 = scalar_lea.vmem [#allocation2], 96
    %v2860 = vld [vmem:[%s2859] sm:$0xff]
    %v2861 = vld [vmem:[%s2859 + $0x8] sm:$0xff]
    %v2862 = vld [vmem:[%s2859 + $0x10] sm:$0xff]
    %v2863 = vld [vmem:[%s2859 + $0x18] sm:$0xff]
    %v2896 = vunpack.c.l.b16 %v2827
    %v2897 = vunpack.c.h.b16 %v2827
    %v2898 = vunpack.c.l.b16 %v2828
    %v2899 = vunpack.c.h.b16 %v2828
    %v2900 = vunpack.c.l.b16 %v2829
    %v2901 = vunpack.c.h.b16 %v2829
    %v2902 = vunpack.c.l.b16 %v2830
    %v2903 = vunpack.c.h.b16 %v2830
    %v2904 = vunpack.c.l.b16 %v2831
    %v2905 = vunpack.c.h.b16 %v2831
    %v2906 = vunpack.c.l.b16 %v2832
    %v2907 = vunpack.c.h.b16 %v2832
    %v2908 = vunpack.c.l.b16 %v2833
    %v2909 = vunpack.c.h.b16 %v2833
    %v2910 = vunpack.c.l.b16 %v2834
    %v2911 = vunpack.c.h.b16 %v2834
    %v2912 = vunpack.c.l.b16 %v2835
    %v2913 = vunpack.c.h.b16 %v2835
    %v2914 = vunpack.c.l.b16 %v2836
    %v2915 = vunpack.c.h.b16 %v2836
    %v2916 = vunpack.c.l.b16 %v2837
    %v2917 = vunpack.c.h.b16 %v2837
    %v2918 = vunpack.c.l.b16 %v2838
    %v2919 = vunpack.c.h.b16 %v2838
    %v2920 = vunpack.c.l.b16 %v2839
    %v2921 = vunpack.c.h.b16 %v2839
    %v2922 = vunpack.c.l.b16 %v2840
    %v2923 = vunpack.c.h.b16 %v2840
    %v2924 = vunpack.c.l.b16 %v2841
    %v2925 = vunpack.c.h.b16 %v2841
    %v2926 = vunpack.c.l.b16 %v2842
    %v2927 = vunpack.c.h.b16 %v2842
    %v2928 = vunpack.c.l.b16 %v2843
    %v2929 = vunpack.c.h.b16 %v2843
    %v2930 = vunpack.c.l.b16 %v2844
    %v2931 = vunpack.c.h.b16 %v2844
    %v2932 = vunpack.c.l.b16 %v2845
    %v2933 = vunpack.c.h.b16 %v2845
    %v2934 = vunpack.c.l.b16 %v2846
    %v2935 = vunpack.c.h.b16 %v2846
    %v2936 = vunpack.c.l.b16 %v2847
    %v2937 = vunpack.c.h.b16 %v2847
    %v2938 = vunpack.c.l.b16 %v2848
    %v2939 = vunpack.c.h.b16 %v2848
    %v2940 = vunpack.c.l.b16 %v2849
    %v2941 = vunpack.c.h.b16 %v2849
    %v2942 = vunpack.c.l.b16 %v2850
    %v2943 = vunpack.c.h.b16 %v2850
    %v2944 = vunpack.c.l.b16 %v2851
    %v2945 = vunpack.c.h.b16 %v2851
    %v2946 = vunpack.c.l.b16 %v2852
    %v2947 = vunpack.c.h.b16 %v2852
    %v2948 = vunpack.c.l.b16 %v2853
    %v2949 = vunpack.c.h.b16 %v2853
    %v2950 = vunpack.c.l.b16 %v2854
    %v2951 = vunpack.c.h.b16 %v2854
    %v2952 = vunpack.c.l.b16 %v2855
    %v2953 = vunpack.c.h.b16 %v2855
    %v2954 = vunpack.c.l.b16 %v2856
    %v2955 = vunpack.c.h.b16 %v2856
    %v2956 = vunpack.c.l.b16 %v2857
    %v2957 = vunpack.c.h.b16 %v2857
    %v2958 = vunpack.c.l.b16 %v2858
    %v2959 = vunpack.c.h.b16 %v2858
    %v2960 = vpack.c.b16 %v2900, %v2896
    %v2961 = vpack.c.b16 %v2901, %v2897
    %v2962 = vpack.c.b16 %v2902, %v2898
    %v2963 = vpack.c.b16 %v2903, %v2899
    %v2964 = vpack.c.b16 %v2908, %v2904
    %v2965 = vpack.c.b16 %v2909, %v2905
    %v2966 = vpack.c.b16 %v2910, %v2906
    %v2967 = vpack.c.b16 %v2911, %v2907
    %v2968 = vpack.c.b16 %v2916, %v2912
    %v2969 = vpack.c.b16 %v2917, %v2913
    %v2970 = vpack.c.b16 %v2918, %v2914
    %v2971 = vpack.c.b16 %v2919, %v2915
    %v2972 = vpack.c.b16 %v2924, %v2920
    %v2973 = vpack.c.b16 %v2925, %v2921
    %v2974 = vpack.c.b16 %v2926, %v2922
    %v2975 = vpack.c.b16 %v2927, %v2923
    %v2976 = vpack.c.b16 %v2932, %v2928
    %v2977 = vpack.c.b16 %v2933, %v2929
    %v2978 = vpack.c.b16 %v2934, %v2930
    %v2979 = vpack.c.b16 %v2935, %v2931
    %v2980 = vpack.c.b16 %v2940, %v2936
    %v2981 = vpack.c.b16 %v2941, %v2937
    %v2982 = vpack.c.b16 %v2942, %v2938
    %v2983 = vpack.c.b16 %v2943, %v2939
    %v2984 = vpack.c.b16 %v2948, %v2944
    %v2985 = vpack.c.b16 %v2949, %v2945
    %v2986 = vpack.c.b16 %v2950, %v2946
    %v2987 = vpack.c.b16 %v2951, %v2947
    %v2988 = vpack.c.b16 %v2956, %v2952
    %v2989 = vpack.c.b16 %v2957, %v2953
    %v2990 = vpack.c.b16 %v2958, %v2954
    %v2991 = vpack.c.b16 %v2959, %v2955
    %3024 = vmatpush.bf16.msra.mxu0 %v2988
    %3025 = vmatpush.bf16.msra.mxu0 %v2984
    %3026 = vmatpush.bf16.msra.mxu0 %v2980
    %3027 = vmatpush.bf16.msra.mxu0 %v2976
    %3028 = vmatpush.bf16.msra.mxu0 %v2972
    %3029 = vmatpush.bf16.msra.mxu0 %v2968
    %3030 = vmatpush.bf16.msra.mxu0 %v2964
    %3031 = vmatpush.bf16.msra.mxu0 %v2960
    %3032 = vmatmul.bf16.gmra.mxu0 %v2826
    %v3033 = vpop.f32.mrf.mxu0
    %v3034 = vadd.f32 %v2860, %v3033
    %v3035 = vpop.f32.mrf.mxu0
    %3036 = vdwg.mxu0
    %3037 = vmatpush.bf16.msra.mxu0 %v2989
    %3038 = vmatpush.bf16.msra.mxu0 %v2985
    %3039 = vmatpush.bf16.msra.mxu0 %v2981
    %3040 = vmatpush.bf16.msra.mxu0 %v2977
    %3041 = vmatpush.bf16.msra.mxu0 %v2973
    %3042 = vmatpush.bf16.msra.mxu0 %v2969
    %3043 = vmatpush.bf16.msra.mxu0 %v2965
    %3044 = vmatpush.bf16.msra.mxu0 %v2961
    %3045 = vmatmul.bf16.gmra.mxu0 %v2826
    %v3046 = vpop.f32.mrf.mxu0
    %v3047 = vadd.f32 %v2861, %v3046
    %v3048 = vpop.f32.mrf.mxu0
    %3049 = vdwg.mxu0
    %3050 = vmatpush.bf16.msra.mxu0 %v2990
    %3051 = vmatpush.bf16.msra.mxu0 %v2986
    %3052 = vmatpush.bf16.msra.mxu0 %v2982
    %3053 = vmatpush.bf16.msra.mxu0 %v2978
    %3054 = vmatpush.bf16.msra.mxu0 %v2974
    %3055 = vmatpush.bf16.msra.mxu0 %v2970
    %3056 = vmatpush.bf16.msra.mxu0 %v2966
    %3057 = vmatpush.bf16.msra.mxu0 %v2962
    %3058 = vmatmul.bf16.gmra.mxu0 %v2826
    %v3059 = vpop.f32.mrf.mxu0
    %v3060 = vadd.f32 %v2862, %v3059
    %v3061 = vpop.f32.mrf.mxu0
    %3062 = vdwg.mxu0
    %3063 = vmatpush.bf16.msra.mxu0 %v2991
    %3064 = vmatpush.bf16.msra.mxu0 %v2987
    %3065 = vmatpush.bf16.msra.mxu0 %v2983
    %3066 = vmatpush.bf16.msra.mxu0 %v2979
    %3067 = vmatpush.bf16.msra.mxu0 %v2975
    %3068 = vmatpush.bf16.msra.mxu0 %v2971
    %3069 = vmatpush.bf16.msra.mxu0 %v2967
    %3070 = vmatpush.bf16.msra.mxu0 %v2963
    %3071 = vmatmul.bf16.gmra.mxu0 %v2826
    %v3072 = vpop.f32.mrf.mxu0
    %v3073 = vadd.f32 %v2863, %v3072
    %v3074 = vpop.f32.mrf.mxu0
    %3075 = vdwg.mxu0
    %v3076 = vmul.f32 %v3034, 0.5
    %v3077 = vtanh.pop %v3076
    %v3078 = vmul.f32 %v3077, 0.5
    %v3079 = vadd.f32 %v3078, 0.5
    %v3080 = vmul.f32 %v3047, 0.5
    %v3081 = vtanh.pop %v3080
    %v3082 = vmul.f32 %v3081, 0.5
    %v3083 = vadd.f32 %v3082, 0.5
    %v3084 = vtanh.pop %v3060
    %v3085 = vmul.f32 %v3073, 0.5
    %v3086 = vtanh.pop %v3085
    %v3087 = vmul.f32 %v3086, 0.5
    %v3088 = vadd.f32 %v3087, 0.5
    %v3089 = vmul.f32 %v3083, %v2825
    %v3090 = vmul.f32 %v3079, %v3084
    %v3091 = vadd.f32 %v3089, %v3090
    %v3092 = vtanh.pop %v3091
    %v3093 = vmul.f32 %v3088, %v3092
    %3094 = vst [vmem:[#allocation14] sm:$0xff] %v3091
    %3095 = vst [vmem:[#allocation12] sm:$0xff] %v3093
    %v3096 = vpack.c.bf16 %v3093, %v3093
    %v3097 = vld [vmem:[%s737] sm:$0xff]
    %v3098 = vld [vmem:[%s739] sm:$0xff]
    %v3099 = vpack.c.bf16 %v3097, %v3097
    %v3100 = vld [vmem:[%s742] sm:$0xff]
    %v3101 = vld [vmem:[%s742 + $0x8] sm:$0xff]
    %v3102 = vld [vmem:[%s742 + $0x10] sm:$0xff]
    %v3103 = vld [vmem:[%s742 + $0x18] sm:$0xff]
    %v3104 = vld [vmem:[%s742 + $0x20] sm:$0xff]
    %v3105 = vld [vmem:[%s742 + $0x28] sm:$0xff]
    %v3106 = vld [vmem:[%s742 + $0x30] sm:$0xff]
    %v3107 = vld [vmem:[%s742 + $0x38] sm:$0xff]
    %v3108 = vld [vmem:[%s742 + $0x40] sm:$0xff]
    %v3109 = vld [vmem:[%s742 + $0x48] sm:$0xff]
    %v3110 = vld [vmem:[%s742 + $0x50] sm:$0xff]
    %v3111 = vld [vmem:[%s742 + $0x58] sm:$0xff]
    %v3112 = vld [vmem:[%s742 + $0x60] sm:$0xff]
    %v3113 = vld [vmem:[%s742 + $0x68] sm:$0xff]
    %v3114 = vld [vmem:[%s742 + $0x70] sm:$0xff]
    %v3115 = vld [vmem:[%s742 + $0x78] sm:$0xff]
    %v3116 = vld [vmem:[%s742 + $0x80] sm:$0xff]
    %v3117 = vld [vmem:[%s742 + $0x88] sm:$0xff]
    %v3118 = vld [vmem:[%s742 + $0x90] sm:$0xff]
    %v3119 = vld [vmem:[%s742 + $0x98] sm:$0xff]
    %v3120 = vld [vmem:[%s742 + $0xa0] sm:$0xff]
    %v3121 = vld [vmem:[%s742 + $0xa8] sm:$0xff]
    %v3122 = vld [vmem:[%s742 + $0xb0] sm:$0xff]
    %v3123 = vld [vmem:[%s742 + $0xb8] sm:$0xff]
    %v3124 = vld [vmem:[%s742 + $0xc0] sm:$0xff]
    %v3125 = vld [vmem:[%s742 + $0xc8] sm:$0xff]
    %v3126 = vld [vmem:[%s742 + $0xd0] sm:$0xff]
    %v3127 = vld [vmem:[%s742 + $0xd8] sm:$0xff]
    %v3128 = vld [vmem:[%s742 + $0xe0] sm:$0xff]
    %v3129 = vld [vmem:[%s742 + $0xe8] sm:$0xff]
    %v3130 = vld [vmem:[%s742 + $0xf0] sm:$0xff]
    %v3131 = vld [vmem:[%s742 + $0xf8] sm:$0xff]
    %v3132 = vld [vmem:[#allocation9] sm:$0xff]
    %v3133 = vld [vmem:[#allocation9 + $0x8] sm:$0xff]
    %v3134 = vld [vmem:[#allocation9 + $0x10] sm:$0xff]
    %v3135 = vld [vmem:[#allocation9 + $0x18] sm:$0xff]
    %v3136 = vld [vmem:[#allocation9 + $0x20] sm:$0xff]
    %v3137 = vld [vmem:[#allocation9 + $0x28] sm:$0xff]
    %v3138 = vld [vmem:[#allocation9 + $0x30] sm:$0xff]
    %v3139 = vld [vmem:[#allocation9 + $0x38] sm:$0xff]
    %v3140 = vld [vmem:[#allocation9 + $0x40] sm:$0xff]
    %v3141 = vld [vmem:[#allocation9 + $0x48] sm:$0xff]
    %v3142 = vld [vmem:[#allocation9 + $0x50] sm:$0xff]
    %v3143 = vld [vmem:[#allocation9 + $0x58] sm:$0xff]
    %v3144 = vld [vmem:[#allocation9 + $0x60] sm:$0xff]
    %v3145 = vld [vmem:[#allocation9 + $0x68] sm:$0xff]
    %v3146 = vld [vmem:[#allocation9 + $0x70] sm:$0xff]
    %v3147 = vld [vmem:[#allocation9 + $0x78] sm:$0xff]
    %v3148 = vld [vmem:[#allocation9 + $0x80] sm:$0xff]
    %v3149 = vld [vmem:[#allocation9 + $0x88] sm:$0xff]
    %v3150 = vld [vmem:[#allocation9 + $0x90] sm:$0xff]
    %v3151 = vld [vmem:[#allocation9 + $0x98] sm:$0xff]
    %v3152 = vld [vmem:[#allocation9 + $0xa0] sm:$0xff]
    %v3153 = vld [vmem:[#allocation9 + $0xa8] sm:$0xff]
    %v3154 = vld [vmem:[#allocation9 + $0xb0] sm:$0xff]
    %v3155 = vld [vmem:[#allocation9 + $0xb8] sm:$0xff]
    %v3156 = vld [vmem:[#allocation9 + $0xc0] sm:$0xff]
    %v3157 = vld [vmem:[#allocation9 + $0xc8] sm:$0xff]
    %v3158 = vld [vmem:[#allocation9 + $0xd0] sm:$0xff]
    %v3159 = vld [vmem:[#allocation9 + $0xd8] sm:$0xff]
    %v3160 = vld [vmem:[#allocation9 + $0xe0] sm:$0xff]
    %v3161 = vld [vmem:[#allocation9 + $0xe8] sm:$0xff]
    %v3162 = vld [vmem:[#allocation9 + $0xf0] sm:$0xff]
    %v3163 = vld [vmem:[#allocation9 + $0xf8] sm:$0xff]
    %v3196 = vunpack.c.l.b16 %v3132
    %v3197 = vunpack.c.h.b16 %v3132
    %v3198 = vunpack.c.l.b16 %v3133
    %v3199 = vunpack.c.h.b16 %v3133
    %v3200 = vunpack.c.l.b16 %v3134
    %v3201 = vunpack.c.h.b16 %v3134
    %v3202 = vunpack.c.l.b16 %v3135
    %v3203 = vunpack.c.h.b16 %v3135
    %v3204 = vunpack.c.l.b16 %v3136
    %v3205 = vunpack.c.h.b16 %v3136
    %v3206 = vunpack.c.l.b16 %v3137
    %v3207 = vunpack.c.h.b16 %v3137
    %v3208 = vunpack.c.l.b16 %v3138
    %v3209 = vunpack.c.h.b16 %v3138
    %v3210 = vunpack.c.l.b16 %v3139
    %v3211 = vunpack.c.h.b16 %v3139
    %v3212 = vunpack.c.l.b16 %v3140
    %v3213 = vunpack.c.h.b16 %v3140
    %v3214 = vunpack.c.l.b16 %v3141
    %v3215 = vunpack.c.h.b16 %v3141
    %v3216 = vunpack.c.l.b16 %v3142
    %v3217 = vunpack.c.h.b16 %v3142
    %v3218 = vunpack.c.l.b16 %v3143
    %v3219 = vunpack.c.h.b16 %v3143
    %v3220 = vunpack.c.l.b16 %v3144
    %v3221 = vunpack.c.h.b16 %v3144
    %v3222 = vunpack.c.l.b16 %v3145
    %v3223 = vunpack.c.h.b16 %v3145
    %v3224 = vunpack.c.l.b16 %v3146
    %v3225 = vunpack.c.h.b16 %v3146
    %v3226 = vunpack.c.l.b16 %v3147
    %v3227 = vunpack.c.h.b16 %v3147
    %v3228 = vunpack.c.l.b16 %v3148
    %v3229 = vunpack.c.h.b16 %v3148
    %v3230 = vunpack.c.l.b16 %v3149
    %v3231 = vunpack.c.h.b16 %v3149
    %v3232 = vunpack.c.l.b16 %v3150
    %v3233 = vunpack.c.h.b16 %v3150
    %v3234 = vunpack.c.l.b16 %v3151
    %v3235 = vunpack.c.h.b16 %v3151
    %v3236 = vunpack.c.l.b16 %v3152
    %v3237 = vunpack.c.h.b16 %v3152
    %v3238 = vunpack.c.l.b16 %v3153
    %v3239 = vunpack.c.h.b16 %v3153
    %v3240 = vunpack.c.l.b16 %v3154
    %v3241 = vunpack.c.h.b16 %v3154
    %v3242 = vunpack.c.l.b16 %v3155
    %v3243 = vunpack.c.h.b16 %v3155
    %v3244 = vunpack.c.l.b16 %v3156
    %v3245 = vunpack.c.h.b16 %v3156
    %v3246 = vunpack.c.l.b16 %v3157
    %v3247 = vunpack.c.h.b16 %v3157
    %v3248 = vunpack.c.l.b16 %v3158
    %v3249 = vunpack.c.h.b16 %v3158
    %v3250 = vunpack.c.l.b16 %v3159
    %v3251 = vunpack.c.h.b16 %v3159
    %v3252 = vunpack.c.l.b16 %v3160
    %v3253 = vunpack.c.h.b16 %v3160
    %v3254 = vunpack.c.l.b16 %v3161
    %v3255 = vunpack.c.h.b16 %v3161
    %v3256 = vunpack.c.l.b16 %v3162
    %v3257 = vunpack.c.h.b16 %v3162
    %v3258 = vunpack.c.l.b16 %v3163
    %v3259 = vunpack.c.h.b16 %v3163
    %v3260 = vpack.c.b16 %v3200, %v3196
    %v3261 = vpack.c.b16 %v3201, %v3197
    %v3262 = vpack.c.b16 %v3202, %v3198
    %v3263 = vpack.c.b16 %v3203, %v3199
    %v3264 = vpack.c.b16 %v3208, %v3204
    %v3265 = vpack.c.b16 %v3209, %v3205
    %v3266 = vpack.c.b16 %v3210, %v3206
    %v3267 = vpack.c.b16 %v3211, %v3207
    %v3268 = vpack.c.b16 %v3216, %v3212
    %v3269 = vpack.c.b16 %v3217, %v3213
    %v3270 = vpack.c.b16 %v3218, %v3214
    %v3271 = vpack.c.b16 %v3219, %v3215
    %v3272 = vpack.c.b16 %v3224, %v3220
    %v3273 = vpack.c.b16 %v3225, %v3221
    %v3274 = vpack.c.b16 %v3226, %v3222
    %v3275 = vpack.c.b16 %v3227, %v3223
    %v3276 = vpack.c.b16 %v3232, %v3228
    %v3277 = vpack.c.b16 %v3233, %v3229
    %v3278 = vpack.c.b16 %v3234, %v3230
    %v3279 = vpack.c.b16 %v3235, %v3231
    %v3280 = vpack.c.b16 %v3240, %v3236
    %v3281 = vpack.c.b16 %v3241, %v3237
    %v3282 = vpack.c.b16 %v3242, %v3238
    %v3283 = vpack.c.b16 %v3243, %v3239
    %v3284 = vpack.c.b16 %v3248, %v3244
    %v3285 = vpack.c.b16 %v3249, %v3245
    %v3286 = vpack.c.b16 %v3250, %v3246
    %v3287 = vpack.c.b16 %v3251, %v3247
    %v3288 = vpack.c.b16 %v3256, %v3252
    %v3289 = vpack.c.b16 %v3257, %v3253
    %v3290 = vpack.c.b16 %v3258, %v3254
    %v3291 = vpack.c.b16 %v3259, %v3255
    %3324 = vmatpush.bf16.msra.mxu0 %v3288
    %3325 = vmatpush.bf16.msra.mxu0 %v3284
    %3326 = vmatpush.bf16.msra.mxu0 %v3280
    %3327 = vmatpush.bf16.msra.mxu0 %v3276
    %3328 = vmatpush.bf16.msra.mxu0 %v3272
    %3329 = vmatpush.bf16.msra.mxu0 %v3268
    %3330 = vmatpush.bf16.msra.mxu0 %v3264
    %3331 = vmatpush.bf16.msra.mxu0 %v3260
    %3332 = vmatmul.bf16.gmra.mxu0 %v3096
    %v3333 = vpop.f32.mrf.mxu0
    %v3334 = vadd.f32 0.0, %v3333
    %v3335 = vpop.f32.mrf.mxu0
    %3336 = vdwg.mxu0
    %3337 = vmatpush.bf16.msra.mxu0 %v3289
    %3338 = vmatpush.bf16.msra.mxu0 %v3285
    %3339 = vmatpush.bf16.msra.mxu0 %v3281
    %3340 = vmatpush.bf16.msra.mxu0 %v3277
    %3341 = vmatpush.bf16.msra.mxu0 %v3273
    %3342 = vmatpush.bf16.msra.mxu0 %v3269
    %3343 = vmatpush.bf16.msra.mxu0 %v3265
    %3344 = vmatpush.bf16.msra.mxu0 %v3261
    %3345 = vmatmul.bf16.gmra.mxu0 %v3096
    %v3346 = vpop.f32.mrf.mxu0
    %v3347 = vadd.f32 0.0, %v3346
    %v3348 = vpop.f32.mrf.mxu0
    %3349 = vdwg.mxu0
    %3350 = vmatpush.bf16.msra.mxu0 %v3290
    %3351 = vmatpush.bf16.msra.mxu0 %v3286
    %3352 = vmatpush.bf16.msra.mxu0 %v3282
    %3353 = vmatpush.bf16.msra.mxu0 %v3278
    %3354 = vmatpush.bf16.msra.mxu0 %v3274
    %3355 = vmatpush.bf16.msra.mxu0 %v3270
    %3356 = vmatpush.bf16.msra.mxu0 %v3266
    %3357 = vmatpush.bf16.msra.mxu0 %v3262
    %3358 = vmatmul.bf16.gmra.mxu0 %v3096
    %v3359 = vpop.f32.mrf.mxu0
    %v3360 = vadd.f32 0.0, %v3359
    %v3361 = vpop.f32.mrf.mxu0
    %3362 = vdwg.mxu0
    %3363 = vmatpush.bf16.msra.mxu0 %v3291
    %3364 = vmatpush.bf16.msra.mxu0 %v3287
    %3365 = vmatpush.bf16.msra.mxu0 %v3283
    %3366 = vmatpush.bf16.msra.mxu0 %v3279
    %3367 = vmatpush.bf16.msra.mxu0 %v3275
    %3368 = vmatpush.bf16.msra.mxu0 %v3271
    %3369 = vmatpush.bf16.msra.mxu0 %v3267
    %3370 = vmatpush.bf16.msra.mxu0 %v3263
    %3371 = vmatmul.bf16.gmra.mxu0 %v3096
    %v3372 = vpop.f32.mrf.mxu0
    %v3373 = vadd.f32 0.0, %v3372
    %v3374 = vpop.f32.mrf.mxu0
    %3375 = vdwg.mxu0
    %v3408 = vunpack.c.l.b16 %v3100
    %v3409 = vunpack.c.h.b16 %v3100
    %v3410 = vunpack.c.l.b16 %v3101
    %v3411 = vunpack.c.h.b16 %v3101
    %v3412 = vunpack.c.l.b16 %v3102
    %v3413 = vunpack.c.h.b16 %v3102
    %v3414 = vunpack.c.l.b16 %v3103
    %v3415 = vunpack.c.h.b16 %v3103
    %v3416 = vunpack.c.l.b16 %v3104
    %v3417 = vunpack.c.h.b16 %v3104
    %v3418 = vunpack.c.l.b16 %v3105
    %v3419 = vunpack.c.h.b16 %v3105
    %v3420 = vunpack.c.l.b16 %v3106
    %v3421 = vunpack.c.h.b16 %v3106
    %v3422 = vunpack.c.l.b16 %v3107
    %v3423 = vunpack.c.h.b16 %v3107
    %v3424 = vunpack.c.l.b16 %v3108
    %v3425 = vunpack.c.h.b16 %v3108
    %v3426 = vunpack.c.l.b16 %v3109
    %v3427 = vunpack.c.h.b16 %v3109
    %v3428 = vunpack.c.l.b16 %v3110
    %v3429 = vunpack.c.h.b16 %v3110
    %v3430 = vunpack.c.l.b16 %v3111
    %v3431 = vunpack.c.h.b16 %v3111
    %v3432 = vunpack.c.l.b16 %v3112
    %v3433 = vunpack.c.h.b16 %v3112
    %v3434 = vunpack.c.l.b16 %v3113
    %v3435 = vunpack.c.h.b16 %v3113
    %v3436 = vunpack.c.l.b16 %v3114
    %v3437 = vunpack.c.h.b16 %v3114
    %v3438 = vunpack.c.l.b16 %v3115
    %v3439 = vunpack.c.h.b16 %v3115
    %v3440 = vunpack.c.l.b16 %v3116
    %v3441 = vunpack.c.h.b16 %v3116
    %v3442 = vunpack.c.l.b16 %v3117
    %v3443 = vunpack.c.h.b16 %v3117
    %v3444 = vunpack.c.l.b16 %v3118
    %v3445 = vunpack.c.h.b16 %v3118
    %v3446 = vunpack.c.l.b16 %v3119
    %v3447 = vunpack.c.h.b16 %v3119
    %v3448 = vunpack.c.l.b16 %v3120
    %v3449 = vunpack.c.h.b16 %v3120
    %v3450 = vunpack.c.l.b16 %v3121
    %v3451 = vunpack.c.h.b16 %v3121
    %v3452 = vunpack.c.l.b16 %v3122
    %v3453 = vunpack.c.h.b16 %v3122
    %v3454 = vunpack.c.l.b16 %v3123
    %v3455 = vunpack.c.h.b16 %v3123
    %v3456 = vunpack.c.l.b16 %v3124
    %v3457 = vunpack.c.h.b16 %v3124
    %v3458 = vunpack.c.l.b16 %v3125
    %v3459 = vunpack.c.h.b16 %v3125
    %v3460 = vunpack.c.l.b16 %v3126
    %v3461 = vunpack.c.h.b16 %v3126
    %v3462 = vunpack.c.l.b16 %v3127
    %v3463 = vunpack.c.h.b16 %v3127
    %v3464 = vunpack.c.l.b16 %v3128
    %v3465 = vunpack.c.h.b16 %v3128
    %v3466 = vunpack.c.l.b16 %v3129
    %v3467 = vunpack.c.h.b16 %v3129
    %v3468 = vunpack.c.l.b16 %v3130
    %v3469 = vunpack.c.h.b16 %v3130
    %v3470 = vunpack.c.l.b16 %v3131
    %v3471 = vunpack.c.h.b16 %v3131
    %v3472 = vpack.c.b16 %v3412, %v3408
    %v3473 = vpack.c.b16 %v3413, %v3409
    %v3474 = vpack.c.b16 %v3414, %v3410
    %v3475 = vpack.c.b16 %v3415, %v3411
    %v3476 = vpack.c.b16 %v3420, %v3416
    %v3477 = vpack.c.b16 %v3421, %v3417
    %v3478 = vpack.c.b16 %v3422, %v3418
    %v3479 = vpack.c.b16 %v3423, %v3419
    %v3480 = vpack.c.b16 %v3428, %v3424
    %v3481 = vpack.c.b16 %v3429, %v3425
    %v3482 = vpack.c.b16 %v3430, %v3426
    %v3483 = vpack.c.b16 %v3431, %v3427
    %v3484 = vpack.c.b16 %v3436, %v3432
    %v3485 = vpack.c.b16 %v3437, %v3433
    %v3486 = vpack.c.b16 %v3438, %v3434
    %v3487 = vpack.c.b16 %v3439, %v3435
    %v3488 = vpack.c.b16 %v3444, %v3440
    %v3489 = vpack.c.b16 %v3445, %v3441
    %v3490 = vpack.c.b16 %v3446, %v3442
    %v3491 = vpack.c.b16 %v3447, %v3443
    %v3492 = vpack.c.b16 %v3452, %v3448
    %v3493 = vpack.c.b16 %v3453, %v3449
    %v3494 = vpack.c.b16 %v3454, %v3450
    %v3495 = vpack.c.b16 %v3455, %v3451
    %v3496 = vpack.c.b16 %v3460, %v3456
    %v3497 = vpack.c.b16 %v3461, %v3457
    %v3498 = vpack.c.b16 %v3462, %v3458
    %v3499 = vpack.c.b16 %v3463, %v3459
    %v3500 = vpack.c.b16 %v3468, %v3464
    %v3501 = vpack.c.b16 %v3469, %v3465
    %v3502 = vpack.c.b16 %v3470, %v3466
    %v3503 = vpack.c.b16 %v3471, %v3467
    %3536 = vmatpush.bf16.msra.mxu0 %v3500
    %3537 = vmatpush.bf16.msra.mxu0 %v3496
    %3538 = vmatpush.bf16.msra.mxu0 %v3492
    %3539 = vmatpush.bf16.msra.mxu0 %v3488
    %3540 = vmatpush.bf16.msra.mxu0 %v3484
    %3541 = vmatpush.bf16.msra.mxu0 %v3480
    %3542 = vmatpush.bf16.msra.mxu0 %v3476
    %3543 = vmatpush.bf16.msra.mxu0 %v3472
    %3544 = vmatmul.bf16.gmra.mxu0 %v3099
    %v3545 = vpop.f32.mrf.mxu0
    %v3546 = vadd.f32 %v3334, %v3545
    %v3547 = vpop.f32.mrf.mxu0
    %3548 = vdwg.mxu0
    %3549 = vmatpush.bf16.msra.mxu0 %v3501
    %3550 = vmatpush.bf16.msra.mxu0 %v3497
    %3551 = vmatpush.bf16.msra.mxu0 %v3493
    %3552 = vmatpush.bf16.msra.mxu0 %v3489
    %3553 = vmatpush.bf16.msra.mxu0 %v3485
    %3554 = vmatpush.bf16.msra.mxu0 %v3481
    %3555 = vmatpush.bf16.msra.mxu0 %v3477
    %3556 = vmatpush.bf16.msra.mxu0 %v3473
    %3557 = vmatmul.bf16.gmra.mxu0 %v3099
    %v3558 = vpop.f32.mrf.mxu0
    %v3559 = vadd.f32 %v3347, %v3558
    %v3560 = vpop.f32.mrf.mxu0
    %3561 = vdwg.mxu0
    %3562 = vmatpush.bf16.msra.mxu0 %v3502
    %3563 = vmatpush.bf16.msra.mxu0 %v3498
    %3564 = vmatpush.bf16.msra.mxu0 %v3494
    %3565 = vmatpush.bf16.msra.mxu0 %v3490
    %3566 = vmatpush.bf16.msra.mxu0 %v3486
    %3567 = vmatpush.bf16.msra.mxu0 %v3482
    %3568 = vmatpush.bf16.msra.mxu0 %v3478
    %3569 = vmatpush.bf16.msra.mxu0 %v3474
    %3570 = vmatmul.bf16.gmra.mxu0 %v3099
    %v3571 = vpop.f32.mrf.mxu0
    %v3572 = vadd.f32 %v3360, %v3571
    %v3573 = vpop.f32.mrf.mxu0
    %3574 = vdwg.mxu0
    %3575 = vmatpush.bf16.msra.mxu0 %v3503
    %3576 = vmatpush.bf16.msra.mxu0 %v3499
    %3577 = vmatpush.bf16.msra.mxu0 %v3495
    %3578 = vmatpush.bf16.msra.mxu0 %v3491
    %3579 = vmatpush.bf16.msra.mxu0 %v3487
    %3580 = vmatpush.bf16.msra.mxu0 %v3483
    %3581 = vmatpush.bf16.msra.mxu0 %v3479
    %3582 = vmatpush.bf16.msra.mxu0 %v3475
    %3583 = vmatmul.bf16.gmra.mxu0 %v3099
    %v3584 = vpop.f32.mrf.mxu0
    %v3585 = vadd.f32 %v3373, %v3584
    %v3586 = vpop.f32.mrf.mxu0
    %3587 = vdwg.mxu0
    %v3588 = vmul.f32 %v3546, 0.5
    %v3589 = vtanh.pop %v3588
    %v3590 = vmul.f32 %v3589, 0.5
    %v3591 = vadd.f32 %v3590, 0.5
    %v3592 = vmul.f32 %v3559, 0.5
    %v3593 = vtanh.pop %v3592
    %v3594 = vmul.f32 %v3593, 0.5
    %v3595 = vadd.f32 %v3594, 0.5
    %v3596 = vtanh.pop %v3572
    %v3597 = vmul.f32 %v3585, 0.5
    %v3598 = vtanh.pop %v3597
    %v3599 = vmul.f32 %v3598, 0.5
    %v3600 = vadd.f32 %v3599, 0.5
    %v3601 = vmul.f32 %v3595, %v3098
    %v3602 = vmul.f32 %v3591, %v3596
    %v3603 = vadd.f32 %v3601, %v3602
    %v3604 = vtanh.pop %v3603
    %v3605 = vmul.f32 %v3600, %v3604
    %3606 = vst [vmem:[%s739] sm:$0xff] %v3603
    %3607 = vst [vmem:[%s737] sm:$0xff] %v3605
    %s3608 = scalar_lea.vmem [#allocation11], 24
    %3609 = vst [vmem:[%s3608] sm:$0xff] %v3605
    %v3610 = vld [vmem:[#allocation12] sm:$0xff]
    %v3611 = vld [vmem:[#allocation14] sm:$0xff]
    %v3612 = vpack.c.bf16 %v3610, %v3610
    %v3613 = vld [vmem:[#allocation8] sm:$0xff]
    %v3614 = vld [vmem:[#allocation8 + $0x8] sm:$0xff]
    %v3615 = vld [vmem:[#allocation8 + $0x10] sm:$0xff]
    %v3616 = vld [vmem:[#allocation8 + $0x18] sm:$0xff]
    %v3617 = vld [vmem:[#allocation8 + $0x20] sm:$0xff]
    %v3618 = vld [vmem:[#allocation8 + $0x28] sm:$0xff]
    %v3619 = vld [vmem:[#allocation8 + $0x30] sm:$0xff]
    %v3620 = vld [vmem:[#allocation8 + $0x38] sm:$0xff]
    %v3621 = vld [vmem:[#allocation8 + $0x40] sm:$0xff]
    %v3622 = vld [vmem:[#allocation8 + $0x48] sm:$0xff]
    %v3623 = vld [vmem:[#allocation8 + $0x50] sm:$0xff]
    %v3624 = vld [vmem:[#allocation8 + $0x58] sm:$0xff]
    %v3625 = vld [vmem:[#allocation8 + $0x60] sm:$0xff]
    %v3626 = vld [vmem:[#allocation8 + $0x68] sm:$0xff]
    %v3627 = vld [vmem:[#allocation8 + $0x70] sm:$0xff]
    %v3628 = vld [vmem:[#allocation8 + $0x78] sm:$0xff]
    %v3629 = vld [vmem:[#allocation8 + $0x80] sm:$0xff]
    %v3630 = vld [vmem:[#allocation8 + $0x88] sm:$0xff]
    %v3631 = vld [vmem:[#allocation8 + $0x90] sm:$0xff]
    %v3632 = vld [vmem:[#allocation8 + $0x98] sm:$0xff]
    %v3633 = vld [vmem:[#allocation8 + $0xa0] sm:$0xff]
    %v3634 = vld [vmem:[#allocation8 + $0xa8] sm:$0xff]
    %v3635 = vld [vmem:[#allocation8 + $0xb0] sm:$0xff]
    %v3636 = vld [vmem:[#allocation8 + $0xb8] sm:$0xff]
    %v3637 = vld [vmem:[#allocation8 + $0xc0] sm:$0xff]
    %v3638 = vld [vmem:[#allocation8 + $0xc8] sm:$0xff]
    %v3639 = vld [vmem:[#allocation8 + $0xd0] sm:$0xff]
    %v3640 = vld [vmem:[#allocation8 + $0xd8] sm:$0xff]
    %v3641 = vld [vmem:[#allocation8 + $0xe0] sm:$0xff]
    %v3642 = vld [vmem:[#allocation8 + $0xe8] sm:$0xff]
    %v3643 = vld [vmem:[#allocation8 + $0xf0] sm:$0xff]
    %v3644 = vld [vmem:[#allocation8 + $0xf8] sm:$0xff]
    %s3645 = scalar_lea.vmem [#allocation2], 128
    %v3646 = vld [vmem:[%s3645] sm:$0xff]
    %v3647 = vld [vmem:[%s3645 + $0x8] sm:$0xff]
    %v3648 = vld [vmem:[%s3645 + $0x10] sm:$0xff]
    %v3649 = vld [vmem:[%s3645 + $0x18] sm:$0xff]
    %v3682 = vunpack.c.l.b16 %v3613
    %v3683 = vunpack.c.h.b16 %v3613
    %v3684 = vunpack.c.l.b16 %v3614
    %v3685 = vunpack.c.h.b16 %v3614
    %v3686 = vunpack.c.l.b16 %v3615
    %v3687 = vunpack.c.h.b16 %v3615
    %v3688 = vunpack.c.l.b16 %v3616
    %v3689 = vunpack.c.h.b16 %v3616
    %v3690 = vunpack.c.l.b16 %v3617
    %v3691 = vunpack.c.h.b16 %v3617
    %v3692 = vunpack.c.l.b16 %v3618
    %v3693 = vunpack.c.h.b16 %v3618
    %v3694 = vunpack.c.l.b16 %v3619
    %v3695 = vunpack.c.h.b16 %v3619
    %v3696 = vunpack.c.l.b16 %v3620
    %v3697 = vunpack.c.h.b16 %v3620
    %v3698 = vunpack.c.l.b16 %v3621
    %v3699 = vunpack.c.h.b16 %v3621
    %v3700 = vunpack.c.l.b16 %v3622
    %v3701 = vunpack.c.h.b16 %v3622
    %v3702 = vunpack.c.l.b16 %v3623
    %v3703 = vunpack.c.h.b16 %v3623
    %v3704 = vunpack.c.l.b16 %v3624
    %v3705 = vunpack.c.h.b16 %v3624
    %v3706 = vunpack.c.l.b16 %v3625
    %v3707 = vunpack.c.h.b16 %v3625
    %v3708 = vunpack.c.l.b16 %v3626
    %v3709 = vunpack.c.h.b16 %v3626
    %v3710 = vunpack.c.l.b16 %v3627
    %v3711 = vunpack.c.h.b16 %v3627
    %v3712 = vunpack.c.l.b16 %v3628
    %v3713 = vunpack.c.h.b16 %v3628
    %v3714 = vunpack.c.l.b16 %v3629
    %v3715 = vunpack.c.h.b16 %v3629
    %v3716 = vunpack.c.l.b16 %v3630
    %v3717 = vunpack.c.h.b16 %v3630
    %v3718 = vunpack.c.l.b16 %v3631
    %v3719 = vunpack.c.h.b16 %v3631
    %v3720 = vunpack.c.l.b16 %v3632
    %v3721 = vunpack.c.h.b16 %v3632
    %v3722 = vunpack.c.l.b16 %v3633
    %v3723 = vunpack.c.h.b16 %v3633
    %v3724 = vunpack.c.l.b16 %v3634
    %v3725 = vunpack.c.h.b16 %v3634
    %v3726 = vunpack.c.l.b16 %v3635
    %v3727 = vunpack.c.h.b16 %v3635
    %v3728 = vunpack.c.l.b16 %v3636
    %v3729 = vunpack.c.h.b16 %v3636
    %v3730 = vunpack.c.l.b16 %v3637
    %v3731 = vunpack.c.h.b16 %v3637
    %v3732 = vunpack.c.l.b16 %v3638
    %v3733 = vunpack.c.h.b16 %v3638
    %v3734 = vunpack.c.l.b16 %v3639
    %v3735 = vunpack.c.h.b16 %v3639
    %v3736 = vunpack.c.l.b16 %v3640
    %v3737 = vunpack.c.h.b16 %v3640
    %v3738 = vunpack.c.l.b16 %v3641
    %v3739 = vunpack.c.h.b16 %v3641
    %v3740 = vunpack.c.l.b16 %v3642
    %v3741 = vunpack.c.h.b16 %v3642
    %v3742 = vunpack.c.l.b16 %v3643
    %v3743 = vunpack.c.h.b16 %v3643
    %v3744 = vunpack.c.l.b16 %v3644
    %v3745 = vunpack.c.h.b16 %v3644
    %v3746 = vpack.c.b16 %v3686, %v3682
    %v3747 = vpack.c.b16 %v3687, %v3683
    %v3748 = vpack.c.b16 %v3688, %v3684
    %v3749 = vpack.c.b16 %v3689, %v3685
    %v3750 = vpack.c.b16 %v3694, %v3690
    %v3751 = vpack.c.b16 %v3695, %v3691
    %v3752 = vpack.c.b16 %v3696, %v3692
    %v3753 = vpack.c.b16 %v3697, %v3693
    %v3754 = vpack.c.b16 %v3702, %v3698
    %v3755 = vpack.c.b16 %v3703, %v3699
    %v3756 = vpack.c.b16 %v3704, %v3700
    %v3757 = vpack.c.b16 %v3705, %v3701
    %v3758 = vpack.c.b16 %v3710, %v3706
    %v3759 = vpack.c.b16 %v3711, %v3707
    %v3760 = vpack.c.b16 %v3712, %v3708
    %v3761 = vpack.c.b16 %v3713, %v3709
    %v3762 = vpack.c.b16 %v3718, %v3714
    %v3763 = vpack.c.b16 %v3719, %v3715
    %v3764 = vpack.c.b16 %v3720, %v3716
    %v3765 = vpack.c.b16 %v3721, %v3717
    %v3766 = vpack.c.b16 %v3726, %v3722
    %v3767 = vpack.c.b16 %v3727, %v3723
    %v3768 = vpack.c.b16 %v3728, %v3724
    %v3769 = vpack.c.b16 %v3729, %v3725
    %v3770 = vpack.c.b16 %v3734, %v3730
    %v3771 = vpack.c.b16 %v3735, %v3731
    %v3772 = vpack.c.b16 %v3736, %v3732
    %v3773 = vpack.c.b16 %v3737, %v3733
    %v3774 = vpack.c.b16 %v3742, %v3738
    %v3775 = vpack.c.b16 %v3743, %v3739
    %v3776 = vpack.c.b16 %v3744, %v3740
    %v3777 = vpack.c.b16 %v3745, %v3741
    %3810 = vmatpush.bf16.msra.mxu0 %v3774
    %3811 = vmatpush.bf16.msra.mxu0 %v3770
    %3812 = vmatpush.bf16.msra.mxu0 %v3766
    %3813 = vmatpush.bf16.msra.mxu0 %v3762
    %3814 = vmatpush.bf16.msra.mxu0 %v3758
    %3815 = vmatpush.bf16.msra.mxu0 %v3754
    %3816 = vmatpush.bf16.msra.mxu0 %v3750
    %3817 = vmatpush.bf16.msra.mxu0 %v3746
    %3818 = vmatmul.bf16.gmra.mxu0 %v3612
    %v3819 = vpop.f32.mrf.mxu0
    %v3820 = vadd.f32 %v3646, %v3819
    %v3821 = vpop.f32.mrf.mxu0
    %3822 = vdwg.mxu0
    %3823 = vmatpush.bf16.msra.mxu0 %v3775
    %3824 = vmatpush.bf16.msra.mxu0 %v3771
    %3825 = vmatpush.bf16.msra.mxu0 %v3767
    %3826 = vmatpush.bf16.msra.mxu0 %v3763
    %3827 = vmatpush.bf16.msra.mxu0 %v3759
    %3828 = vmatpush.bf16.msra.mxu0 %v3755
    %3829 = vmatpush.bf16.msra.mxu0 %v3751
    %3830 = vmatpush.bf16.msra.mxu0 %v3747
    %3831 = vmatmul.bf16.gmra.mxu0 %v3612
    %v3832 = vpop.f32.mrf.mxu0
    %v3833 = vadd.f32 %v3647, %v3832
    %v3834 = vpop.f32.mrf.mxu0
    %3835 = vdwg.mxu0
    %3836 = vmatpush.bf16.msra.mxu0 %v3776
    %3837 = vmatpush.bf16.msra.mxu0 %v3772
    %3838 = vmatpush.bf16.msra.mxu0 %v3768
    %3839 = vmatpush.bf16.msra.mxu0 %v3764
    %3840 = vmatpush.bf16.msra.mxu0 %v3760
    %3841 = vmatpush.bf16.msra.mxu0 %v3756
    %3842 = vmatpush.bf16.msra.mxu0 %v3752
    %3843 = vmatpush.bf16.msra.mxu0 %v3748
    %3844 = vmatmul.bf16.gmra.mxu0 %v3612
    %v3845 = vpop.f32.mrf.mxu0
    %v3846 = vadd.f32 %v3648, %v3845
    %v3847 = vpop.f32.mrf.mxu0
    %3848 = vdwg.mxu0
    %3849 = vmatpush.bf16.msra.mxu0 %v3777
    %3850 = vmatpush.bf16.msra.mxu0 %v3773
    %3851 = vmatpush.bf16.msra.mxu0 %v3769
    %3852 = vmatpush.bf16.msra.mxu0 %v3765
    %3853 = vmatpush.bf16.msra.mxu0 %v3761
    %3854 = vmatpush.bf16.msra.mxu0 %v3757
    %3855 = vmatpush.bf16.msra.mxu0 %v3753
    %3856 = vmatpush.bf16.msra.mxu0 %v3749
    %3857 = vmatmul.bf16.gmra.mxu0 %v3612
    %v3858 = vpop.f32.mrf.mxu0
    %v3859 = vadd.f32 %v3649, %v3858
    %v3860 = vpop.f32.mrf.mxu0
    %3861 = vdwg.mxu0
    %v3862 = vmul.f32 %v3820, 0.5
    %v3863 = vtanh.pop %v3862
    %v3864 = vmul.f32 %v3863, 0.5
    %v3865 = vadd.f32 %v3864, 0.5
    %v3866 = vmul.f32 %v3833, 0.5
    %v3867 = vtanh.pop %v3866
    %v3868 = vmul.f32 %v3867, 0.5
    %v3869 = vadd.f32 %v3868, 0.5
    %v3870 = vtanh.pop %v3846
    %v3871 = vmul.f32 %v3859, 0.5
    %v3872 = vtanh.pop %v3871
    %v3873 = vmul.f32 %v3872, 0.5
    %v3874 = vadd.f32 %v3873, 0.5
    %v3875 = vmul.f32 %v3869, %v3611
    %v3876 = vmul.f32 %v3865, %v3870
    %v3877 = vadd.f32 %v3875, %v3876
    %v3878 = vtanh.pop %v3877
    %v3879 = vmul.f32 %v3874, %v3878
    %3880 = vst [vmem:[#allocation14] sm:$0xff] %v3877
    %3881 = vst [vmem:[#allocation12] sm:$0xff] %v3879
    %v3882 = vpack.c.bf16 %v3879, %v3879
    %v3883 = vld [vmem:[%s737] sm:$0xff]
    %v3884 = vld [vmem:[%s739] sm:$0xff]
    %v3885 = vpack.c.bf16 %v3883, %v3883
    %v3886 = vld [vmem:[%s742] sm:$0xff]
    %v3887 = vld [vmem:[%s742 + $0x8] sm:$0xff]
    %v3888 = vld [vmem:[%s742 + $0x10] sm:$0xff]
    %v3889 = vld [vmem:[%s742 + $0x18] sm:$0xff]
    %v3890 = vld [vmem:[%s742 + $0x20] sm:$0xff]
    %v3891 = vld [vmem:[%s742 + $0x28] sm:$0xff]
    %v3892 = vld [vmem:[%s742 + $0x30] sm:$0xff]
    %v3893 = vld [vmem:[%s742 + $0x38] sm:$0xff]
    %v3894 = vld [vmem:[%s742 + $0x40] sm:$0xff]
    %v3895 = vld [vmem:[%s742 + $0x48] sm:$0xff]
    %v3896 = vld [vmem:[%s742 + $0x50] sm:$0xff]
    %v3897 = vld [vmem:[%s742 + $0x58] sm:$0xff]
    %v3898 = vld [vmem:[%s742 + $0x60] sm:$0xff]
    %v3899 = vld [vmem:[%s742 + $0x68] sm:$0xff]
    %v3900 = vld [vmem:[%s742 + $0x70] sm:$0xff]
    %v3901 = vld [vmem:[%s742 + $0x78] sm:$0xff]
    %v3902 = vld [vmem:[%s742 + $0x80] sm:$0xff]
    %v3903 = vld [vmem:[%s742 + $0x88] sm:$0xff]
    %v3904 = vld [vmem:[%s742 + $0x90] sm:$0xff]
    %v3905 = vld [vmem:[%s742 + $0x98] sm:$0xff]
    %v3906 = vld [vmem:[%s742 + $0xa0] sm:$0xff]
    %v3907 = vld [vmem:[%s742 + $0xa8] sm:$0xff]
    %v3908 = vld [vmem:[%s742 + $0xb0] sm:$0xff]
    %v3909 = vld [vmem:[%s742 + $0xb8] sm:$0xff]
    %v3910 = vld [vmem:[%s742 + $0xc0] sm:$0xff]
    %v3911 = vld [vmem:[%s742 + $0xc8] sm:$0xff]
    %v3912 = vld [vmem:[%s742 + $0xd0] sm:$0xff]
    %v3913 = vld [vmem:[%s742 + $0xd8] sm:$0xff]
    %v3914 = vld [vmem:[%s742 + $0xe0] sm:$0xff]
    %v3915 = vld [vmem:[%s742 + $0xe8] sm:$0xff]
    %v3916 = vld [vmem:[%s742 + $0xf0] sm:$0xff]
    %v3917 = vld [vmem:[%s742 + $0xf8] sm:$0xff]
    %v3918 = vld [vmem:[#allocation9] sm:$0xff]
    %v3919 = vld [vmem:[#allocation9 + $0x8] sm:$0xff]
    %v3920 = vld [vmem:[#allocation9 + $0x10] sm:$0xff]
    %v3921 = vld [vmem:[#allocation9 + $0x18] sm:$0xff]
    %v3922 = vld [vmem:[#allocation9 + $0x20] sm:$0xff]
    %v3923 = vld [vmem:[#allocation9 + $0x28] sm:$0xff]
    %v3924 = vld [vmem:[#allocation9 + $0x30] sm:$0xff]
    %v3925 = vld [vmem:[#allocation9 + $0x38] sm:$0xff]
    %v3926 = vld [vmem:[#allocation9 + $0x40] sm:$0xff]
    %v3927 = vld [vmem:[#allocation9 + $0x48] sm:$0xff]
    %v3928 = vld [vmem:[#allocation9 + $0x50] sm:$0xff]
    %v3929 = vld [vmem:[#allocation9 + $0x58] sm:$0xff]
    %v3930 = vld [vmem:[#allocation9 + $0x60] sm:$0xff]
    %v3931 = vld [vmem:[#allocation9 + $0x68] sm:$0xff]
    %v3932 = vld [vmem:[#allocation9 + $0x70] sm:$0xff]
    %v3933 = vld [vmem:[#allocation9 + $0x78] sm:$0xff]
    %v3934 = vld [vmem:[#allocation9 + $0x80] sm:$0xff]
    %v3935 = vld [vmem:[#allocation9 + $0x88] sm:$0xff]
    %v3936 = vld [vmem:[#allocation9 + $0x90] sm:$0xff]
    %v3937 = vld [vmem:[#allocation9 + $0x98] sm:$0xff]
    %v3938 = vld [vmem:[#allocation9 + $0xa0] sm:$0xff]
    %v3939 = vld [vmem:[#allocation9 + $0xa8] sm:$0xff]
    %v3940 = vld [vmem:[#allocation9 + $0xb0] sm:$0xff]
    %v3941 = vld [vmem:[#allocation9 + $0xb8] sm:$0xff]
    %v3942 = vld [vmem:[#allocation9 + $0xc0] sm:$0xff]
    %v3943 = vld [vmem:[#allocation9 + $0xc8] sm:$0xff]
    %v3944 = vld [vmem:[#allocation9 + $0xd0] sm:$0xff]
    %v3945 = vld [vmem:[#allocation9 + $0xd8] sm:$0xff]
    %v3946 = vld [vmem:[#allocation9 + $0xe0] sm:$0xff]
    %v3947 = vld [vmem:[#allocation9 + $0xe8] sm:$0xff]
    %v3948 = vld [vmem:[#allocation9 + $0xf0] sm:$0xff]
    %v3949 = vld [vmem:[#allocation9 + $0xf8] sm:$0xff]
    %v3982 = vunpack.c.l.b16 %v3918
    %v3983 = vunpack.c.h.b16 %v3918
    %v3984 = vunpack.c.l.b16 %v3919
    %v3985 = vunpack.c.h.b16 %v3919
    %v3986 = vunpack.c.l.b16 %v3920
    %v3987 = vunpack.c.h.b16 %v3920
    %v3988 = vunpack.c.l.b16 %v3921
    %v3989 = vunpack.c.h.b16 %v3921
    %v3990 = vunpack.c.l.b16 %v3922
    %v3991 = vunpack.c.h.b16 %v3922
    %v3992 = vunpack.c.l.b16 %v3923
    %v3993 = vunpack.c.h.b16 %v3923
    %v3994 = vunpack.c.l.b16 %v3924
    %v3995 = vunpack.c.h.b16 %v3924
    %v3996 = vunpack.c.l.b16 %v3925
    %v3997 = vunpack.c.h.b16 %v3925
    %v3998 = vunpack.c.l.b16 %v3926
    %v3999 = vunpack.c.h.b16 %v3926
    %v4000 = vunpack.c.l.b16 %v3927
    %v4001 = vunpack.c.h.b16 %v3927
    %v4002 = vunpack.c.l.b16 %v3928
    %v4003 = vunpack.c.h.b16 %v3928
    %v4004 = vunpack.c.l.b16 %v3929
    %v4005 = vunpack.c.h.b16 %v3929
    %v4006 = vunpack.c.l.b16 %v3930
    %v4007 = vunpack.c.h.b16 %v3930
    %v4008 = vunpack.c.l.b16 %v3931
    %v4009 = vunpack.c.h.b16 %v3931
    %v4010 = vunpack.c.l.b16 %v3932
    %v4011 = vunpack.c.h.b16 %v3932
    %v4012 = vunpack.c.l.b16 %v3933
    %v4013 = vunpack.c.h.b16 %v3933
    %v4014 = vunpack.c.l.b16 %v3934
    %v4015 = vunpack.c.h.b16 %v3934
    %v4016 = vunpack.c.l.b16 %v3935
    %v4017 = vunpack.c.h.b16 %v3935
    %v4018 = vunpack.c.l.b16 %v3936
    %v4019 = vunpack.c.h.b16 %v3936
    %v4020 = vunpack.c.l.b16 %v3937
    %v4021 = vunpack.c.h.b16 %v3937
    %v4022 = vunpack.c.l.b16 %v3938
    %v4023 = vunpack.c.h.b16 %v3938
    %v4024 = vunpack.c.l.b16 %v3939
    %v4025 = vunpack.c.h.b16 %v3939
    %v4026 = vunpack.c.l.b16 %v3940
    %v4027 = vunpack.c.h.b16 %v3940
    %v4028 = vunpack.c.l.b16 %v3941
    %v4029 = vunpack.c.h.b16 %v3941
    %v4030 = vunpack.c.l.b16 %v3942
    %v4031 = vunpack.c.h.b16 %v3942
    %v4032 = vunpack.c.l.b16 %v3943
    %v4033 = vunpack.c.h.b16 %v3943
    %v4034 = vunpack.c.l.b16 %v3944
    %v4035 = vunpack.c.h.b16 %v3944
    %v4036 = vunpack.c.l.b16 %v3945
    %v4037 = vunpack.c.h.b16 %v3945
    %v4038 = vunpack.c.l.b16 %v3946
    %v4039 = vunpack.c.h.b16 %v3946
    %v4040 = vunpack.c.l.b16 %v3947
    %v4041 = vunpack.c.h.b16 %v3947
    %v4042 = vunpack.c.l.b16 %v3948
    %v4043 = vunpack.c.h.b16 %v3948
    %v4044 = vunpack.c.l.b16 %v3949
    %v4045 = vunpack.c.h.b16 %v3949
    %v4046 = vpack.c.b16 %v3986, %v3982
    %v4047 = vpack.c.b16 %v3987, %v3983
    %v4048 = vpack.c.b16 %v3988, %v3984
    %v4049 = vpack.c.b16 %v3989, %v3985
    %v4050 = vpack.c.b16 %v3994, %v3990
    %v4051 = vpack.c.b16 %v3995, %v3991
    %v4052 = vpack.c.b16 %v3996, %v3992
    %v4053 = vpack.c.b16 %v3997, %v3993
    %v4054 = vpack.c.b16 %v4002, %v3998
    %v4055 = vpack.c.b16 %v4003, %v3999
    %v4056 = vpack.c.b16 %v4004, %v4000
    %v4057 = vpack.c.b16 %v4005, %v4001
    %v4058 = vpack.c.b16 %v4010, %v4006
    %v4059 = vpack.c.b16 %v4011, %v4007
    %v4060 = vpack.c.b16 %v4012, %v4008
    %v4061 = vpack.c.b16 %v4013, %v4009
    %v4062 = vpack.c.b16 %v4018, %v4014
    %v4063 = vpack.c.b16 %v4019, %v4015
    %v4064 = vpack.c.b16 %v4020, %v4016
    %v4065 = vpack.c.b16 %v4021, %v4017
    %v4066 = vpack.c.b16 %v4026, %v4022
    %v4067 = vpack.c.b16 %v4027, %v4023
    %v4068 = vpack.c.b16 %v4028, %v4024
    %v4069 = vpack.c.b16 %v4029, %v4025
    %v4070 = vpack.c.b16 %v4034, %v4030
    %v4071 = vpack.c.b16 %v4035, %v4031
    %v4072 = vpack.c.b16 %v4036, %v4032
    %v4073 = vpack.c.b16 %v4037, %v4033
    %v4074 = vpack.c.b16 %v4042, %v4038
    %v4075 = vpack.c.b16 %v4043, %v4039
    %v4076 = vpack.c.b16 %v4044, %v4040
    %v4077 = vpack.c.b16 %v4045, %v4041
    %4110 = vmatpush.bf16.msra.mxu0 %v4074
    %4111 = vmatpush.bf16.msra.mxu0 %v4070
    %4112 = vmatpush.bf16.msra.mxu0 %v4066
    %4113 = vmatpush.bf16.msra.mxu0 %v4062
    %4114 = vmatpush.bf16.msra.mxu0 %v4058
    %4115 = vmatpush.bf16.msra.mxu0 %v4054
    %4116 = vmatpush.bf16.msra.mxu0 %v4050
    %4117 = vmatpush.bf16.msra.mxu0 %v4046
    %4118 = vmatmul.bf16.gmra.mxu0 %v3882
    %v4119 = vpop.f32.mrf.mxu0
    %v4120 = vadd.f32 0.0, %v4119
    %v4121 = vpop.f32.mrf.mxu0
    %4122 = vdwg.mxu0
    %4123 = vmatpush.bf16.msra.mxu0 %v4075
    %4124 = vmatpush.bf16.msra.mxu0 %v4071
    %4125 = vmatpush.bf16.msra.mxu0 %v4067
    %4126 = vmatpush.bf16.msra.mxu0 %v4063
    %4127 = vmatpush.bf16.msra.mxu0 %v4059
    %4128 = vmatpush.bf16.msra.mxu0 %v4055
    %4129 = vmatpush.bf16.msra.mxu0 %v4051
    %4130 = vmatpush.bf16.msra.mxu0 %v4047
    %4131 = vmatmul.bf16.gmra.mxu0 %v3882
    %v4132 = vpop.f32.mrf.mxu0
    %v4133 = vadd.f32 0.0, %v4132
    %v4134 = vpop.f32.mrf.mxu0
    %4135 = vdwg.mxu0
    %4136 = vmatpush.bf16.msra.mxu0 %v4076
    %4137 = vmatpush.bf16.msra.mxu0 %v4072
    %4138 = vmatpush.bf16.msra.mxu0 %v4068
    %4139 = vmatpush.bf16.msra.mxu0 %v4064
    %4140 = vmatpush.bf16.msra.mxu0 %v4060
    %4141 = vmatpush.bf16.msra.mxu0 %v4056
    %4142 = vmatpush.bf16.msra.mxu0 %v4052
    %4143 = vmatpush.bf16.msra.mxu0 %v4048
    %4144 = vmatmul.bf16.gmra.mxu0 %v3882
    %v4145 = vpop.f32.mrf.mxu0
    %v4146 = vadd.f32 0.0, %v4145
    %v4147 = vpop.f32.mrf.mxu0
    %4148 = vdwg.mxu0
    %4149 = vmatpush.bf16.msra.mxu0 %v4077
    %4150 = vmatpush.bf16.msra.mxu0 %v4073
    %4151 = vmatpush.bf16.msra.mxu0 %v4069
    %4152 = vmatpush.bf16.msra.mxu0 %v4065
    %4153 = vmatpush.bf16.msra.mxu0 %v4061
    %4154 = vmatpush.bf16.msra.mxu0 %v4057
    %4155 = vmatpush.bf16.msra.mxu0 %v4053
    %4156 = vmatpush.bf16.msra.mxu0 %v4049
    %4157 = vmatmul.bf16.gmra.mxu0 %v3882
    %v4158 = vpop.f32.mrf.mxu0
    %v4159 = vadd.f32 0.0, %v4158
    %v4160 = vpop.f32.mrf.mxu0
    %4161 = vdwg.mxu0
    %v4194 = vunpack.c.l.b16 %v3886
    %v4195 = vunpack.c.h.b16 %v3886
    %v4196 = vunpack.c.l.b16 %v3887
    %v4197 = vunpack.c.h.b16 %v3887
    %v4198 = vunpack.c.l.b16 %v3888
    %v4199 = vunpack.c.h.b16 %v3888
    %v4200 = vunpack.c.l.b16 %v3889
    %v4201 = vunpack.c.h.b16 %v3889
    %v4202 = vunpack.c.l.b16 %v3890
    %v4203 = vunpack.c.h.b16 %v3890
    %v4204 = vunpack.c.l.b16 %v3891
    %v4205 = vunpack.c.h.b16 %v3891
    %v4206 = vunpack.c.l.b16 %v3892
    %v4207 = vunpack.c.h.b16 %v3892
    %v4208 = vunpack.c.l.b16 %v3893
    %v4209 = vunpack.c.h.b16 %v3893
    %v4210 = vunpack.c.l.b16 %v3894
    %v4211 = vunpack.c.h.b16 %v3894
    %v4212 = vunpack.c.l.b16 %v3895
    %v4213 = vunpack.c.h.b16 %v3895
    %v4214 = vunpack.c.l.b16 %v3896
    %v4215 = vunpack.c.h.b16 %v3896
    %v4216 = vunpack.c.l.b16 %v3897
    %v4217 = vunpack.c.h.b16 %v3897
    %v4218 = vunpack.c.l.b16 %v3898
    %v4219 = vunpack.c.h.b16 %v3898
    %v4220 = vunpack.c.l.b16 %v3899
    %v4221 = vunpack.c.h.b16 %v3899
    %v4222 = vunpack.c.l.b16 %v3900
    %v4223 = vunpack.c.h.b16 %v3900
    %v4224 = vunpack.c.l.b16 %v3901
    %v4225 = vunpack.c.h.b16 %v3901
    %v4226 = vunpack.c.l.b16 %v3902
    %v4227 = vunpack.c.h.b16 %v3902
    %v4228 = vunpack.c.l.b16 %v3903
    %v4229 = vunpack.c.h.b16 %v3903
    %v4230 = vunpack.c.l.b16 %v3904
    %v4231 = vunpack.c.h.b16 %v3904
    %v4232 = vunpack.c.l.b16 %v3905
    %v4233 = vunpack.c.h.b16 %v3905
    %v4234 = vunpack.c.l.b16 %v3906
    %v4235 = vunpack.c.h.b16 %v3906
    %v4236 = vunpack.c.l.b16 %v3907
    %v4237 = vunpack.c.h.b16 %v3907
    %v4238 = vunpack.c.l.b16 %v3908
    %v4239 = vunpack.c.h.b16 %v3908
    %v4240 = vunpack.c.l.b16 %v3909
    %v4241 = vunpack.c.h.b16 %v3909
    %v4242 = vunpack.c.l.b16 %v3910
    %v4243 = vunpack.c.h.b16 %v3910
    %v4244 = vunpack.c.l.b16 %v3911
    %v4245 = vunpack.c.h.b16 %v3911
    %v4246 = vunpack.c.l.b16 %v3912
    %v4247 = vunpack.c.h.b16 %v3912
    %v4248 = vunpack.c.l.b16 %v3913
    %v4249 = vunpack.c.h.b16 %v3913
    %v4250 = vunpack.c.l.b16 %v3914
    %v4251 = vunpack.c.h.b16 %v3914
    %v4252 = vunpack.c.l.b16 %v3915
    %v4253 = vunpack.c.h.b16 %v3915
    %v4254 = vunpack.c.l.b16 %v3916
    %v4255 = vunpack.c.h.b16 %v3916
    %v4256 = vunpack.c.l.b16 %v3917
    %v4257 = vunpack.c.h.b16 %v3917
    %v4258 = vpack.c.b16 %v4198, %v4194
    %v4259 = vpack.c.b16 %v4199, %v4195
    %v4260 = vpack.c.b16 %v4200, %v4196
    %v4261 = vpack.c.b16 %v4201, %v4197
    %v4262 = vpack.c.b16 %v4206, %v4202
    %v4263 = vpack.c.b16 %v4207, %v4203
    %v4264 = vpack.c.b16 %v4208, %v4204
    %v4265 = vpack.c.b16 %v4209, %v4205
    %v4266 = vpack.c.b16 %v4214, %v4210
    %v4267 = vpack.c.b16 %v4215, %v4211
    %v4268 = vpack.c.b16 %v4216, %v4212
    %v4269 = vpack.c.b16 %v4217, %v4213
    %v4270 = vpack.c.b16 %v4222, %v4218
    %v4271 = vpack.c.b16 %v4223, %v4219
    %v4272 = vpack.c.b16 %v4224, %v4220
    %v4273 = vpack.c.b16 %v4225, %v4221
    %v4274 = vpack.c.b16 %v4230, %v4226
    %v4275 = vpack.c.b16 %v4231, %v4227
    %v4276 = vpack.c.b16 %v4232, %v4228
    %v4277 = vpack.c.b16 %v4233, %v4229
    %v4278 = vpack.c.b16 %v4238, %v4234
    %v4279 = vpack.c.b16 %v4239, %v4235
    %v4280 = vpack.c.b16 %v4240, %v4236
    %v4281 = vpack.c.b16 %v4241, %v4237
    %v4282 = vpack.c.b16 %v4246, %v4242
    %v4283 = vpack.c.b16 %v4247, %v4243
    %v4284 = vpack.c.b16 %v4248, %v4244
    %v4285 = vpack.c.b16 %v4249, %v4245
    %v4286 = vpack.c.b16 %v4254, %v4250
    %v4287 = vpack.c.b16 %v4255, %v4251
    %v4288 = vpack.c.b16 %v4256, %v4252
    %v4289 = vpack.c.b16 %v4257, %v4253
    %4322 = vmatpush.bf16.msra.mxu0 %v4286
    %4323 = vmatpush.bf16.msra.mxu0 %v4282
    %4324 = vmatpush.bf16.msra.mxu0 %v4278
    %4325 = vmatpush.bf16.msra.mxu0 %v4274
    %4326 = vmatpush.bf16.msra.mxu0 %v4270
    %4327 = vmatpush.bf16.msra.mxu0 %v4266
    %4328 = vmatpush.bf16.msra.mxu0 %v4262
    %4329 = vmatpush.bf16.msra.mxu0 %v4258
    %4330 = vmatmul.bf16.gmra.mxu0 %v3885
    %v4331 = vpop.f32.mrf.mxu0
    %v4332 = vadd.f32 %v4120, %v4331
    %v4333 = vpop.f32.mrf.mxu0
    %4334 = vdwg.mxu0
    %4335 = vmatpush.bf16.msra.mxu0 %v4287
    %4336 = vmatpush.bf16.msra.mxu0 %v4283
    %4337 = vmatpush.bf16.msra.mxu0 %v4279
    %4338 = vmatpush.bf16.msra.mxu0 %v4275
    %4339 = vmatpush.bf16.msra.mxu0 %v4271
    %4340 = vmatpush.bf16.msra.mxu0 %v4267
    %4341 = vmatpush.bf16.msra.mxu0 %v4263
    %4342 = vmatpush.bf16.msra.mxu0 %v4259
    %4343 = vmatmul.bf16.gmra.mxu0 %v3885
    %v4344 = vpop.f32.mrf.mxu0
    %v4345 = vadd.f32 %v4133, %v4344
    %v4346 = vpop.f32.mrf.mxu0
    %4347 = vdwg.mxu0
    %4348 = vmatpush.bf16.msra.mxu0 %v4288
    %4349 = vmatpush.bf16.msra.mxu0 %v4284
    %4350 = vmatpush.bf16.msra.mxu0 %v4280
    %4351 = vmatpush.bf16.msra.mxu0 %v4276
    %4352 = vmatpush.bf16.msra.mxu0 %v4272
    %4353 = vmatpush.bf16.msra.mxu0 %v4268
    %4354 = vmatpush.bf16.msra.mxu0 %v4264
    %4355 = vmatpush.bf16.msra.mxu0 %v4260
    %4356 = vmatmul.bf16.gmra.mxu0 %v3885
    %v4357 = vpop.f32.mrf.mxu0
    %v4358 = vadd.f32 %v4146, %v4357
    %v4359 = vpop.f32.mrf.mxu0
    %4360 = vdwg.mxu0
    %4361 = vmatpush.bf16.msra.mxu0 %v4289
    %4362 = vmatpush.bf16.msra.mxu0 %v4285
    %4363 = vmatpush.bf16.msra.mxu0 %v4281
    %4364 = vmatpush.bf16.msra.mxu0 %v4277
    %4365 = vmatpush.bf16.msra.mxu0 %v4273
    %4366 = vmatpush.bf16.msra.mxu0 %v4269
    %4367 = vmatpush.bf16.msra.mxu0 %v4265
    %4368 = vmatpush.bf16.msra.mxu0 %v4261
    %4369 = vmatmul.bf16.gmra.mxu0 %v3885
    %v4370 = vpop.f32.mrf.mxu0
    %v4371 = vadd.f32 %v4159, %v4370
    %v4372 = vpop.f32.mrf.mxu0
    %4373 = vdwg.mxu0
    %v4374 = vmul.f32 %v4332, 0.5
    %v4375 = vtanh.pop %v4374
    %v4376 = vmul.f32 %v4375, 0.5
    %v4377 = vadd.f32 %v4376, 0.5
    %v4378 = vmul.f32 %v4345, 0.5
    %v4379 = vtanh.pop %v4378
    %v4380 = vmul.f32 %v4379, 0.5
    %v4381 = vadd.f32 %v4380, 0.5
    %v4382 = vtanh.pop %v4358
    %v4383 = vmul.f32 %v4371, 0.5
    %v4384 = vtanh.pop %v4383
    %v4385 = vmul.f32 %v4384, 0.5
    %v4386 = vadd.f32 %v4385, 0.5
    %v4387 = vmul.f32 %v4381, %v3884
    %v4388 = vmul.f32 %v4377, %v4382
    %v4389 = vadd.f32 %v4387, %v4388
    %v4390 = vtanh.pop %v4389
    %v4391 = vmul.f32 %v4386, %v4390
    %4392 = vst [vmem:[%s739] sm:$0xff] %v4389
    %4393 = vst [vmem:[%s737] sm:$0xff] %v4391
    %s4394 = scalar_lea.vmem [#allocation11], 32
    %4395 = vst [vmem:[%s4394] sm:$0xff] %v4391
    %v4396 = vld [vmem:[#allocation12] sm:$0xff]
    %v4397 = vld [vmem:[#allocation14] sm:$0xff]
    %v4398 = vpack.c.bf16 %v4396, %v4396
    %v4399 = vld [vmem:[#allocation8] sm:$0xff]
    %v4400 = vld [vmem:[#allocation8 + $0x8] sm:$0xff]
    %v4401 = vld [vmem:[#allocation8 + $0x10] sm:$0xff]
    %v4402 = vld [vmem:[#allocation8 + $0x18] sm:$0xff]
    %v4403 = vld [vmem:[#allocation8 + $0x20] sm:$0xff]
    %v4404 = vld [vmem:[#allocation8 + $0x28] sm:$0xff]
    %v4405 = vld [vmem:[#allocation8 + $0x30] sm:$0xff]
    %v4406 = vld [vmem:[#allocation8 + $0x38] sm:$0xff]
    %v4407 = vld [vmem:[#allocation8 + $0x40] sm:$0xff]
    %v4408 = vld [vmem:[#allocation8 + $0x48] sm:$0xff]
    %v4409 = vld [vmem:[#allocation8 + $0x50] sm:$0xff]
    %v4410 = vld [vmem:[#allocation8 + $0x58] sm:$0xff]
    %v4411 = vld [vmem:[#allocation8 + $0x60] sm:$0xff]
    %v4412 = vld [vmem:[#allocation8 + $0x68] sm:$0xff]
    %v4413 = vld [vmem:[#allocation8 + $0x70] sm:$0xff]
    %v4414 = vld [vmem:[#allocation8 + $0x78] sm:$0xff]
    %v4415 = vld [vmem:[#allocation8 + $0x80] sm:$0xff]
    %v4416 = vld [vmem:[#allocation8 + $0x88] sm:$0xff]
    %v4417 = vld [vmem:[#allocation8 + $0x90] sm:$0xff]
    %v4418 = vld [vmem:[#allocation8 + $0x98] sm:$0xff]
    %v4419 = vld [vmem:[#allocation8 + $0xa0] sm:$0xff]
    %v4420 = vld [vmem:[#allocation8 + $0xa8] sm:$0xff]
    %v4421 = vld [vmem:[#allocation8 + $0xb0] sm:$0xff]
    %v4422 = vld [vmem:[#allocation8 + $0xb8] sm:$0xff]
    %v4423 = vld [vmem:[#allocation8 + $0xc0] sm:$0xff]
    %v4424 = vld [vmem:[#allocation8 + $0xc8] sm:$0xff]
    %v4425 = vld [vmem:[#allocation8 + $0xd0] sm:$0xff]
    %v4426 = vld [vmem:[#allocation8 + $0xd8] sm:$0xff]
    %v4427 = vld [vmem:[#allocation8 + $0xe0] sm:$0xff]
    %v4428 = vld [vmem:[#allocation8 + $0xe8] sm:$0xff]
    %v4429 = vld [vmem:[#allocation8 + $0xf0] sm:$0xff]
    %v4430 = vld [vmem:[#allocation8 + $0xf8] sm:$0xff]
    %s4431 = scalar_lea.vmem [#allocation2], 160
    %v4432 = vld [vmem:[%s4431] sm:$0xff]
    %v4433 = vld [vmem:[%s4431 + $0x8] sm:$0xff]
    %v4434 = vld [vmem:[%s4431 + $0x10] sm:$0xff]
    %v4435 = vld [vmem:[%s4431 + $0x18] sm:$0xff]
    %v4468 = vunpack.c.l.b16 %v4399
    %v4469 = vunpack.c.h.b16 %v4399
    %v4470 = vunpack.c.l.b16 %v4400
    %v4471 = vunpack.c.h.b16 %v4400
    %v4472 = vunpack.c.l.b16 %v4401
    %v4473 = vunpack.c.h.b16 %v4401
    %v4474 = vunpack.c.l.b16 %v4402
    %v4475 = vunpack.c.h.b16 %v4402
    %v4476 = vunpack.c.l.b16 %v4403
    %v4477 = vunpack.c.h.b16 %v4403
    %v4478 = vunpack.c.l.b16 %v4404
    %v4479 = vunpack.c.h.b16 %v4404
    %v4480 = vunpack.c.l.b16 %v4405
    %v4481 = vunpack.c.h.b16 %v4405
    %v4482 = vunpack.c.l.b16 %v4406
    %v4483 = vunpack.c.h.b16 %v4406
    %v4484 = vunpack.c.l.b16 %v4407
    %v4485 = vunpack.c.h.b16 %v4407
    %v4486 = vunpack.c.l.b16 %v4408
    %v4487 = vunpack.c.h.b16 %v4408
    %v4488 = vunpack.c.l.b16 %v4409
    %v4489 = vunpack.c.h.b16 %v4409
    %v4490 = vunpack.c.l.b16 %v4410
    %v4491 = vunpack.c.h.b16 %v4410
    %v4492 = vunpack.c.l.b16 %v4411
    %v4493 = vunpack.c.h.b16 %v4411
    %v4494 = vunpack.c.l.b16 %v4412
    %v4495 = vunpack.c.h.b16 %v4412
    %v4496 = vunpack.c.l.b16 %v4413
    %v4497 = vunpack.c.h.b16 %v4413
    %v4498 = vunpack.c.l.b16 %v4414
    %v4499 = vunpack.c.h.b16 %v4414
    %v4500 = vunpack.c.l.b16 %v4415
    %v4501 = vunpack.c.h.b16 %v4415
    %v4502 = vunpack.c.l.b16 %v4416
    %v4503 = vunpack.c.h.b16 %v4416
    %v4504 = vunpack.c.l.b16 %v4417
    %v4505 = vunpack.c.h.b16 %v4417
    %v4506 = vunpack.c.l.b16 %v4418
    %v4507 = vunpack.c.h.b16 %v4418
    %v4508 = vunpack.c.l.b16 %v4419
    %v4509 = vunpack.c.h.b16 %v4419
    %v4510 = vunpack.c.l.b16 %v4420
    %v4511 = vunpack.c.h.b16 %v4420
    %v4512 = vunpack.c.l.b16 %v4421
    %v4513 = vunpack.c.h.b16 %v4421
    %v4514 = vunpack.c.l.b16 %v4422
    %v4515 = vunpack.c.h.b16 %v4422
    %v4516 = vunpack.c.l.b16 %v4423
    %v4517 = vunpack.c.h.b16 %v4423
    %v4518 = vunpack.c.l.b16 %v4424
    %v4519 = vunpack.c.h.b16 %v4424
    %v4520 = vunpack.c.l.b16 %v4425
    %v4521 = vunpack.c.h.b16 %v4425
    %v4522 = vunpack.c.l.b16 %v4426
    %v4523 = vunpack.c.h.b16 %v4426
    %v4524 = vunpack.c.l.b16 %v4427
    %v4525 = vunpack.c.h.b16 %v4427
    %v4526 = vunpack.c.l.b16 %v4428
    %v4527 = vunpack.c.h.b16 %v4428
    %v4528 = vunpack.c.l.b16 %v4429
    %v4529 = vunpack.c.h.b16 %v4429
    %v4530 = vunpack.c.l.b16 %v4430
    %v4531 = vunpack.c.h.b16 %v4430
    %v4532 = vpack.c.b16 %v4472, %v4468
    %v4533 = vpack.c.b16 %v4473, %v4469
    %v4534 = vpack.c.b16 %v4474, %v4470
    %v4535 = vpack.c.b16 %v4475, %v4471
    %v4536 = vpack.c.b16 %v4480, %v4476
    %v4537 = vpack.c.b16 %v4481, %v4477
    %v4538 = vpack.c.b16 %v4482, %v4478
    %v4539 = vpack.c.b16 %v4483, %v4479
    %v4540 = vpack.c.b16 %v4488, %v4484
    %v4541 = vpack.c.b16 %v4489, %v4485
    %v4542 = vpack.c.b16 %v4490, %v4486
    %v4543 = vpack.c.b16 %v4491, %v4487
    %v4544 = vpack.c.b16 %v4496, %v4492
    %v4545 = vpack.c.b16 %v4497, %v4493
    %v4546 = vpack.c.b16 %v4498, %v4494
    %v4547 = vpack.c.b16 %v4499, %v4495
    %v4548 = vpack.c.b16 %v4504, %v4500
    %v4549 = vpack.c.b16 %v4505, %v4501
    %v4550 = vpack.c.b16 %v4506, %v4502
    %v4551 = vpack.c.b16 %v4507, %v4503
    %v4552 = vpack.c.b16 %v4512, %v4508
    %v4553 = vpack.c.b16 %v4513, %v4509
    %v4554 = vpack.c.b16 %v4514, %v4510
    %v4555 = vpack.c.b16 %v4515, %v4511
    %v4556 = vpack.c.b16 %v4520, %v4516
    %v4557 = vpack.c.b16 %v4521, %v4517
    %v4558 = vpack.c.b16 %v4522, %v4518
    %v4559 = vpack.c.b16 %v4523, %v4519
    %v4560 = vpack.c.b16 %v4528, %v4524
    %v4561 = vpack.c.b16 %v4529, %v4525
    %v4562 = vpack.c.b16 %v4530, %v4526
    %v4563 = vpack.c.b16 %v4531, %v4527
    %4596 = vmatpush.bf16.msra.mxu0 %v4560
    %4597 = vmatpush.bf16.msra.mxu0 %v4556
    %4598 = vmatpush.bf16.msra.mxu0 %v4552
    %4599 = vmatpush.bf16.msra.mxu0 %v4548
    %4600 = vmatpush.bf16.msra.mxu0 %v4544
    %4601 = vmatpush.bf16.msra.mxu0 %v4540
    %4602 = vmatpush.bf16.msra.mxu0 %v4536
    %4603 = vmatpush.bf16.msra.mxu0 %v4532
    %4604 = vmatmul.bf16.gmra.mxu0 %v4398
    %v4605 = vpop.f32.mrf.mxu0
    %v4606 = vadd.f32 %v4432, %v4605
    %v4607 = vpop.f32.mrf.mxu0
    %4608 = vdwg.mxu0
    %4609 = vmatpush.bf16.msra.mxu0 %v4561
    %4610 = vmatpush.bf16.msra.mxu0 %v4557
    %4611 = vmatpush.bf16.msra.mxu0 %v4553
    %4612 = vmatpush.bf16.msra.mxu0 %v4549
    %4613 = vmatpush.bf16.msra.mxu0 %v4545
    %4614 = vmatpush.bf16.msra.mxu0 %v4541
    %4615 = vmatpush.bf16.msra.mxu0 %v4537
    %4616 = vmatpush.bf16.msra.mxu0 %v4533
    %4617 = vmatmul.bf16.gmra.mxu0 %v4398
    %v4618 = vpop.f32.mrf.mxu0
    %v4619 = vadd.f32 %v4433, %v4618
    %v4620 = vpop.f32.mrf.mxu0
    %4621 = vdwg.mxu0
    %4622 = vmatpush.bf16.msra.mxu0 %v4562
    %4623 = vmatpush.bf16.msra.mxu0 %v4558
    %4624 = vmatpush.bf16.msra.mxu0 %v4554
    %4625 = vmatpush.bf16.msra.mxu0 %v4550
    %4626 = vmatpush.bf16.msra.mxu0 %v4546
    %4627 = vmatpush.bf16.msra.mxu0 %v4542
    %4628 = vmatpush.bf16.msra.mxu0 %v4538
    %4629 = vmatpush.bf16.msra.mxu0 %v4534
    %4630 = vmatmul.bf16.gmra.mxu0 %v4398
    %v4631 = vpop.f32.mrf.mxu0
    %v4632 = vadd.f32 %v4434, %v4631
    %v4633 = vpop.f32.mrf.mxu0
    %4634 = vdwg.mxu0
    %4635 = vmatpush.bf16.msra.mxu0 %v4563
    %4636 = vmatpush.bf16.msra.mxu0 %v4559
    %4637 = vmatpush.bf16.msra.mxu0 %v4555
    %4638 = vmatpush.bf16.msra.mxu0 %v4551
    %4639 = vmatpush.bf16.msra.mxu0 %v4547
    %4640 = vmatpush.bf16.msra.mxu0 %v4543
    %4641 = vmatpush.bf16.msra.mxu0 %v4539
    %4642 = vmatpush.bf16.msra.mxu0 %v4535
    %4643 = vmatmul.bf16.gmra.mxu0 %v4398
    %v4644 = vpop.f32.mrf.mxu0
    %v4645 = vadd.f32 %v4435, %v4644
    %v4646 = vpop.f32.mrf.mxu0
    %4647 = vdwg.mxu0
    %v4648 = vmul.f32 %v4606, 0.5
    %v4649 = vtanh.pop %v4648
    %v4650 = vmul.f32 %v4649, 0.5
    %v4651 = vadd.f32 %v4650, 0.5
    %v4652 = vmul.f32 %v4619, 0.5
    %v4653 = vtanh.pop %v4652
    %v4654 = vmul.f32 %v4653, 0.5
    %v4655 = vadd.f32 %v4654, 0.5
    %v4656 = vtanh.pop %v4632
    %v4657 = vmul.f32 %v4645, 0.5
    %v4658 = vtanh.pop %v4657
    %v4659 = vmul.f32 %v4658, 0.5
    %v4660 = vadd.f32 %v4659, 0.5
    %v4661 = vmul.f32 %v4655, %v4397
    %v4662 = vmul.f32 %v4651, %v4656
    %v4663 = vadd.f32 %v4661, %v4662
    %v4664 = vtanh.pop %v4663
    %v4665 = vmul.f32 %v4660, %v4664
    %4666 = vst [vmem:[#allocation14] sm:$0xff] %v4663
    %4667 = vst [vmem:[#allocation12] sm:$0xff] %v4665
    %v4668 = vpack.c.bf16 %v4665, %v4665
    %v4669 = vld [vmem:[%s737] sm:$0xff]
    %v4670 = vld [vmem:[%s739] sm:$0xff]
    %v4671 = vpack.c.bf16 %v4669, %v4669
    %v4672 = vld [vmem:[%s742] sm:$0xff]
    %v4673 = vld [vmem:[%s742 + $0x8] sm:$0xff]
    %v4674 = vld [vmem:[%s742 + $0x10] sm:$0xff]
    %v4675 = vld [vmem:[%s742 + $0x18] sm:$0xff]
    %v4676 = vld [vmem:[%s742 + $0x20] sm:$0xff]
    %v4677 = vld [vmem:[%s742 + $0x28] sm:$0xff]
    %v4678 = vld [vmem:[%s742 + $0x30] sm:$0xff]
    %v4679 = vld [vmem:[%s742 + $0x38] sm:$0xff]
    %v4680 = vld [vmem:[%s742 + $0x40] sm:$0xff]
    %v4681 = vld [vmem:[%s742 + $0x48] sm:$0xff]
    %v4682 = vld [vmem:[%s742 + $0x50] sm:$0xff]
    %v4683 = vld [vmem:[%s742 + $0x58] sm:$0xff]
    %v4684 = vld [vmem:[%s742 + $0x60] sm:$0xff]
    %v4685 = vld [vmem:[%s742 + $0x68] sm:$0xff]
    %v4686 = vld [vmem:[%s742 + $0x70] sm:$0xff]
    %v4687 = vld [vmem:[%s742 + $0x78] sm:$0xff]
    %v4688 = vld [vmem:[%s742 + $0x80] sm:$0xff]
    %v4689 = vld [vmem:[%s742 + $0x88] sm:$0xff]
    %v4690 = vld [vmem:[%s742 + $0x90] sm:$0xff]
    %v4691 = vld [vmem:[%s742 + $0x98] sm:$0xff]
    %v4692 = vld [vmem:[%s742 + $0xa0] sm:$0xff]
    %v4693 = vld [vmem:[%s742 + $0xa8] sm:$0xff]
    %v4694 = vld [vmem:[%s742 + $0xb0] sm:$0xff]
    %v4695 = vld [vmem:[%s742 + $0xb8] sm:$0xff]
    %v4696 = vld [vmem:[%s742 + $0xc0] sm:$0xff]
    %v4697 = vld [vmem:[%s742 + $0xc8] sm:$0xff]
    %v4698 = vld [vmem:[%s742 + $0xd0] sm:$0xff]
    %v4699 = vld [vmem:[%s742 + $0xd8] sm:$0xff]
    %v4700 = vld [vmem:[%s742 + $0xe0] sm:$0xff]
    %v4701 = vld [vmem:[%s742 + $0xe8] sm:$0xff]
    %v4702 = vld [vmem:[%s742 + $0xf0] sm:$0xff]
    %v4703 = vld [vmem:[%s742 + $0xf8] sm:$0xff]
    %v4704 = vld [vmem:[#allocation9] sm:$0xff]
    %v4705 = vld [vmem:[#allocation9 + $0x8] sm:$0xff]
    %v4706 = vld [vmem:[#allocation9 + $0x10] sm:$0xff]
    %v4707 = vld [vmem:[#allocation9 + $0x18] sm:$0xff]
    %v4708 = vld [vmem:[#allocation9 + $0x20] sm:$0xff]
    %v4709 = vld [vmem:[#allocation9 + $0x28] sm:$0xff]
    %v4710 = vld [vmem:[#allocation9 + $0x30] sm:$0xff]
    %v4711 = vld [vmem:[#allocation9 + $0x38] sm:$0xff]
    %v4712 = vld [vmem:[#allocation9 + $0x40] sm:$0xff]
    %v4713 = vld [vmem:[#allocation9 + $0x48] sm:$0xff]
    %v4714 = vld [vmem:[#allocation9 + $0x50] sm:$0xff]
    %v4715 = vld [vmem:[#allocation9 + $0x58] sm:$0xff]
    %v4716 = vld [vmem:[#allocation9 + $0x60] sm:$0xff]
    %v4717 = vld [vmem:[#allocation9 + $0x68] sm:$0xff]
    %v4718 = vld [vmem:[#allocation9 + $0x70] sm:$0xff]
    %v4719 = vld [vmem:[#allocation9 + $0x78] sm:$0xff]
    %v4720 = vld [vmem:[#allocation9 + $0x80] sm:$0xff]
    %v4721 = vld [vmem:[#allocation9 + $0x88] sm:$0xff]
    %v4722 = vld [vmem:[#allocation9 + $0x90] sm:$0xff]
    %v4723 = vld [vmem:[#allocation9 + $0x98] sm:$0xff]
    %v4724 = vld [vmem:[#allocation9 + $0xa0] sm:$0xff]
    %v4725 = vld [vmem:[#allocation9 + $0xa8] sm:$0xff]
    %v4726 = vld [vmem:[#allocation9 + $0xb0] sm:$0xff]
    %v4727 = vld [vmem:[#allocation9 + $0xb8] sm:$0xff]
    %v4728 = vld [vmem:[#allocation9 + $0xc0] sm:$0xff]
    %v4729 = vld [vmem:[#allocation9 + $0xc8] sm:$0xff]
    %v4730 = vld [vmem:[#allocation9 + $0xd0] sm:$0xff]
    %v4731 = vld [vmem:[#allocation9 + $0xd8] sm:$0xff]
    %v4732 = vld [vmem:[#allocation9 + $0xe0] sm:$0xff]
    %v4733 = vld [vmem:[#allocation9 + $0xe8] sm:$0xff]
    %v4734 = vld [vmem:[#allocation9 + $0xf0] sm:$0xff]
    %v4735 = vld [vmem:[#allocation9 + $0xf8] sm:$0xff]
    %v4768 = vunpack.c.l.b16 %v4704
    %v4769 = vunpack.c.h.b16 %v4704
    %v4770 = vunpack.c.l.b16 %v4705
    %v4771 = vunpack.c.h.b16 %v4705
    %v4772 = vunpack.c.l.b16 %v4706
    %v4773 = vunpack.c.h.b16 %v4706
    %v4774 = vunpack.c.l.b16 %v4707
    %v4775 = vunpack.c.h.b16 %v4707
    %v4776 = vunpack.c.l.b16 %v4708
    %v4777 = vunpack.c.h.b16 %v4708
    %v4778 = vunpack.c.l.b16 %v4709
    %v4779 = vunpack.c.h.b16 %v4709
    %v4780 = vunpack.c.l.b16 %v4710
    %v4781 = vunpack.c.h.b16 %v4710
    %v4782 = vunpack.c.l.b16 %v4711
    %v4783 = vunpack.c.h.b16 %v4711
    %v4784 = vunpack.c.l.b16 %v4712
    %v4785 = vunpack.c.h.b16 %v4712
    %v4786 = vunpack.c.l.b16 %v4713
    %v4787 = vunpack.c.h.b16 %v4713
    %v4788 = vunpack.c.l.b16 %v4714
    %v4789 = vunpack.c.h.b16 %v4714
    %v4790 = vunpack.c.l.b16 %v4715
    %v4791 = vunpack.c.h.b16 %v4715
    %v4792 = vunpack.c.l.b16 %v4716
    %v4793 = vunpack.c.h.b16 %v4716
    %v4794 = vunpack.c.l.b16 %v4717
    %v4795 = vunpack.c.h.b16 %v4717
    %v4796 = vunpack.c.l.b16 %v4718
    %v4797 = vunpack.c.h.b16 %v4718
    %v4798 = vunpack.c.l.b16 %v4719
    %v4799 = vunpack.c.h.b16 %v4719
    %v4800 = vunpack.c.l.b16 %v4720
    %v4801 = vunpack.c.h.b16 %v4720
    %v4802 = vunpack.c.l.b16 %v4721
    %v4803 = vunpack.c.h.b16 %v4721
    %v4804 = vunpack.c.l.b16 %v4722
    %v4805 = vunpack.c.h.b16 %v4722
    %v4806 = vunpack.c.l.b16 %v4723
    %v4807 = vunpack.c.h.b16 %v4723
    %v4808 = vunpack.c.l.b16 %v4724
    %v4809 = vunpack.c.h.b16 %v4724
    %v4810 = vunpack.c.l.b16 %v4725
    %v4811 = vunpack.c.h.b16 %v4725
    %v4812 = vunpack.c.l.b16 %v4726
    %v4813 = vunpack.c.h.b16 %v4726
    %v4814 = vunpack.c.l.b16 %v4727
    %v4815 = vunpack.c.h.b16 %v4727
    %v4816 = vunpack.c.l.b16 %v4728
    %v4817 = vunpack.c.h.b16 %v4728
    %v4818 = vunpack.c.l.b16 %v4729
    %v4819 = vunpack.c.h.b16 %v4729
    %v4820 = vunpack.c.l.b16 %v4730
    %v4821 = vunpack.c.h.b16 %v4730
    %v4822 = vunpack.c.l.b16 %v4731
    %v4823 = vunpack.c.h.b16 %v4731
    %v4824 = vunpack.c.l.b16 %v4732
    %v4825 = vunpack.c.h.b16 %v4732
    %v4826 = vunpack.c.l.b16 %v4733
    %v4827 = vunpack.c.h.b16 %v4733
    %v4828 = vunpack.c.l.b16 %v4734
    %v4829 = vunpack.c.h.b16 %v4734
    %v4830 = vunpack.c.l.b16 %v4735
    %v4831 = vunpack.c.h.b16 %v4735
    %v4832 = vpack.c.b16 %v4772, %v4768
    %v4833 = vpack.c.b16 %v4773, %v4769
    %v4834 = vpack.c.b16 %v4774, %v4770
    %v4835 = vpack.c.b16 %v4775, %v4771
    %v4836 = vpack.c.b16 %v4780, %v4776
    %v4837 = vpack.c.b16 %v4781, %v4777
    %v4838 = vpack.c.b16 %v4782, %v4778
    %v4839 = vpack.c.b16 %v4783, %v4779
    %v4840 = vpack.c.b16 %v4788, %v4784
    %v4841 = vpack.c.b16 %v4789, %v4785
    %v4842 = vpack.c.b16 %v4790, %v4786
    %v4843 = vpack.c.b16 %v4791, %v4787
    %v4844 = vpack.c.b16 %v4796, %v4792
    %v4845 = vpack.c.b16 %v4797, %v4793
    %v4846 = vpack.c.b16 %v4798, %v4794
    %v4847 = vpack.c.b16 %v4799, %v4795
    %v4848 = vpack.c.b16 %v4804, %v4800
    %v4849 = vpack.c.b16 %v4805, %v4801
    %v4850 = vpack.c.b16 %v4806, %v4802
    %v4851 = vpack.c.b16 %v4807, %v4803
    %v4852 = vpack.c.b16 %v4812, %v4808
    %v4853 = vpack.c.b16 %v4813, %v4809
    %v4854 = vpack.c.b16 %v4814, %v4810
    %v4855 = vpack.c.b16 %v4815, %v4811
    %v4856 = vpack.c.b16 %v4820, %v4816
    %v4857 = vpack.c.b16 %v4821, %v4817
    %v4858 = vpack.c.b16 %v4822, %v4818
    %v4859 = vpack.c.b16 %v4823, %v4819
    %v4860 = vpack.c.b16 %v4828, %v4824
    %v4861 = vpack.c.b16 %v4829, %v4825
    %v4862 = vpack.c.b16 %v4830, %v4826
    %v4863 = vpack.c.b16 %v4831, %v4827
    %4896 = vmatpush.bf16.msra.mxu0 %v4860
    %4897 = vmatpush.bf16.msra.mxu0 %v4856
    %4898 = vmatpush.bf16.msra.mxu0 %v4852
    %4899 = vmatpush.bf16.msra.mxu0 %v4848
    %4900 = vmatpush.bf16.msra.mxu0 %v4844
    %4901 = vmatpush.bf16.msra.mxu0 %v4840
    %4902 = vmatpush.bf16.msra.mxu0 %v4836
    %4903 = vmatpush.bf16.msra.mxu0 %v4832
    %4904 = vmatmul.bf16.gmra.mxu0 %v4668
    %v4905 = vpop.f32.mrf.mxu0
    %v4906 = vadd.f32 0.0, %v4905
    %v4907 = vpop.f32.mrf.mxu0
    %4908 = vdwg.mxu0
    %4909 = vmatpush.bf16.msra.mxu0 %v4861
    %4910 = vmatpush.bf16.msra.mxu0 %v4857
    %4911 = vmatpush.bf16.msra.mxu0 %v4853
    %4912 = vmatpush.bf16.msra.mxu0 %v4849
    %4913 = vmatpush.bf16.msra.mxu0 %v4845
    %4914 = vmatpush.bf16.msra.mxu0 %v4841
    %4915 = vmatpush.bf16.msra.mxu0 %v4837
    %4916 = vmatpush.bf16.msra.mxu0 %v4833
    %4917 = vmatmul.bf16.gmra.mxu0 %v4668
    %v4918 = vpop.f32.mrf.mxu0
    %v4919 = vadd.f32 0.0, %v4918
    %v4920 = vpop.f32.mrf.mxu0
    %4921 = vdwg.mxu0
    %4922 = vmatpush.bf16.msra.mxu0 %v4862
    %4923 = vmatpush.bf16.msra.mxu0 %v4858
    %4924 = vmatpush.bf16.msra.mxu0 %v4854
    %4925 = vmatpush.bf16.msra.mxu0 %v4850
    %4926 = vmatpush.bf16.msra.mxu0 %v4846
    %4927 = vmatpush.bf16.msra.mxu0 %v4842
    %4928 = vmatpush.bf16.msra.mxu0 %v4838
    %4929 = vmatpush.bf16.msra.mxu0 %v4834
    %4930 = vmatmul.bf16.gmra.mxu0 %v4668
    %v4931 = vpop.f32.mrf.mxu0
    %v4932 = vadd.f32 0.0, %v4931
    %v4933 = vpop.f32.mrf.mxu0
    %4934 = vdwg.mxu0
    %4935 = vmatpush.bf16.msra.mxu0 %v4863
    %4936 = vmatpush.bf16.msra.mxu0 %v4859
    %4937 = vmatpush.bf16.msra.mxu0 %v4855
    %4938 = vmatpush.bf16.msra.mxu0 %v4851
    %4939 = vmatpush.bf16.msra.mxu0 %v4847
    %4940 = vmatpush.bf16.msra.mxu0 %v4843
    %4941 = vmatpush.bf16.msra.mxu0 %v4839
    %4942 = vmatpush.bf16.msra.mxu0 %v4835
    %4943 = vmatmul.bf16.gmra.mxu0 %v4668
    %v4944 = vpop.f32.mrf.mxu0
    %v4945 = vadd.f32 0.0, %v4944
    %v4946 = vpop.f32.mrf.mxu0
    %4947 = vdwg.mxu0
    %v4980 = vunpack.c.l.b16 %v4672
    %v4981 = vunpack.c.h.b16 %v4672
    %v4982 = vunpack.c.l.b16 %v4673
    %v4983 = vunpack.c.h.b16 %v4673
    %v4984 = vunpack.c.l.b16 %v4674
    %v4985 = vunpack.c.h.b16 %v4674
    %v4986 = vunpack.c.l.b16 %v4675
    %v4987 = vunpack.c.h.b16 %v4675
    %v4988 = vunpack.c.l.b16 %v4676
    %v4989 = vunpack.c.h.b16 %v4676
    %v4990 = vunpack.c.l.b16 %v4677
    %v4991 = vunpack.c.h.b16 %v4677
    %v4992 = vunpack.c.l.b16 %v4678
    %v4993 = vunpack.c.h.b16 %v4678
    %v4994 = vunpack.c.l.b16 %v4679
    %v4995 = vunpack.c.h.b16 %v4679
    %v4996 = vunpack.c.l.b16 %v4680
    %v4997 = vunpack.c.h.b16 %v4680
    %v4998 = vunpack.c.l.b16 %v4681
    %v4999 = vunpack.c.h.b16 %v4681
    %v5000 = vunpack.c.l.b16 %v4682
    %v5001 = vunpack.c.h.b16 %v4682
    %v5002 = vunpack.c.l.b16 %v4683
    %v5003 = vunpack.c.h.b16 %v4683
    %v5004 = vunpack.c.l.b16 %v4684
    %v5005 = vunpack.c.h.b16 %v4684
    %v5006 = vunpack.c.l.b16 %v4685
    %v5007 = vunpack.c.h.b16 %v4685
    %v5008 = vunpack.c.l.b16 %v4686
    %v5009 = vunpack.c.h.b16 %v4686
    %v5010 = vunpack.c.l.b16 %v4687
    %v5011 = vunpack.c.h.b16 %v4687
    %v5012 = vunpack.c.l.b16 %v4688
    %v5013 = vunpack.c.h.b16 %v4688
    %v5014 = vunpack.c.l.b16 %v4689
    %v5015 = vunpack.c.h.b16 %v4689
    %v5016 = vunpack.c.l.b16 %v4690
    %v5017 = vunpack.c.h.b16 %v4690
    %v5018 = vunpack.c.l.b16 %v4691
    %v5019 = vunpack.c.h.b16 %v4691
    %v5020 = vunpack.c.l.b16 %v4692
    %v5021 = vunpack.c.h.b16 %v4692
    %v5022 = vunpack.c.l.b16 %v4693
    %v5023 = vunpack.c.h.b16 %v4693
    %v5024 = vunpack.c.l.b16 %v4694
    %v5025 = vunpack.c.h.b16 %v4694
    %v5026 = vunpack.c.l.b16 %v4695
    %v5027 = vunpack.c.h.b16 %v4695
    %v5028 = vunpack.c.l.b16 %v4696
    %v5029 = vunpack.c.h.b16 %v4696
    %v5030 = vunpack.c.l.b16 %v4697
    %v5031 = vunpack.c.h.b16 %v4697
    %v5032 = vunpack.c.l.b16 %v4698
    %v5033 = vunpack.c.h.b16 %v4698
    %v5034 = vunpack.c.l.b16 %v4699
    %v5035 = vunpack.c.h.b16 %v4699
    %v5036 = vunpack.c.l.b16 %v4700
    %v5037 = vunpack.c.h.b16 %v4700
    %v5038 = vunpack.c.l.b16 %v4701
    %v5039 = vunpack.c.h.b16 %v4701
    %v5040 = vunpack.c.l.b16 %v4702
    %v5041 = vunpack.c.h.b16 %v4702
    %v5042 = vunpack.c.l.b16 %v4703
    %v5043 = vunpack.c.h.b16 %v4703
    %v5044 = vpack.c.b16 %v4984, %v4980
    %v5045 = vpack.c.b16 %v4985, %v4981
    %v5046 = vpack.c.b16 %v4986, %v4982
    %v5047 = vpack.c.b16 %v4987, %v4983
    %v5048 = vpack.c.b16 %v4992, %v4988
    %v5049 = vpack.c.b16 %v4993, %v4989
    %v5050 = vpack.c.b16 %v4994, %v4990
    %v5051 = vpack.c.b16 %v4995, %v4991
    %v5052 = vpack.c.b16 %v5000, %v4996
    %v5053 = vpack.c.b16 %v5001, %v4997
    %v5054 = vpack.c.b16 %v5002, %v4998
    %v5055 = vpack.c.b16 %v5003, %v4999
    %v5056 = vpack.c.b16 %v5008, %v5004
    %v5057 = vpack.c.b16 %v5009, %v5005
    %v5058 = vpack.c.b16 %v5010, %v5006
    %v5059 = vpack.c.b16 %v5011, %v5007
    %v5060 = vpack.c.b16 %v5016, %v5012
    %v5061 = vpack.c.b16 %v5017, %v5013
    %v5062 = vpack.c.b16 %v5018, %v5014
    %v5063 = vpack.c.b16 %v5019, %v5015
    %v5064 = vpack.c.b16 %v5024, %v5020
    %v5065 = vpack.c.b16 %v5025, %v5021
    %v5066 = vpack.c.b16 %v5026, %v5022
    %v5067 = vpack.c.b16 %v5027, %v5023
    %v5068 = vpack.c.b16 %v5032, %v5028
    %v5069 = vpack.c.b16 %v5033, %v5029
    %v5070 = vpack.c.b16 %v5034, %v5030
    %v5071 = vpack.c.b16 %v5035, %v5031
    %v5072 = vpack.c.b16 %v5040, %v5036
    %v5073 = vpack.c.b16 %v5041, %v5037
    %v5074 = vpack.c.b16 %v5042, %v5038
    %v5075 = vpack.c.b16 %v5043, %v5039
    %5108 = vmatpush.bf16.msra.mxu0 %v5072
    %5109 = vmatpush.bf16.msra.mxu0 %v5068
    %5110 = vmatpush.bf16.msra.mxu0 %v5064
    %5111 = vmatpush.bf16.msra.mxu0 %v5060
    %5112 = vmatpush.bf16.msra.mxu0 %v5056
    %5113 = vmatpush.bf16.msra.mxu0 %v5052
    %5114 = vmatpush.bf16.msra.mxu0 %v5048
    %5115 = vmatpush.bf16.msra.mxu0 %v5044
    %5116 = vmatmul.bf16.gmra.mxu0 %v4671
    %v5117 = vpop.f32.mrf.mxu0
    %v5118 = vadd.f32 %v4906, %v5117
    %v5119 = vpop.f32.mrf.mxu0
    %5120 = vdwg.mxu0
    %5121 = vmatpush.bf16.msra.mxu0 %v5073
    %5122 = vmatpush.bf16.msra.mxu0 %v5069
    %5123 = vmatpush.bf16.msra.mxu0 %v5065
    %5124 = vmatpush.bf16.msra.mxu0 %v5061
    %5125 = vmatpush.bf16.msra.mxu0 %v5057
    %5126 = vmatpush.bf16.msra.mxu0 %v5053
    %5127 = vmatpush.bf16.msra.mxu0 %v5049
    %5128 = vmatpush.bf16.msra.mxu0 %v5045
    %5129 = vmatmul.bf16.gmra.mxu0 %v4671
    %v5130 = vpop.f32.mrf.mxu0
    %v5131 = vadd.f32 %v4919, %v5130
    %v5132 = vpop.f32.mrf.mxu0
    %5133 = vdwg.mxu0
    %5134 = vmatpush.bf16.msra.mxu0 %v5074
    %5135 = vmatpush.bf16.msra.mxu0 %v5070
    %5136 = vmatpush.bf16.msra.mxu0 %v5066
    %5137 = vmatpush.bf16.msra.mxu0 %v5062
    %5138 = vmatpush.bf16.msra.mxu0 %v5058
    %5139 = vmatpush.bf16.msra.mxu0 %v5054
    %5140 = vmatpush.bf16.msra.mxu0 %v5050
    %5141 = vmatpush.bf16.msra.mxu0 %v5046
    %5142 = vmatmul.bf16.gmra.mxu0 %v4671
    %v5143 = vpop.f32.mrf.mxu0
    %v5144 = vadd.f32 %v4932, %v5143
    %v5145 = vpop.f32.mrf.mxu0
    %5146 = vdwg.mxu0
    %5147 = vmatpush.bf16.msra.mxu0 %v5075
    %5148 = vmatpush.bf16.msra.mxu0 %v5071
    %5149 = vmatpush.bf16.msra.mxu0 %v5067
    %5150 = vmatpush.bf16.msra.mxu0 %v5063
    %5151 = vmatpush.bf16.msra.mxu0 %v5059
    %5152 = vmatpush.bf16.msra.mxu0 %v5055
    %5153 = vmatpush.bf16.msra.mxu0 %v5051
    %5154 = vmatpush.bf16.msra.mxu0 %v5047
    %5155 = vmatmul.bf16.gmra.mxu0 %v4671
    %v5156 = vpop.f32.mrf.mxu0
    %v5157 = vadd.f32 %v4945, %v5156
    %v5158 = vpop.f32.mrf.mxu0
    %5159 = vdwg.mxu0
    %v5160 = vmul.f32 %v5118, 0.5
    %v5161 = vtanh.pop %v5160
    %v5162 = vmul.f32 %v5161, 0.5
    %v5163 = vadd.f32 %v5162, 0.5
    %v5164 = vmul.f32 %v5131, 0.5
    %v5165 = vtanh.pop %v5164
    %v5166 = vmul.f32 %v5165, 0.5
    %v5167 = vadd.f32 %v5166, 0.5
    %v5168 = vtanh.pop %v5144
    %v5169 = vmul.f32 %v5157, 0.5
    %v5170 = vtanh.pop %v5169
    %v5171 = vmul.f32 %v5170, 0.5
    %v5172 = vadd.f32 %v5171, 0.5
    %v5173 = vmul.f32 %v5167, %v4670
    %v5174 = vmul.f32 %v5163, %v5168
    %v5175 = vadd.f32 %v5173, %v5174
    %v5176 = vtanh.pop %v5175
    %v5177 = vmul.f32 %v5172, %v5176
    %5178 = vst [vmem:[%s739] sm:$0xff] %v5175
    %5179 = vst [vmem:[%s737] sm:$0xff] %v5177
    %s5180 = scalar_lea.vmem [#allocation11], 40
    %5181 = vst [vmem:[%s5180] sm:$0xff] %v5177
    %v5182 = vld [vmem:[#allocation12] sm:$0xff]
    %v5183 = vld [vmem:[#allocation14] sm:$0xff]
    %v5184 = vpack.c.bf16 %v5182, %v5182
    %v5185 = vld [vmem:[#allocation8] sm:$0xff]
    %v5186 = vld [vmem:[#allocation8 + $0x8] sm:$0xff]
    %v5187 = vld [vmem:[#allocation8 + $0x10] sm:$0xff]
    %v5188 = vld [vmem:[#allocation8 + $0x18] sm:$0xff]
    %v5189 = vld [vmem:[#allocation8 + $0x20] sm:$0xff]
    %v5190 = vld [vmem:[#allocation8 + $0x28] sm:$0xff]
    %v5191 = vld [vmem:[#allocation8 + $0x30] sm:$0xff]
    %v5192 = vld [vmem:[#allocation8 + $0x38] sm:$0xff]
    %v5193 = vld [vmem:[#allocation8 + $0x40] sm:$0xff]
    %v5194 = vld [vmem:[#allocation8 + $0x48] sm:$0xff]
    %v5195 = vld [vmem:[#allocation8 + $0x50] sm:$0xff]
    %v5196 = vld [vmem:[#allocation8 + $0x58] sm:$0xff]
    %v5197 = vld [vmem:[#allocation8 + $0x60] sm:$0xff]
    %v5198 = vld [vmem:[#allocation8 + $0x68] sm:$0xff]
    %v5199 = vld [vmem:[#allocation8 + $0x70] sm:$0xff]
    %v5200 = vld [vmem:[#allocation8 + $0x78] sm:$0xff]
    %v5201 = vld [vmem:[#allocation8 + $0x80] sm:$0xff]
    %v5202 = vld [vmem:[#allocation8 + $0x88] sm:$0xff]
    %v5203 = vld [vmem:[#allocation8 + $0x90] sm:$0xff]
    %v5204 = vld [vmem:[#allocation8 + $0x98] sm:$0xff]
    %v5205 = vld [vmem:[#allocation8 + $0xa0] sm:$0xff]
    %v5206 = vld [vmem:[#allocation8 + $0xa8] sm:$0xff]
    %v5207 = vld [vmem:[#allocation8 + $0xb0] sm:$0xff]
    %v5208 = vld [vmem:[#allocation8 + $0xb8] sm:$0xff]
    %v5209 = vld [vmem:[#allocation8 + $0xc0] sm:$0xff]
    %v5210 = vld [vmem:[#allocation8 + $0xc8] sm:$0xff]
    %v5211 = vld [vmem:[#allocation8 + $0xd0] sm:$0xff]
    %v5212 = vld [vmem:[#allocation8 + $0xd8] sm:$0xff]
    %v5213 = vld [vmem:[#allocation8 + $0xe0] sm:$0xff]
    %v5214 = vld [vmem:[#allocation8 + $0xe8] sm:$0xff]
    %v5215 = vld [vmem:[#allocation8 + $0xf0] sm:$0xff]
    %v5216 = vld [vmem:[#allocation8 + $0xf8] sm:$0xff]
    %s5217 = scalar_lea.vmem [#allocation2], 192
    %v5218 = vld [vmem:[%s5217] sm:$0xff]
    %v5219 = vld [vmem:[%s5217 + $0x8] sm:$0xff]
    %v5220 = vld [vmem:[%s5217 + $0x10] sm:$0xff]
    %v5221 = vld [vmem:[%s5217 + $0x18] sm:$0xff]
    %v5254 = vunpack.c.l.b16 %v5185
    %v5255 = vunpack.c.h.b16 %v5185
    %v5256 = vunpack.c.l.b16 %v5186
    %v5257 = vunpack.c.h.b16 %v5186
    %v5258 = vunpack.c.l.b16 %v5187
    %v5259 = vunpack.c.h.b16 %v5187
    %v5260 = vunpack.c.l.b16 %v5188
    %v5261 = vunpack.c.h.b16 %v5188
    %v5262 = vunpack.c.l.b16 %v5189
    %v5263 = vunpack.c.h.b16 %v5189
    %v5264 = vunpack.c.l.b16 %v5190
    %v5265 = vunpack.c.h.b16 %v5190
    %v5266 = vunpack.c.l.b16 %v5191
    %v5267 = vunpack.c.h.b16 %v5191
    %v5268 = vunpack.c.l.b16 %v5192
    %v5269 = vunpack.c.h.b16 %v5192
    %v5270 = vunpack.c.l.b16 %v5193
    %v5271 = vunpack.c.h.b16 %v5193
    %v5272 = vunpack.c.l.b16 %v5194
    %v5273 = vunpack.c.h.b16 %v5194
    %v5274 = vunpack.c.l.b16 %v5195
    %v5275 = vunpack.c.h.b16 %v5195
    %v5276 = vunpack.c.l.b16 %v5196
    %v5277 = vunpack.c.h.b16 %v5196
    %v5278 = vunpack.c.l.b16 %v5197
    %v5279 = vunpack.c.h.b16 %v5197
    %v5280 = vunpack.c.l.b16 %v5198
    %v5281 = vunpack.c.h.b16 %v5198
    %v5282 = vunpack.c.l.b16 %v5199
    %v5283 = vunpack.c.h.b16 %v5199
    %v5284 = vunpack.c.l.b16 %v5200
    %v5285 = vunpack.c.h.b16 %v5200
    %v5286 = vunpack.c.l.b16 %v5201
    %v5287 = vunpack.c.h.b16 %v5201
    %v5288 = vunpack.c.l.b16 %v5202
    %v5289 = vunpack.c.h.b16 %v5202
    %v5290 = vunpack.c.l.b16 %v5203
    %v5291 = vunpack.c.h.b16 %v5203
    %v5292 = vunpack.c.l.b16 %v5204
    %v5293 = vunpack.c.h.b16 %v5204
    %v5294 = vunpack.c.l.b16 %v5205
    %v5295 = vunpack.c.h.b16 %v5205
    %v5296 = vunpack.c.l.b16 %v5206
    %v5297 = vunpack.c.h.b16 %v5206
    %v5298 = vunpack.c.l.b16 %v5207
    %v5299 = vunpack.c.h.b16 %v5207
    %v5300 = vunpack.c.l.b16 %v5208
    %v5301 = vunpack.c.h.b16 %v5208
    %v5302 = vunpack.c.l.b16 %v5209
    %v5303 = vunpack.c.h.b16 %v5209
    %v5304 = vunpack.c.l.b16 %v5210
    %v5305 = vunpack.c.h.b16 %v5210
    %v5306 = vunpack.c.l.b16 %v5211
    %v5307 = vunpack.c.h.b16 %v5211
    %v5308 = vunpack.c.l.b16 %v5212
    %v5309 = vunpack.c.h.b16 %v5212
    %v5310 = vunpack.c.l.b16 %v5213
    %v5311 = vunpack.c.h.b16 %v5213
    %v5312 = vunpack.c.l.b16 %v5214
    %v5313 = vunpack.c.h.b16 %v5214
    %v5314 = vunpack.c.l.b16 %v5215
    %v5315 = vunpack.c.h.b16 %v5215
    %v5316 = vunpack.c.l.b16 %v5216
    %v5317 = vunpack.c.h.b16 %v5216
    %v5318 = vpack.c.b16 %v5258, %v5254
    %v5319 = vpack.c.b16 %v5259, %v5255
    %v5320 = vpack.c.b16 %v5260, %v5256
    %v5321 = vpack.c.b16 %v5261, %v5257
    %v5322 = vpack.c.b16 %v5266, %v5262
    %v5323 = vpack.c.b16 %v5267, %v5263
    %v5324 = vpack.c.b16 %v5268, %v5264
    %v5325 = vpack.c.b16 %v5269, %v5265
    %v5326 = vpack.c.b16 %v5274, %v5270
    %v5327 = vpack.c.b16 %v5275, %v5271
    %v5328 = vpack.c.b16 %v5276, %v5272
    %v5329 = vpack.c.b16 %v5277, %v5273
    %v5330 = vpack.c.b16 %v5282, %v5278
    %v5331 = vpack.c.b16 %v5283, %v5279
    %v5332 = vpack.c.b16 %v5284, %v5280
    %v5333 = vpack.c.b16 %v5285, %v5281
    %v5334 = vpack.c.b16 %v5290, %v5286
    %v5335 = vpack.c.b16 %v5291, %v5287
    %v5336 = vpack.c.b16 %v5292, %v5288
    %v5337 = vpack.c.b16 %v5293, %v5289
    %v5338 = vpack.c.b16 %v5298, %v5294
    %v5339 = vpack.c.b16 %v5299, %v5295
    %v5340 = vpack.c.b16 %v5300, %v5296
    %v5341 = vpack.c.b16 %v5301, %v5297
    %v5342 = vpack.c.b16 %v5306, %v5302
    %v5343 = vpack.c.b16 %v5307, %v5303
    %v5344 = vpack.c.b16 %v5308, %v5304
    %v5345 = vpack.c.b16 %v5309, %v5305
    %v5346 = vpack.c.b16 %v5314, %v5310
    %v5347 = vpack.c.b16 %v5315, %v5311
    %v5348 = vpack.c.b16 %v5316, %v5312
    %v5349 = vpack.c.b16 %v5317, %v5313
    %5382 = vmatpush.bf16.msra.mxu0 %v5346
    %5383 = vmatpush.bf16.msra.mxu0 %v5342
    %5384 = vmatpush.bf16.msra.mxu0 %v5338
    %5385 = vmatpush.bf16.msra.mxu0 %v5334
    %5386 = vmatpush.bf16.msra.mxu0 %v5330
    %5387 = vmatpush.bf16.msra.mxu0 %v5326
    %5388 = vmatpush.bf16.msra.mxu0 %v5322
    %5389 = vmatpush.bf16.msra.mxu0 %v5318
    %5390 = vmatmul.bf16.gmra.mxu0 %v5184
    %v5391 = vpop.f32.mrf.mxu0
    %v5392 = vadd.f32 %v5218, %v5391
    %v5393 = vpop.f32.mrf.mxu0
    %5394 = vdwg.mxu0
    %5395 = vmatpush.bf16.msra.mxu0 %v5347
    %5396 = vmatpush.bf16.msra.mxu0 %v5343
    %5397 = vmatpush.bf16.msra.mxu0 %v5339
    %5398 = vmatpush.bf16.msra.mxu0 %v5335
    %5399 = vmatpush.bf16.msra.mxu0 %v5331
    %5400 = vmatpush.bf16.msra.mxu0 %v5327
    %5401 = vmatpush.bf16.msra.mxu0 %v5323
    %5402 = vmatpush.bf16.msra.mxu0 %v5319
    %5403 = vmatmul.bf16.gmra.mxu0 %v5184
    %v5404 = vpop.f32.mrf.mxu0
    %v5405 = vadd.f32 %v5219, %v5404
    %v5406 = vpop.f32.mrf.mxu0
    %5407 = vdwg.mxu0
    %5408 = vmatpush.bf16.msra.mxu0 %v5348
    %5409 = vmatpush.bf16.msra.mxu0 %v5344
    %5410 = vmatpush.bf16.msra.mxu0 %v5340
    %5411 = vmatpush.bf16.msra.mxu0 %v5336
    %5412 = vmatpush.bf16.msra.mxu0 %v5332
    %5413 = vmatpush.bf16.msra.mxu0 %v5328
    %5414 = vmatpush.bf16.msra.mxu0 %v5324
    %5415 = vmatpush.bf16.msra.mxu0 %v5320
    %5416 = vmatmul.bf16.gmra.mxu0 %v5184
    %v5417 = vpop.f32.mrf.mxu0
    %v5418 = vadd.f32 %v5220, %v5417
    %v5419 = vpop.f32.mrf.mxu0
    %5420 = vdwg.mxu0
    %5421 = vmatpush.bf16.msra.mxu0 %v5349
    %5422 = vmatpush.bf16.msra.mxu0 %v5345
    %5423 = vmatpush.bf16.msra.mxu0 %v5341
    %5424 = vmatpush.bf16.msra.mxu0 %v5337
    %5425 = vmatpush.bf16.msra.mxu0 %v5333
    %5426 = vmatpush.bf16.msra.mxu0 %v5329
    %5427 = vmatpush.bf16.msra.mxu0 %v5325
    %5428 = vmatpush.bf16.msra.mxu0 %v5321
    %5429 = vmatmul.bf16.gmra.mxu0 %v5184
    %v5430 = vpop.f32.mrf.mxu0
    %v5431 = vadd.f32 %v5221, %v5430
    %v5432 = vpop.f32.mrf.mxu0
    %5433 = vdwg.mxu0
    %v5434 = vmul.f32 %v5392, 0.5
    %v5435 = vtanh.pop %v5434
    %v5436 = vmul.f32 %v5435, 0.5
    %v5437 = vadd.f32 %v5436, 0.5
    %v5438 = vmul.f32 %v5405, 0.5
    %v5439 = vtanh.pop %v5438
    %v5440 = vmul.f32 %v5439, 0.5
    %v5441 = vadd.f32 %v5440, 0.5
    %v5442 = vtanh.pop %v5418
    %v5443 = vmul.f32 %v5431, 0.5
    %v5444 = vtanh.pop %v5443
    %v5445 = vmul.f32 %v5444, 0.5
    %v5446 = vadd.f32 %v5445, 0.5
    %v5447 = vmul.f32 %v5441, %v5183
    %v5448 = vmul.f32 %v5437, %v5442
    %v5449 = vadd.f32 %v5447, %v5448
    %v5450 = vtanh.pop %v5449
    %v5451 = vmul.f32 %v5446, %v5450
    %5452 = vst [vmem:[#allocation14] sm:$0xff] %v5449
    %5453 = vst [vmem:[#allocation12] sm:$0xff] %v5451
    %v5454 = vpack.c.bf16 %v5451, %v5451
    %v5455 = vld [vmem:[%s737] sm:$0xff]
    %v5456 = vld [vmem:[%s739] sm:$0xff]
    %v5457 = vpack.c.bf16 %v5455, %v5455
    %v5458 = vld [vmem:[%s742] sm:$0xff]
    %v5459 = vld [vmem:[%s742 + $0x8] sm:$0xff]
    %v5460 = vld [vmem:[%s742 + $0x10] sm:$0xff]
    %v5461 = vld [vmem:[%s742 + $0x18] sm:$0xff]
    %v5462 = vld [vmem:[%s742 + $0x20] sm:$0xff]
    %v5463 = vld [vmem:[%s742 + $0x28] sm:$0xff]
    %v5464 = vld [vmem:[%s742 + $0x30] sm:$0xff]
    %v5465 = vld [vmem:[%s742 + $0x38] sm:$0xff]
    %v5466 = vld [vmem:[%s742 + $0x40] sm:$0xff]
    %v5467 = vld [vmem:[%s742 + $0x48] sm:$0xff]
    %v5468 = vld [vmem:[%s742 + $0x50] sm:$0xff]
    %v5469 = vld [vmem:[%s742 + $0x58] sm:$0xff]
    %v5470 = vld [vmem:[%s742 + $0x60] sm:$0xff]
    %v5471 = vld [vmem:[%s742 + $0x68] sm:$0xff]
    %v5472 = vld [vmem:[%s742 + $0x70] sm:$0xff]
    %v5473 = vld [vmem:[%s742 + $0x78] sm:$0xff]
    %v5474 = vld [vmem:[%s742 + $0x80] sm:$0xff]
    %v5475 = vld [vmem:[%s742 + $0x88] sm:$0xff]
    %v5476 = vld [vmem:[%s742 + $0x90] sm:$0xff]
    %v5477 = vld [vmem:[%s742 + $0x98] sm:$0xff]
    %v5478 = vld [vmem:[%s742 + $0xa0] sm:$0xff]
    %v5479 = vld [vmem:[%s742 + $0xa8] sm:$0xff]
    %v5480 = vld [vmem:[%s742 + $0xb0] sm:$0xff]
    %v5481 = vld [vmem:[%s742 + $0xb8] sm:$0xff]
    %v5482 = vld [vmem:[%s742 + $0xc0] sm:$0xff]
    %v5483 = vld [vmem:[%s742 + $0xc8] sm:$0xff]
    %v5484 = vld [vmem:[%s742 + $0xd0] sm:$0xff]
    %v5485 = vld [vmem:[%s742 + $0xd8] sm:$0xff]
    %v5486 = vld [vmem:[%s742 + $0xe0] sm:$0xff]
    %v5487 = vld [vmem:[%s742 + $0xe8] sm:$0xff]
    %v5488 = vld [vmem:[%s742 + $0xf0] sm:$0xff]
    %v5489 = vld [vmem:[%s742 + $0xf8] sm:$0xff]
    %v5490 = vld [vmem:[#allocation9] sm:$0xff]
    %v5491 = vld [vmem:[#allocation9 + $0x8] sm:$0xff]
    %v5492 = vld [vmem:[#allocation9 + $0x10] sm:$0xff]
    %v5493 = vld [vmem:[#allocation9 + $0x18] sm:$0xff]
    %v5494 = vld [vmem:[#allocation9 + $0x20] sm:$0xff]
    %v5495 = vld [vmem:[#allocation9 + $0x28] sm:$0xff]
    %v5496 = vld [vmem:[#allocation9 + $0x30] sm:$0xff]
    %v5497 = vld [vmem:[#allocation9 + $0x38] sm:$0xff]
    %v5498 = vld [vmem:[#allocation9 + $0x40] sm:$0xff]
    %v5499 = vld [vmem:[#allocation9 + $0x48] sm:$0xff]
    %v5500 = vld [vmem:[#allocation9 + $0x50] sm:$0xff]
    %v5501 = vld [vmem:[#allocation9 + $0x58] sm:$0xff]
    %v5502 = vld [vmem:[#allocation9 + $0x60] sm:$0xff]
    %v5503 = vld [vmem:[#allocation9 + $0x68] sm:$0xff]
    %v5504 = vld [vmem:[#allocation9 + $0x70] sm:$0xff]
    %v5505 = vld [vmem:[#allocation9 + $0x78] sm:$0xff]
    %v5506 = vld [vmem:[#allocation9 + $0x80] sm:$0xff]
    %v5507 = vld [vmem:[#allocation9 + $0x88] sm:$0xff]
    %v5508 = vld [vmem:[#allocation9 + $0x90] sm:$0xff]
    %v5509 = vld [vmem:[#allocation9 + $0x98] sm:$0xff]
    %v5510 = vld [vmem:[#allocation9 + $0xa0] sm:$0xff]
    %v5511 = vld [vmem:[#allocation9 + $0xa8] sm:$0xff]
    %v5512 = vld [vmem:[#allocation9 + $0xb0] sm:$0xff]
    %v5513 = vld [vmem:[#allocation9 + $0xb8] sm:$0xff]
    %v5514 = vld [vmem:[#allocation9 + $0xc0] sm:$0xff]
    %v5515 = vld [vmem:[#allocation9 + $0xc8] sm:$0xff]
    %v5516 = vld [vmem:[#allocation9 + $0xd0] sm:$0xff]
    %v5517 = vld [vmem:[#allocation9 + $0xd8] sm:$0xff]
    %v5518 = vld [vmem:[#allocation9 + $0xe0] sm:$0xff]
    %v5519 = vld [vmem:[#allocation9 + $0xe8] sm:$0xff]
    %v5520 = vld [vmem:[#allocation9 + $0xf0] sm:$0xff]
    %v5521 = vld [vmem:[#allocation9 + $0xf8] sm:$0xff]
    %v5554 = vunpack.c.l.b16 %v5490
    %v5555 = vunpack.c.h.b16 %v5490
    %v5556 = vunpack.c.l.b16 %v5491
    %v5557 = vunpack.c.h.b16 %v5491
    %v5558 = vunpack.c.l.b16 %v5492
    %v5559 = vunpack.c.h.b16 %v5492
    %v5560 = vunpack.c.l.b16 %v5493
    %v5561 = vunpack.c.h.b16 %v5493
    %v5562 = vunpack.c.l.b16 %v5494
    %v5563 = vunpack.c.h.b16 %v5494
    %v5564 = vunpack.c.l.b16 %v5495
    %v5565 = vunpack.c.h.b16 %v5495
    %v5566 = vunpack.c.l.b16 %v5496
    %v5567 = vunpack.c.h.b16 %v5496
    %v5568 = vunpack.c.l.b16 %v5497
    %v5569 = vunpack.c.h.b16 %v5497
    %v5570 = vunpack.c.l.b16 %v5498
    %v5571 = vunpack.c.h.b16 %v5498
    %v5572 = vunpack.c.l.b16 %v5499
    %v5573 = vunpack.c.h.b16 %v5499
    %v5574 = vunpack.c.l.b16 %v5500
    %v5575 = vunpack.c.h.b16 %v5500
    %v5576 = vunpack.c.l.b16 %v5501
    %v5577 = vunpack.c.h.b16 %v5501
    %v5578 = vunpack.c.l.b16 %v5502
    %v5579 = vunpack.c.h.b16 %v5502
    %v5580 = vunpack.c.l.b16 %v5503
    %v5581 = vunpack.c.h.b16 %v5503
    %v5582 = vunpack.c.l.b16 %v5504
    %v5583 = vunpack.c.h.b16 %v5504
    %v5584 = vunpack.c.l.b16 %v5505
    %v5585 = vunpack.c.h.b16 %v5505
    %v5586 = vunpack.c.l.b16 %v5506
    %v5587 = vunpack.c.h.b16 %v5506
    %v5588 = vunpack.c.l.b16 %v5507
    %v5589 = vunpack.c.h.b16 %v5507
    %v5590 = vunpack.c.l.b16 %v5508
    %v5591 = vunpack.c.h.b16 %v5508
    %v5592 = vunpack.c.l.b16 %v5509
    %v5593 = vunpack.c.h.b16 %v5509
    %v5594 = vunpack.c.l.b16 %v5510
    %v5595 = vunpack.c.h.b16 %v5510
    %v5596 = vunpack.c.l.b16 %v5511
    %v5597 = vunpack.c.h.b16 %v5511
    %v5598 = vunpack.c.l.b16 %v5512
    %v5599 = vunpack.c.h.b16 %v5512
    %v5600 = vunpack.c.l.b16 %v5513
    %v5601 = vunpack.c.h.b16 %v5513
    %v5602 = vunpack.c.l.b16 %v5514
    %v5603 = vunpack.c.h.b16 %v5514
    %v5604 = vunpack.c.l.b16 %v5515
    %v5605 = vunpack.c.h.b16 %v5515
    %v5606 = vunpack.c.l.b16 %v5516
    %v5607 = vunpack.c.h.b16 %v5516
    %v5608 = vunpack.c.l.b16 %v5517
    %v5609 = vunpack.c.h.b16 %v5517
    %v5610 = vunpack.c.l.b16 %v5518
    %v5611 = vunpack.c.h.b16 %v5518
    %v5612 = vunpack.c.l.b16 %v5519
    %v5613 = vunpack.c.h.b16 %v5519
    %v5614 = vunpack.c.l.b16 %v5520
    %v5615 = vunpack.c.h.b16 %v5520
    %v5616 = vunpack.c.l.b16 %v5521
    %v5617 = vunpack.c.h.b16 %v5521
    %v5618 = vpack.c.b16 %v5558, %v5554
    %v5619 = vpack.c.b16 %v5559, %v5555
    %v5620 = vpack.c.b16 %v5560, %v5556
    %v5621 = vpack.c.b16 %v5561, %v5557
    %v5622 = vpack.c.b16 %v5566, %v5562
    %v5623 = vpack.c.b16 %v5567, %v5563
    %v5624 = vpack.c.b16 %v5568, %v5564
    %v5625 = vpack.c.b16 %v5569, %v5565
    %v5626 = vpack.c.b16 %v5574, %v5570
    %v5627 = vpack.c.b16 %v5575, %v5571
    %v5628 = vpack.c.b16 %v5576, %v5572
    %v5629 = vpack.c.b16 %v5577, %v5573
    %v5630 = vpack.c.b16 %v5582, %v5578
    %v5631 = vpack.c.b16 %v5583, %v5579
    %v5632 = vpack.c.b16 %v5584, %v5580
    %v5633 = vpack.c.b16 %v5585, %v5581
    %v5634 = vpack.c.b16 %v5590, %v5586
    %v5635 = vpack.c.b16 %v5591, %v5587
    %v5636 = vpack.c.b16 %v5592, %v5588
    %v5637 = vpack.c.b16 %v5593, %v5589
    %v5638 = vpack.c.b16 %v5598, %v5594
    %v5639 = vpack.c.b16 %v5599, %v5595
    %v5640 = vpack.c.b16 %v5600, %v5596
    %v5641 = vpack.c.b16 %v5601, %v5597
    %v5642 = vpack.c.b16 %v5606, %v5602
    %v5643 = vpack.c.b16 %v5607, %v5603
    %v5644 = vpack.c.b16 %v5608, %v5604
    %v5645 = vpack.c.b16 %v5609, %v5605
    %v5646 = vpack.c.b16 %v5614, %v5610
    %v5647 = vpack.c.b16 %v5615, %v5611
    %v5648 = vpack.c.b16 %v5616, %v5612
    %v5649 = vpack.c.b16 %v5617, %v5613
    %5682 = vmatpush.bf16.msra.mxu0 %v5646
    %5683 = vmatpush.bf16.msra.mxu0 %v5642
    %5684 = vmatpush.bf16.msra.mxu0 %v5638
    %5685 = vmatpush.bf16.msra.mxu0 %v5634
    %5686 = vmatpush.bf16.msra.mxu0 %v5630
    %5687 = vmatpush.bf16.msra.mxu0 %v5626
    %5688 = vmatpush.bf16.msra.mxu0 %v5622
    %5689 = vmatpush.bf16.msra.mxu0 %v5618
    %5690 = vmatmul.bf16.gmra.mxu0 %v5454
    %v5691 = vpop.f32.mrf.mxu0
    %v5692 = vadd.f32 0.0, %v5691
    %v5693 = vpop.f32.mrf.mxu0
    %5694 = vdwg.mxu0
    %5695 = vmatpush.bf16.msra.mxu0 %v5647
    %5696 = vmatpush.bf16.msra.mxu0 %v5643
    %5697 = vmatpush.bf16.msra.mxu0 %v5639
    %5698 = vmatpush.bf16.msra.mxu0 %v5635
    %5699 = vmatpush.bf16.msra.mxu0 %v5631
    %5700 = vmatpush.bf16.msra.mxu0 %v5627
    %5701 = vmatpush.bf16.msra.mxu0 %v5623
    %5702 = vmatpush.bf16.msra.mxu0 %v5619
    %5703 = vmatmul.bf16.gmra.mxu0 %v5454
    %v5704 = vpop.f32.mrf.mxu0
    %v5705 = vadd.f32 0.0, %v5704
    %v5706 = vpop.f32.mrf.mxu0
    %5707 = vdwg.mxu0
    %5708 = vmatpush.bf16.msra.mxu0 %v5648
    %5709 = vmatpush.bf16.msra.mxu0 %v5644
    %5710 = vmatpush.bf16.msra.mxu0 %v5640
    %5711 = vmatpush.bf16.msra.mxu0 %v5636
    %5712 = vmatpush.bf16.msra.mxu0 %v5632
    %5713 = vmatpush.bf16.msra.mxu0 %v5628
    %5714 = vmatpush.bf16.msra.mxu0 %v5624
    %5715 = vmatpush.bf16.msra.mxu0 %v5620
    %5716 = vmatmul.bf16.gmra.mxu0 %v5454
    %v5717 = vpop.f32.mrf.mxu0
    %v5718 = vadd.f32 0.0, %v5717
    %v5719 = vpop.f32.mrf.mxu0
    %5720 = vdwg.mxu0
    %5721 = vmatpush.bf16.msra.mxu0 %v5649
    %5722 = vmatpush.bf16.msra.mxu0 %v5645
    %5723 = vmatpush.bf16.msra.mxu0 %v5641
    %5724 = vmatpush.bf16.msra.mxu0 %v5637
    %5725 = vmatpush.bf16.msra.mxu0 %v5633
    %5726 = vmatpush.bf16.msra.mxu0 %v5629
    %5727 = vmatpush.bf16.msra.mxu0 %v5625
    %5728 = vmatpush.bf16.msra.mxu0 %v5621
    %5729 = vmatmul.bf16.gmra.mxu0 %v5454
    %v5730 = vpop.f32.mrf.mxu0
    %v5731 = vadd.f32 0.0, %v5730
    %v5732 = vpop.f32.mrf.mxu0
    %5733 = vdwg.mxu0
    %v5766 = vunpack.c.l.b16 %v5458
    %v5767 = vunpack.c.h.b16 %v5458
    %v5768 = vunpack.c.l.b16 %v5459
    %v5769 = vunpack.c.h.b16 %v5459
    %v5770 = vunpack.c.l.b16 %v5460
    %v5771 = vunpack.c.h.b16 %v5460
    %v5772 = vunpack.c.l.b16 %v5461
    %v5773 = vunpack.c.h.b16 %v5461
    %v5774 = vunpack.c.l.b16 %v5462
    %v5775 = vunpack.c.h.b16 %v5462
    %v5776 = vunpack.c.l.b16 %v5463
    %v5777 = vunpack.c.h.b16 %v5463
    %v5778 = vunpack.c.l.b16 %v5464
    %v5779 = vunpack.c.h.b16 %v5464
    %v5780 = vunpack.c.l.b16 %v5465
    %v5781 = vunpack.c.h.b16 %v5465
    %v5782 = vunpack.c.l.b16 %v5466
    %v5783 = vunpack.c.h.b16 %v5466
    %v5784 = vunpack.c.l.b16 %v5467
    %v5785 = vunpack.c.h.b16 %v5467
    %v5786 = vunpack.c.l.b16 %v5468
    %v5787 = vunpack.c.h.b16 %v5468
    %v5788 = vunpack.c.l.b16 %v5469
    %v5789 = vunpack.c.h.b16 %v5469
    %v5790 = vunpack.c.l.b16 %v5470
    %v5791 = vunpack.c.h.b16 %v5470
    %v5792 = vunpack.c.l.b16 %v5471
    %v5793 = vunpack.c.h.b16 %v5471
    %v5794 = vunpack.c.l.b16 %v5472
    %v5795 = vunpack.c.h.b16 %v5472
    %v5796 = vunpack.c.l.b16 %v5473
    %v5797 = vunpack.c.h.b16 %v5473
    %v5798 = vunpack.c.l.b16 %v5474
    %v5799 = vunpack.c.h.b16 %v5474
    %v5800 = vunpack.c.l.b16 %v5475
    %v5801 = vunpack.c.h.b16 %v5475
    %v5802 = vunpack.c.l.b16 %v5476
    %v5803 = vunpack.c.h.b16 %v5476
    %v5804 = vunpack.c.l.b16 %v5477
    %v5805 = vunpack.c.h.b16 %v5477
    %v5806 = vunpack.c.l.b16 %v5478
    %v5807 = vunpack.c.h.b16 %v5478
    %v5808 = vunpack.c.l.b16 %v5479
    %v5809 = vunpack.c.h.b16 %v5479
    %v5810 = vunpack.c.l.b16 %v5480
    %v5811 = vunpack.c.h.b16 %v5480
    %v5812 = vunpack.c.l.b16 %v5481
    %v5813 = vunpack.c.h.b16 %v5481
    %v5814 = vunpack.c.l.b16 %v5482
    %v5815 = vunpack.c.h.b16 %v5482
    %v5816 = vunpack.c.l.b16 %v5483
    %v5817 = vunpack.c.h.b16 %v5483
    %v5818 = vunpack.c.l.b16 %v5484
    %v5819 = vunpack.c.h.b16 %v5484
    %v5820 = vunpack.c.l.b16 %v5485
    %v5821 = vunpack.c.h.b16 %v5485
    %v5822 = vunpack.c.l.b16 %v5486
    %v5823 = vunpack.c.h.b16 %v5486
    %v5824 = vunpack.c.l.b16 %v5487
    %v5825 = vunpack.c.h.b16 %v5487
    %v5826 = vunpack.c.l.b16 %v5488
    %v5827 = vunpack.c.h.b16 %v5488
    %v5828 = vunpack.c.l.b16 %v5489
    %v5829 = vunpack.c.h.b16 %v5489
    %v5830 = vpack.c.b16 %v5770, %v5766
    %v5831 = vpack.c.b16 %v5771, %v5767
    %v5832 = vpack.c.b16 %v5772, %v5768
    %v5833 = vpack.c.b16 %v5773, %v5769
    %v5834 = vpack.c.b16 %v5778, %v5774
    %v5835 = vpack.c.b16 %v5779, %v5775
    %v5836 = vpack.c.b16 %v5780, %v5776
    %v5837 = vpack.c.b16 %v5781, %v5777
    %v5838 = vpack.c.b16 %v5786, %v5782
    %v5839 = vpack.c.b16 %v5787, %v5783
    %v5840 = vpack.c.b16 %v5788, %v5784
    %v5841 = vpack.c.b16 %v5789, %v5785
    %v5842 = vpack.c.b16 %v5794, %v5790
    %v5843 = vpack.c.b16 %v5795, %v5791
    %v5844 = vpack.c.b16 %v5796, %v5792
    %v5845 = vpack.c.b16 %v5797, %v5793
    %v5846 = vpack.c.b16 %v5802, %v5798
    %v5847 = vpack.c.b16 %v5803, %v5799
    %v5848 = vpack.c.b16 %v5804, %v5800
    %v5849 = vpack.c.b16 %v5805, %v5801
    %v5850 = vpack.c.b16 %v5810, %v5806
    %v5851 = vpack.c.b16 %v5811, %v5807
    %v5852 = vpack.c.b16 %v5812, %v5808
    %v5853 = vpack.c.b16 %v5813, %v5809
    %v5854 = vpack.c.b16 %v5818, %v5814
    %v5855 = vpack.c.b16 %v5819, %v5815
    %v5856 = vpack.c.b16 %v5820, %v5816
    %v5857 = vpack.c.b16 %v5821, %v5817
    %v5858 = vpack.c.b16 %v5826, %v5822
    %v5859 = vpack.c.b16 %v5827, %v5823
    %v5860 = vpack.c.b16 %v5828, %v5824
    %v5861 = vpack.c.b16 %v5829, %v5825
    %5894 = vmatpush.bf16.msra.mxu0 %v5858
    %5895 = vmatpush.bf16.msra.mxu0 %v5854
    %5896 = vmatpush.bf16.msra.mxu0 %v5850
    %5897 = vmatpush.bf16.msra.mxu0 %v5846
    %5898 = vmatpush.bf16.msra.mxu0 %v5842
    %5899 = vmatpush.bf16.msra.mxu0 %v5838
    %5900 = vmatpush.bf16.msra.mxu0 %v5834
    %5901 = vmatpush.bf16.msra.mxu0 %v5830
    %5902 = vmatmul.bf16.gmra.mxu0 %v5457
    %v5903 = vpop.f32.mrf.mxu0
    %v5904 = vadd.f32 %v5692, %v5903
    %v5905 = vpop.f32.mrf.mxu0
    %5906 = vdwg.mxu0
    %5907 = vmatpush.bf16.msra.mxu0 %v5859
    %5908 = vmatpush.bf16.msra.mxu0 %v5855
    %5909 = vmatpush.bf16.msra.mxu0 %v5851
    %5910 = vmatpush.bf16.msra.mxu0 %v5847
    %5911 = vmatpush.bf16.msra.mxu0 %v5843
    %5912 = vmatpush.bf16.msra.mxu0 %v5839
    %5913 = vmatpush.bf16.msra.mxu0 %v5835
    %5914 = vmatpush.bf16.msra.mxu0 %v5831
    %5915 = vmatmul.bf16.gmra.mxu0 %v5457
    %v5916 = vpop.f32.mrf.mxu0
    %v5917 = vadd.f32 %v5705, %v5916
    %v5918 = vpop.f32.mrf.mxu0
    %5919 = vdwg.mxu0
    %5920 = vmatpush.bf16.msra.mxu0 %v5860
    %5921 = vmatpush.bf16.msra.mxu0 %v5856
    %5922 = vmatpush.bf16.msra.mxu0 %v5852
    %5923 = vmatpush.bf16.msra.mxu0 %v5848
    %5924 = vmatpush.bf16.msra.mxu0 %v5844
    %5925 = vmatpush.bf16.msra.mxu0 %v5840
    %5926 = vmatpush.bf16.msra.mxu0 %v5836
    %5927 = vmatpush.bf16.msra.mxu0 %v5832
    %5928 = vmatmul.bf16.gmra.mxu0 %v5457
    %v5929 = vpop.f32.mrf.mxu0
    %v5930 = vadd.f32 %v5718, %v5929
    %v5931 = vpop.f32.mrf.mxu0
    %5932 = vdwg.mxu0
    %5933 = vmatpush.bf16.msra.mxu0 %v5861
    %5934 = vmatpush.bf16.msra.mxu0 %v5857
    %5935 = vmatpush.bf16.msra.mxu0 %v5853
    %5936 = vmatpush.bf16.msra.mxu0 %v5849
    %5937 = vmatpush.bf16.msra.mxu0 %v5845
    %5938 = vmatpush.bf16.msra.mxu0 %v5841
    %5939 = vmatpush.bf16.msra.mxu0 %v5837
    %5940 = vmatpush.bf16.msra.mxu0 %v5833
    %5941 = vmatmul.bf16.gmra.mxu0 %v5457
    %v5942 = vpop.f32.mrf.mxu0
    %v5943 = vadd.f32 %v5731, %v5942
    %v5944 = vpop.f32.mrf.mxu0
    %5945 = vdwg.mxu0
    %v5946 = vmul.f32 %v5904, 0.5
    %v5947 = vtanh.pop %v5946
    %v5948 = vmul.f32 %v5947, 0.5
    %v5949 = vadd.f32 %v5948, 0.5
    %v5950 = vmul.f32 %v5917, 0.5
    %v5951 = vtanh.pop %v5950
    %v5952 = vmul.f32 %v5951, 0.5
    %v5953 = vadd.f32 %v5952, 0.5
    %v5954 = vtanh.pop %v5930
    %v5955 = vmul.f32 %v5943, 0.5
    %v5956 = vtanh.pop %v5955
    %v5957 = vmul.f32 %v5956, 0.5
    %v5958 = vadd.f32 %v5957, 0.5
    %v5959 = vmul.f32 %v5953, %v5456
    %v5960 = vmul.f32 %v5949, %v5954
    %v5961 = vadd.f32 %v5959, %v5960
    %v5962 = vtanh.pop %v5961
    %v5963 = vmul.f32 %v5958, %v5962
    %5964 = vst [vmem:[%s739] sm:$0xff] %v5961
    %5965 = vst [vmem:[%s737] sm:$0xff] %v5963
    %s5966 = scalar_lea.vmem [#allocation11], 48
    %5967 = vst [vmem:[%s5966] sm:$0xff] %v5963
    %v5968 = vld [vmem:[#allocation12] sm:$0xff]
    %v5969 = vld [vmem:[#allocation14] sm:$0xff]
    %v5970 = vpack.c.bf16 %v5968, %v5968
    %v5971 = vld [vmem:[#allocation8] sm:$0xff]
    %v5972 = vld [vmem:[#allocation8 + $0x8] sm:$0xff]
    %v5973 = vld [vmem:[#allocation8 + $0x10] sm:$0xff]
    %v5974 = vld [vmem:[#allocation8 + $0x18] sm:$0xff]
    %v5975 = vld [vmem:[#allocation8 + $0x20] sm:$0xff]
    %v5976 = vld [vmem:[#allocation8 + $0x28] sm:$0xff]
    %v5977 = vld [vmem:[#allocation8 + $0x30] sm:$0xff]
    %v5978 = vld [vmem:[#allocation8 + $0x38] sm:$0xff]
    %v5979 = vld [vmem:[#allocation8 + $0x40] sm:$0xff]
    %v5980 = vld [vmem:[#allocation8 + $0x48] sm:$0xff]
    %v5981 = vld [vmem:[#allocation8 + $0x50] sm:$0xff]
    %v5982 = vld [vmem:[#allocation8 + $0x58] sm:$0xff]
    %v5983 = vld [vmem:[#allocation8 + $0x60] sm:$0xff]
    %v5984 = vld [vmem:[#allocation8 + $0x68] sm:$0xff]
    %v5985 = vld [vmem:[#allocation8 + $0x70] sm:$0xff]
    %v5986 = vld [vmem:[#allocation8 + $0x78] sm:$0xff]
    %v5987 = vld [vmem:[#allocation8 + $0x80] sm:$0xff]
    %v5988 = vld [vmem:[#allocation8 + $0x88] sm:$0xff]
    %v5989 = vld [vmem:[#allocation8 + $0x90] sm:$0xff]
    %v5990 = vld [vmem:[#allocation8 + $0x98] sm:$0xff]
    %v5991 = vld [vmem:[#allocation8 + $0xa0] sm:$0xff]
    %v5992 = vld [vmem:[#allocation8 + $0xa8] sm:$0xff]
    %v5993 = vld [vmem:[#allocation8 + $0xb0] sm:$0xff]
    %v5994 = vld [vmem:[#allocation8 + $0xb8] sm:$0xff]
    %v5995 = vld [vmem:[#allocation8 + $0xc0] sm:$0xff]
    %v5996 = vld [vmem:[#allocation8 + $0xc8] sm:$0xff]
    %v5997 = vld [vmem:[#allocation8 + $0xd0] sm:$0xff]
    %v5998 = vld [vmem:[#allocation8 + $0xd8] sm:$0xff]
    %v5999 = vld [vmem:[#allocation8 + $0xe0] sm:$0xff]
    %v6000 = vld [vmem:[#allocation8 + $0xe8] sm:$0xff]
    %v6001 = vld [vmem:[#allocation8 + $0xf0] sm:$0xff]
    %v6002 = vld [vmem:[#allocation8 + $0xf8] sm:$0xff]
    %s6003 = scalar_lea.vmem [#allocation2], 224
    %v6004 = vld [vmem:[%s6003] sm:$0xff]
    %v6005 = vld [vmem:[%s6003 + $0x8] sm:$0xff]
    %v6006 = vld [vmem:[%s6003 + $0x10] sm:$0xff]
    %v6007 = vld [vmem:[%s6003 + $0x18] sm:$0xff]
    %v6040 = vunpack.c.l.b16 %v5971
    %v6041 = vunpack.c.h.b16 %v5971
    %v6042 = vunpack.c.l.b16 %v5972
    %v6043 = vunpack.c.h.b16 %v5972
    %v6044 = vunpack.c.l.b16 %v5973
    %v6045 = vunpack.c.h.b16 %v5973
    %v6046 = vunpack.c.l.b16 %v5974
    %v6047 = vunpack.c.h.b16 %v5974
    %v6048 = vunpack.c.l.b16 %v5975
    %v6049 = vunpack.c.h.b16 %v5975
    %v6050 = vunpack.c.l.b16 %v5976
    %v6051 = vunpack.c.h.b16 %v5976
    %v6052 = vunpack.c.l.b16 %v5977
    %v6053 = vunpack.c.h.b16 %v5977
    %v6054 = vunpack.c.l.b16 %v5978
    %v6055 = vunpack.c.h.b16 %v5978
    %v6056 = vunpack.c.l.b16 %v5979
    %v6057 = vunpack.c.h.b16 %v5979
    %v6058 = vunpack.c.l.b16 %v5980
    %v6059 = vunpack.c.h.b16 %v5980
    %v6060 = vunpack.c.l.b16 %v5981
    %v6061 = vunpack.c.h.b16 %v5981
    %v6062 = vunpack.c.l.b16 %v5982
    %v6063 = vunpack.c.h.b16 %v5982
    %v6064 = vunpack.c.l.b16 %v5983
    %v6065 = vunpack.c.h.b16 %v5983
    %v6066 = vunpack.c.l.b16 %v5984
    %v6067 = vunpack.c.h.b16 %v5984
    %v6068 = vunpack.c.l.b16 %v5985
    %v6069 = vunpack.c.h.b16 %v5985
    %v6070 = vunpack.c.l.b16 %v5986
    %v6071 = vunpack.c.h.b16 %v5986
    %v6072 = vunpack.c.l.b16 %v5987
    %v6073 = vunpack.c.h.b16 %v5987
    %v6074 = vunpack.c.l.b16 %v5988
    %v6075 = vunpack.c.h.b16 %v5988
    %v6076 = vunpack.c.l.b16 %v5989
    %v6077 = vunpack.c.h.b16 %v5989
    %v6078 = vunpack.c.l.b16 %v5990
    %v6079 = vunpack.c.h.b16 %v5990
    %v6080 = vunpack.c.l.b16 %v5991
    %v6081 = vunpack.c.h.b16 %v5991
    %v6082 = vunpack.c.l.b16 %v5992
    %v6083 = vunpack.c.h.b16 %v5992
    %v6084 = vunpack.c.l.b16 %v5993
    %v6085 = vunpack.c.h.b16 %v5993
    %v6086 = vunpack.c.l.b16 %v5994
    %v6087 = vunpack.c.h.b16 %v5994
    %v6088 = vunpack.c.l.b16 %v5995
    %v6089 = vunpack.c.h.b16 %v5995
    %v6090 = vunpack.c.l.b16 %v5996
    %v6091 = vunpack.c.h.b16 %v5996
    %v6092 = vunpack.c.l.b16 %v5997
    %v6093 = vunpack.c.h.b16 %v5997
    %v6094 = vunpack.c.l.b16 %v5998
    %v6095 = vunpack.c.h.b16 %v5998
    %v6096 = vunpack.c.l.b16 %v5999
    %v6097 = vunpack.c.h.b16 %v5999
    %v6098 = vunpack.c.l.b16 %v6000
    %v6099 = vunpack.c.h.b16 %v6000
    %v6100 = vunpack.c.l.b16 %v6001
    %v6101 = vunpack.c.h.b16 %v6001
    %v6102 = vunpack.c.l.b16 %v6002
    %v6103 = vunpack.c.h.b16 %v6002
    %v6104 = vpack.c.b16 %v6044, %v6040
    %v6105 = vpack.c.b16 %v6045, %v6041
    %v6106 = vpack.c.b16 %v6046, %v6042
    %v6107 = vpack.c.b16 %v6047, %v6043
    %v6108 = vpack.c.b16 %v6052, %v6048
    %v6109 = vpack.c.b16 %v6053, %v6049
    %v6110 = vpack.c.b16 %v6054, %v6050
    %v6111 = vpack.c.b16 %v6055, %v6051
    %v6112 = vpack.c.b16 %v6060, %v6056
    %v6113 = vpack.c.b16 %v6061, %v6057
    %v6114 = vpack.c.b16 %v6062, %v6058
    %v6115 = vpack.c.b16 %v6063, %v6059
    %v6116 = vpack.c.b16 %v6068, %v6064
    %v6117 = vpack.c.b16 %v6069, %v6065
    %v6118 = vpack.c.b16 %v6070, %v6066
    %v6119 = vpack.c.b16 %v6071, %v6067
    %v6120 = vpack.c.b16 %v6076, %v6072
    %v6121 = vpack.c.b16 %v6077, %v6073
    %v6122 = vpack.c.b16 %v6078, %v6074
    %v6123 = vpack.c.b16 %v6079, %v6075
    %v6124 = vpack.c.b16 %v6084, %v6080
    %v6125 = vpack.c.b16 %v6085, %v6081
    %v6126 = vpack.c.b16 %v6086, %v6082
    %v6127 = vpack.c.b16 %v6087, %v6083
    %v6128 = vpack.c.b16 %v6092, %v6088
    %v6129 = vpack.c.b16 %v6093, %v6089
    %v6130 = vpack.c.b16 %v6094, %v6090
    %v6131 = vpack.c.b16 %v6095, %v6091
    %v6132 = vpack.c.b16 %v6100, %v6096
    %v6133 = vpack.c.b16 %v6101, %v6097
    %v6134 = vpack.c.b16 %v6102, %v6098
    %v6135 = vpack.c.b16 %v6103, %v6099
    %6168 = vmatpush.bf16.msra.mxu0 %v6132
    %6169 = vmatpush.bf16.msra.mxu0 %v6128
    %6170 = vmatpush.bf16.msra.mxu0 %v6124
    %6171 = vmatpush.bf16.msra.mxu0 %v6120
    %6172 = vmatpush.bf16.msra.mxu0 %v6116
    %6173 = vmatpush.bf16.msra.mxu0 %v6112
    %6174 = vmatpush.bf16.msra.mxu0 %v6108
    %6175 = vmatpush.bf16.msra.mxu0 %v6104
    %6176 = vmatmul.bf16.gmra.mxu0 %v5970
    %v6177 = vpop.f32.mrf.mxu0
    %v6178 = vadd.f32 %v6004, %v6177
    %v6179 = vpop.f32.mrf.mxu0
    %6180 = vdwg.mxu0
    %6181 = vmatpush.bf16.msra.mxu0 %v6133
    %6182 = vmatpush.bf16.msra.mxu0 %v6129
    %6183 = vmatpush.bf16.msra.mxu0 %v6125
    %6184 = vmatpush.bf16.msra.mxu0 %v6121
    %6185 = vmatpush.bf16.msra.mxu0 %v6117
    %6186 = vmatpush.bf16.msra.mxu0 %v6113
    %6187 = vmatpush.bf16.msra.mxu0 %v6109
    %6188 = vmatpush.bf16.msra.mxu0 %v6105
    %6189 = vmatmul.bf16.gmra.mxu0 %v5970
    %v6190 = vpop.f32.mrf.mxu0
    %v6191 = vadd.f32 %v6005, %v6190
    %v6192 = vpop.f32.mrf.mxu0
    %6193 = vdwg.mxu0
    %6194 = vmatpush.bf16.msra.mxu0 %v6134
    %6195 = vmatpush.bf16.msra.mxu0 %v6130
    %6196 = vmatpush.bf16.msra.mxu0 %v6126
    %6197 = vmatpush.bf16.msra.mxu0 %v6122
    %6198 = vmatpush.bf16.msra.mxu0 %v6118
    %6199 = vmatpush.bf16.msra.mxu0 %v6114
    %6200 = vmatpush.bf16.msra.mxu0 %v6110
    %6201 = vmatpush.bf16.msra.mxu0 %v6106
    %6202 = vmatmul.bf16.gmra.mxu0 %v5970
    %v6203 = vpop.f32.mrf.mxu0
    %v6204 = vadd.f32 %v6006, %v6203
    %v6205 = vpop.f32.mrf.mxu0
    %6206 = vdwg.mxu0
    %6207 = vmatpush.bf16.msra.mxu0 %v6135
    %6208 = vmatpush.bf16.msra.mxu0 %v6131
    %6209 = vmatpush.bf16.msra.mxu0 %v6127
    %6210 = vmatpush.bf16.msra.mxu0 %v6123
    %6211 = vmatpush.bf16.msra.mxu0 %v6119
    %6212 = vmatpush.bf16.msra.mxu0 %v6115
    %6213 = vmatpush.bf16.msra.mxu0 %v6111
    %6214 = vmatpush.bf16.msra.mxu0 %v6107
    %6215 = vmatmul.bf16.gmra.mxu0 %v5970
    %v6216 = vpop.f32.mrf.mxu0
    %v6217 = vadd.f32 %v6007, %v6216
    %v6218 = vpop.f32.mrf.mxu0
    %6219 = vdwg.mxu0
    %v6220 = vmul.f32 %v6178, 0.5
    %v6221 = vtanh.pop %v6220
    %v6222 = vmul.f32 %v6221, 0.5
    %v6223 = vadd.f32 %v6222, 0.5
    %v6224 = vmul.f32 %v6191, 0.5
    %v6225 = vtanh.pop %v6224
    %v6226 = vmul.f32 %v6225, 0.5
    %v6227 = vadd.f32 %v6226, 0.5
    %v6228 = vtanh.pop %v6204
    %v6229 = vmul.f32 %v6217, 0.5
    %v6230 = vtanh.pop %v6229
    %v6231 = vmul.f32 %v6230, 0.5
    %v6232 = vadd.f32 %v6231, 0.5
    %v6233 = vmul.f32 %v6227, %v5969
    %v6234 = vmul.f32 %v6223, %v6228
    %v6235 = vadd.f32 %v6233, %v6234
    %v6236 = vtanh.pop %v6235
    %v6237 = vmul.f32 %v6232, %v6236
    %6238 = vst [vmem:[#allocation14] sm:$0xff] %v6235
    %6239 = vst [vmem:[#allocation12] sm:$0xff] %v6237
    %v6240 = vpack.c.bf16 %v6237, %v6237
    %v6241 = vld [vmem:[%s737] sm:$0xff]
    %v6242 = vld [vmem:[%s739] sm:$0xff]
    %v6243 = vpack.c.bf16 %v6241, %v6241
    %v6244 = vld [vmem:[%s742] sm:$0xff]
    %v6245 = vld [vmem:[%s742 + $0x8] sm:$0xff]
    %v6246 = vld [vmem:[%s742 + $0x10] sm:$0xff]
    %v6247 = vld [vmem:[%s742 + $0x18] sm:$0xff]
    %v6248 = vld [vmem:[%s742 + $0x20] sm:$0xff]
    %v6249 = vld [vmem:[%s742 + $0x28] sm:$0xff]
    %v6250 = vld [vmem:[%s742 + $0x30] sm:$0xff]
    %v6251 = vld [vmem:[%s742 + $0x38] sm:$0xff]
    %v6252 = vld [vmem:[%s742 + $0x40] sm:$0xff]
    %v6253 = vld [vmem:[%s742 + $0x48] sm:$0xff]
    %v6254 = vld [vmem:[%s742 + $0x50] sm:$0xff]
    %v6255 = vld [vmem:[%s742 + $0x58] sm:$0xff]
    %v6256 = vld [vmem:[%s742 + $0x60] sm:$0xff]
    %v6257 = vld [vmem:[%s742 + $0x68] sm:$0xff]
    %v6258 = vld [vmem:[%s742 + $0x70] sm:$0xff]
    %v6259 = vld [vmem:[%s742 + $0x78] sm:$0xff]
    %v6260 = vld [vmem:[%s742 + $0x80] sm:$0xff]
    %v6261 = vld [vmem:[%s742 + $0x88] sm:$0xff]
    %v6262 = vld [vmem:[%s742 + $0x90] sm:$0xff]
    %v6263 = vld [vmem:[%s742 + $0x98] sm:$0xff]
    %v6264 = vld [vmem:[%s742 + $0xa0] sm:$0xff]
    %v6265 = vld [vmem:[%s742 + $0xa8] sm:$0xff]
    %v6266 = vld [vmem:[%s742 + $0xb0] sm:$0xff]
    %v6267 = vld [vmem:[%s742 + $0xb8] sm:$0xff]
    %v6268 = vld [vmem:[%s742 + $0xc0] sm:$0xff]
    %v6269 = vld [vmem:[%s742 + $0xc8] sm:$0xff]
    %v6270 = vld [vmem:[%s742 + $0xd0] sm:$0xff]
    %v6271 = vld [vmem:[%s742 + $0xd8] sm:$0xff]
    %v6272 = vld [vmem:[%s742 + $0xe0] sm:$0xff]
    %v6273 = vld [vmem:[%s742 + $0xe8] sm:$0xff]
    %v6274 = vld [vmem:[%s742 + $0xf0] sm:$0xff]
    %v6275 = vld [vmem:[%s742 + $0xf8] sm:$0xff]
    %v6276 = vld [vmem:[#allocation9] sm:$0xff]
    %v6277 = vld [vmem:[#allocation9 + $0x8] sm:$0xff]
    %v6278 = vld [vmem:[#allocation9 + $0x10] sm:$0xff]
    %v6279 = vld [vmem:[#allocation9 + $0x18] sm:$0xff]
    %v6280 = vld [vmem:[#allocation9 + $0x20] sm:$0xff]
    %v6281 = vld [vmem:[#allocation9 + $0x28] sm:$0xff]
    %v6282 = vld [vmem:[#allocation9 + $0x30] sm:$0xff]
    %v6283 = vld [vmem:[#allocation9 + $0x38] sm:$0xff]
    %v6284 = vld [vmem:[#allocation9 + $0x40] sm:$0xff]
    %v6285 = vld [vmem:[#allocation9 + $0x48] sm:$0xff]
    %v6286 = vld [vmem:[#allocation9 + $0x50] sm:$0xff]
    %v6287 = vld [vmem:[#allocation9 + $0x58] sm:$0xff]
    %v6288 = vld [vmem:[#allocation9 + $0x60] sm:$0xff]
    %v6289 = vld [vmem:[#allocation9 + $0x68] sm:$0xff]
    %v6290 = vld [vmem:[#allocation9 + $0x70] sm:$0xff]
    %v6291 = vld [vmem:[#allocation9 + $0x78] sm:$0xff]
    %v6292 = vld [vmem:[#allocation9 + $0x80] sm:$0xff]
    %v6293 = vld [vmem:[#allocation9 + $0x88] sm:$0xff]
    %v6294 = vld [vmem:[#allocation9 + $0x90] sm:$0xff]
    %v6295 = vld [vmem:[#allocation9 + $0x98] sm:$0xff]
    %v6296 = vld [vmem:[#allocation9 + $0xa0] sm:$0xff]
    %v6297 = vld [vmem:[#allocation9 + $0xa8] sm:$0xff]
    %v6298 = vld [vmem:[#allocation9 + $0xb0] sm:$0xff]
    %v6299 = vld [vmem:[#allocation9 + $0xb8] sm:$0xff]
    %v6300 = vld [vmem:[#allocation9 + $0xc0] sm:$0xff]
    %v6301 = vld [vmem:[#allocation9 + $0xc8] sm:$0xff]
    %v6302 = vld [vmem:[#allocation9 + $0xd0] sm:$0xff]
    %v6303 = vld [vmem:[#allocation9 + $0xd8] sm:$0xff]
    %v6304 = vld [vmem:[#allocation9 + $0xe0] sm:$0xff]
    %v6305 = vld [vmem:[#allocation9 + $0xe8] sm:$0xff]
    %v6306 = vld [vmem:[#allocation9 + $0xf0] sm:$0xff]
    %v6307 = vld [vmem:[#allocation9 + $0xf8] sm:$0xff]
    %v6340 = vunpack.c.l.b16 %v6276
    %v6341 = vunpack.c.h.b16 %v6276
    %v6342 = vunpack.c.l.b16 %v6277
    %v6343 = vunpack.c.h.b16 %v6277
    %v6344 = vunpack.c.l.b16 %v6278
    %v6345 = vunpack.c.h.b16 %v6278
    %v6346 = vunpack.c.l.b16 %v6279
    %v6347 = vunpack.c.h.b16 %v6279
    %v6348 = vunpack.c.l.b16 %v6280
    %v6349 = vunpack.c.h.b16 %v6280
    %v6350 = vunpack.c.l.b16 %v6281
    %v6351 = vunpack.c.h.b16 %v6281
    %v6352 = vunpack.c.l.b16 %v6282
    %v6353 = vunpack.c.h.b16 %v6282
    %v6354 = vunpack.c.l.b16 %v6283
    %v6355 = vunpack.c.h.b16 %v6283
    %v6356 = vunpack.c.l.b16 %v6284
    %v6357 = vunpack.c.h.b16 %v6284
    %v6358 = vunpack.c.l.b16 %v6285
    %v6359 = vunpack.c.h.b16 %v6285
    %v6360 = vunpack.c.l.b16 %v6286
    %v6361 = vunpack.c.h.b16 %v6286
    %v6362 = vunpack.c.l.b16 %v6287
    %v6363 = vunpack.c.h.b16 %v6287
    %v6364 = vunpack.c.l.b16 %v6288
    %v6365 = vunpack.c.h.b16 %v6288
    %v6366 = vunpack.c.l.b16 %v6289
    %v6367 = vunpack.c.h.b16 %v6289
    %v6368 = vunpack.c.l.b16 %v6290
    %v6369 = vunpack.c.h.b16 %v6290
    %v6370 = vunpack.c.l.b16 %v6291
    %v6371 = vunpack.c.h.b16 %v6291
    %v6372 = vunpack.c.l.b16 %v6292
    %v6373 = vunpack.c.h.b16 %v6292
    %v6374 = vunpack.c.l.b16 %v6293
    %v6375 = vunpack.c.h.b16 %v6293
    %v6376 = vunpack.c.l.b16 %v6294
    %v6377 = vunpack.c.h.b16 %v6294
    %v6378 = vunpack.c.l.b16 %v6295
    %v6379 = vunpack.c.h.b16 %v6295
    %v6380 = vunpack.c.l.b16 %v6296
    %v6381 = vunpack.c.h.b16 %v6296
    %v6382 = vunpack.c.l.b16 %v6297
    %v6383 = vunpack.c.h.b16 %v6297
    %v6384 = vunpack.c.l.b16 %v6298
    %v6385 = vunpack.c.h.b16 %v6298
    %v6386 = vunpack.c.l.b16 %v6299
    %v6387 = vunpack.c.h.b16 %v6299
    %v6388 = vunpack.c.l.b16 %v6300
    %v6389 = vunpack.c.h.b16 %v6300
    %v6390 = vunpack.c.l.b16 %v6301
    %v6391 = vunpack.c.h.b16 %v6301
    %v6392 = vunpack.c.l.b16 %v6302
    %v6393 = vunpack.c.h.b16 %v6302
    %v6394 = vunpack.c.l.b16 %v6303
    %v6395 = vunpack.c.h.b16 %v6303
    %v6396 = vunpack.c.l.b16 %v6304
    %v6397 = vunpack.c.h.b16 %v6304
    %v6398 = vunpack.c.l.b16 %v6305
    %v6399 = vunpack.c.h.b16 %v6305
    %v6400 = vunpack.c.l.b16 %v6306
    %v6401 = vunpack.c.h.b16 %v6306
    %v6402 = vunpack.c.l.b16 %v6307
    %v6403 = vunpack.c.h.b16 %v6307
    %v6404 = vpack.c.b16 %v6344, %v6340
    %v6405 = vpack.c.b16 %v6345, %v6341
    %v6406 = vpack.c.b16 %v6346, %v6342
    %v6407 = vpack.c.b16 %v6347, %v6343
    %v6408 = vpack.c.b16 %v6352, %v6348
    %v6409 = vpack.c.b16 %v6353, %v6349
    %v6410 = vpack.c.b16 %v6354, %v6350
    %v6411 = vpack.c.b16 %v6355, %v6351
    %v6412 = vpack.c.b16 %v6360, %v6356
    %v6413 = vpack.c.b16 %v6361, %v6357
    %v6414 = vpack.c.b16 %v6362, %v6358
    %v6415 = vpack.c.b16 %v6363, %v6359
    %v6416 = vpack.c.b16 %v6368, %v6364
    %v6417 = vpack.c.b16 %v6369, %v6365
    %v6418 = vpack.c.b16 %v6370, %v6366
    %v6419 = vpack.c.b16 %v6371, %v6367
    %v6420 = vpack.c.b16 %v6376, %v6372
    %v6421 = vpack.c.b16 %v6377, %v6373
    %v6422 = vpack.c.b16 %v6378, %v6374
    %v6423 = vpack.c.b16 %v6379, %v6375
    %v6424 = vpack.c.b16 %v6384, %v6380
    %v6425 = vpack.c.b16 %v6385, %v6381
    %v6426 = vpack.c.b16 %v6386, %v6382
    %v6427 = vpack.c.b16 %v6387, %v6383
    %v6428 = vpack.c.b16 %v6392, %v6388
    %v6429 = vpack.c.b16 %v6393, %v6389
    %v6430 = vpack.c.b16 %v6394, %v6390
    %v6431 = vpack.c.b16 %v6395, %v6391
    %v6432 = vpack.c.b16 %v6400, %v6396
    %v6433 = vpack.c.b16 %v6401, %v6397
    %v6434 = vpack.c.b16 %v6402, %v6398
    %v6435 = vpack.c.b16 %v6403, %v6399
    %6468 = vmatpush.bf16.msra.mxu0 %v6432
    %6469 = vmatpush.bf16.msra.mxu0 %v6428
    %6470 = vmatpush.bf16.msra.mxu0 %v6424
    %6471 = vmatpush.bf16.msra.mxu0 %v6420
    %6472 = vmatpush.bf16.msra.mxu0 %v6416
    %6473 = vmatpush.bf16.msra.mxu0 %v6412
    %6474 = vmatpush.bf16.msra.mxu0 %v6408
    %6475 = vmatpush.bf16.msra.mxu0 %v6404
    %6476 = vmatmul.bf16.gmra.mxu0 %v6240
    %v6477 = vpop.f32.mrf.mxu0
    %v6478 = vadd.f32 0.0, %v6477
    %v6479 = vpop.f32.mrf.mxu0
    %6480 = vdwg.mxu0
    %6481 = vmatpush.bf16.msra.mxu0 %v6433
    %6482 = vmatpush.bf16.msra.mxu0 %v6429
    %6483 = vmatpush.bf16.msra.mxu0 %v6425
    %6484 = vmatpush.bf16.msra.mxu0 %v6421
    %6485 = vmatpush.bf16.msra.mxu0 %v6417
    %6486 = vmatpush.bf16.msra.mxu0 %v6413
    %6487 = vmatpush.bf16.msra.mxu0 %v6409
    %6488 = vmatpush.bf16.msra.mxu0 %v6405
    %6489 = vmatmul.bf16.gmra.mxu0 %v6240
    %v6490 = vpop.f32.mrf.mxu0
    %v6491 = vadd.f32 0.0, %v6490
    %v6492 = vpop.f32.mrf.mxu0
    %6493 = vdwg.mxu0
    %6494 = vmatpush.bf16.msra.mxu0 %v6434
    %6495 = vmatpush.bf16.msra.mxu0 %v6430
    %6496 = vmatpush.bf16.msra.mxu0 %v6426
    %6497 = vmatpush.bf16.msra.mxu0 %v6422
    %6498 = vmatpush.bf16.msra.mxu0 %v6418
    %6499 = vmatpush.bf16.msra.mxu0 %v6414
    %6500 = vmatpush.bf16.msra.mxu0 %v6410
    %6501 = vmatpush.bf16.msra.mxu0 %v6406
    %6502 = vmatmul.bf16.gmra.mxu0 %v6240
    %v6503 = vpop.f32.mrf.mxu0
    %v6504 = vadd.f32 0.0, %v6503
    %v6505 = vpop.f32.mrf.mxu0
    %6506 = vdwg.mxu0
    %6507 = vmatpush.bf16.msra.mxu0 %v6435
    %6508 = vmatpush.bf16.msra.mxu0 %v6431
    %6509 = vmatpush.bf16.msra.mxu0 %v6427
    %6510 = vmatpush.bf16.msra.mxu0 %v6423
    %6511 = vmatpush.bf16.msra.mxu0 %v6419
    %6512 = vmatpush.bf16.msra.mxu0 %v6415
    %6513 = vmatpush.bf16.msra.mxu0 %v6411
    %6514 = vmatpush.bf16.msra.mxu0 %v6407
    %6515 = vmatmul.bf16.gmra.mxu0 %v6240
    %v6516 = vpop.f32.mrf.mxu0
    %v6517 = vadd.f32 0.0, %v6516
    %v6518 = vpop.f32.mrf.mxu0
    %6519 = vdwg.mxu0
    %v6552 = vunpack.c.l.b16 %v6244
    %v6553 = vunpack.c.h.b16 %v6244
    %v6554 = vunpack.c.l.b16 %v6245
    %v6555 = vunpack.c.h.b16 %v6245
    %v6556 = vunpack.c.l.b16 %v6246
    %v6557 = vunpack.c.h.b16 %v6246
    %v6558 = vunpack.c.l.b16 %v6247
    %v6559 = vunpack.c.h.b16 %v6247
    %v6560 = vunpack.c.l.b16 %v6248
    %v6561 = vunpack.c.h.b16 %v6248
    %v6562 = vunpack.c.l.b16 %v6249
    %v6563 = vunpack.c.h.b16 %v6249
    %v6564 = vunpack.c.l.b16 %v6250
    %v6565 = vunpack.c.h.b16 %v6250
    %v6566 = vunpack.c.l.b16 %v6251
    %v6567 = vunpack.c.h.b16 %v6251
    %v6568 = vunpack.c.l.b16 %v6252
    %v6569 = vunpack.c.h.b16 %v6252
    %v6570 = vunpack.c.l.b16 %v6253
    %v6571 = vunpack.c.h.b16 %v6253
    %v6572 = vunpack.c.l.b16 %v6254
    %v6573 = vunpack.c.h.b16 %v6254
    %v6574 = vunpack.c.l.b16 %v6255
    %v6575 = vunpack.c.h.b16 %v6255
    %v6576 = vunpack.c.l.b16 %v6256
    %v6577 = vunpack.c.h.b16 %v6256
    %v6578 = vunpack.c.l.b16 %v6257
    %v6579 = vunpack.c.h.b16 %v6257
    %v6580 = vunpack.c.l.b16 %v6258
    %v6581 = vunpack.c.h.b16 %v6258
    %v6582 = vunpack.c.l.b16 %v6259
    %v6583 = vunpack.c.h.b16 %v6259
    %v6584 = vunpack.c.l.b16 %v6260
    %v6585 = vunpack.c.h.b16 %v6260
    %v6586 = vunpack.c.l.b16 %v6261
    %v6587 = vunpack.c.h.b16 %v6261
    %v6588 = vunpack.c.l.b16 %v6262
    %v6589 = vunpack.c.h.b16 %v6262
    %v6590 = vunpack.c.l.b16 %v6263
    %v6591 = vunpack.c.h.b16 %v6263
    %v6592 = vunpack.c.l.b16 %v6264
    %v6593 = vunpack.c.h.b16 %v6264
    %v6594 = vunpack.c.l.b16 %v6265
    %v6595 = vunpack.c.h.b16 %v6265
    %v6596 = vunpack.c.l.b16 %v6266
    %v6597 = vunpack.c.h.b16 %v6266
    %v6598 = vunpack.c.l.b16 %v6267
    %v6599 = vunpack.c.h.b16 %v6267
    %v6600 = vunpack.c.l.b16 %v6268
    %v6601 = vunpack.c.h.b16 %v6268
    %v6602 = vunpack.c.l.b16 %v6269
    %v6603 = vunpack.c.h.b16 %v6269
    %v6604 = vunpack.c.l.b16 %v6270
    %v6605 = vunpack.c.h.b16 %v6270
    %v6606 = vunpack.c.l.b16 %v6271
    %v6607 = vunpack.c.h.b16 %v6271
    %v6608 = vunpack.c.l.b16 %v6272
    %v6609 = vunpack.c.h.b16 %v6272
    %v6610 = vunpack.c.l.b16 %v6273
    %v6611 = vunpack.c.h.b16 %v6273
    %v6612 = vunpack.c.l.b16 %v6274
    %v6613 = vunpack.c.h.b16 %v6274
    %v6614 = vunpack.c.l.b16 %v6275
    %v6615 = vunpack.c.h.b16 %v6275
    %v6616 = vpack.c.b16 %v6556, %v6552
    %v6617 = vpack.c.b16 %v6557, %v6553
    %v6618 = vpack.c.b16 %v6558, %v6554
    %v6619 = vpack.c.b16 %v6559, %v6555
    %v6620 = vpack.c.b16 %v6564, %v6560
    %v6621 = vpack.c.b16 %v6565, %v6561
    %v6622 = vpack.c.b16 %v6566, %v6562
    %v6623 = vpack.c.b16 %v6567, %v6563
    %v6624 = vpack.c.b16 %v6572, %v6568
    %v6625 = vpack.c.b16 %v6573, %v6569
    %v6626 = vpack.c.b16 %v6574, %v6570
    %v6627 = vpack.c.b16 %v6575, %v6571
    %v6628 = vpack.c.b16 %v6580, %v6576
    %v6629 = vpack.c.b16 %v6581, %v6577
    %v6630 = vpack.c.b16 %v6582, %v6578
    %v6631 = vpack.c.b16 %v6583, %v6579
    %v6632 = vpack.c.b16 %v6588, %v6584
    %v6633 = vpack.c.b16 %v6589, %v6585
    %v6634 = vpack.c.b16 %v6590, %v6586
    %v6635 = vpack.c.b16 %v6591, %v6587
    %v6636 = vpack.c.b16 %v6596, %v6592
    %v6637 = vpack.c.b16 %v6597, %v6593
    %v6638 = vpack.c.b16 %v6598, %v6594
    %v6639 = vpack.c.b16 %v6599, %v6595
    %v6640 = vpack.c.b16 %v6604, %v6600
    %v6641 = vpack.c.b16 %v6605, %v6601
    %v6642 = vpack.c.b16 %v6606, %v6602
    %v6643 = vpack.c.b16 %v6607, %v6603
    %v6644 = vpack.c.b16 %v6612, %v6608
    %v6645 = vpack.c.b16 %v6613, %v6609
    %v6646 = vpack.c.b16 %v6614, %v6610
    %v6647 = vpack.c.b16 %v6615, %v6611
    %6680 = vmatpush.bf16.msra.mxu0 %v6644
    %6681 = vmatpush.bf16.msra.mxu0 %v6640
    %6682 = vmatpush.bf16.msra.mxu0 %v6636
    %6683 = vmatpush.bf16.msra.mxu0 %v6632
    %6684 = vmatpush.bf16.msra.mxu0 %v6628
    %6685 = vmatpush.bf16.msra.mxu0 %v6624
    %6686 = vmatpush.bf16.msra.mxu0 %v6620
    %6687 = vmatpush.bf16.msra.mxu0 %v6616
    %6688 = vmatmul.bf16.gmra.mxu0 %v6243
    %v6689 = vpop.f32.mrf.mxu0
    %v6690 = vadd.f32 %v6478, %v6689
    %v6691 = vpop.f32.mrf.mxu0
    %6692 = vdwg.mxu0
    %6693 = vmatpush.bf16.msra.mxu0 %v6645
    %6694 = vmatpush.bf16.msra.mxu0 %v6641
    %6695 = vmatpush.bf16.msra.mxu0 %v6637
    %6696 = vmatpush.bf16.msra.mxu0 %v6633
    %6697 = vmatpush.bf16.msra.mxu0 %v6629
    %6698 = vmatpush.bf16.msra.mxu0 %v6625
    %6699 = vmatpush.bf16.msra.mxu0 %v6621
    %6700 = vmatpush.bf16.msra.mxu0 %v6617
    %6701 = vmatmul.bf16.gmra.mxu0 %v6243
    %v6702 = vpop.f32.mrf.mxu0
    %v6703 = vadd.f32 %v6491, %v6702
    %v6704 = vpop.f32.mrf.mxu0
    %6705 = vdwg.mxu0
    %6706 = vmatpush.bf16.msra.mxu0 %v6646
    %6707 = vmatpush.bf16.msra.mxu0 %v6642
    %6708 = vmatpush.bf16.msra.mxu0 %v6638
    %6709 = vmatpush.bf16.msra.mxu0 %v6634
    %6710 = vmatpush.bf16.msra.mxu0 %v6630
    %6711 = vmatpush.bf16.msra.mxu0 %v6626
    %6712 = vmatpush.bf16.msra.mxu0 %v6622
    %6713 = vmatpush.bf16.msra.mxu0 %v6618
    %6714 = vmatmul.bf16.gmra.mxu0 %v6243
    %v6715 = vpop.f32.mrf.mxu0
    %v6716 = vadd.f32 %v6504, %v6715
    %v6717 = vpop.f32.mrf.mxu0
    %6718 = vdwg.mxu0
    %6719 = vmatpush.bf16.msra.mxu0 %v6647
    %6720 = vmatpush.bf16.msra.mxu0 %v6643
    %6721 = vmatpush.bf16.msra.mxu0 %v6639
    %6722 = vmatpush.bf16.msra.mxu0 %v6635
    %6723 = vmatpush.bf16.msra.mxu0 %v6631
    %6724 = vmatpush.bf16.msra.mxu0 %v6627
    %6725 = vmatpush.bf16.msra.mxu0 %v6623
    %6726 = vmatpush.bf16.msra.mxu0 %v6619
    %6727 = vmatmul.bf16.gmra.mxu0 %v6243
    %v6728 = vpop.f32.mrf.mxu0
    %v6729 = vadd.f32 %v6517, %v6728
    %v6730 = vpop.f32.mrf.mxu0
    %6731 = vdwg.mxu0
    %v6732 = vmul.f32 %v6690, 0.5
    %v6733 = vtanh.pop %v6732
    %v6734 = vmul.f32 %v6733, 0.5
    %v6735 = vadd.f32 %v6734, 0.5
    %v6736 = vmul.f32 %v6703, 0.5
    %v6737 = vtanh.pop %v6736
    %v6738 = vmul.f32 %v6737, 0.5
    %v6739 = vadd.f32 %v6738, 0.5
    %v6740 = vtanh.pop %v6716
    %v6741 = vmul.f32 %v6729, 0.5
    %v6742 = vtanh.pop %v6741
    %v6743 = vmul.f32 %v6742, 0.5
    %v6744 = vadd.f32 %v6743, 0.5
    %v6745 = vmul.f32 %v6739, %v6242
    %v6746 = vmul.f32 %v6735, %v6740
    %v6747 = vadd.f32 %v6745, %v6746
    %v6748 = vtanh.pop %v6747
    %v6749 = vmul.f32 %v6744, %v6748
    %6750 = vst [vmem:[%s739] sm:$0xff] %v6747
    %6751 = vst [vmem:[%s737] sm:$0xff] %v6749
    %s6752 = scalar_lea.vmem [#allocation11], 56
    %6753 = vst [vmem:[%s6752] sm:$0xff] %v6749
    // Predicated region
    $region38: #{tpu_custom_call.1} parent=1 // pred_check
      _
    $region39: #{tpu_custom_call.1} parent=1 // pred_check_branch
      %6755 = sbr.rel (0) target = $region41
    $region40: #{tpu_custom_call.1} parent=1 // pred_region
      %6757 = vsyncadd [#allocation5], 0
      %s6758 = sshll.u32 [#allocation11], 4
      %s6759 = int_to_ptr.vmem [resolvable:$true] %s6758
      %s6760 = sshll.u32 %s4, 4
      %s6761 = int_to_ptr.hbm [resolvable:$true] %s6760
      %6766 = dma.vmem_to_hbm [thread:$0]  %s6759, 1024, %s6761, [#allocation5], 128, 128, 8
    $region41: #{tpu_custom_call.1} parent=1 // pred_fallthru
      _
    // Predicated region
    $region42: #{tpu_custom_call.1} parent=1 // pred_check
      _
    $region43: #{tpu_custom_call.1} parent=1 // pred_check_branch
      %6768 = sbr.rel (0) target = $region45
    $region44: #{tpu_custom_call.1} parent=1 // pred_region
      %6770 = vsyncadd [#allocation13], 0
      %s6771 = sshll.u32 [#allocation12], 4
      %s6772 = int_to_ptr.vmem [resolvable:$true] %s6771
      %s6773 = sshll.u32 %s5, 4
      %s6774 = int_to_ptr.hbm [resolvable:$true] %s6773
      %6779 = dma.vmem_to_hbm [thread:$0]  %s6772, 256, %s6774, [#allocation13], 128, 128, 8
    $region45: #{tpu_custom_call.1} parent=1 // pred_fallthru
      _
    // Predicated region
    $region46: #{tpu_custom_call.1} parent=1 // pred_check
      _
    $region47: #{tpu_custom_call.1} parent=1 // pred_check_branch
      %6781 = sbr.rel (0) target = $region49
    $region48: #{tpu_custom_call.1} parent=1 // pred_region
      %6783 = vsyncadd [#allocation13], 0
      %s6784 = sshll.u32 [#allocation14], 4
      %s6785 = int_to_ptr.vmem [resolvable:$true] %s6784
      %s6786 = sshll.u32 %s6, 4
      %s6787 = int_to_ptr.hbm [resolvable:$true] %s6786
      %6792 = dma.vmem_to_hbm [thread:$0]  %s6785, 256, %s6787, [#allocation13], 128, 128, 8
    $region49: #{tpu_custom_call.1} parent=1 // pred_fallthru
      _
    // Predicated region
    $region50: #{tpu_custom_call.1} parent=1 // pred_check
      _
    $region51: #{tpu_custom_call.1} parent=1 // pred_check_branch
      %6794 = sbr.rel (0) target = $region53
    $region52: #{tpu_custom_call.1} parent=1 // pred_region
      %6796 = dma.done [#allocation5], 1024
    $region53: #{tpu_custom_call.1} parent=1 // pred_fallthru
      _
    // Predicated region
    $region54: #{tpu_custom_call.1} parent=1 // pred_check
      _
    $region55: #{tpu_custom_call.1} parent=1 // pred_check_branch
      %6798 = sbr.rel (0) target = $region57
    $region56: #{tpu_custom_call.1} parent=1 // pred_region
      %6800 = dma.done [#allocation13], 256
    $region57: #{tpu_custom_call.1} parent=1 // pred_fallthru
      _
    // Predicated region
    $region58: #{tpu_custom_call.1} parent=1 // pred_check
      _
    $region59: #{tpu_custom_call.1} parent=1 // pred_check_branch
      %6802 = sbr.rel (0) target = $region61
    $region60: #{tpu_custom_call.1} parent=1 // pred_region
      %6804 = dma.done [#allocation13], 256
    $region61: #{tpu_custom_call.1} parent=1 // pred_fallthru
      _
    %6805 = vsyncpa [#allocation4], 1
    %6806 = vsyncpa [#allocation7], 1
    %6807 = vsyncpa [#allocation10], 1
    %6808 = vsyncpa [#allocation5], 1
    %6809 = vsyncpa [#allocation13], 1

</llo_original>
